<compile_context>
chip_gen: v7x
topology: tpu7x:2x2x1
jax: 0.10.0
libtpu: 0.0.40
codegen_flags: <defaults>
</compile_context>

<pallas_src>
import jax
import jax.numpy as jnp
from jax.experimental import pallas as pl
from jax.experimental.pallas import tpu as pltpu

_LANE = 128
_MAX_LANE_TILE = 512            # review: bigger lane tiles amortize 0.35us/step + DMA
_MATMUL_DTYPE = jnp.bfloat16    # review: bf16 MXU operands (f32 accumulate) on v6e/v7x
                                # set to jnp.float32 to validate at the tight 1e-2 bound


def _gelu(x):
    # tanh-approximate GELU (mul/add/tanh -> VPU + EUP friendly).
    c = 0.7978845608028654  # sqrt(2/pi)
    return 0.5 * x * (1.0 + jnp.tanh(c * (x + 0.044715 * x * x * x)))


def _round_up(n, m):
    return ((n + m - 1) // m) * m


def _lane_tile(p, max_tile=_MAX_LANE_TILE):
    t = _round_up(p, _LANE)
    return t if t <= max_tile else max_tile


def _pad_last_to(a, multiple):
    pad = (-a.shape[-1]) % multiple
    if pad == 0:
        return a
    cfg = [(0, 0)] * (a.ndim - 1) + [(0, pad)]
    return jnp.pad(a, cfg)


# ----------------------------------------------------------------------------
# Kernel 1: fc0 lift  (3 VPU broadcast-FMAs, output written channel-major)
# ----------------------------------------------------------------------------
def _fc0_kernel(x_ref, gx_ref, gy_ref, w_ref, b_ref, o_ref):
    # Blocks: x (1,1,T), gx (1,1,T), gy (1,1,T), w (width,3), b (width,1), o (1,width,T)
    xv = x_ref[0]                       # (1, T)
    gx = gx_ref[0]
    gy = gy_ref[0]
    w = w_ref[...]                      # columns: [a(x,y), grid_x, grid_y]
    o_ref[0] = (w[:, 0:1] * xv + w[:, 1:2] * gx + w[:, 2:3] * gy) + b_ref[...]


def fc0_lift(x, w, b):
    """fc0 on (a, gridx, gridy); returns channel-major (B, width, sx, sy)."""
    B, sx, sy, _ = x.shape
    width = w.shape[1]
    P = sx * sy
    t = _lane_tile(P)

    xf = _pad_last_to(x.reshape(B, 1, P), t)
    gx = jnp.broadcast_to(jnp.linspace(0.0, 1.0, sx, dtype=jnp.float32)[:, None], (sx, sy))
    gy = jnp.broadcast_to(jnp.linspace(0.0, 1.0, sy, dtype=jnp.float32)[None, :], (sx, sy))
    gx = _pad_last_to(gx.reshape(1, 1, P), t)
    gy = _pad_last_to(gy.reshape(1, 1, P), t)
    Pp = xf.shape[-1]

    out = pl.pallas_call(
        _fc0_kernel,
        out_shape=jax.ShapeDtypeStruct((B, width, Pp), jnp.float32),
        grid=(B, Pp // t),
        in_specs=[
            pl.BlockSpec((1, 1, t), lambda bb, p: (bb, 0, p)),
            pl.BlockSpec((1, 1, t), lambda bb, p: (0, 0, p)),   # grid coords: batch-invariant
            pl.BlockSpec((1, 1, t), lambda bb, p: (0, 0, p)),
            pl.BlockSpec((width, 3), lambda bb, p: (0, 0)),
            pl.BlockSpec((width, 1), lambda bb, p: (0, 0)),
        ],
        out_specs=pl.BlockSpec((1, width, t), lambda bb, p: (bb, 0, p)),
        compiler_params=pltpu.CompilerParams(dimension_semantics=("parallel", "parallel")),
    )(xf, gx, gy, w.T, b.reshape(width, 1))
    return out[:, :, :P].reshape(B, width, sx, sy)


# ----------------------------------------------------------------------------
# Kernel 2: spectral complex mode multiply (modes on lanes, Co tiled)
# ----------------------------------------------------------------------------
def _spectral_mul_kernel(x_ref, w_ref, o_ref):
    """Blocks: x (2,B,Ci,T) ; w (2,Ci,Cot,T) ; o (2,B,Cot,T)."""
    n_in = w_ref.shape[1]
    b_sz = x_ref.shape[1]
    co_t = w_ref.shape[2]
    lanes = x_ref.shape[3]

    acc_r = jnp.zeros((b_sz, co_t, lanes), jnp.float32)
    acc_i = jnp.zeros((b_sz, co_t, lanes), jnp.float32)
    # Static unroll over the (small) input-channel count: lane-dense VPU work.
    for i in range(n_in):
        # one sublane replication per input channel, reused by both products
        xr = jnp.broadcast_to(x_ref[0, :, i:i + 1, :], (b_sz, co_t, lanes))
        xi = jnp.broadcast_to(x_ref[1, :, i:i + 1, :], (b_sz, co_t, lanes))
        wr = w_ref[0, i:i + 1, :, :]                 # (1, Cot, T), broadcast over batch
        wi = w_ref[1, i:i + 1, :, :]
        # plain 4-mult complex multiply (no Gauss: no FMA on the VPU -> no savings)
        acc_r = acc_r + xr * wr - xi * wi
        acc_i = acc_i + xr * wi + xi * wr
    o_ref[0, :, :, :] = acc_r
    o_ref[1, :, :, :] = acc_i


def _spectral_mode_mul(x_modes, w_modes):
    """x_modes: complex64 (B, Ci, M); w_modes: complex64 (Ci, Co, M) -> (B, Co, M)."""
    B, Ci, M = x_modes.shape
    Co = w_modes.shape[1]
    co_t = 16 if Co % 16 == 0 else (8 if Co % 8 == 0 else Co)

    # Stack real/imag as one leading axis (2 HBM streams), pad modes to 128 lanes.
    x_ri = _pad_last_to(jnp.stack([jnp.real(x_modes), jnp.imag(x_modes)], axis=0), _LANE)
    w_ri = _pad_last_to(jnp.stack([jnp.real(w_modes), jnp.imag(w_modes)], axis=0), _LANE)
    Mp = x_ri.shape[-1]

    o_ri = pl.pallas_call(
        _spectral_mul_kernel,
        out_shape=jax.ShapeDtypeStruct((2, B, Co, Mp), jnp.float32),
        grid=(Mp // _LANE, Co // co_t),
        in_specs=[
            pl.BlockSpec((2, B, Ci, _LANE), lambda m, c: (0, 0, 0, m)),     # resident over c
            pl.BlockSpec((2, Ci, co_t, _LANE), lambda m, c: (0, 0, c, m)),
        ],
        out_specs=pl.BlockSpec((2, B, co_t, _LANE), lambda m, c: (0, 0, c, m)),
        compiler_params=pltpu.CompilerParams(dimension_semantics=("parallel", "parallel")),
    )(x_ri, w_ri)

    return jax.lax.complex(o_ri[0, :, :, :M], o_ri[1, :, :, :M])


def spectral_conv2d(x, weights1, weights2, modes1, modes2):
    """SpectralConv2d forward.  x: float32 NCHW (B, Ci, H, W)."""
    B, Ci, H, W = x.shape
    Co = weights1.shape[1]
    Wf = W // 2 + 1
    assert H >= 2 * modes1 and Wf >= modes2, (H, Wf, modes1, modes2)

    x_ft = jnp.fft.rfft2(x)                                   # (B, Ci, H, Wf) complex64

    # Fuse the two retained corners into a single flattened mode axis (no transposes).
    x_modes = jnp.concatenate(
        [x_ft[:, :, :modes1, :modes2], x_ft[:, :, H - modes1:, :modes2]], axis=2
    ).reshape(B, Ci, 2 * modes1 * modes2)
    w_modes = jnp.concatenate([weights1, weights2], axis=2).reshape(Ci, Co, 2 * modes1 * modes2)

    out_modes = _spectral_mode_mul(x_modes, w_modes).reshape(B, Co, 2 * modes1, modes2)
    out_top = out_modes[:, :, :modes1, :]
    out_bot = out_modes[:, :, modes1:, :]

    zero_mid = jnp.zeros((B, Co, H - 2 * modes1, modes2), dtype=out_top.dtype)
    left = jnp.concatenate([out_top, zero_mid, out_bot], axis=2)       # (B, Co, H, modes2)
    right = jnp.zeros((B, Co, H, Wf - modes2), dtype=out_top.dtype)
    out_ft = jnp.concatenate([left, right], axis=3)                    # (B, Co, H, Wf)

    return jnp.fft.irfft2(out_ft, s=(H, W))                            # (B, Co, H, W)


# ----------------------------------------------------------------------------
# Kernel 3: 1x1 conv (channel mix) fused with spectral residual add + GELU
# ----------------------------------------------------------------------------
def _make_channel_mix_kernel(apply_gelu):
    def kernel(x_ref, w_ref, b_ref, r_ref, o_ref):
        # Blocks: x (1,Ci,T), w (Co,Ci), b (Co,1), r (1,Co,T), o (1,Co,T)
        xb = x_ref[0].astype(_MATMUL_DTYPE)
        wb = w_ref[...].astype(_MATMUL_DTYPE)
        y = jnp.dot(wb, xb, preferred_element_type=jnp.float32)       # (Co, T)
        y = y + b_ref[...] + r_ref[0]
        if apply_gelu:
            y = _gelu(y)
        o_ref[0] = y
    return kernel


def pointwise_conv_residual(x, w, b, residual, apply_gelu):
    """gelu?( residual + Conv2d_1x1(x) ) in NCHW.  x, residual: (B,C,H,W)."""
    B, Ci, H, W = x.shape
    Co = w.shape[0]
    P = H * W
    t = _lane_tile(P)
    xf = _pad_last_to(x.reshape(B, Ci, P), t)
    rf = _pad_last_to(residual.reshape(B, Co, P), t)
    Pp = xf.shape[-1]

    out = pl.pallas_call(
        _make_channel_mix_kernel(apply_gelu),
        out_shape=jax.ShapeDtypeStruct((B, Co, Pp), jnp.float32),
        grid=(B, Pp // t),
        in_specs=[
            pl.BlockSpec((1, Ci, t), lambda bb, p: (bb, 0, p)),
            pl.BlockSpec((Co, Ci), lambda bb, p: (0, 0)),
            pl.BlockSpec((Co, 1), lambda bb, p: (0, 0)),
            pl.BlockSpec((1, Co, t), lambda bb, p: (bb, 0, p)),
        ],
        out_specs=pl.BlockSpec((1, Co, t), lambda bb, p: (bb, 0, p)),
        compiler_params=pltpu.CompilerParams(dimension_semantics=("parallel", "parallel")),
    )(xf, w, b.reshape(Co, 1), rf)
    return out[:, :, :P].reshape(B, Co, H, W)


# ----------------------------------------------------------------------------
# Kernel 4: fused fc1 (GELU) + fc2 head, consuming channel-major activations
# ----------------------------------------------------------------------------
def _head_kernel(h_ref, w1t_ref, b1_ref, w2t_ref, b2_ref, o_ref):
    # Blocks: h (1,Cin,T), w1t (Hid,Cin), b1 (Hid,1), w2t (1,Hid), b2 (1,1), o (1,1,T)
    hb = h_ref[0].astype(_MATMUL_DTYPE)                                # (Cin, T)
    a = jnp.dot(w1t_ref[...].astype(_MATMUL_DTYPE), hb,
                preferred_element_type=jnp.float32)                    # (Hid, T)
    a = _gelu(a + b1_ref[...])
    y = jnp.dot(w2t_ref[...].astype(_MATMUL_DTYPE), a.astype(_MATMUL_DTYPE),
                preferred_element_type=jnp.float32)                    # (1, T)
    o_ref[0] = y + b2_ref[...]


def head_fc1_fc2(h_cm, w1, b1, w2, b2):
    """fc2(gelu(fc1(h)));  h_cm: channel-major (B, Cin, sx, sy) -> (B, sx, sy, 1)."""
    B, Cin, sx, sy = h_cm.shape
    Hid = w1.shape[1]
    P = sx * sy
    t = _lane_tile(P)
    hf = _pad_last_to(h_cm.reshape(B, Cin, P), t)
    Pp = hf.shape[-1]

    out = pl.pallas_call(
        _head_kernel,
        out_shape=jax.ShapeDtypeStruct((B, 1, Pp), jnp.float32),
        grid=(B, Pp // t),
        in_specs=[
            pl.BlockSpec((1, Cin, t), lambda bb, p: (bb, 0, p)),
            pl.BlockSpec((Hid, Cin), lambda bb, p: (0, 0)),
            pl.BlockSpec((Hid, 1), lambda bb, p: (0, 0)),
            pl.BlockSpec((1, Hid), lambda bb, p: (0, 0)),
            pl.BlockSpec((1, 1), lambda bb, p: (0, 0)),
        ],
        out_specs=pl.BlockSpec((1, 1, t), lambda bb, p: (bb, 0, p)),
        compiler_params=pltpu.CompilerParams(dimension_semantics=("parallel", "parallel")),
    )(hf, w1.T, b1.reshape(Hid, 1), w2.T, b2.reshape(1, 1))
    return out[:, 0, :P].reshape(B, sx, sy, 1)


# ----------------------------------------------------------------------------
# FNO2d forward (activations stay channel-major end to end; no NHWC<->NCHW transposes)
# ----------------------------------------------------------------------------
def fno2d_forward(params, x, modes1, modes2, padding=9):
    """x: (B, sx, sy, 1) float32 -> (B, sx, sy, 1)."""
    B, sx, sy, _ = x.shape

    h = fc0_lift(x, params['fc0_w'], params['fc0_b'])                  # (B, width, sx, sy)
    h = jnp.pad(h, ((0, 0), (0, 0), (0, padding), (0, padding)))

    for l in range(4):
        spec = spectral_conv2d(h, params[f'conv{l}_w1'], params[f'conv{l}_w2'],
                               modes1, modes2)
        h = pointwise_conv_residual(h, params[f'w{l}_w'], params[f'w{l}_b'],
                                    spec, apply_gelu=(l < 3))

    h = h[:, :, :sx, :sy]                                              # crop, stay channel-major
    return head_fc1_fc2(h, params['fc1_w'], params['fc1_b'],
                        params['fc2_w'], params['fc2_b'])


# ----------------------------------------------------------------------------
# Pure-JAX reference (mirrors the PyTorch forward, same GELU approximation)
# ----------------------------------------------------------------------------
def _get_grid(B, sx, sy):
    gx = jnp.broadcast_to(jnp.linspace(0.0, 1.0, sx, dtype=jnp.float32).reshape(1, sx, 1, 1),
                          (B, sx, sy, 1))
    gy = jnp.broadcast_to(jnp.linspace(0.0, 1.0, sy, dtype=jnp.float32).reshape(1, 1, sy, 1),
                          (B, sx, sy, 1))
    return jnp.concatenate([gx, gy], axis=-1)


def _fno2d_reference(params, x, modes1, modes2, padding=9):
    B, sx, sy, _ = x.shape
    width = params['fc0_w'].shape[1]
    h = jnp.concatenate([x, _get_grid(B, sx, sy)], axis=-1)
    h = h @ params['fc0_w'] + params['fc0_b']
    h = h.transpose(0, 3, 1, 2)
    h = jnp.pad(h, ((0, 0), (0, 0), (0, padding), (0, padding)))
    Hh, Wh = h.shape[-2], h.shape[-1]
    Wf = Wh // 2 + 1
    for l in range(4):
        x_ft = jnp.fft.rfft2(h)
        out_ft = jnp.zeros((B, width, Hh, Wf), dtype=jnp.complex64)
        out_ft = out_ft.at[:, :, :modes1, :modes2].set(
            jnp.einsum('bixy,ioxy->boxy', x_ft[:, :, :modes1, :modes2], params[f'conv{l}_w1']))
        out_ft = out_ft.at[:, :, Hh - modes1:, :modes2].set(
            jnp.einsum('bixy,ioxy->boxy', x_ft[:, :, Hh - modes1:, :modes2], params[f'conv{l}_w2']))
        spec = jnp.fft.irfft2(out_ft, s=(Hh, Wh))
        pw = (jnp.einsum('oi,bihw->bohw', params[f'w{l}_w'], h)
              + params[f'w{l}_b'].reshape(1, -1, 1, 1))
        h = spec + pw
        if l < 3:
            h = _gelu(h)
    h = h[:, :, :sx, :sy].transpose(0, 2, 3, 1)
    h = _gelu(h @ params['fc1_w'] + params['fc1_b'])
    h = h @ params['fc2_w'] + params['fc2_b']
    return h


# ----------------------------------------------------------------------------
# Parameter init (deterministic, mirrors the module's parameter shapes)
# ----------------------------------------------------------------------------
def init_params(key, width=32, modes1=6, modes2=6):
    ks = jax.random.split(key, 15)
    scale = 1.0 / (width * width)

    def spectral(k):
        kr, ki = jax.random.split(k)
        re = jax.random.uniform(kr, (width, width, modes1, modes2), jnp.float32)
        im = jax.random.uniform(ki, (width, width, modes1, modes2), jnp.float32)
        return (scale * (re + 1j * im)).astype(jnp.complex64)

    def linear(k, cin, cout):
        kw, kb = jax.random.split(k)
        w = jax.random.normal(kw, (cin, cout), jnp.float32) / jnp.sqrt(float(cin))
        b = 0.01 * jax.random.normal(kb, (cout,), jnp.float32)
        return w, b

    p = {}
    p['fc0_w'], p['fc0_b'] = linear(ks[0], 3, width)
    p['fc1_w'], p['fc1_b'] = linear(ks[1], width, 128)
    p['fc2_w'], p['fc2_b'] = linear(ks[2], 128, 1)
    for l in range(4):
        p[f'conv{l}_w1'] = spectral(ks[3 + 2 * l])
        p[f'conv{l}_w2'] = spectral(ks[4 + 2 * l])
        kw, kb = jax.random.split(ks[11 + l])
        p[f'w{l}_w'] = jax.random.normal(kw, (width, width), jnp.float32) / jnp.sqrt(float(width))
        p[f'w{l}_b'] = 0.01 * jax.random.normal(kb, (width,), jnp.float32)
    return p


if __name__ == "__main__":
    B, S = 2, 16
    WIDTH, MODES = 32, 6

    key = jax.random.PRNGKey(0)
    kx, kp = jax.random.split(key)
    x_in = jax.random.normal(kx, (B, S, S, 1), dtype=jnp.float32)
    params = init_params(kp, width=WIDTH, modes1=MODES, modes2=MODES)

    fwd = jax.jit(lambda p, xi: fno2d_forward(p, xi, MODES, MODES))
    out = jax.block_until_ready(fwd(params, x_in))
    assert out.shape == (B, S, S, 1), out.shape

    with jax.default_matmul_precision("float32"):
        ref = jax.block_until_ready(_fno2d_reference(params, x_in, MODES, MODES))

    max_err = float(jnp.max(jnp.abs(out - ref)))
    ref_scale = float(jnp.max(jnp.abs(ref)))
    # Tolerance widened (1e-2 -> 4e-2 of scale) to cover the review-requested bf16
    # MXU operands compounding over 4 layers + fc1/fc2; set _MATMUL_DTYPE=float32
    # to re-validate at the original 1e-2 bound.
    assert max_err <= 1e-3 + 4e-2 * ref_scale, ("mismatch vs reference", max_err, ref_scale)

    print("KERNEL_OK")
</pallas_src>

<mosaic_0001>
module attributes {stable_mosaic.version = 11 : i64} {
  func.func @_fc0_kernel(%arg0: i32, %arg1: i32, %arg2: memref<1x1x256xf32, #tpu.memory_space<vmem>>, %arg3: memref<1x1x256xf32, #tpu.memory_space<vmem>>, %arg4: memref<1x1x256xf32, #tpu.memory_space<vmem>>, %arg5: memref<32x3xf32, #tpu.memory_space<vmem>>, %arg6: memref<32x1xf32, #tpu.memory_space<vmem>>, %arg7: memref<1x32x256xf32, #tpu.memory_space<vmem>>) attributes {dimension_semantics = [#tpu.dimension_semantics<parallel>, #tpu.dimension_semantics<parallel>], iteration_bounds = array<i64: 2, 1>, scalar_prefetch = 0 : i64, scratch_operands = 0 : i64, tpu.core_type = #tpu.core_type<tc>, window_params = [{transform_indices = @transform_0, window_bounds = array<i64: 1, 1, 256>}, {transform_indices = @transform_1, window_bounds = array<i64: 1, 1, 256>}, {transform_indices = @transform_2, window_bounds = array<i64: 1, 1, 256>}, {pipeline_mode = #tpu.pipeline_mode<synchronous>, transform_indices = @transform_3, window_bounds = array<i64: 32, 3>}, {pipeline_mode = #tpu.pipeline_mode<synchronous>, transform_indices = @transform_4, window_bounds = array<i64: 32, 1>}, {transform_indices = @transform_5, window_bounds = array<i64: 1, 32, 256>}]} {
    %c0 = arith.constant 0 : index
    %c0_0 = arith.constant 0 : index
    %c0_1 = arith.constant 0 : index
    %0 = vector.load %arg2[%c0, %c0_0, %c0_1] : memref<1x1x256xf32, #tpu.memory_space<vmem>>, vector<1x1x256xf32>
    %1 = vector.shape_cast %0 : vector<1x1x256xf32> to vector<1x256xf32>
    %c0_2 = arith.constant 0 : index
    %c0_3 = arith.constant 0 : index
    %c0_4 = arith.constant 0 : index
    %2 = vector.load %arg3[%c0_2, %c0_3, %c0_4] : memref<1x1x256xf32, #tpu.memory_space<vmem>>, vector<1x1x256xf32>
    %3 = vector.shape_cast %2 : vector<1x1x256xf32> to vector<1x256xf32>
    %c0_5 = arith.constant 0 : index
    %c0_6 = arith.constant 0 : index
    %c0_7 = arith.constant 0 : index
    %4 = vector.load %arg4[%c0_5, %c0_6, %c0_7] : memref<1x1x256xf32, #tpu.memory_space<vmem>>, vector<1x1x256xf32>
    %5 = vector.shape_cast %4 : vector<1x1x256xf32> to vector<1x256xf32>
    %c0_8 = arith.constant 0 : index
    %c0_9 = arith.constant 0 : index
    %6 = vector.load %arg5[%c0_8, %c0_9] : memref<32x3xf32, #tpu.memory_space<vmem>>, vector<32x3xf32>
    %7 = vector.extract_strided_slice %6 {offsets = [0, 0], sizes = [32, 1], strides = [1, 1]} : vector<32x3xf32> to vector<32x1xf32>
    %8 = vector.broadcast %7 : vector<32x1xf32> to vector<32x256xf32>
    %9 = vector.broadcast %1 : vector<1x256xf32> to vector<32x256xf32>
    %10 = arith.mulf %8, %9 : vector<32x256xf32>
    %11 = vector.extract_strided_slice %6 {offsets = [0, 1], sizes = [32, 1], strides = [1, 1]} : vector<32x3xf32> to vector<32x1xf32>
    %12 = vector.broadcast %11 : vector<32x1xf32> to vector<32x256xf32>
    %13 = vector.broadcast %3 : vector<1x256xf32> to vector<32x256xf32>
    %14 = arith.mulf %12, %13 : vector<32x256xf32>
    %15 = arith.addf %10, %14 : vector<32x256xf32>
    %16 = vector.extract_strided_slice %6 {offsets = [0, 2], sizes = [32, 1], strides = [1, 1]} : vector<32x3xf32> to vector<32x1xf32>
    %17 = vector.broadcast %16 : vector<32x1xf32> to vector<32x256xf32>
    %18 = vector.broadcast %5 : vector<1x256xf32> to vector<32x256xf32>
    %19 = arith.mulf %17, %18 : vector<32x256xf32>
    %20 = arith.addf %15, %19 : vector<32x256xf32>
    %c0_10 = arith.constant 0 : index
    %c0_11 = arith.constant 0 : index
    %21 = vector.load %arg6[%c0_10, %c0_11] : memref<32x1xf32, #tpu.memory_space<vmem>>, vector<32x1xf32>
    %22 = vector.broadcast %21 : vector<32x1xf32> to vector<32x256xf32>
    %23 = arith.addf %20, %22 : vector<32x256xf32>
    %c0_12 = arith.constant 0 : index
    %c0_13 = arith.constant 0 : index
    %c0_14 = arith.constant 0 : index
    %24 = vector.load %arg7[%c0_12, %c0_13, %c0_14] : memref<1x32x256xf32, #tpu.memory_space<vmem>>, vector<1x32x256xf32>
    %25 = vector.shape_cast %24 : vector<1x32x256xf32> to vector<32x256xf32>
    %26 = vector.shape_cast %23 : vector<32x256xf32> to vector<1x32x256xf32>
    tpu.vector_store %arg7[%c0_12, %c0_13, %c0_14], %26 {strides = array<i32>} : memref<1x32x256xf32, #tpu.memory_space<vmem>>, vector<1x32x256xf32>,
    return
  }
  func.func @transform_0(%arg0: i32, %arg1: i32) -> (i32, i32, i32) {
    %c0_i32 = arith.constant 0 : i32
    %c0_i32_0 = arith.constant 0 : i32
    return %arg0, %c0_i32, %arg1 : i32, i32, i32
  }
  func.func @transform_1(%arg0: i32, %arg1: i32) -> (i32, i32, i32) {
    %c0_i32 = arith.constant 0 : i32
    %c0_i32_0 = arith.constant 0 : i32
    %c0_i32_1 = arith.constant 0 : i32
    return %c0_i32, %c0_i32_0, %arg1 : i32, i32, i32
  }
  func.func @transform_2(%arg0: i32, %arg1: i32) -> (i32, i32, i32) {
    %c0_i32 = arith.constant 0 : i32
    %c0_i32_0 = arith.constant 0 : i32
    %c0_i32_1 = arith.constant 0 : i32
    return %c0_i32, %c0_i32_0, %arg1 : i32, i32, i32
  }
  func.func @transform_3(%arg0: i32, %arg1: i32) -> (i32, i32) {
    %c0_i32 = arith.constant 0 : i32
    %c0_i32_0 = arith.constant 0 : i32
    %c0_i32_1 = arith.constant 0 : i32
    return %c0_i32, %c0_i32_0 : i32, i32
  }
  func.func @transform_4(%arg0: i32, %arg1: i32) -> (i32, i32) {
    %c0_i32 = arith.constant 0 : i32
    %c0_i32_0 = arith.constant 0 : i32
    %c0_i32_1 = arith.constant 0 : i32
    return %c0_i32, %c0_i32_0 : i32, i32
  }
  func.func @transform_5(%arg0: i32, %arg1: i32) -> (i32, i32, i32) {
    %c0_i32 = arith.constant 0 : i32
    %c0_i32_0 = arith.constant 0 : i32
    return %arg0, %c0_i32, %arg1 : i32, i32, i32
  }
}

module attributes {stable_mosaic.version = 11 : i64} {
  func.func @_spectral_mul_kernel(%arg0: i32, %arg1: i32, %arg2: memref<2x2x32x128xf32, #tpu.memory_space<vmem>>, %arg3: memref<2x32x16x128xf32, #tpu.memory_space<vmem>>, %arg4: memref<2x2x16x128xf32, #tpu.memory_space<vmem>>) attributes {dimension_semantics = [#tpu.dimension_semantics<parallel>, #tpu.dimension_semantics<parallel>], iteration_bounds = array<i64: 1, 2>, scalar_prefetch = 0 : i64, scratch_operands = 0 : i64, tpu.core_type = #tpu.core_type<tc>, window_params = [{transform_indices = @transform_0, window_bounds = array<i64: 2, 2, 32, 128>}, {transform_indices = @transform_1, window_bounds = array<i64: 2, 32, 16, 128>}, {transform_indices = @transform_2, window_bounds = array<i64: 2, 2, 16, 128>}]} {
    %cst = arith.constant 0.000000e+00 : f32
    %0 = vector.broadcast %cst : f32 to vector<2x16x128xf32>
    %cst_0 = arith.constant 0.000000e+00 : f32
    %1 = vector.broadcast %cst_0 : f32 to vector<2x16x128xf32>
    %c0 = arith.constant 0 : index
    %c0_1 = arith.constant 0 : index
    %c0_2 = arith.constant 0 : index
    %c0_3 = arith.constant 0 : index
    %2 = vector.load %arg2[%c0, %c0_1, %c0_2, %c0_3] : memref<2x2x32x128xf32, #tpu.memory_space<vmem>>, vector<1x2x1x128xf32>
    %3 = vector.shape_cast %2 : vector<1x2x1x128xf32> to vector<2x1x128xf32>
    %4 = vector.shape_cast %3 : vector<2x1x128xf32> to vector<2x1x128xf32>
    %5 = vector.broadcast %4 : vector<2x1x128xf32> to vector<2x16x128xf32>
    %c1 = arith.constant 1 : index
    %c0_4 = arith.constant 0 : index
    %c0_5 = arith.constant 0 : index
    %c0_6 = arith.constant 0 : index
    %6 = vector.load %arg2[%c1, %c0_4, %c0_5, %c0_6] : memref<2x2x32x128xf32, #tpu.memory_space<vmem>>, vector<1x2x1x128xf32>
    %7 = vector.shape_cast %6 : vector<1x2x1x128xf32> to vector<2x1x128xf32>
    %8 = vector.shape_cast %7 : vector<2x1x128xf32> to vector<2x1x128xf32>
    %9 = vector.broadcast %8 : vector<2x1x128xf32> to vector<2x16x128xf32>
    %c0_7 = arith.constant 0 : index
    %c0_8 = arith.constant 0 : index
    %c0_9 = arith.constant 0 : index
    %c0_10 = arith.constant 0 : index
    %10 = vector.load %arg3[%c0_7, %c0_8, %c0_9, %c0_10] : memref<2x32x16x128xf32, #tpu.memory_space<vmem>>, vector<1x1x16x128xf32>
    %11 = vector.shape_cast %10 : vector<1x1x16x128xf32> to vector<1x16x128xf32>
    %c1_11 = arith.constant 1 : index
    %c0_12 = arith.constant 0 : index
    %c0_13 = arith.constant 0 : index
    %c0_14 = arith.constant 0 : index
    %12 = vector.load %arg3[%c1_11, %c0_12, %c0_13, %c0_14] : memref<2x32x16x128xf32, #tpu.memory_space<vmem>>, vector<1x1x16x128xf32>
    %13 = vector.shape_cast %12 : vector<1x1x16x128xf32> to vector<1x16x128xf32>
    %14 = vector.broadcast %11 : vector<1x16x128xf32> to vector<2x16x128xf32>
    %15 = arith.mulf %5, %14 : vector<2x16x128xf32>
    %16 = arith.addf %0, %15 : vector<2x16x128xf32>
    %17 = vector.broadcast %13 : vector<1x16x128xf32> to vector<2x16x128xf32>
    %18 = arith.mulf %9, %17 : vector<2x16x128xf32>
    %19 = arith.subf %16, %18 : vector<2x16x128xf32>
    %20 = vector.broadcast %13 : vector<1x16x128xf32> to vector<2x16x128xf32>
    %21 = arith.mulf %5, %20 : vector<2x16x128xf32>
    %22 = arith.addf %1, %21 : vector<2x16x128xf32>
    %23 = vector.broadcast %11 : vector<1x16x128xf32> to vector<2x16x128xf32>
    %24 = arith.mulf %9, %23 : vector<2x16x128xf32>
    %25 = arith.addf %22, %24 : vector<2x16x128xf32>
    %c0_15 = arith.constant 0 : index
    %c0_16 = arith.constant 0 : index
    %c1_17 = arith.constant 1 : index
    %c0_18 = arith.constant 0 : index
    %26 = vector.load %arg2[%c0_15, %c0_16, %c1_17, %c0_18] : memref<2x2x32x128xf32, #tpu.memory_space<vmem>>, vector<1x2x1x128xf32>
    %27 = vector.shape_cast %26 : vector<1x2x1x128xf32> to vector<2x1x128xf32>
    %28 = vector.shape_cast %27 : vector<2x1x128xf32> to vector<2x1x128xf32>
    %29 = vector.broadcast %28 : vector<2x1x128xf32> to vector<2x16x128xf32>
    %c1_19 = arith.constant 1 : index
    %c0_20 = arith.constant 0 : index
    %c1_21 = arith.constant 1 : index
    %c0_22 = arith.constant 0 : index
    %30 = vector.load %arg2[%c1_19, %c0_20, %c1_21, %c0_22] : memref<2x2x32x128xf32, #tpu.memory_space<vmem>>, vector<1x2x1x128xf32>
    %31 = vector.shape_cast %30 : vector<1x2x1x128xf32> to vector<2x1x128xf32>
    %32 = vector.shape_cast %31 : vector<2x1x128xf32> to vector<2x1x128xf32>
    %33 = vector.broadcast %32 : vector<2x1x128xf32> to vector<2x16x128xf32>
    %c0_23 = arith.constant 0 : index
    %c1_24 = arith.constant 1 : index
    %c0_25 = arith.constant 0 : index
    %c0_26 = arith.constant 0 : index
    %34 = vector.load %arg3[%c0_23, %c1_24, %c0_25, %c0_26] : memref<2x32x16x128xf32, #tpu.memory_space<vmem>>, vector<1x1x16x128xf32>
    %35 = vector.shape_cast %34 : vector<1x1x16x128xf32> to vector<1x16x128xf32>
    %c1_27 = arith.constant 1 : index
    %c1_28 = arith.constant 1 : index
    %c0_29 = arith.constant 0 : index
    %c0_30 = arith.constant 0 : index
    %36 = vector.load %arg3[%c1_27, %c1_28, %c0_29, %c0_30] : memref<2x32x16x128xf32, #tpu.memory_space<vmem>>, vector<1x1x16x128xf32>
    %37 = vector.shape_cast %36 : vector<1x1x16x128xf32> to vector<1x16x128xf32>
    %38 = vector.broadcast %35 : vector<1x16x128xf32> to vector<2x16x128xf32>
    %39 = arith.mulf %29, %38 : vector<2x16x128xf32>
    %40 = arith.addf %19, %39 : vector<2x16x128xf32>
    %41 = vector.broadcast %37 : vector<1x16x128xf32> to vector<2x16x128xf32>
    %42 = arith.mulf %33, %41 : vector<2x16x128xf32>
    %43 = arith.subf %40, %42 : vector<2x16x128xf32>
    %44 = vector.broadcast %37 : vector<1x16x128xf32> to vector<2x16x128xf32>
    %45 = arith.mulf %29, %44 : vector<2x16x128xf32>
    %46 = arith.addf %25, %45 : vector<2x16x128xf32>
    %47 = vector.broadcast %35 : vector<1x16x128xf32> to vector<2x16x128xf32>
    %48 = arith.mulf %33, %47 : vector<2x16x128xf32>
    %49 = arith.addf %46, %48 : vector<2x16x128xf32>
    %c0_31 = arith.constant 0 : index
    %c0_32 = arith.constant 0 : index
    %c2 = arith.constant 2 : index
    %c0_33 = arith.constant 0 : index
    %50 = vector.load %arg2[%c0_31, %c0_32, %c2, %c0_33] : memref<2x2x32x128xf32, #tpu.memory_space<vmem>>, vector<1x2x1x128xf32>
    %51 = vector.shape_cast %50 : vector<1x2x1x128xf32> to vector<2x1x128xf32>
    %52 = vector.shape_cast %51 : vector<2x1x128xf32> to vector<2x1x128xf32>
    %53 = vector.broadcast %52 : vector<2x1x128xf32> to vector<2x16x128xf32>
    %c1_34 = arith.constant 1 : index
    %c0_35 = arith.constant 0 : index
    %c2_36 = arith.constant 2 : index
    %c0_37 = arith.constant 0 : index
    %54 = vector.load %arg2[%c1_34, %c0_35, %c2_36, %c0_37] : memref<2x2x32x128xf32, #tpu.memory_space<vmem>>, vector<1x2x1x128xf32>
    %55 = vector.shape_cast %54 : vector<1x2x1x128xf32> to vector<2x1x128xf32>
    %56 = vector.shape_cast %55 : vector<2x1x128xf32> to vector<2x1x128xf32>
    %57 = vector.broadcast %56 : vector<2x1x128xf32> to vector<2x16x128xf32>
    %c0_38 = arith.constant 0 : index
    %c2_39 = arith.constant 2 : index
    %c0_40 = arith.constant 0 : index
    %c0_41 = arith.constant 0 : index
    %58 = vector.load %arg3[%c0_38, %c2_39, %c0_40, %c0_41] : memref<2x32x16x128xf32, #tpu.memory_space<vmem>>, vector<1x1x16x128xf32>
    %59 = vector.shape_cast %58 : vector<1x1x16x128xf32> to vector<1x16x128xf32>
    %c1_42 = arith.constant 1 : index
    %c2_43 = arith.constant 2 : index
    %c0_44 = arith.constant 0 : index
    %c0_45 = arith.constant 0 : index
    %60 = vector.load %arg3[%c1_42, %c2_43, %c0_44, %c0_45] : memref<2x32x16x128xf32, #tpu.memory_space<vmem>>, vector<1x1x16x128xf32>
    %61 = vector.shape_cast %60 : vector<1x1x16x128xf32> to vector<1x16x128xf32>
    %62 = vector.broadcast %59 : vector<1x16x128xf32> to vector<2x16x128xf32>
    %63 = arith.mulf %53, %62 : vector<2x16x128xf32>
    %64 = arith.addf %43, %63 : vector<2x16x128xf32>
    %65 = vector.broadcast %61 : vector<1x16x128xf32> to vector<2x16x128xf32>
    %66 = arith.mulf %57, %65 : vector<2x16x128xf32>
    %67 = arith.subf %64, %66 : vector<2x16x128xf32>
    %68 = vector.broadcast %61 : vector<1x16x128xf32> to vector<2x16x128xf32>
    %69 = arith.mulf %53, %68 : vector<2x16x128xf32>
    %70 = arith.addf %49, %69 : vector<2x16x128xf32>
    %71 = vector.broadcast %59 : vector<1x16x128xf32> to vector<2x16x128xf32>
    %72 = arith.mulf %57, %71 : vector<2x16x128xf32>
    %73 = arith.addf %70, %72 : vector<2x16x128xf32>
    %c0_46 = arith.constant 0 : index
    %c0_47 = arith.constant 0 : index
    %c3 = arith.constant 3 : index
    %c0_48 = arith.constant 0 : index
    %74 = vector.load %arg2[%c0_46, %c0_47, %c3, %c0_48] : memref<2x2x32x128xf32, #tpu.memory_space<vmem>>, vector<1x2x1x128xf32>
    %75 = vector.shape_cast %74 : vector<1x2x1x128xf32> to vector<2x1x128xf32>
    %76 = vector.shape_cast %75 : vector<2x1x128xf32> to vector<2x1x128xf32>
    %77 = vector.broadcast %76 : vector<2x1x128xf32> to vector<2x16x128xf32>
    %c1_49 = arith.constant 1 : index
    %c0_50 = arith.constant 0 : index
    %c3_51 = arith.constant 3 : index
    %c0_52 = arith.constant 0 : index
    %78 = vector.load %arg2[%c1_49, %c0_50, %c3_51, %c0_52] : memref<2x2x32x128xf32, #tpu.memory_space<vmem>>, vector<1x2x1x128xf32>
    %79 = vector.shape_cast %78 : vector<1x2x1x128xf32> to vector<2x1x128xf32>
    %80 = vector.shape_cast %79 : vector<2x1x128xf32> to vector<2x1x128xf32>
    %81 = vector.broadcast %80 : vector<2x1x128xf32> to vector<2x16x128xf32>
    %c0_53 = arith.constant 0 : index
    %c3_54 = arith.constant 3 : index
    %c0_55 = arith.constant 0 : index
    %c0_56 = arith.constant 0 : index
    %82 = vector.load %arg3[%c0_53, %c3_54, %c0_55, %c0_56] : memref<2x32x16x128xf32, #tpu.memory_space<vmem>>, vector<1x1x16x128xf32>
    %83 = vector.shape_cast %82 : vector<1x1x16x128xf32> to vector<1x16x128xf32>
    %c1_57 = arith.constant 1 : index
    %c3_58 = arith.constant 3 : index
    %c0_59 = arith.constant 0 : index
    %c0_60 = arith.constant 0 : index
    %84 = vector.load %arg3[%c1_57, %c3_58, %c0_59, %c0_60] : memref<2x32x16x128xf32, #tpu.memory_space<vmem>>, vector<1x1x16x128xf32>
    %85 = vector.shape_cast %84 : vector<1x1x16x128xf32> to vector<1x16x128xf32>
    %86 = vector.broadcast %83 : vector<1x16x128xf32> to vector<2x16x128xf32>
    %87 = arith.mulf %77, %86 : vector<2x16x128xf32>
    %88 = arith.addf %67, %87 : vector<2x16x128xf32>
    %89 = vector.broadcast %85 : vector<1x16x128xf32> to vector<2x16x128xf32>
    %90 = arith.mulf %81, %89 : vector<2x16x128xf32>
    %91 = arith.subf %88, %90 : vector<2x16x128xf32>
    %92 = vector.broadcast %85 : vector<1x16x128xf32> to vector<2x16x128xf32>
    %93 = arith.mulf %77, %92 : vector<2x16x128xf32>
    %94 = arith.addf %73, %93 : vector<2x16x128xf32>
    %95 = vector.broadcast %83 : vector<1x16x128xf32> to vector<2x16x128xf32>
    %96 = arith.mulf %81, %95 : vector<2x16x128xf32>
    %97 = arith.addf %94, %96 : vector<2x16x128xf32>
    %c0_61 = arith.constant 0 : index
    %c0_62 = arith.constant 0 : index
    %c4 = arith.constant 4 : index
    %c0_63 = arith.constant 0 : index
    %98 = vector.load %arg2[%c0_61, %c0_62, %c4, %c0_63] : memref<2x2x32x128xf32, #tpu.memory_space<vmem>>, vector<1x2x1x128xf32>
    %99 = vector.shape_cast %98 : vector<1x2x1x128xf32> to vector<2x1x128xf32>
    %100 = vector.shape_cast %99 : vector<2x1x128xf32> to vector<2x1x128xf32>
    %101 = vector.broadcast %100 : vector<2x1x128xf32> to vector<2x16x128xf32>
    %c1_64 = arith.constant 1 : index
    %c0_65 = arith.constant 0 : index
    %c4_66 = arith.constant 4 : index
    %c0_67 = arith.constant 0 : index
    %102 = vector.load %arg2[%c1_64, %c0_65, %c4_66, %c0_67] : memref<2x2x32x128xf32, #tpu.memory_space<vmem>>, vector<1x2x1x128xf32>
    %103 = vector.shape_cast %102 : vector<1x2x1x128xf32> to vector<2x1x128xf32>
    %104 = vector.shape_cast %103 : vector<2x1x128xf32> to vector<2x1x128xf32>
    %105 = vector.broadcast %104 : vector<2x1x128xf32> to vector<2x16x128xf32>
    %c0_68 = arith.constant 0 : index
    %c4_69 = arith.constant 4 : index
    %c0_70 = arith.constant 0 : index
    %c0_71 = arith.constant 0 : index
    %106 = vector.load %arg3[%c0_68, %c4_69, %c0_70, %c0_71] : memref<2x32x16x128xf32, #tpu.memory_space<vmem>>, vector<1x1x16x128xf32>
    %107 = vector.shape_cast %106 : vector<1x1x16x128xf32> to vector<1x16x128xf32>
    %c1_72 = arith.constant 1 : index
    %c4_73 = arith.constant 4 : index
    %c0_74 = arith.constant 0 : index
    %c0_75 = arith.constant 0 : index
    %108 = vector.load %arg3[%c1_72, %c4_73, %c0_74, %c0_75] : memref<2x32x16x128xf32, #tpu.memory_space<vmem>>, vector<1x1x16x128xf32>
    %109 = vector.shape_cast %108 : vector<1x1x16x128xf32> to vector<1x16x128xf32>
    %110 = vector.broadcast %107 : vector<1x16x128xf32> to vector<2x16x128xf32>
    %111 = arith.mulf %101, %110 : vector<2x16x128xf32>
    %112 = arith.addf %91, %111 : vector<2x16x128xf32>
    %113 = vector.broadcast %109 : vector<1x16x128xf32> to vector<2x16x128xf32>
    %114 = arith.mulf %105, %113 : vector<2x16x128xf32>
    %115 = arith.subf %112, %114 : vector<2x16x128xf32>
    %116 = vector.broadcast %109 : vector<1x16x128xf32> to vector<2x16x128xf32>
    %117 = arith.mulf %101, %116 : vector<2x16x128xf32>
    %118 = arith.addf %97, %117 : vector<2x16x128xf32>
    %119 = vector.broadcast %107 : vector<1x16x128xf32> to vector<2x16x128xf32>
    %120 = arith.mulf %105, %119 : vector<2x16x128xf32>
    %121 = arith.addf %118, %120 : vector<2x16x128xf32>
    %c0_76 = arith.constant 0 : index
    %c0_77 = arith.constant 0 : index
    %c5 = arith.constant 5 : index
    %c0_78 = arith.constant 0 : index
    %122 = vector.load %arg2[%c0_76, %c0_77, %c5, %c0_78] : memref<2x2x32x128xf32, #tpu.memory_space<vmem>>, vector<1x2x1x128xf32>
    %123 = vector.shape_cast %122 : vector<1x2x1x128xf32> to vector<2x1x128xf32>
    %124 = vector.shape_cast %123 : vector<2x1x128xf32> to vector<2x1x128xf32>
    %125 = vector.broadcast %124 : vector<2x1x128xf32> to vector<2x16x128xf32>
    %c1_79 = arith.constant 1 : index
    %c0_80 = arith.constant 0 : index
    %c5_81 = arith.constant 5 : index
    %c0_82 = arith.constant 0 : index
    %126 = vector.load %arg2[%c1_79, %c0_80, %c5_81, %c0_82] : memref<2x2x32x128xf32, #tpu.memory_space<vmem>>, vector<1x2x1x128xf32>
    %127 = vector.shape_cast %126 : vector<1x2x1x128xf32> to vector<2x1x128xf32>
    %128 = vector.shape_cast %127 : vector<2x1x128xf32> to vector<2x1x128xf32>
    %129 = vector.broadcast %128 : vector<2x1x128xf32> to vector<2x16x128xf32>
    %c0_83 = arith.constant 0 : index
    %c5_84 = arith.constant 5 : index
    %c0_85 = arith.constant 0 : index
    %c0_86 = arith.constant 0 : index
    %130 = vector.load %arg3[%c0_83, %c5_84, %c0_85, %c0_86] : memref<2x32x16x128xf32, #tpu.memory_space<vmem>>, vector<1x1x16x128xf32>
    %131 = vector.shape_cast %130 : vector<1x1x16x128xf32> to vector<1x16x128xf32>
    %c1_87 = arith.constant 1 : index
    %c5_88 = arith.constant 5 : index
    %c0_89 = arith.constant 0 : index
    %c0_90 = arith.constant 0 : index
    %132 = vector.load %arg3[%c1_87, %c5_88, %c0_89, %c0_90] : memref<2x32x16x128xf32, #tpu.memory_space<vmem>>, vector<1x1x16x128xf32>
    %133 = vector.shape_cast %132 : vector<1x1x16x128xf32> to vector<1x16x128xf32>
    %134 = vector.broadcast %131 : vector<1x16x128xf32> to vector<2x16x128xf32>
    %135 = arith.mulf %125, %134 : vector<2x16x128xf32>
    %136 = arith.addf %115, %135 : vector<2x16x128xf32>
    %137 = vector.broadcast %133 : vector<1x16x128xf32> to vector<2x16x128xf32>
    %138 = arith.mulf %129, %137 : vector<2x16x128xf32>
    %139 = arith.subf %136, %138 : vector<2x16x128xf32>
    %140 = vector.broadcast %133 : vector<1x16x128xf32> to vector<2x16x128xf32>
    %141 = arith.mulf %125, %140 : vector<2x16x128xf32>
    %142 = arith.addf %121, %141 : vector<2x16x128xf32>
    %143 = vector.broadcast %131 : vector<1x16x128xf32> to vector<2x16x128xf32>
    %144 = arith.mulf %129, %143 : vector<2x16x128xf32>
    %145 = arith.addf %142, %144 : vector<2x16x128xf32>
    %c0_91 = arith.constant 0 : index
    %c0_92 = arith.constant 0 : index
    %c6 = arith.constant 6 : index
    %c0_93 = arith.constant 0 : index
    %146 = vector.load %arg2[%c0_91, %c0_92, %c6, %c0_93] : memref<2x2x32x128xf32, #tpu.memory_space<vmem>>, vector<1x2x1x128xf32>
    %147 = vector.shape_cast %146 : vector<1x2x1x128xf32> to vector<2x1x128xf32>
    %148 = vector.shape_cast %147 : vector<2x1x128xf32> to vector<2x1x128xf32>
    %149 = vector.broadcast %148 : vector<2x1x128xf32> to vector<2x16x128xf32>
    %c1_94 = arith.constant 1 : index
    %c0_95 = arith.constant 0 : index
    %c6_96 = arith.constant 6 : index
    %c0_97 = arith.constant 0 : index
    %150 = vector.load %arg2[%c1_94, %c0_95, %c6_96, %c0_97] : memref<2x2x32x128xf32, #tpu.memory_space<vmem>>, vector<1x2x1x128xf32>
    %151 = vector.shape_cast %150 : vector<1x2x1x128xf32> to vector<2x1x128xf32>
    %152 = vector.shape_cast %151 : vector<2x1x128xf32> to vector<2x1x128xf32>
    %153 = vector.broadcast %152 : vector<2x1x128xf32> to vector<2x16x128xf32>
    %c0_98 = arith.constant 0 : index
    %c6_99 = arith.constant 6 : index
    %c0_100 = arith.constant 0 : index
    %c0_101 = arith.constant 0 : index
    %154 = vector.load %arg3[%c0_98, %c6_99, %c0_100, %c0_101] : memref<2x32x16x128xf32, #tpu.memory_space<vmem>>, vector<1x1x16x128xf32>
    %155 = vector.shape_cast %154 : vector<1x1x16x128xf32> to vector<1x16x128xf32>
    %c1_102 = arith.constant 1 : index
    %c6_103 = arith.constant 6 : index
    %c0_104 = arith.constant 0 : index
    %c0_105 = arith.constant 0 : index
    %156 = vector.load %arg3[%c1_102, %c6_103, %c0_104, %c0_105] : memref<2x32x16x128xf32, #tpu.memory_space<vmem>>, vector<1x1x16x128xf32>
    %157 = vector.shape_cast %156 : vector<1x1x16x128xf32> to vector<1x16x128xf32>
    %158 = vector.broadcast %155 : vector<1x16x128xf32> to vector<2x16x128xf32>
    %159 = arith.mulf %149, %158 : vector<2x16x128xf32>
    %160 = arith.addf %139, %159 : vector<2x16x128xf32>
    %161 = vector.broadcast %157 : vector<1x16x128xf32> to vector<2x16x128xf32>
    %162 = arith.mulf %153, %161 : vector<2x16x128xf32>
    %163 = arith.subf %160, %162 : vector<2x16x128xf32>
    %164 = vector.broadcast %157 : vector<1x16x128xf32> to vector<2x16x128xf32>
    %165 = arith.mulf %149, %164 : vector<2x16x128xf32>
    %166 = arith.addf %145, %165 : vector<2x16x128xf32>
    %167 = vector.broadcast %155 : vector<1x16x128xf32> to vector<2x16x128xf32>
    %168 = arith.mulf %153, %167 : vector<2x16x128xf32>
    %169 = arith.addf %166, %168 : vector<2x16x128xf32>
    %c0_106 = arith.constant 0 : index
    %c0_107 = arith.constant 0 : index
    %c7 = arith.constant 7 : index
    %c0_108 = arith.constant 0 : index
    %170 = vector.load %arg2[%c0_106, %c0_107, %c7, %c0_108] : memref<2x2x32x128xf32, #tpu.memory_space<vmem>>, vector<1x2x1x128xf32>
    %171 = vector.shape_cast %170 : vector<1x2x1x128xf32> to vector<2x1x128xf32>
    %172 = vector.shape_cast %171 : vector<2x1x128xf32> to vector<2x1x128xf32>
    %173 = vector.broadcast %172 : vector<2x1x128xf32> to vector<2x16x128xf32>
    %c1_109 = arith.constant 1 : index
    %c0_110 = arith.constant 0 : index
    %c7_111 = arith.constant 7 : index
    %c0_112 = arith.constant 0 : index
    %174 = vector.load %arg2[%c1_109, %c0_110, %c7_111, %c0_112] : memref<2x2x32x128xf32, #tpu.memory_space<vmem>>, vector<1x2x1x128xf32>
    %175 = vector.shape_cast %174 : vector<1x2x1x128xf32> to vector<2x1x128xf32>
    %176 = vector.shape_cast %175 : vector<2x1x128xf32> to vector<2x1x128xf32>
    %177 = vector.broadcast %176 : vector<2x1x128xf32> to vector<2x16x128xf32>
    %c0_113 = arith.constant 0 : index
    %c7_114 = arith.constant 7 : index
    %c0_115 = arith.constant 0 : index
    %c0_116 = arith.constant 0 : index
    %178 = vector.load %arg3[%c0_113, %c7_114, %c0_115, %c0_116] : memref<2x32x16x128xf32, #tpu.memory_space<vmem>>, vector<1x1x16x128xf32>
    %179 = vector.shape_cast %178 : vector<1x1x16x128xf32> to vector<1x16x128xf32>
    %c1_117 = arith.constant 1 : index
    %c7_118 = arith.constant 7 : index
    %c0_119 = arith.constant 0 : index
    %c0_120 = arith.constant 0 : index
    %180 = vector.load %arg3[%c1_117, %c7_118, %c0_119, %c0_120] : memref<2x32x16x128xf32, #tpu.memory_space<vmem>>, vector<1x1x16x128xf32>
    %181 = vector.shape_cast %180 : vector<1x1x16x128xf32> to vector<1x16x128xf32>
    %182 = vector.broadcast %179 : vector<1x16x128xf32> to vector<2x16x128xf32>
    %183 = arith.mulf %173, %182 : vector<2x16x128xf32>
    %184 = arith.addf %163, %183 : vector<2x16x128xf32>
    %185 = vector.broadcast %181 : vector<1x16x128xf32> to vector<2x16x128xf32>
    %186 = arith.mulf %177, %185 : vector<2x16x128xf32>
    %187 = arith.subf %184, %186 : vector<2x16x128xf32>
    %188 = vector.broadcast %181 : vector<1x16x128xf32> to vector<2x16x128xf32>
    %189 = arith.mulf %173, %188 : vector<2x16x128xf32>
    %190 = arith.addf %169, %189 : vector<2x16x128xf32>
    %191 = vector.broadcast %179 : vector<1x16x128xf32> to vector<2x16x128xf32>
    %192 = arith.mulf %177, %191 : vector<2x16x128xf32>
    %193 = arith.addf %190, %192 : vector<2x16x128xf32>
    %c0_121 = arith.constant 0 : index
    %c0_122 = arith.constant 0 : index
    %c8 = arith.constant 8 : index
    %c0_123 = arith.constant 0 : index
    %194 = vector.load %arg2[%c0_121, %c0_122, %c8, %c0_123] : memref<2x2x32x128xf32, #tpu.memory_space<vmem>>, vector<1x2x1x128xf32>
    %195 = vector.shape_cast %194 : vector<1x2x1x128xf32> to vector<2x1x128xf32>
    %196 = vector.shape_cast %195 : vector<2x1x128xf32> to vector<2x1x128xf32>
    %197 = vector.broadcast %196 : vector<2x1x128xf32> to vector<2x16x128xf32>
    %c1_124 = arith.constant 1 : index
    %c0_125 = arith.constant 0 : index
    %c8_126 = arith.constant 8 : index
    %c0_127 = arith.constant 0 : index
    %198 = vector.load %arg2[%c1_124, %c0_125, %c8_126, %c0_127] : memref<2x2x32x128xf32, #tpu.memory_space<vmem>>, vector<1x2x1x128xf32>
    %199 = vector.shape_cast %198 : vector<1x2x1x128xf32> to vector<2x1x128xf32>
    %200 = vector.shape_cast %199 : vector<2x1x128xf32> to vector<2x1x128xf32>
    %201 = vector.broadcast %200 : vector<2x1x128xf32> to vector<2x16x128xf32>
    %c0_128 = arith.constant 0 : index
    %c8_129 = arith.constant 8 : index
    %c0_130 = arith.constant 0 : index
    %c0_131 = arith.constant 0 : index
    %202 = vector.load %arg3[%c0_128, %c8_129, %c0_130, %c0_131] : memref<2x32x16x128xf32, #tpu.memory_space<vmem>>, vector<1x1x16x128xf32>
    %203 = vector.shape_cast %202 : vector<1x1x16x128xf32> to vector<1x16x128xf32>
    %c1_132 = arith.constant 1 : index
    %c8_133 = arith.constant 8 : index
    %c0_134 = arith.constant 0 : index
    %c0_135 = arith.constant 0 : index
    %204 = vector.load %arg3[%c1_132, %c8_133, %c0_134, %c0_135] : memref<2x32x16x128xf32, #tpu.memory_space<vmem>>, vector<1x1x16x128xf32>
    %205 = vector.shape_cast %204 : vector<1x1x16x128xf32> to vector<1x16x128xf32>
    %206 = vector.broadcast %203 : vector<1x16x128xf32> to vector<2x16x128xf32>
    %207 = arith.mulf %197, %206 : vector<2x16x128xf32>
    %208 = arith.addf %187, %207 : vector<2x16x128xf32>
    %209 = vector.broadcast %205 : vector<1x16x128xf32> to vector<2x16x128xf32>
    %210 = arith.mulf %201, %209 : vector<2x16x128xf32>
    %211 = arith.subf %208, %210 : vector<2x16x128xf32>
    %212 = vector.broadcast %205 : vector<1x16x128xf32> to vector<2x16x128xf32>
    %213 = arith.mulf %197, %212 : vector<2x16x128xf32>
    %214 = arith.addf %193, %213 : vector<2x16x128xf32>
    %215 = vector.broadcast %203 : vector<1x16x128xf32> to vector<2x16x128xf32>
    %216 = arith.mulf %201, %215 : vector<2x16x128xf32>
    %217 = arith.addf %214, %216 : vector<2x16x128xf32>
    %c0_136 = arith.constant 0 : index
    %c0_137 = arith.constant 0 : index
    %c9 = arith.constant 9 : index
    %c0_138 = arith.constant 0 : index
    %218 = vector.load %arg2[%c0_136, %c0_137, %c9, %c0_138] : memref<2x2x32x128xf32, #tpu.memory_space<vmem>>, vector<1x2x1x128xf32>
    %219 = vector.shape_cast %218 : vector<1x2x1x128xf32> to vector<2x1x128xf32>
    %220 = vector.shape_cast %219 : vector<2x1x128xf32> to vector<2x1x128xf32>
    %221 = vector.broadcast %220 : vector<2x1x128xf32> to vector<2x16x128xf32>
    %c1_139 = arith.constant 1 : index
    %c0_140 = arith.constant 0 : index
    %c9_141 = arith.constant 9 : index
    %c0_142 = arith.constant 0 : index
    %222 = vector.load %arg2[%c1_139, %c0_140, %c9_141, %c0_142] : memref<2x2x32x128xf32, #tpu.memory_space<vmem>>, vector<1x2x1x128xf32>
    %223 = vector.shape_cast %222 : vector<1x2x1x128xf32> to vector<2x1x128xf32>
    %224 = vector.shape_cast %223 : vector<2x1x128xf32> to vector<2x1x128xf32>
    %225 = vector.broadcast %224 : vector<2x1x128xf32> to vector<2x16x128xf32>
    %c0_143 = arith.constant 0 : index
    %c9_144 = arith.constant 9 : index
    %c0_145 = arith.constant 0 : index
    %c0_146 = arith.constant 0 : index
    %226 = vector.load %arg3[%c0_143, %c9_144, %c0_145, %c0_146] : memref<2x32x16x128xf32, #tpu.memory_space<vmem>>, vector<1x1x16x128xf32>
    %227 = vector.shape_cast %226 : vector<1x1x16x128xf32> to vector<1x16x128xf32>
    %c1_147 = arith.constant 1 : index
    %c9_148 = arith.constant 9 : index
    %c0_149 = arith.constant 0 : index
    %c0_150 = arith.constant 0 : index
    %228 = vector.load %arg3[%c1_147, %c9_148, %c0_149, %c0_150] : memref<2x32x16x128xf32, #tpu.memory_space<vmem>>, vector<1x1x16x128xf32>
    %229 = vector.shape_cast %228 : vector<1x1x16x128xf32> to vector<1x16x128xf32>
    %230 = vector.broadcast %227 : vector<1x16x128xf32> to vector<2x16x128xf32>
    %231 = arith.mulf %221, %230 : vector<2x16x128xf32>
    %232 = arith.addf %211, %231 : vector<2x16x128xf32>
    %233 = vector.broadcast %229 : vector<1x16x128xf32> to vector<2x16x128xf32>
    %234 = arith.mulf %225, %233 : vector<2x16x128xf32>
    %235 = arith.subf %232, %234 : vector<2x16x128xf32>
    %236 = vector.broadcast %229 : vector<1x16x128xf32> to vector<2x16x128xf32>
    %237 = arith.mulf %221, %236 : vector<2x16x128xf32>
    %238 = arith.addf %217, %237 : vector<2x16x128xf32>
    %239 = vector.broadcast %227 : vector<1x16x128xf32> to vector<2x16x128xf32>
    %240 = arith.mulf %225, %239 : vector<2x16x128xf32>
    %241 = arith.addf %238, %240 : vector<2x16x128xf32>
    %c0_151 = arith.constant 0 : index
    %c0_152 = arith.constant 0 : index
    %c10 = arith.constant 10 : index
    %c0_153 = arith.constant 0 : index
    %242 = vector.load %arg2[%c0_151, %c0_152, %c10, %c0_153] : memref<2x2x32x128xf32, #tpu.memory_space<vmem>>, vector<1x2x1x128xf32>
    %243 = vector.shape_cast %242 : vector<1x2x1x128xf32> to vector<2x1x128xf32>
    %244 = vector.shape_cast %243 : vector<2x1x128xf32> to vector<2x1x128xf32>
    %245 = vector.broadcast %244 : vector<2x1x128xf32> to vector<2x16x128xf32>
    %c1_154 = arith.constant 1 : index
    %c0_155 = arith.constant 0 : index
    %c10_156 = arith.constant 10 : index
    %c0_157 = arith.constant 0 : index
    %246 = vector.load %arg2[%c1_154, %c0_155, %c10_156, %c0_157] : memref<2x2x32x128xf32, #tpu.memory_space<vmem>>, vector<1x2x1x128xf32>
    %247 = vector.shape_cast %246 : vector<1x2x1x128xf32> to vector<2x1x128xf32>
    %248 = vector.shape_cast %247 : vector<2x1x128xf32> to vector<2x1x128xf32>
    %249 = vector.broadcast %248 : vector<2x1x128xf32> to vector<2x16x128xf32>
    %c0_158 = arith.constant 0 : index
    %c10_159 = arith.constant 10 : index
    %c0_160 = arith.constant 0 : index
    %c0_161 = arith.constant 0 : index
    %250 = vector.load %arg3[%c0_158, %c10_159, %c0_160, %c0_161] : memref<2x32x16x128xf32, #tpu.memory_space<vmem>>, vector<1x1x16x128xf32>
    %251 = vector.shape_cast %250 : vector<1x1x16x128xf32> to vector<1x16x128xf32>
    %c1_162 = arith.constant 1 : index
    %c10_163 = arith.constant 10 : index
    %c0_164 = arith.constant 0 : index
    %c0_165 = arith.constant 0 : index
    %252 = vector.load %arg3[%c1_162, %c10_163, %c0_164, %c0_165] : memref<2x32x16x128xf32, #tpu.memory_space<vmem>>, vector<1x1x16x128xf32>
    %253 = vector.shape_cast %252 : vector<1x1x16x128xf32> to vector<1x16x128xf32>
    %254 = vector.broadcast %251 : vector<1x16x128xf32> to vector<2x16x128xf32>
    %255 = arith.mulf %245, %254 : vector<2x16x128xf32>
    %256 = arith.addf %235, %255 : vector<2x16x128xf32>
    %257 = vector.broadcast %253 : vector<1x16x128xf32> to vector<2x16x128xf32>
    %258 = arith.mulf %249, %257 : vector<2x16x128xf32>
    %259 = arith.subf %256, %258 : vector<2x16x128xf32>
    %260 = vector.broadcast %253 : vector<1x16x128xf32> to vector<2x16x128xf32>
    %261 = arith.mulf %245, %260 : vector<2x16x128xf32>
    %262 = arith.addf %241, %261 : vector<2x16x128xf32>
    %263 = vector.broadcast %251 : vector<1x16x128xf32> to vector<2x16x128xf32>
    %264 = arith.mulf %249, %263 : vector<2x16x128xf32>
    %265 = arith.addf %262, %264 : vector<2x16x128xf32>
    %c0_166 = arith.constant 0 : index
    %c0_167 = arith.constant 0 : index
    %c11 = arith.constant 11 : index
    %c0_168 = arith.constant 0 : index
    %266 = vector.load %arg2[%c0_166, %c0_167, %c11, %c0_168] : memref<2x2x32x128xf32, #tpu.memory_space<vmem>>, vector<1x2x1x128xf32>
    %267 = vector.shape_cast %266 : vector<1x2x1x128xf32> to vector<2x1x128xf32>
    %268 = vector.shape_cast %267 : vector<2x1x128xf32> to vector<2x1x128xf32>
    %269 = vector.broadcast %268 : vector<2x1x128xf32> to vector<2x16x128xf32>
    %c1_169 = arith.constant 1 : index
    %c0_170 = arith.constant 0 : index
    %c11_171 = arith.constant 11 : index
    %c0_172 = arith.constant 0 : index
    %270 = vector.load %arg2[%c1_169, %c0_170, %c11_171, %c0_172] : memref<2x2x32x128xf32, #tpu.memory_space<vmem>>, vector<1x2x1x128xf32>
    %271 = vector.shape_cast %270 : vector<1x2x1x128xf32> to vector<2x1x128xf32>
    %272 = vector.shape_cast %271 : vector<2x1x128xf32> to vector<2x1x128xf32>
    %273 = vector.broadcast %272 : vector<2x1x128xf32> to vector<2x16x128xf32>
    %c0_173 = arith.constant 0 : index
    %c11_174 = arith.constant 11 : index
    %c0_175 = arith.constant 0 : index
    %c0_176 = arith.constant 0 : index
    %274 = vector.load %arg3[%c0_173, %c11_174, %c0_175, %c0_176] : memref<2x32x16x128xf32, #tpu.memory_space<vmem>>, vector<1x1x16x128xf32>
    %275 = vector.shape_cast %274 : vector<1x1x16x128xf32> to vector<1x16x128xf32>
    %c1_177 = arith.constant 1 : index
    %c11_178 = arith.constant 11 : index
    %c0_179 = arith.constant 0 : index
    %c0_180 = arith.constant 0 : index
    %276 = vector.load %arg3[%c1_177, %c11_178, %c0_179, %c0_180] : memref<2x32x16x128xf32, #tpu.memory_space<vmem>>, vector<1x1x16x128xf32>
    %277 = vector.shape_cast %276 : vector<1x1x16x128xf32> to vector<1x16x128xf32>
    %278 = vector.broadcast %275 : vector<1x16x128xf32> to vector<2x16x128xf32>
    %279 = arith.mulf %269, %278 : vector<2x16x128xf32>
    %280 = arith.addf %259, %279 : vector<2x16x128xf32>
    %281 = vector.broadcast %277 : vector<1x16x128xf32> to vector<2x16x128xf32>
    %282 = arith.mulf %273, %281 : vector<2x16x128xf32>
    %283 = arith.subf %280, %282 : vector<2x16x128xf32>
    %284 = vector.broadcast %277 : vector<1x16x128xf32> to vector<2x16x128xf32>
    %285 = arith.mulf %269, %284 : vector<2x16x128xf32>
    %286 = arith.addf %265, %285 : vector<2x16x128xf32>
    %287 = vector.broadcast %275 : vector<1x16x128xf32> to vector<2x16x128xf32>
    %288 = arith.mulf %273, %287 : vector<2x16x128xf32>
    %289 = arith.addf %286, %288 : vector<2x16x128xf32>
    %c0_181 = arith.constant 0 : index
    %c0_182 = arith.constant 0 : index
    %c12 = arith.constant 12 : index
    %c0_183 = arith.constant 0 : index
    %290 = vector.load %arg2[%c0_181, %c0_182, %c12, %c0_183] : memref<2x2x32x128xf32, #tpu.memory_space<vmem>>, vector<1x2x1x128xf32>
    %291 = vector.shape_cast %290 : vector<1x2x1x128xf32> to vector<2x1x128xf32>
    %292 = vector.shape_cast %291 : vector<2x1x128xf32> to vector<2x1x128xf32>
    %293 = vector.broadcast %292 : vector<2x1x128xf32> to vector<2x16x128xf32>
    %c1_184 = arith.constant 1 : index
    %c0_185 = arith.constant 0 : index
    %c12_186 = arith.constant 12 : index
    %c0_187 = arith.constant 0 : index
    %294 = vector.load %arg2[%c1_184, %c0_185, %c12_186, %c0_187] : memref<2x2x32x128xf32, #tpu.memory_space<vmem>>, vector<1x2x1x128xf32>
    %295 = vector.shape_cast %294 : vector<1x2x1x128xf32> to vector<2x1x128xf32>
    %296 = vector.shape_cast %295 : vector<2x1x128xf32> to vector<2x1x128xf32>
    %297 = vector.broadcast %296 : vector<2x1x128xf32> to vector<2x16x128xf32>
    %c0_188 = arith.constant 0 : index
    %c12_189 = arith.constant 12 : index
    %c0_190 = arith.constant 0 : index
    %c0_191 = arith.constant 0 : index
    %298 = vector.load %arg3[%c0_188, %c12_189, %c0_190, %c0_191] : memref<2x32x16x128xf32, #tpu.memory_space<vmem>>, vector<1x1x16x128xf32>
    %299 = vector.shape_cast %298 : vector<1x1x16x128xf32> to vector<1x16x128xf32>
    %c1_192 = arith.constant 1 : index
    %c12_193 = arith.constant 12 : index
    %c0_194 = arith.constant 0 : index
    %c0_195 = arith.constant 0 : index
    %300 = vector.load %arg3[%c1_192, %c12_193, %c0_194, %c0_195] : memref<2x32x16x128xf32, #tpu.memory_space<vmem>>, vector<1x1x16x128xf32>
    %301 = vector.shape_cast %300 : vector<1x1x16x128xf32> to vector<1x16x128xf32>
    %302 = vector.broadcast %299 : vector<1x16x128xf32> to vector<2x16x128xf32>
    %303 = arith.mulf %293, %302 : vector<2x16x128xf32>
    %304 = arith.addf %283, %303 : vector<2x16x128xf32>
    %305 = vector.broadcast %301 : vector<1x16x128xf32> to vector<2x16x128xf32>
    %306 = arith.mulf %297, %305 : vector<2x16x128xf32>
    %307 = arith.subf %304, %306 : vector<2x16x128xf32>
    %308 = vector.broadcast %301 : vector<1x16x128xf32> to vector<2x16x128xf32>
    %309 = arith.mulf %293, %308 : vector<2x16x128xf32>
    %310 = arith.addf %289, %309 : vector<2x16x128xf32>
    %311 = vector.broadcast %299 : vector<1x16x128xf32> to vector<2x16x128xf32>
    %312 = arith.mulf %297, %311 : vector<2x16x128xf32>
    %313 = arith.addf %310, %312 : vector<2x16x128xf32>
    %c0_196 = arith.constant 0 : index
    %c0_197 = arith.constant 0 : index
    %c13 = arith.constant 13 : index
    %c0_198 = arith.constant 0 : index
    %314 = vector.load %arg2[%c0_196, %c0_197, %c13, %c0_198] : memref<2x2x32x128xf32, #tpu.memory_space<vmem>>, vector<1x2x1x128xf32>
    %315 = vector.shape_cast %314 : vector<1x2x1x128xf32> to vector<2x1x128xf32>
    %316 = vector.shape_cast %315 : vector<2x1x128xf32> to vector<2x1x128xf32>
    %317 = vector.broadcast %316 : vector<2x1x128xf32> to vector<2x16x128xf32>
    %c1_199 = arith.constant 1 : index
    %c0_200 = arith.constant 0 : index
    %c13_201 = arith.constant 13 : index
    %c0_202 = arith.constant 0 : index
    %318 = vector.load %arg2[%c1_199, %c0_200, %c13_201, %c0_202] : memref<2x2x32x128xf32, #tpu.memory_space<vmem>>, vector<1x2x1x128xf32>
    %319 = vector.shape_cast %318 : vector<1x2x1x128xf32> to vector<2x1x128xf32>
    %320 = vector.shape_cast %319 : vector<2x1x128xf32> to vector<2x1x128xf32>
    %321 = vector.broadcast %320 : vector<2x1x128xf32> to vector<2x16x128xf32>
    %c0_203 = arith.constant 0 : index
    %c13_204 = arith.constant 13 : index
    %c0_205 = arith.constant 0 : index
    %c0_206 = arith.constant 0 : index
    %322 = vector.load %arg3[%c0_203, %c13_204, %c0_205, %c0_206] : memref<2x32x16x128xf32, #tpu.memory_space<vmem>>, vector<1x1x16x128xf32>
    %323 = vector.shape_cast %322 : vector<1x1x16x128xf32> to vector<1x16x128xf32>
    %c1_207 = arith.constant 1 : index
    %c13_208 = arith.constant 13 : index
    %c0_209 = arith.constant 0 : index
    %c0_210 = arith.constant 0 : index
    %324 = vector.load %arg3[%c1_207, %c13_208, %c0_209, %c0_210] : memref<2x32x16x128xf32, #tpu.memory_space<vmem>>, vector<1x1x16x128xf32>
    %325 = vector.shape_cast %324 : vector<1x1x16x128xf32> to vector<1x16x128xf32>
    %326 = vector.broadcast %323 : vector<1x16x128xf32> to vector<2x16x128xf32>
    %327 = arith.mulf %317, %326 : vector<2x16x128xf32>
    %328 = arith.addf %307, %327 : vector<2x16x128xf32>
    %329 = vector.broadcast %325 : vector<1x16x128xf32> to vector<2x16x128xf32>
    %330 = arith.mulf %321, %329 : vector<2x16x128xf32>
    %331 = arith.subf %328, %330 : vector<2x16x128xf32>
    %332 = vector.broadcast %325 : vector<1x16x128xf32> to vector<2x16x128xf32>
    %333 = arith.mulf %317, %332 : vector<2x16x128xf32>
    %334 = arith.addf %313, %333 : vector<2x16x128xf32>
    %335 = vector.broadcast %323 : vector<1x16x128xf32> to vector<2x16x128xf32>
    %336 = arith.mulf %321, %335 : vector<2x16x128xf32>
    %337 = arith.addf %334, %336 : vector<2x16x128xf32>
    %c0_211 = arith.constant 0 : index
    %c0_212 = arith.constant 0 : index
    %c14 = arith.constant 14 : index
    %c0_213 = arith.constant 0 : index
    %338 = vector.load %arg2[%c0_211, %c0_212, %c14, %c0_213] : memref<2x2x32x128xf32, #tpu.memory_space<vmem>>, vector<1x2x1x128xf32>
    %339 = vector.shape_cast %338 : vector<1x2x1x128xf32> to vector<2x1x128xf32>
    %340 = vector.shape_cast %339 : vector<2x1x128xf32> to vector<2x1x128xf32>
    %341 = vector.broadcast %340 : vector<2x1x128xf32> to vector<2x16x128xf32>
    %c1_214 = arith.constant 1 : index
    %c0_215 = arith.constant 0 : index
    %c14_216 = arith.constant 14 : index
    %c0_217 = arith.constant 0 : index
    %342 = vector.load %arg2[%c1_214, %c0_215, %c14_216, %c0_217] : memref<2x2x32x128xf32, #tpu.memory_space<vmem>>, vector<1x2x1x128xf32>
    %343 = vector.shape_cast %342 : vector<1x2x1x128xf32> to vector<2x1x128xf32>
    %344 = vector.shape_cast %343 : vector<2x1x128xf32> to vector<2x1x128xf32>
    %345 = vector.broadcast %344 : vector<2x1x128xf32> to vector<2x16x128xf32>
    %c0_218 = arith.constant 0 : index
    %c14_219 = arith.constant 14 : index
    %c0_220 = arith.constant 0 : index
    %c0_221 = arith.constant 0 : index
    %346 = vector.load %arg3[%c0_218, %c14_219, %c0_220, %c0_221] : memref<2x32x16x128xf32, #tpu.memory_space<vmem>>, vector<1x1x16x128xf32>
    %347 = vector.shape_cast %346 : vector<1x1x16x128xf32> to vector<1x16x128xf32>
    %c1_222 = arith.constant 1 : index
    %c14_223 = arith.constant 14 : index
    %c0_224 = arith.constant 0 : index
    %c0_225 = arith.constant 0 : index
    %348 = vector.load %arg3[%c1_222, %c14_223, %c0_224, %c0_225] : memref<2x32x16x128xf32, #tpu.memory_space<vmem>>, vector<1x1x16x128xf32>
    %349 = vector.shape_cast %348 : vector<1x1x16x128xf32> to vector<1x16x128xf32>
    %350 = vector.broadcast %347 : vector<1x16x128xf32> to vector<2x16x128xf32>
    %351 = arith.mulf %341, %350 : vector<2x16x128xf32>
    %352 = arith.addf %331, %351 : vector<2x16x128xf32>
    %353 = vector.broadcast %349 : vector<1x16x128xf32> to vector<2x16x128xf32>
    %354 = arith.mulf %345, %353 : vector<2x16x128xf32>
    %355 = arith.subf %352, %354 : vector<2x16x128xf32>
    %356 = vector.broadcast %349 : vector<1x16x128xf32> to vector<2x16x128xf32>
    %357 = arith.mulf %341, %356 : vector<2x16x128xf32>
    %358 = arith.addf %337, %357 : vector<2x16x128xf32>
    %359 = vector.broadcast %347 : vector<1x16x128xf32> to vector<2x16x128xf32>
    %360 = arith.mulf %345, %359 : vector<2x16x128xf32>
    %361 = arith.addf %358, %360 : vector<2x16x128xf32>
    %c0_226 = arith.constant 0 : index
    %c0_227 = arith.constant 0 : index
    %c15 = arith.constant 15 : index
    %c0_228 = arith.constant 0 : index
    %362 = vector.load %arg2[%c0_226, %c0_227, %c15, %c0_228] : memref<2x2x32x128xf32, #tpu.memory_space<vmem>>, vector<1x2x1x128xf32>
    %363 = vector.shape_cast %362 : vector<1x2x1x128xf32> to vector<2x1x128xf32>
    %364 = vector.shape_cast %363 : vector<2x1x128xf32> to vector<2x1x128xf32>
    %365 = vector.broadcast %364 : vector<2x1x128xf32> to vector<2x16x128xf32>
    %c1_229 = arith.constant 1 : index
    %c0_230 = arith.constant 0 : index
    %c15_231 = arith.constant 15 : index
    %c0_232 = arith.constant 0 : index
    %366 = vector.load %arg2[%c1_229, %c0_230, %c15_231, %c0_232] : memref<2x2x32x128xf32, #tpu.memory_space<vmem>>, vector<1x2x1x128xf32>
    %367 = vector.shape_cast %366 : vector<1x2x1x128xf32> to vector<2x1x128xf32>
    %368 = vector.shape_cast %367 : vector<2x1x128xf32> to vector<2x1x128xf32>
    %369 = vector.broadcast %368 : vector<2x1x128xf32> to vector<2x16x128xf32>
    %c0_233 = arith.constant 0 : index
    %c15_234 = arith.constant 15 : index
    %c0_235 = arith.constant 0 : index
    %c0_236 = arith.constant 0 : index
    %370 = vector.load %arg3[%c0_233, %c15_234, %c0_235, %c0_236] : memref<2x32x16x128xf32, #tpu.memory_space<vmem>>, vector<1x1x16x128xf32>
    %371 = vector.shape_cast %370 : vector<1x1x16x128xf32> to vector<1x16x128xf32>
    %c1_237 = arith.constant 1 : index
    %c15_238 = arith.constant 15 : index
    %c0_239 = arith.constant 0 : index
    %c0_240 = arith.constant 0 : index
    %372 = vector.load %arg3[%c1_237, %c15_238, %c0_239, %c0_240] : memref<2x32x16x128xf32, #tpu.memory_space<vmem>>, vector<1x1x16x128xf32>
    %373 = vector.shape_cast %372 : vector<1x1x16x128xf32> to vector<1x16x128xf32>
    %374 = vector.broadcast %371 : vector<1x16x128xf32> to vector<2x16x128xf32>
    %375 = arith.mulf %365, %374 : vector<2x16x128xf32>
    %376 = arith.addf %355, %375 : vector<2x16x128xf32>
    %377 = vector.broadcast %373 : vector<1x16x128xf32> to vector<2x16x128xf32>
    %378 = arith.mulf %369, %377 : vector<2x16x128xf32>
    %379 = arith.subf %376, %378 : vector<2x16x128xf32>
    %380 = vector.broadcast %373 : vector<1x16x128xf32> to vector<2x16x128xf32>
    %381 = arith.mulf %365, %380 : vector<2x16x128xf32>
    %382 = arith.addf %361, %381 : vector<2x16x128xf32>
    %383 = vector.broadcast %371 : vector<1x16x128xf32> to vector<2x16x128xf32>
    %384 = arith.mulf %369, %383 : vector<2x16x128xf32>
    %385 = arith.addf %382, %384 : vector<2x16x128xf32>
    %c0_241 = arith.constant 0 : index
    %c0_242 = arith.constant 0 : index
    %c16 = arith.constant 16 : index
    %c0_243 = arith.constant 0 : index
    %386 = vector.load %arg2[%c0_241, %c0_242, %c16, %c0_243] : memref<2x2x32x128xf32, #tpu.memory_space<vmem>>, vector<1x2x1x128xf32>
    %387 = vector.shape_cast %386 : vector<1x2x1x128xf32> to vector<2x1x128xf32>
    %388 = vector.shape_cast %387 : vector<2x1x128xf32> to vector<2x1x128xf32>
    %389 = vector.broadcast %388 : vector<2x1x128xf32> to vector<2x16x128xf32>
    %c1_244 = arith.constant 1 : index
    %c0_245 = arith.constant 0 : index
    %c16_246 = arith.constant 16 : index
    %c0_247 = arith.constant 0 : index
    %390 = vector.load %arg2[%c1_244, %c0_245, %c16_246, %c0_247] : memref<2x2x32x128xf32, #tpu.memory_space<vmem>>, vector<1x2x1x128xf32>
    %391 = vector.shape_cast %390 : vector<1x2x1x128xf32> to vector<2x1x128xf32>
    %392 = vector.shape_cast %391 : vector<2x1x128xf32> to vector<2x1x128xf32>
    %393 = vector.broadcast %392 : vector<2x1x128xf32> to vector<2x16x128xf32>
    %c0_248 = arith.constant 0 : index
    %c16_249 = arith.constant 16 : index
    %c0_250 = arith.constant 0 : index
    %c0_251 = arith.constant 0 : index
    %394 = vector.load %arg3[%c0_248, %c16_249, %c0_250, %c0_251] : memref<2x32x16x128xf32, #tpu.memory_space<vmem>>, vector<1x1x16x128xf32>
    %395 = vector.shape_cast %394 : vector<1x1x16x128xf32> to vector<1x16x128xf32>
    %c1_252 = arith.constant 1 : index
    %c16_253 = arith.constant 16 : index
    %c0_254 = arith.constant 0 : index
    %c0_255 = arith.constant 0 : index
    %396 = vector.load %arg3[%c1_252, %c16_253, %c0_254, %c0_255] : memref<2x32x16x128xf32, #tpu.memory_space<vmem>>, vector<1x1x16x128xf32>
    %397 = vector.shape_cast %396 : vector<1x1x16x128xf32> to vector<1x16x128xf32>
    %398 = vector.broadcast %395 : vector<1x16x128xf32> to vector<2x16x128xf32>
    %399 = arith.mulf %389, %398 : vector<2x16x128xf32>
    %400 = arith.addf %379, %399 : vector<2x16x128xf32>
    %401 = vector.broadcast %397 : vector<1x16x128xf32> to vector<2x16x128xf32>
    %402 = arith.mulf %393, %401 : vector<2x16x128xf32>
    %403 = arith.subf %400, %402 : vector<2x16x128xf32>
    %404 = vector.broadcast %397 : vector<1x16x128xf32> to vector<2x16x128xf32>
    %405 = arith.mulf %389, %404 : vector<2x16x128xf32>
    %406 = arith.addf %385, %405 : vector<2x16x128xf32>
    %407 = vector.broadcast %395 : vector<1x16x128xf32> to vector<2x16x128xf32>
    %408 = arith.mulf %393, %407 : vector<2x16x128xf32>
    %409 = arith.addf %406, %408 : vector<2x16x128xf32>
    %c0_256 = arith.constant 0 : index
    %c0_257 = arith.constant 0 : index
    %c17 = arith.constant 17 : index
    %c0_258 = arith.constant 0 : index
    %410 = vector.load %arg2[%c0_256, %c0_257, %c17, %c0_258] : memref<2x2x32x128xf32, #tpu.memory_space<vmem>>, vector<1x2x1x128xf32>
    %411 = vector.shape_cast %410 : vector<1x2x1x128xf32> to vector<2x1x128xf32>
    %412 = vector.shape_cast %411 : vector<2x1x128xf32> to vector<2x1x128xf32>
    %413 = vector.broadcast %412 : vector<2x1x128xf32> to vector<2x16x128xf32>
    %c1_259 = arith.constant 1 : index
    %c0_260 = arith.constant 0 : index
    %c17_261 = arith.constant 17 : index
    %c0_262 = arith.constant 0 : index
    %414 = vector.load %arg2[%c1_259, %c0_260, %c17_261, %c0_262] : memref<2x2x32x128xf32, #tpu.memory_space<vmem>>, vector<1x2x1x128xf32>
    %415 = vector.shape_cast %414 : vector<1x2x1x128xf32> to vector<2x1x128xf32>
    %416 = vector.shape_cast %415 : vector<2x1x128xf32> to vector<2x1x128xf32>
    %417 = vector.broadcast %416 : vector<2x1x128xf32> to vector<2x16x128xf32>
    %c0_263 = arith.constant 0 : index
    %c17_264 = arith.constant 17 : index
    %c0_265 = arith.constant 0 : index
    %c0_266 = arith.constant 0 : index
    %418 = vector.load %arg3[%c0_263, %c17_264, %c0_265, %c0_266] : memref<2x32x16x128xf32, #tpu.memory_space<vmem>>, vector<1x1x16x128xf32>
    %419 = vector.shape_cast %418 : vector<1x1x16x128xf32> to vector<1x16x128xf32>
    %c1_267 = arith.constant 1 : index
    %c17_268 = arith.constant 17 : index
    %c0_269 = arith.constant 0 : index
    %c0_270 = arith.constant 0 : index
    %420 = vector.load %arg3[%c1_267, %c17_268, %c0_269, %c0_270] : memref<2x32x16x128xf32, #tpu.memory_space<vmem>>, vector<1x1x16x128xf32>
    %421 = vector.shape_cast %420 : vector<1x1x16x128xf32> to vector<1x16x128xf32>
    %422 = vector.broadcast %419 : vector<1x16x128xf32> to vector<2x16x128xf32>
    %423 = arith.mulf %413, %422 : vector<2x16x128xf32>
    %424 = arith.addf %403, %423 : vector<2x16x128xf32>
    %425 = vector.broadcast %421 : vector<1x16x128xf32> to vector<2x16x128xf32>
    %426 = arith.mulf %417, %425 : vector<2x16x128xf32>
    %427 = arith.subf %424, %426 : vector<2x16x128xf32>
    %428 = vector.broadcast %421 : vector<1x16x128xf32> to vector<2x16x128xf32>
    %429 = arith.mulf %413, %428 : vector<2x16x128xf32>
    %430 = arith.addf %409, %429 : vector<2x16x128xf32>
    %431 = vector.broadcast %419 : vector<1x16x128xf32> to vector<2x16x128xf32>
    %432 = arith.mulf %417, %431 : vector<2x16x128xf32>
    %433 = arith.addf %430, %432 : vector<2x16x128xf32>
    %c0_271 = arith.constant 0 : index
    %c0_272 = arith.constant 0 : index
    %c18 = arith.constant 18 : index
    %c0_273 = arith.constant 0 : index
    %434 = vector.load %arg2[%c0_271, %c0_272, %c18, %c0_273] : memref<2x2x32x128xf32, #tpu.memory_space<vmem>>, vector<1x2x1x128xf32>
    %435 = vector.shape_cast %434 : vector<1x2x1x128xf32> to vector<2x1x128xf32>
    %436 = vector.shape_cast %435 : vector<2x1x128xf32> to vector<2x1x128xf32>
    %437 = vector.broadcast %436 : vector<2x1x128xf32> to vector<2x16x128xf32>
    %c1_274 = arith.constant 1 : index
    %c0_275 = arith.constant 0 : index
    %c18_276 = arith.constant 18 : index
    %c0_277 = arith.constant 0 : index
    %438 = vector.load %arg2[%c1_274, %c0_275, %c18_276, %c0_277] : memref<2x2x32x128xf32, #tpu.memory_space<vmem>>, vector<1x2x1x128xf32>
    %439 = vector.shape_cast %438 : vector<1x2x1x128xf32> to vector<2x1x128xf32>
    %440 = vector.shape_cast %439 : vector<2x1x128xf32> to vector<2x1x128xf32>
    %441 = vector.broadcast %440 : vector<2x1x128xf32> to vector<2x16x128xf32>
    %c0_278 = arith.constant 0 : index
    %c18_279 = arith.constant 18 : index
    %c0_280 = arith.constant 0 : index
    %c0_281 = arith.constant 0 : index
    %442 = vector.load %arg3[%c0_278, %c18_279, %c0_280, %c0_281] : memref<2x32x16x128xf32, #tpu.memory_space<vmem>>, vector<1x1x16x128xf32>
    %443 = vector.shape_cast %442 : vector<1x1x16x128xf32> to vector<1x16x128xf32>
    %c1_282 = arith.constant 1 : index
    %c18_283 = arith.constant 18 : index
    %c0_284 = arith.constant 0 : index
    %c0_285 = arith.constant 0 : index
    %444 = vector.load %arg3[%c1_282, %c18_283, %c0_284, %c0_285] : memref<2x32x16x128xf32, #tpu.memory_space<vmem>>, vector<1x1x16x128xf32>
    %445 = vector.shape_cast %444 : vector<1x1x16x128xf32> to vector<1x16x128xf32>
    %446 = vector.broadcast %443 : vector<1x16x128xf32> to vector<2x16x128xf32>
    %447 = arith.mulf %437, %446 : vector<2x16x128xf32>
    %448 = arith.addf %427, %447 : vector<2x16x128xf32>
    %449 = vector.broadcast %445 : vector<1x16x128xf32> to vector<2x16x128xf32>
    %450 = arith.mulf %441, %449 : vector<2x16x128xf32>
    %451 = arith.subf %448, %450 : vector<2x16x128xf32>
    %452 = vector.broadcast %445 : vector<1x16x128xf32> to vector<2x16x128xf32>
    %453 = arith.mulf %437, %452 : vector<2x16x128xf32>
    %454 = arith.addf %433, %453 : vector<2x16x128xf32>
    %455 = vector.broadcast %443 : vector<1x16x128xf32> to vector<2x16x128xf32>
    %456 = arith.mulf %441, %455 : vector<2x16x128xf32>
    %457 = arith.addf %454, %456 : vector<2x16x128xf32>
    %c0_286 = arith.constant 0 : index
    %c0_287 = arith.constant 0 : index
    %c19 = arith.constant 19 : index
    %c0_288 = arith.constant 0 : index
    %458 = vector.load %arg2[%c0_286, %c0_287, %c19, %c0_288] : memref<2x2x32x128xf32, #tpu.memory_space<vmem>>, vector<1x2x1x128xf32>
    %459 = vector.shape_cast %458 : vector<1x2x1x128xf32> to vector<2x1x128xf32>
    %460 = vector.shape_cast %459 : vector<2x1x128xf32> to vector<2x1x128xf32>
    %461 = vector.broadcast %460 : vector<2x1x128xf32> to vector<2x16x128xf32>
    %c1_289 = arith.constant 1 : index
    %c0_290 = arith.constant 0 : index
    %c19_291 = arith.constant 19 : index
    %c0_292 = arith.constant 0 : index
    %462 = vector.load %arg2[%c1_289, %c0_290, %c19_291, %c0_292] : memref<2x2x32x128xf32, #tpu.memory_space<vmem>>, vector<1x2x1x128xf32>
    %463 = vector.shape_cast %462 : vector<1x2x1x128xf32> to vector<2x1x128xf32>
    %464 = vector.shape_cast %463 : vector<2x1x128xf32> to vector<2x1x128xf32>
    %465 = vector.broadcast %464 : vector<2x1x128xf32> to vector<2x16x128xf32>
    %c0_293 = arith.constant 0 : index
    %c19_294 = arith.constant 19 : index
    %c0_295 = arith.constant 0 : index
    %c0_296 = arith.constant 0 : index
    %466 = vector.load %arg3[%c0_293, %c19_294, %c0_295, %c0_296] : memref<2x32x16x128xf32, #tpu.memory_space<vmem>>, vector<1x1x16x128xf32>
    %467 = vector.shape_cast %466 : vector<1x1x16x128xf32> to vector<1x16x128xf32>
    %c1_297 = arith.constant 1 : index
    %c19_298 = arith.constant 19 : index
    %c0_299 = arith.constant 0 : index
    %c0_300 = arith.constant 0 : index
    %468 = vector.load %arg3[%c1_297, %c19_298, %c0_299, %c0_300] : memref<2x32x16x128xf32, #tpu.memory_space<vmem>>, vector<1x1x16x128xf32>
    %469 = vector.shape_cast %468 : vector<1x1x16x128xf32> to vector<1x16x128xf32>
    %470 = vector.broadcast %467 : vector<1x16x128xf32> to vector<2x16x128xf32>
    %471 = arith.mulf %461, %470 : vector<2x16x128xf32>
    %472 = arith.addf %451, %471 : vector<2x16x128xf32>
    %473 = vector.broadcast %469 : vector<1x16x128xf32> to vector<2x16x128xf32>
    %474 = arith.mulf %465, %473 : vector<2x16x128xf32>
    %475 = arith.subf %472, %474 : vector<2x16x128xf32>
    %476 = vector.broadcast %469 : vector<1x16x128xf32> to vector<2x16x128xf32>
    %477 = arith.mulf %461, %476 : vector<2x16x128xf32>
    %478 = arith.addf %457, %477 : vector<2x16x128xf32>
    %479 = vector.broadcast %467 : vector<1x16x128xf32> to vector<2x16x128xf32>
    %480 = arith.mulf %465, %479 : vector<2x16x128xf32>
    %481 = arith.addf %478, %480 : vector<2x16x128xf32>
    %c0_301 = arith.constant 0 : index
    %c0_302 = arith.constant 0 : index
    %c20 = arith.constant 20 : index
    %c0_303 = arith.constant 0 : index
    %482 = vector.load %arg2[%c0_301, %c0_302, %c20, %c0_303] : memref<2x2x32x128xf32, #tpu.memory_space<vmem>>, vector<1x2x1x128xf32>
    %483 = vector.shape_cast %482 : vector<1x2x1x128xf32> to vector<2x1x128xf32>
    %484 = vector.shape_cast %483 : vector<2x1x128xf32> to vector<2x1x128xf32>
    %485 = vector.broadcast %484 : vector<2x1x128xf32> to vector<2x16x128xf32>
    %c1_304 = arith.constant 1 : index
    %c0_305 = arith.constant 0 : index
    %c20_306 = arith.constant 20 : index
    %c0_307 = arith.constant 0 : index
    %486 = vector.load %arg2[%c1_304, %c0_305, %c20_306, %c0_307] : memref<2x2x32x128xf32, #tpu.memory_space<vmem>>, vector<1x2x1x128xf32>
    %487 = vector.shape_cast %486 : vector<1x2x1x128xf32> to vector<2x1x128xf32>
    %488 = vector.shape_cast %487 : vector<2x1x128xf32> to vector<2x1x128xf32>
    %489 = vector.broadcast %488 : vector<2x1x128xf32> to vector<2x16x128xf32>
    %c0_308 = arith.constant 0 : index
    %c20_309 = arith.constant 20 : index
    %c0_310 = arith.constant 0 : index
    %c0_311 = arith.constant 0 : index
    %490 = vector.load %arg3[%c0_308, %c20_309, %c0_310, %c0_311] : memref<2x32x16x128xf32, #tpu.memory_space<vmem>>, vector<1x1x16x128xf32>
    %491 = vector.shape_cast %490 : vector<1x1x16x128xf32> to vector<1x16x128xf32>
    %c1_312 = arith.constant 1 : index
    %c20_313 = arith.constant 20 : index
    %c0_314 = arith.constant 0 : index
    %c0_315 = arith.constant 0 : index
    %492 = vector.load %arg3[%c1_312, %c20_313, %c0_314, %c0_315] : memref<2x32x16x128xf32, #tpu.memory_space<vmem>>, vector<1x1x16x128xf32>
    %493 = vector.shape_cast %492 : vector<1x1x16x128xf32> to vector<1x16x128xf32>
    %494 = vector.broadcast %491 : vector<1x16x128xf32> to vector<2x16x128xf32>
    %495 = arith.mulf %485, %494 : vector<2x16x128xf32>
    %496 = arith.addf %475, %495 : vector<2x16x128xf32>
    %497 = vector.broadcast %493 : vector<1x16x128xf32> to vector<2x16x128xf32>
    %498 = arith.mulf %489, %497 : vector<2x16x128xf32>
    %499 = arith.subf %496, %498 : vector<2x16x128xf32>
    %500 = vector.broadcast %493 : vector<1x16x128xf32> to vector<2x16x128xf32>
    %501 = arith.mulf %485, %500 : vector<2x16x128xf32>
    %502 = arith.addf %481, %501 : vector<2x16x128xf32>
    %503 = vector.broadcast %491 : vector<1x16x128xf32> to vector<2x16x128xf32>
    %504 = arith.mulf %489, %503 : vector<2x16x128xf32>
    %505 = arith.addf %502, %504 : vector<2x16x128xf32>
    %c0_316 = arith.constant 0 : index
    %c0_317 = arith.constant 0 : index
    %c21 = arith.constant 21 : index
    %c0_318 = arith.constant 0 : index
    %506 = vector.load %arg2[%c0_316, %c0_317, %c21, %c0_318] : memref<2x2x32x128xf32, #tpu.memory_space<vmem>>, vector<1x2x1x128xf32>
    %507 = vector.shape_cast %506 : vector<1x2x1x128xf32> to vector<2x1x128xf32>
    %508 = vector.shape_cast %507 : vector<2x1x128xf32> to vector<2x1x128xf32>
    %509 = vector.broadcast %508 : vector<2x1x128xf32> to vector<2x16x128xf32>
    %c1_319 = arith.constant 1 : index
    %c0_320 = arith.constant 0 : index
    %c21_321 = arith.constant 21 : index
    %c0_322 = arith.constant 0 : index
    %510 = vector.load %arg2[%c1_319, %c0_320, %c21_321, %c0_322] : memref<2x2x32x128xf32, #tpu.memory_space<vmem>>, vector<1x2x1x128xf32>
    %511 = vector.shape_cast %510 : vector<1x2x1x128xf32> to vector<2x1x128xf32>
    %512 = vector.shape_cast %511 : vector<2x1x128xf32> to vector<2x1x128xf32>
    %513 = vector.broadcast %512 : vector<2x1x128xf32> to vector<2x16x128xf32>
    %c0_323 = arith.constant 0 : index
    %c21_324 = arith.constant 21 : index
    %c0_325 = arith.constant 0 : index
    %c0_326 = arith.constant 0 : index
    %514 = vector.load %arg3[%c0_323, %c21_324, %c0_325, %c0_326] : memref<2x32x16x128xf32, #tpu.memory_space<vmem>>, vector<1x1x16x128xf32>
    %515 = vector.shape_cast %514 : vector<1x1x16x128xf32> to vector<1x16x128xf32>
    %c1_327 = arith.constant 1 : index
    %c21_328 = arith.constant 21 : index
    %c0_329 = arith.constant 0 : index
    %c0_330 = arith.constant 0 : index
    %516 = vector.load %arg3[%c1_327, %c21_328, %c0_329, %c0_330] : memref<2x32x16x128xf32, #tpu.memory_space<vmem>>, vector<1x1x16x128xf32>
    %517 = vector.shape_cast %516 : vector<1x1x16x128xf32> to vector<1x16x128xf32>
    %518 = vector.broadcast %515 : vector<1x16x128xf32> to vector<2x16x128xf32>
    %519 = arith.mulf %509, %518 : vector<2x16x128xf32>
    %520 = arith.addf %499, %519 : vector<2x16x128xf32>
    %521 = vector.broadcast %517 : vector<1x16x128xf32> to vector<2x16x128xf32>
    %522 = arith.mulf %513, %521 : vector<2x16x128xf32>
    %523 = arith.subf %520, %522 : vector<2x16x128xf32>
    %524 = vector.broadcast %517 : vector<1x16x128xf32> to vector<2x16x128xf32>
    %525 = arith.mulf %509, %524 : vector<2x16x128xf32>
    %526 = arith.addf %505, %525 : vector<2x16x128xf32>
    %527 = vector.broadcast %515 : vector<1x16x128xf32> to vector<2x16x128xf32>
    %528 = arith.mulf %513, %527 : vector<2x16x128xf32>
    %529 = arith.addf %526, %528 : vector<2x16x128xf32>
    %c0_331 = arith.constant 0 : index
    %c0_332 = arith.constant 0 : index
    %c22 = arith.constant 22 : index
    %c0_333 = arith.constant 0 : index
    %530 = vector.load %arg2[%c0_331, %c0_332, %c22, %c0_333] : memref<2x2x32x128xf32, #tpu.memory_space<vmem>>, vector<1x2x1x128xf32>
    %531 = vector.shape_cast %530 : vector<1x2x1x128xf32> to vector<2x1x128xf32>
    %532 = vector.shape_cast %531 : vector<2x1x128xf32> to vector<2x1x128xf32>
    %533 = vector.broadcast %532 : vector<2x1x128xf32> to vector<2x16x128xf32>
    %c1_334 = arith.constant 1 : index
    %c0_335 = arith.constant 0 : index
    %c22_336 = arith.constant 22 : index
    %c0_337 = arith.constant 0 : index
    %534 = vector.load %arg2[%c1_334, %c0_335, %c22_336, %c0_337] : memref<2x2x32x128xf32, #tpu.memory_space<vmem>>, vector<1x2x1x128xf32>
    %535 = vector.shape_cast %534 : vector<1x2x1x128xf32> to vector<2x1x128xf32>
    %536 = vector.shape_cast %535 : vector<2x1x128xf32> to vector<2x1x128xf32>
    %537 = vector.broadcast %536 : vector<2x1x128xf32> to vector<2x16x128xf32>
    %c0_338 = arith.constant 0 : index
    %c22_339 = arith.constant 22 : index
    %c0_340 = arith.constant 0 : index
    %c0_341 = arith.constant 0 : index
    %538 = vector.load %arg3[%c0_338, %c22_339, %c0_340, %c0_341] : memref<2x32x16x128xf32, #tpu.memory_space<vmem>>, vector<1x1x16x128xf32>
    %539 = vector.shape_cast %538 : vector<1x1x16x128xf32> to vector<1x16x128xf32>
    %c1_342 = arith.constant 1 : index
    %c22_343 = arith.constant 22 : index
    %c0_344 = arith.constant 0 : index
    %c0_345 = arith.constant 0 : index
    %540 = vector.load %arg3[%c1_342, %c22_343, %c0_344, %c0_345] : memref<2x32x16x128xf32, #tpu.memory_space<vmem>>, vector<1x1x16x128xf32>
    %541 = vector.shape_cast %540 : vector<1x1x16x128xf32> to vector<1x16x128xf32>
    %542 = vector.broadcast %539 : vector<1x16x128xf32> to vector<2x16x128xf32>
    %543 = arith.mulf %533, %542 : vector<2x16x128xf32>
    %544 = arith.addf %523, %543 : vector<2x16x128xf32>
    %545 = vector.broadcast %541 : vector<1x16x128xf32> to vector<2x16x128xf32>
    %546 = arith.mulf %537, %545 : vector<2x16x128xf32>
    %547 = arith.subf %544, %546 : vector<2x16x128xf32>
    %548 = vector.broadcast %541 : vector<1x16x128xf32> to vector<2x16x128xf32>
    %549 = arith.mulf %533, %548 : vector<2x16x128xf32>
    %550 = arith.addf %529, %549 : vector<2x16x128xf32>
    %551 = vector.broadcast %539 : vector<1x16x128xf32> to vector<2x16x128xf32>
    %552 = arith.mulf %537, %551 : vector<2x16x128xf32>
    %553 = arith.addf %550, %552 : vector<2x16x128xf32>
    %c0_346 = arith.constant 0 : index
    %c0_347 = arith.constant 0 : index
    %c23 = arith.constant 23 : index
    %c0_348 = arith.constant 0 : index
    %554 = vector.load %arg2[%c0_346, %c0_347, %c23, %c0_348] : memref<2x2x32x128xf32, #tpu.memory_space<vmem>>, vector<1x2x1x128xf32>
    %555 = vector.shape_cast %554 : vector<1x2x1x128xf32> to vector<2x1x128xf32>
    %556 = vector.shape_cast %555 : vector<2x1x128xf32> to vector<2x1x128xf32>
    %557 = vector.broadcast %556 : vector<2x1x128xf32> to vector<2x16x128xf32>
    %c1_349 = arith.constant 1 : index
    %c0_350 = arith.constant 0 : index
    %c23_351 = arith.constant 23 : index
    %c0_352 = arith.constant 0 : index
    %558 = vector.load %arg2[%c1_349, %c0_350, %c23_351, %c0_352] : memref<2x2x32x128xf32, #tpu.memory_space<vmem>>, vector<1x2x1x128xf32>
    %559 = vector.shape_cast %558 : vector<1x2x1x128xf32> to vector<2x1x128xf32>
    %560 = vector.shape_cast %559 : vector<2x1x128xf32> to vector<2x1x128xf32>
    %561 = vector.broadcast %560 : vector<2x1x128xf32> to vector<2x16x128xf32>
    %c0_353 = arith.constant 0 : index
    %c23_354 = arith.constant 23 : index
    %c0_355 = arith.constant 0 : index
    %c0_356 = arith.constant 0 : index
    %562 = vector.load %arg3[%c0_353, %c23_354, %c0_355, %c0_356] : memref<2x32x16x128xf32, #tpu.memory_space<vmem>>, vector<1x1x16x128xf32>
    %563 = vector.shape_cast %562 : vector<1x1x16x128xf32> to vector<1x16x128xf32>
    %c1_357 = arith.constant 1 : index
    %c23_358 = arith.constant 23 : index
    %c0_359 = arith.constant 0 : index
    %c0_360 = arith.constant 0 : index
    %564 = vector.load %arg3[%c1_357, %c23_358, %c0_359, %c0_360] : memref<2x32x16x128xf32, #tpu.memory_space<vmem>>, vector<1x1x16x128xf32>
    %565 = vector.shape_cast %564 : vector<1x1x16x128xf32> to vector<1x16x128xf32>
    %566 = vector.broadcast %563 : vector<1x16x128xf32> to vector<2x16x128xf32>
    %567 = arith.mulf %557, %566 : vector<2x16x128xf32>
    %568 = arith.addf %547, %567 : vector<2x16x128xf32>
    %569 = vector.broadcast %565 : vector<1x16x128xf32> to vector<2x16x128xf32>
    %570 = arith.mulf %561, %569 : vector<2x16x128xf32>
    %571 = arith.subf %568, %570 : vector<2x16x128xf32>
    %572 = vector.broadcast %565 : vector<1x16x128xf32> to vector<2x16x128xf32>
    %573 = arith.mulf %557, %572 : vector<2x16x128xf32>
    %574 = arith.addf %553, %573 : vector<2x16x128xf32>
    %575 = vector.broadcast %563 : vector<1x16x128xf32> to vector<2x16x128xf32>
    %576 = arith.mulf %561, %575 : vector<2x16x128xf32>
    %577 = arith.addf %574, %576 : vector<2x16x128xf32>
    %c0_361 = arith.constant 0 : index
    %c0_362 = arith.constant 0 : index
    %c24 = arith.constant 24 : index
    %c0_363 = arith.constant 0 : index
    %578 = vector.load %arg2[%c0_361, %c0_362, %c24, %c0_363] : memref<2x2x32x128xf32, #tpu.memory_space<vmem>>, vector<1x2x1x128xf32>
    %579 = vector.shape_cast %578 : vector<1x2x1x128xf32> to vector<2x1x128xf32>
    %580 = vector.shape_cast %579 : vector<2x1x128xf32> to vector<2x1x128xf32>
    %581 = vector.broadcast %580 : vector<2x1x128xf32> to vector<2x16x128xf32>
    %c1_364 = arith.constant 1 : index
    %c0_365 = arith.constant 0 : index
    %c24_366 = arith.constant 24 : index
    %c0_367 = arith.constant 0 : index
    %582 = vector.load %arg2[%c1_364, %c0_365, %c24_366, %c0_367] : memref<2x2x32x128xf32, #tpu.memory_space<vmem>>, vector<1x2x1x128xf32>
    %583 = vector.shape_cast %582 : vector<1x2x1x128xf32> to vector<2x1x128xf32>
    %584 = vector.shape_cast %583 : vector<2x1x128xf32> to vector<2x1x128xf32>
    %585 = vector.broadcast %584 : vector<2x1x128xf32> to vector<2x16x128xf32>
    %c0_368 = arith.constant 0 : index
    %c24_369 = arith.constant 24 : index
    %c0_370 = arith.constant 0 : index
    %c0_371 = arith.constant 0 : index
    %586 = vector.load %arg3[%c0_368, %c24_369, %c0_370, %c0_371] : memref<2x32x16x128xf32, #tpu.memory_space<vmem>>, vector<1x1x16x128xf32>
    %587 = vector.shape_cast %586 : vector<1x1x16x128xf32> to vector<1x16x128xf32>
    %c1_372 = arith.constant 1 : index
    %c24_373 = arith.constant 24 : index
    %c0_374 = arith.constant 0 : index
    %c0_375 = arith.constant 0 : index
    %588 = vector.load %arg3[%c1_372, %c24_373, %c0_374, %c0_375] : memref<2x32x16x128xf32, #tpu.memory_space<vmem>>, vector<1x1x16x128xf32>
    %589 = vector.shape_cast %588 : vector<1x1x16x128xf32> to vector<1x16x128xf32>
    %590 = vector.broadcast %587 : vector<1x16x128xf32> to vector<2x16x128xf32>
    %591 = arith.mulf %581, %590 : vector<2x16x128xf32>
    %592 = arith.addf %571, %591 : vector<2x16x128xf32>
    %593 = vector.broadcast %589 : vector<1x16x128xf32> to vector<2x16x128xf32>
    %594 = arith.mulf %585, %593 : vector<2x16x128xf32>
    %595 = arith.subf %592, %594 : vector<2x16x128xf32>
    %596 = vector.broadcast %589 : vector<1x16x128xf32> to vector<2x16x128xf32>
    %597 = arith.mulf %581, %596 : vector<2x16x128xf32>
    %598 = arith.addf %577, %597 : vector<2x16x128xf32>
    %599 = vector.broadcast %587 : vector<1x16x128xf32> to vector<2x16x128xf32>
    %600 = arith.mulf %585, %599 : vector<2x16x128xf32>
    %601 = arith.addf %598, %600 : vector<2x16x128xf32>
    %c0_376 = arith.constant 0 : index
    %c0_377 = arith.constant 0 : index
    %c25 = arith.constant 25 : index
    %c0_378 = arith.constant 0 : index
    %602 = vector.load %arg2[%c0_376, %c0_377, %c25, %c0_378] : memref<2x2x32x128xf32, #tpu.memory_space<vmem>>, vector<1x2x1x128xf32>
    %603 = vector.shape_cast %602 : vector<1x2x1x128xf32> to vector<2x1x128xf32>
    %604 = vector.shape_cast %603 : vector<2x1x128xf32> to vector<2x1x128xf32>
    %605 = vector.broadcast %604 : vector<2x1x128xf32> to vector<2x16x128xf32>
    %c1_379 = arith.constant 1 : index
    %c0_380 = arith.constant 0 : index
    %c25_381 = arith.constant 25 : index
    %c0_382 = arith.constant 0 : index
    %606 = vector.load %arg2[%c1_379, %c0_380, %c25_381, %c0_382] : memref<2x2x32x128xf32, #tpu.memory_space<vmem>>, vector<1x2x1x128xf32>
    %607 = vector.shape_cast %606 : vector<1x2x1x128xf32> to vector<2x1x128xf32>
    %608 = vector.shape_cast %607 : vector<2x1x128xf32> to vector<2x1x128xf32>
    %609 = vector.broadcast %608 : vector<2x1x128xf32> to vector<2x16x128xf32>
    %c0_383 = arith.constant 0 : index
    %c25_384 = arith.constant 25 : index
    %c0_385 = arith.constant 0 : index
    %c0_386 = arith.constant 0 : index
    %610 = vector.load %arg3[%c0_383, %c25_384, %c0_385, %c0_386] : memref<2x32x16x128xf32, #tpu.memory_space<vmem>>, vector<1x1x16x128xf32>
    %611 = vector.shape_cast %610 : vector<1x1x16x128xf32> to vector<1x16x128xf32>
    %c1_387 = arith.constant 1 : index
    %c25_388 = arith.constant 25 : index
    %c0_389 = arith.constant 0 : index
    %c0_390 = arith.constant 0 : index
    %612 = vector.load %arg3[%c1_387, %c25_388, %c0_389, %c0_390] : memref<2x32x16x128xf32, #tpu.memory_space<vmem>>, vector<1x1x16x128xf32>
    %613 = vector.shape_cast %612 : vector<1x1x16x128xf32> to vector<1x16x128xf32>
    %614 = vector.broadcast %611 : vector<1x16x128xf32> to vector<2x16x128xf32>
    %615 = arith.mulf %605, %614 : vector<2x16x128xf32>
    %616 = arith.addf %595, %615 : vector<2x16x128xf32>
    %617 = vector.broadcast %613 : vector<1x16x128xf32> to vector<2x16x128xf32>
    %618 = arith.mulf %609, %617 : vector<2x16x128xf32>
    %619 = arith.subf %616, %618 : vector<2x16x128xf32>
    %620 = vector.broadcast %613 : vector<1x16x128xf32> to vector<2x16x128xf32>
    %621 = arith.mulf %605, %620 : vector<2x16x128xf32>
    %622 = arith.addf %601, %621 : vector<2x16x128xf32>
    %623 = vector.broadcast %611 : vector<1x16x128xf32> to vector<2x16x128xf32>
    %624 = arith.mulf %609, %623 : vector<2x16x128xf32>
    %625 = arith.addf %622, %624 : vector<2x16x128xf32>
    %c0_391 = arith.constant 0 : index
    %c0_392 = arith.constant 0 : index
    %c26 = arith.constant 26 : index
    %c0_393 = arith.constant 0 : index
    %626 = vector.load %arg2[%c0_391, %c0_392, %c26, %c0_393] : memref<2x2x32x128xf32, #tpu.memory_space<vmem>>, vector<1x2x1x128xf32>
    %627 = vector.shape_cast %626 : vector<1x2x1x128xf32> to vector<2x1x128xf32>
    %628 = vector.shape_cast %627 : vector<2x1x128xf32> to vector<2x1x128xf32>
    %629 = vector.broadcast %628 : vector<2x1x128xf32> to vector<2x16x128xf32>
    %c1_394 = arith.constant 1 : index
    %c0_395 = arith.constant 0 : index
    %c26_396 = arith.constant 26 : index
    %c0_397 = arith.constant 0 : index
    %630 = vector.load %arg2[%c1_394, %c0_395, %c26_396, %c0_397] : memref<2x2x32x128xf32, #tpu.memory_space<vmem>>, vector<1x2x1x128xf32>
    %631 = vector.shape_cast %630 : vector<1x2x1x128xf32> to vector<2x1x128xf32>
    %632 = vector.shape_cast %631 : vector<2x1x128xf32> to vector<2x1x128xf32>
    %633 = vector.broadcast %632 : vector<2x1x128xf32> to vector<2x16x128xf32>
    %c0_398 = arith.constant 0 : index
    %c26_399 = arith.constant 26 : index
    %c0_400 = arith.constant 0 : index
    %c0_401 = arith.constant 0 : index
    %634 = vector.load %arg3[%c0_398, %c26_399, %c0_400, %c0_401] : memref<2x32x16x128xf32, #tpu.memory_space<vmem>>, vector<1x1x16x128xf32>
    %635 = vector.shape_cast %634 : vector<1x1x16x128xf32> to vector<1x16x128xf32>
    %c1_402 = arith.constant 1 : index
    %c26_403 = arith.constant 26 : index
    %c0_404 = arith.constant 0 : index
    %c0_405 = arith.constant 0 : index
    %636 = vector.load %arg3[%c1_402, %c26_403, %c0_404, %c0_405] : memref<2x32x16x128xf32, #tpu.memory_space<vmem>>, vector<1x1x16x128xf32>
    %637 = vector.shape_cast %636 : vector<1x1x16x128xf32> to vector<1x16x128xf32>
    %638 = vector.broadcast %635 : vector<1x16x128xf32> to vector<2x16x128xf32>
    %639 = arith.mulf %629, %638 : vector<2x16x128xf32>
    %640 = arith.addf %619, %639 : vector<2x16x128xf32>
    %641 = vector.broadcast %637 : vector<1x16x128xf32> to vector<2x16x128xf32>
    %642 = arith.mulf %633, %641 : vector<2x16x128xf32>
    %643 = arith.subf %640, %642 : vector<2x16x128xf32>
    %644 = vector.broadcast %637 : vector<1x16x128xf32> to vector<2x16x128xf32>
    %645 = arith.mulf %629, %644 : vector<2x16x128xf32>
    %646 = arith.addf %625, %645 : vector<2x16x128xf32>
    %647 = vector.broadcast %635 : vector<1x16x128xf32> to vector<2x16x128xf32>
    %648 = arith.mulf %633, %647 : vector<2x16x128xf32>
    %649 = arith.addf %646, %648 : vector<2x16x128xf32>
    %c0_406 = arith.constant 0 : index
    %c0_407 = arith.constant 0 : index
    %c27 = arith.constant 27 : index
    %c0_408 = arith.constant 0 : index
    %650 = vector.load %arg2[%c0_406, %c0_407, %c27, %c0_408] : memref<2x2x32x128xf32, #tpu.memory_space<vmem>>, vector<1x2x1x128xf32>
    %651 = vector.shape_cast %650 : vector<1x2x1x128xf32> to vector<2x1x128xf32>
    %652 = vector.shape_cast %651 : vector<2x1x128xf32> to vector<2x1x128xf32>
    %653 = vector.broadcast %652 : vector<2x1x128xf32> to vector<2x16x128xf32>
    %c1_409 = arith.constant 1 : index
    %c0_410 = arith.constant 0 : index
    %c27_411 = arith.constant 27 : index
    %c0_412 = arith.constant 0 : index
    %654 = vector.load %arg2[%c1_409, %c0_410, %c27_411, %c0_412] : memref<2x2x32x128xf32, #tpu.memory_space<vmem>>, vector<1x2x1x128xf32>
    %655 = vector.shape_cast %654 : vector<1x2x1x128xf32> to vector<2x1x128xf32>
    %656 = vector.shape_cast %655 : vector<2x1x128xf32> to vector<2x1x128xf32>
    %657 = vector.broadcast %656 : vector<2x1x128xf32> to vector<2x16x128xf32>
    %c0_413 = arith.constant 0 : index
    %c27_414 = arith.constant 27 : index
    %c0_415 = arith.constant 0 : index
    %c0_416 = arith.constant 0 : index
    %658 = vector.load %arg3[%c0_413, %c27_414, %c0_415, %c0_416] : memref<2x32x16x128xf32, #tpu.memory_space<vmem>>, vector<1x1x16x128xf32>
    %659 = vector.shape_cast %658 : vector<1x1x16x128xf32> to vector<1x16x128xf32>
    %c1_417 = arith.constant 1 : index
    %c27_418 = arith.constant 27 : index
    %c0_419 = arith.constant 0 : index
    %c0_420 = arith.constant 0 : index
    %660 = vector.load %arg3[%c1_417, %c27_418, %c0_419, %c0_420] : memref<2x32x16x128xf32, #tpu.memory_space<vmem>>, vector<1x1x16x128xf32>
    %661 = vector.shape_cast %660 : vector<1x1x16x128xf32> to vector<1x16x128xf32>
    %662 = vector.broadcast %659 : vector<1x16x128xf32> to vector<2x16x128xf32>
    %663 = arith.mulf %653, %662 : vector<2x16x128xf32>
    %664 = arith.addf %643, %663 : vector<2x16x128xf32>
    %665 = vector.broadcast %661 : vector<1x16x128xf32> to vector<2x16x128xf32>
    %666 = arith.mulf %657, %665 : vector<2x16x128xf32>
    %667 = arith.subf %664, %666 : vector<2x16x128xf32>
    %668 = vector.broadcast %661 : vector<1x16x128xf32> to vector<2x16x128xf32>
    %669 = arith.mulf %653, %668 : vector<2x16x128xf32>
    %670 = arith.addf %649, %669 : vector<2x16x128xf32>
    %671 = vector.broadcast %659 : vector<1x16x128xf32> to vector<2x16x128xf32>
    %672 = arith.mulf %657, %671 : vector<2x16x128xf32>
    %673 = arith.addf %670, %672 : vector<2x16x128xf32>
    %c0_421 = arith.constant 0 : index
    %c0_422 = arith.constant 0 : index
    %c28 = arith.constant 28 : index
    %c0_423 = arith.constant 0 : index
    %674 = vector.load %arg2[%c0_421, %c0_422, %c28, %c0_423] : memref<2x2x32x128xf32, #tpu.memory_space<vmem>>, vector<1x2x1x128xf32>
    %675 = vector.shape_cast %674 : vector<1x2x1x128xf32> to vector<2x1x128xf32>
    %676 = vector.shape_cast %675 : vector<2x1x128xf32> to vector<2x1x128xf32>
    %677 = vector.broadcast %676 : vector<2x1x128xf32> to vector<2x16x128xf32>
    %c1_424 = arith.constant 1 : index
    %c0_425 = arith.constant 0 : index
    %c28_426 = arith.constant 28 : index
    %c0_427 = arith.constant 0 : index
    %678 = vector.load %arg2[%c1_424, %c0_425, %c28_426, %c0_427] : memref<2x2x32x128xf32, #tpu.memory_space<vmem>>, vector<1x2x1x128xf32>
    %679 = vector.shape_cast %678 : vector<1x2x1x128xf32> to vector<2x1x128xf32>
    %680 = vector.shape_cast %679 : vector<2x1x128xf32> to vector<2x1x128xf32>
    %681 = vector.broadcast %680 : vector<2x1x128xf32> to vector<2x16x128xf32>
    %c0_428 = arith.constant 0 : index
    %c28_429 = arith.constant 28 : index
    %c0_430 = arith.constant 0 : index
    %c0_431 = arith.constant 0 : index
    %682 = vector.load %arg3[%c0_428, %c28_429, %c0_430, %c0_431] : memref<2x32x16x128xf32, #tpu.memory_space<vmem>>, vector<1x1x16x128xf32>
    %683 = vector.shape_cast %682 : vector<1x1x16x128xf32> to vector<1x16x128xf32>
    %c1_432 = arith.constant 1 : index
    %c28_433 = arith.constant 28 : index
    %c0_434 = arith.constant 0 : index
    %c0_435 = arith.constant 0 : index
    %684 = vector.load %arg3[%c1_432, %c28_433, %c0_434, %c0_435] : memref<2x32x16x128xf32, #tpu.memory_space<vmem>>, vector<1x1x16x128xf32>
    %685 = vector.shape_cast %684 : vector<1x1x16x128xf32> to vector<1x16x128xf32>
    %686 = vector.broadcast %683 : vector<1x16x128xf32> to vector<2x16x128xf32>
    %687 = arith.mulf %677, %686 : vector<2x16x128xf32>
    %688 = arith.addf %667, %687 : vector<2x16x128xf32>
    %689 = vector.broadcast %685 : vector<1x16x128xf32> to vector<2x16x128xf32>
    %690 = arith.mulf %681, %689 : vector<2x16x128xf32>
    %691 = arith.subf %688, %690 : vector<2x16x128xf32>
    %692 = vector.broadcast %685 : vector<1x16x128xf32> to vector<2x16x128xf32>
    %693 = arith.mulf %677, %692 : vector<2x16x128xf32>
    %694 = arith.addf %673, %693 : vector<2x16x128xf32>
    %695 = vector.broadcast %683 : vector<1x16x128xf32> to vector<2x16x128xf32>
    %696 = arith.mulf %681, %695 : vector<2x16x128xf32>
    %697 = arith.addf %694, %696 : vector<2x16x128xf32>
    %c0_436 = arith.constant 0 : index
    %c0_437 = arith.constant 0 : index
    %c29 = arith.constant 29 : index
    %c0_438 = arith.constant 0 : index
    %698 = vector.load %arg2[%c0_436, %c0_437, %c29, %c0_438] : memref<2x2x32x128xf32, #tpu.memory_space<vmem>>, vector<1x2x1x128xf32>
    %699 = vector.shape_cast %698 : vector<1x2x1x128xf32> to vector<2x1x128xf32>
    %700 = vector.shape_cast %699 : vector<2x1x128xf32> to vector<2x1x128xf32>
    %701 = vector.broadcast %700 : vector<2x1x128xf32> to vector<2x16x128xf32>
    %c1_439 = arith.constant 1 : index
    %c0_440 = arith.constant 0 : index
    %c29_441 = arith.constant 29 : index
    %c0_442 = arith.constant 0 : index
    %702 = vector.load %arg2[%c1_439, %c0_440, %c29_441, %c0_442] : memref<2x2x32x128xf32, #tpu.memory_space<vmem>>, vector<1x2x1x128xf32>
    %703 = vector.shape_cast %702 : vector<1x2x1x128xf32> to vector<2x1x128xf32>
    %704 = vector.shape_cast %703 : vector<2x1x128xf32> to vector<2x1x128xf32>
    %705 = vector.broadcast %704 : vector<2x1x128xf32> to vector<2x16x128xf32>
    %c0_443 = arith.constant 0 : index
    %c29_444 = arith.constant 29 : index
    %c0_445 = arith.constant 0 : index
    %c0_446 = arith.constant 0 : index
    %706 = vector.load %arg3[%c0_443, %c29_444, %c0_445, %c0_446] : memref<2x32x16x128xf32, #tpu.memory_space<vmem>>, vector<1x1x16x128xf32>
    %707 = vector.shape_cast %706 : vector<1x1x16x128xf32> to vector<1x16x128xf32>
    %c1_447 = arith.constant 1 : index
    %c29_448 = arith.constant 29 : index
    %c0_449 = arith.constant 0 : index
    %c0_450 = arith.constant 0 : index
    %708 = vector.load %arg3[%c1_447, %c29_448, %c0_449, %c0_450] : memref<2x32x16x128xf32, #tpu.memory_space<vmem>>, vector<1x1x16x128xf32>
    %709 = vector.shape_cast %708 : vector<1x1x16x128xf32> to vector<1x16x128xf32>
    %710 = vector.broadcast %707 : vector<1x16x128xf32> to vector<2x16x128xf32>
    %711 = arith.mulf %701, %710 : vector<2x16x128xf32>
    %712 = arith.addf %691, %711 : vector<2x16x128xf32>
    %713 = vector.broadcast %709 : vector<1x16x128xf32> to vector<2x16x128xf32>
    %714 = arith.mulf %705, %713 : vector<2x16x128xf32>
    %715 = arith.subf %712, %714 : vector<2x16x128xf32>
    %716 = vector.broadcast %709 : vector<1x16x128xf32> to vector<2x16x128xf32>
    %717 = arith.mulf %701, %716 : vector<2x16x128xf32>
    %718 = arith.addf %697, %717 : vector<2x16x128xf32>
    %719 = vector.broadcast %707 : vector<1x16x128xf32> to vector<2x16x128xf32>
    %720 = arith.mulf %705, %719 : vector<2x16x128xf32>
    %721 = arith.addf %718, %720 : vector<2x16x128xf32>
    %c0_451 = arith.constant 0 : index
    %c0_452 = arith.constant 0 : index
    %c30 = arith.constant 30 : index
    %c0_453 = arith.constant 0 : index
    %722 = vector.load %arg2[%c0_451, %c0_452, %c30, %c0_453] : memref<2x2x32x128xf32, #tpu.memory_space<vmem>>, vector<1x2x1x128xf32>
    %723 = vector.shape_cast %722 : vector<1x2x1x128xf32> to vector<2x1x128xf32>
    %724 = vector.shape_cast %723 : vector<2x1x128xf32> to vector<2x1x128xf32>
    %725 = vector.broadcast %724 : vector<2x1x128xf32> to vector<2x16x128xf32>
    %c1_454 = arith.constant 1 : index
    %c0_455 = arith.constant 0 : index
    %c30_456 = arith.constant 30 : index
    %c0_457 = arith.constant 0 : index
    %726 = vector.load %arg2[%c1_454, %c0_455, %c30_456, %c0_457] : memref<2x2x32x128xf32, #tpu.memory_space<vmem>>, vector<1x2x1x128xf32>
    %727 = vector.shape_cast %726 : vector<1x2x1x128xf32> to vector<2x1x128xf32>
    %728 = vector.shape_cast %727 : vector<2x1x128xf32> to vector<2x1x128xf32>
    %729 = vector.broadcast %728 : vector<2x1x128xf32> to vector<2x16x128xf32>
    %c0_458 = arith.constant 0 : index
    %c30_459 = arith.constant 30 : index
    %c0_460 = arith.constant 0 : index
    %c0_461 = arith.constant 0 : index
    %730 = vector.load %arg3[%c0_458, %c30_459, %c0_460, %c0_461] : memref<2x32x16x128xf32, #tpu.memory_space<vmem>>, vector<1x1x16x128xf32>
    %731 = vector.shape_cast %730 : vector<1x1x16x128xf32> to vector<1x16x128xf32>
    %c1_462 = arith.constant 1 : index
    %c30_463 = arith.constant 30 : index
    %c0_464 = arith.constant 0 : index
    %c0_465 = arith.constant 0 : index
    %732 = vector.load %arg3[%c1_462, %c30_463, %c0_464, %c0_465] : memref<2x32x16x128xf32, #tpu.memory_space<vmem>>, vector<1x1x16x128xf32>
    %733 = vector.shape_cast %732 : vector<1x1x16x128xf32> to vector<1x16x128xf32>
    %734 = vector.broadcast %731 : vector<1x16x128xf32> to vector<2x16x128xf32>
    %735 = arith.mulf %725, %734 : vector<2x16x128xf32>
    %736 = arith.addf %715, %735 : vector<2x16x128xf32>
    %737 = vector.broadcast %733 : vector<1x16x128xf32> to vector<2x16x128xf32>
    %738 = arith.mulf %729, %737 : vector<2x16x128xf32>
    %739 = arith.subf %736, %738 : vector<2x16x128xf32>
    %740 = vector.broadcast %733 : vector<1x16x128xf32> to vector<2x16x128xf32>
    %741 = arith.mulf %725, %740 : vector<2x16x128xf32>
    %742 = arith.addf %721, %741 : vector<2x16x128xf32>
    %743 = vector.broadcast %731 : vector<1x16x128xf32> to vector<2x16x128xf32>
    %744 = arith.mulf %729, %743 : vector<2x16x128xf32>
    %745 = arith.addf %742, %744 : vector<2x16x128xf32>
    %c0_466 = arith.constant 0 : index
    %c0_467 = arith.constant 0 : index
    %c31 = arith.constant 31 : index
    %c0_468 = arith.constant 0 : index
    %746 = vector.load %arg2[%c0_466, %c0_467, %c31, %c0_468] : memref<2x2x32x128xf32, #tpu.memory_space<vmem>>, vector<1x2x1x128xf32>
    %747 = vector.shape_cast %746 : vector<1x2x1x128xf32> to vector<2x1x128xf32>
    %748 = vector.shape_cast %747 : vector<2x1x128xf32> to vector<2x1x128xf32>
    %749 = vector.broadcast %748 : vector<2x1x128xf32> to vector<2x16x128xf32>
    %c1_469 = arith.constant 1 : index
    %c0_470 = arith.constant 0 : index
    %c31_471 = arith.constant 31 : index
    %c0_472 = arith.constant 0 : index
    %750 = vector.load %arg2[%c1_469, %c0_470, %c31_471, %c0_472] : memref<2x2x32x128xf32, #tpu.memory_space<vmem>>, vector<1x2x1x128xf32>
    %751 = vector.shape_cast %750 : vector<1x2x1x128xf32> to vector<2x1x128xf32>
    %752 = vector.shape_cast %751 : vector<2x1x128xf32> to vector<2x1x128xf32>
    %753 = vector.broadcast %752 : vector<2x1x128xf32> to vector<2x16x128xf32>
    %c0_473 = arith.constant 0 : index
    %c31_474 = arith.constant 31 : index
    %c0_475 = arith.constant 0 : index
    %c0_476 = arith.constant 0 : index
    %754 = vector.load %arg3[%c0_473, %c31_474, %c0_475, %c0_476] : memref<2x32x16x128xf32, #tpu.memory_space<vmem>>, vector<1x1x16x128xf32>
    %755 = vector.shape_cast %754 : vector<1x1x16x128xf32> to vector<1x16x128xf32>
    %c1_477 = arith.constant 1 : index
    %c31_478 = arith.constant 31 : index
    %c0_479 = arith.constant 0 : index
    %c0_480 = arith.constant 0 : index
    %756 = vector.load %arg3[%c1_477, %c31_478, %c0_479, %c0_480] : memref<2x32x16x128xf32, #tpu.memory_space<vmem>>, vector<1x1x16x128xf32>
    %757 = vector.shape_cast %756 : vector<1x1x16x128xf32> to vector<1x16x128xf32>
    %758 = vector.broadcast %755 : vector<1x16x128xf32> to vector<2x16x128xf32>
    %759 = arith.mulf %749, %758 : vector<2x16x128xf32>
    %760 = arith.addf %739, %759 : vector<2x16x128xf32>
    %761 = vector.broadcast %757 : vector<1x16x128xf32> to vector<2x16x128xf32>
    %762 = arith.mulf %753, %761 : vector<2x16x128xf32>
    %763 = arith.subf %760, %762 : vector<2x16x128xf32>
    %764 = vector.broadcast %757 : vector<1x16x128xf32> to vector<2x16x128xf32>
    %765 = arith.mulf %749, %764 : vector<2x16x128xf32>
    %766 = arith.addf %745, %765 : vector<2x16x128xf32>
    %767 = vector.broadcast %755 : vector<1x16x128xf32> to vector<2x16x128xf32>
    %768 = arith.mulf %753, %767 : vector<2x16x128xf32>
    %769 = arith.addf %766, %768 : vector<2x16x128xf32>
    %c0_481 = arith.constant 0 : index
    %c0_482 = arith.constant 0 : index
    %c0_483 = arith.constant 0 : index
    %c0_484 = arith.constant 0 : index
    %770 = vector.load %arg4[%c0_481, %c0_482, %c0_483, %c0_484] : memref<2x2x16x128xf32, #tpu.memory_space<vmem>>, vector<1x2x16x128xf32>
    %771 = vector.shape_cast %770 : vector<1x2x16x128xf32> to vector<2x16x128xf32>
    %772 = vector.shape_cast %763 : vector<2x16x128xf32> to vector<1x2x16x128xf32>
    tpu.vector_store %arg4[%c0_481, %c0_482, %c0_483, %c0_484], %772 {strides = array<i32>} : memref<2x2x16x128xf32, #tpu.memory_space<vmem>>, vector<1x2x16x128xf32>,
    %c1_485 = arith.constant 1 : index
    %c0_486 = arith.constant 0 : index
    %c0_487 = arith.constant 0 : index
    %c0_488 = arith.constant 0 : index
    %773 = vector.load %arg4[%c1_485, %c0_486, %c0_487, %c0_488] : memref<2x2x16x128xf32, #tpu.memory_space<vmem>>, vector<1x2x16x128xf32>
    %774 = vector.shape_cast %773 : vector<1x2x16x128xf32> to vector<2x16x128xf32>
    %775 = vector.shape_cast %769 : vector<2x16x128xf32> to vector<1x2x16x128xf32>
    tpu.vector_store %arg4[%c1_485, %c0_486, %c0_487, %c0_488], %775 {strides = array<i32>} : memref<2x2x16x128xf32, #tpu.memory_space<vmem>>, vector<1x2x16x128xf32>,
    return
  }
  func.func @transform_0(%arg0: i32, %arg1: i32) -> (i32, i32, i32, i32) {
    %c0_i32 = arith.constant 0 : i32
    %c0_i32_0 = arith.constant 0 : i32
    %c0_i32_1 = arith.constant 0 : i32
    %c0_i32_2 = arith.constant 0 : i32
    return %c0_i32, %c0_i32_0, %c0_i32_1, %arg0 : i32, i32, i32, i32
  }
  func.func @transform_1(%arg0: i32, %arg1: i32) -> (i32, i32, i32, i32) {
    %c0_i32 = arith.constant 0 : i32
    %c0_i32_0 = arith.constant 0 : i32
    %c0_i32_1 = arith.constant 0 : i32
    return %c0_i32, %c0_i32_0, %arg1, %arg0 : i32, i32, i32, i32
  }
  func.func @transform_2(%arg0: i32, %arg1: i32) -> (i32, i32, i32, i32) {
    %c0_i32 = arith.constant 0 : i32
    %c0_i32_0 = arith.constant 0 : i32
    %c0_i32_1 = arith.constant 0 : i32
    return %c0_i32, %c0_i32_0, %arg1, %arg0 : i32, i32, i32, i32
  }
}

module attributes {stable_mosaic.version = 11 : i64} {
  func.func @kernel(%arg0: i32, %arg1: i32, %arg2: memref<1x32x512xf32, #tpu.memory_space<vmem>>, %arg3: memref<32x32xf32, #tpu.memory_space<vmem>>, %arg4: memref<32x1xf32, #tpu.memory_space<vmem>>, %arg5: memref<1x32x512xf32, #tpu.memory_space<vmem>>, %arg6: memref<1x32x512xf32, #tpu.memory_space<vmem>>) attributes {dimension_semantics = [#tpu.dimension_semantics<parallel>, #tpu.dimension_semantics<parallel>], iteration_bounds = array<i64: 2, 2>, scalar_prefetch = 0 : i64, scratch_operands = 0 : i64, tpu.core_type = #tpu.core_type<tc>, window_params = [{transform_indices = @transform_0, window_bounds = array<i64: 1, 32, 512>}, {pipeline_mode = #tpu.pipeline_mode<synchronous>, transform_indices = @transform_1, window_bounds = array<i64: 32, 32>}, {pipeline_mode = #tpu.pipeline_mode<synchronous>, transform_indices = @transform_2, window_bounds = array<i64: 32, 1>}, {transform_indices = @transform_3, window_bounds = array<i64: 1, 32, 512>}, {transform_indices = @transform_4, window_bounds = array<i64: 1, 32, 512>}]} {
    %c0 = arith.constant 0 : index
    %c0_0 = arith.constant 0 : index
    %c0_1 = arith.constant 0 : index
    %0 = vector.load %arg2[%c0, %c0_0, %c0_1] : memref<1x32x512xf32, #tpu.memory_space<vmem>>, vector<1x32x512xf32>
    %1 = vector.shape_cast %0 : vector<1x32x512xf32> to vector<32x512xf32>
    %2 = arith.truncf %1 : vector<32x512xf32> to vector<32x512xbf16>
    %c0_2 = arith.constant 0 : index
    %c0_3 = arith.constant 0 : index
    %3 = vector.load %arg3[%c0_2, %c0_3] : memref<32x32xf32, #tpu.memory_space<vmem>>, vector<32x32xf32>
    %4 = arith.truncf %3 : vector<32x32xf32> to vector<32x32xbf16>
    %cst = arith.constant dense<0.000000e+00> : vector<32x512xf32>
    %5 = tpu.matmul %4, %2, %cst {dimension_numbers = #tpu.dot_dimension_numbers<[1], [0], [0], [1], [0, 0, 1, 1], [], []>} : vector<32x32xbf16>, vector<32x512xbf16>, vector<32x512xf32> -> vector<32x512xf32>
    %c0_4 = arith.constant 0 : index
    %c0_5 = arith.constant 0 : index
    %6 = vector.load %arg4[%c0_4, %c0_5] : memref<32x1xf32, #tpu.memory_space<vmem>>, vector<32x1xf32>
    %7 = vector.broadcast %6 : vector<32x1xf32> to vector<32x512xf32>
    %8 = arith.addf %5, %7 : vector<32x512xf32>
    %c0_6 = arith.constant 0 : index
    %c0_7 = arith.constant 0 : index
    %c0_8 = arith.constant 0 : index
    %9 = vector.load %arg5[%c0_6, %c0_7, %c0_8] : memref<1x32x512xf32, #tpu.memory_space<vmem>>, vector<1x32x512xf32>
    %10 = vector.shape_cast %9 : vector<1x32x512xf32> to vector<32x512xf32>
    %11 = arith.addf %8, %10 : vector<32x512xf32>
    %cst_9 = arith.constant 5.000000e-01 : f32
    %12 = vector.broadcast %cst_9 : f32 to vector<32x512xf32>
    %13 = arith.mulf %12, %11 : vector<32x512xf32>
    %cst_10 = arith.constant 4.471500e-02 : f32
    %14 = vector.broadcast %cst_10 : f32 to vector<32x512xf32>
    %15 = arith.mulf %14, %11 : vector<32x512xf32>
    %16 = arith.mulf %15, %11 : vector<32x512xf32>
    %17 = arith.mulf %16, %11 : vector<32x512xf32>
    %18 = arith.addf %11, %17 : vector<32x512xf32>
    %cst_11 = arith.constant 0.797884583 : f32
    %19 = vector.broadcast %cst_11 : f32 to vector<32x512xf32>
    %20 = arith.mulf %19, %18 : vector<32x512xf32>
    %21 = math.tanh %20 : vector<32x512xf32>
    %cst_12 = arith.constant 1.000000e+00 : f32
    %22 = vector.broadcast %cst_12 : f32 to vector<32x512xf32>
    %23 = arith.addf %22, %21 : vector<32x512xf32>
    %24 = arith.mulf %13, %23 : vector<32x512xf32>
    %c0_13 = arith.constant 0 : index
    %c0_14 = arith.constant 0 : index
    %c0_15 = arith.constant 0 : index
    %25 = vector.load %arg6[%c0_13, %c0_14, %c0_15] : memref<1x32x512xf32, #tpu.memory_space<vmem>>, vector<1x32x512xf32>
    %26 = vector.shape_cast %25 : vector<1x32x512xf32> to vector<32x512xf32>
    %27 = vector.shape_cast %24 : vector<32x512xf32> to vector<1x32x512xf32>
    tpu.vector_store %arg6[%c0_13, %c0_14, %c0_15], %27 {strides = array<i32>} : memref<1x32x512xf32, #tpu.memory_space<vmem>>, vector<1x32x512xf32>,
    return
  }
  func.func @transform_0(%arg0: i32, %arg1: i32) -> (i32, i32, i32) {
    %c0_i32 = arith.constant 0 : i32
    %c0_i32_0 = arith.constant 0 : i32
    return %arg0, %c0_i32, %arg1 : i32, i32, i32
  }
  func.func @transform_1(%arg0: i32, %arg1: i32) -> (i32, i32) {
    %c0_i32 = arith.constant 0 : i32
    %c0_i32_0 = arith.constant 0 : i32
    %c0_i32_1 = arith.constant 0 : i32
    return %c0_i32, %c0_i32_0 : i32, i32
  }
  func.func @transform_2(%arg0: i32, %arg1: i32) -> (i32, i32) {
    %c0_i32 = arith.constant 0 : i32
    %c0_i32_0 = arith.constant 0 : i32
    %c0_i32_1 = arith.constant 0 : i32
    return %c0_i32, %c0_i32_0 : i32, i32
  }
  func.func @transform_3(%arg0: i32, %arg1: i32) -> (i32, i32, i32) {
    %c0_i32 = arith.constant 0 : i32
    %c0_i32_0 = arith.constant 0 : i32
    return %arg0, %c0_i32, %arg1 : i32, i32, i32
  }
  func.func @transform_4(%arg0: i32, %arg1: i32) -> (i32, i32, i32) {
    %c0_i32 = arith.constant 0 : i32
    %c0_i32_0 = arith.constant 0 : i32
    return %arg0, %c0_i32, %arg1 : i32, i32, i32
  }
}

module attributes {stable_mosaic.version = 11 : i64} {
  func.func @kernel(%arg0: i32, %arg1: i32, %arg2: memref<1x32x512xf32, #tpu.memory_space<vmem>>, %arg3: memref<32x32xf32, #tpu.memory_space<vmem>>, %arg4: memref<32x1xf32, #tpu.memory_space<vmem>>, %arg5: memref<1x32x512xf32, #tpu.memory_space<vmem>>, %arg6: memref<1x32x512xf32, #tpu.memory_space<vmem>>) attributes {dimension_semantics = [#tpu.dimension_semantics<parallel>, #tpu.dimension_semantics<parallel>], iteration_bounds = array<i64: 2, 2>, scalar_prefetch = 0 : i64, scratch_operands = 0 : i64, tpu.core_type = #tpu.core_type<tc>, window_params = [{transform_indices = @transform_0, window_bounds = array<i64: 1, 32, 512>}, {pipeline_mode = #tpu.pipeline_mode<synchronous>, transform_indices = @transform_1, window_bounds = array<i64: 32, 32>}, {pipeline_mode = #tpu.pipeline_mode<synchronous>, transform_indices = @transform_2, window_bounds = array<i64: 32, 1>}, {transform_indices = @transform_3, window_bounds = array<i64: 1, 32, 512>}, {transform_indices = @transform_4, window_bounds = array<i64: 1, 32, 512>}]} {
    %c0 = arith.constant 0 : index
    %c0_0 = arith.constant 0 : index
    %c0_1 = arith.constant 0 : index
    %0 = vector.load %arg2[%c0, %c0_0, %c0_1] : memref<1x32x512xf32, #tpu.memory_space<vmem>>, vector<1x32x512xf32>
    %1 = vector.shape_cast %0 : vector<1x32x512xf32> to vector<32x512xf32>
    %2 = arith.truncf %1 : vector<32x512xf32> to vector<32x512xbf16>
    %c0_2 = arith.constant 0 : index
    %c0_3 = arith.constant 0 : index
    %3 = vector.load %arg3[%c0_2, %c0_3] : memref<32x32xf32, #tpu.memory_space<vmem>>, vector<32x32xf32>
    %4 = arith.truncf %3 : vector<32x32xf32> to vector<32x32xbf16>
    %cst = arith.constant dense<0.000000e+00> : vector<32x512xf32>
    %5 = tpu.matmul %4, %2, %cst {dimension_numbers = #tpu.dot_dimension_numbers<[1], [0], [0], [1], [0, 0, 1, 1], [], []>} : vector<32x32xbf16>, vector<32x512xbf16>, vector<32x512xf32> -> vector<32x512xf32>
    %c0_4 = arith.constant 0 : index
    %c0_5 = arith.constant 0 : index
    %6 = vector.load %arg4[%c0_4, %c0_5] : memref<32x1xf32, #tpu.memory_space<vmem>>, vector<32x1xf32>
    %7 = vector.broadcast %6 : vector<32x1xf32> to vector<32x512xf32>
    %8 = arith.addf %5, %7 : vector<32x512xf32>
    %c0_6 = arith.constant 0 : index
    %c0_7 = arith.constant 0 : index
    %c0_8 = arith.constant 0 : index
    %9 = vector.load %arg5[%c0_6, %c0_7, %c0_8] : memref<1x32x512xf32, #tpu.memory_space<vmem>>, vector<1x32x512xf32>
    %10 = vector.shape_cast %9 : vector<1x32x512xf32> to vector<32x512xf32>
    %11 = arith.addf %8, %10 : vector<32x512xf32>
    %c0_9 = arith.constant 0 : index
    %c0_10 = arith.constant 0 : index
    %c0_11 = arith.constant 0 : index
    %12 = vector.load %arg6[%c0_9, %c0_10, %c0_11] : memref<1x32x512xf32, #tpu.memory_space<vmem>>, vector<1x32x512xf32>
    %13 = vector.shape_cast %12 : vector<1x32x512xf32> to vector<32x512xf32>
    %14 = vector.shape_cast %11 : vector<32x512xf32> to vector<1x32x512xf32>
    tpu.vector_store %arg6[%c0_9, %c0_10, %c0_11], %14 {strides = array<i32>} : memref<1x32x512xf32, #tpu.memory_space<vmem>>, vector<1x32x512xf32>,
    return
  }
  func.func @transform_0(%arg0: i32, %arg1: i32) -> (i32, i32, i32) {
    %c0_i32 = arith.constant 0 : i32
    %c0_i32_0 = arith.constant 0 : i32
    return %arg0, %c0_i32, %arg1 : i32, i32, i32
  }
  func.func @transform_1(%arg0: i32, %arg1: i32) -> (i32, i32) {
    %c0_i32 = arith.constant 0 : i32
    %c0_i32_0 = arith.constant 0 : i32
    %c0_i32_1 = arith.constant 0 : i32
    return %c0_i32, %c0_i32_0 : i32, i32
  }
  func.func @transform_2(%arg0: i32, %arg1: i32) -> (i32, i32) {
    %c0_i32 = arith.constant 0 : i32
    %c0_i32_0 = arith.constant 0 : i32
    %c0_i32_1 = arith.constant 0 : i32
    return %c0_i32, %c0_i32_0 : i32, i32
  }
  func.func @transform_3(%arg0: i32, %arg1: i32) -> (i32, i32, i32) {
    %c0_i32 = arith.constant 0 : i32
    %c0_i32_0 = arith.constant 0 : i32
    return %arg0, %c0_i32, %arg1 : i32, i32, i32
  }
  func.func @transform_4(%arg0: i32, %arg1: i32) -> (i32, i32, i32) {
    %c0_i32 = arith.constant 0 : i32
    %c0_i32_0 = arith.constant 0 : i32
    return %arg0, %c0_i32, %arg1 : i32, i32, i32
  }
}

module attributes {stable_mosaic.version = 11 : i64} {
  func.func @_head_kernel(%arg0: i32, %arg1: i32, %arg2: memref<1x32x256xf32, #tpu.memory_space<vmem>>, %arg3: memref<128x32xf32, #tpu.memory_space<vmem>>, %arg4: memref<128x1xf32, #tpu.memory_space<vmem>>, %arg5: memref<1x128xf32, #tpu.memory_space<vmem>>, %arg6: memref<1x1xf32, #tpu.memory_space<vmem>>, %arg7: memref<1x1x256xf32, #tpu.memory_space<vmem>>) attributes {dimension_semantics = [#tpu.dimension_semantics<parallel>, #tpu.dimension_semantics<parallel>], iteration_bounds = array<i64: 2, 1>, scalar_prefetch = 0 : i64, scratch_operands = 0 : i64, tpu.core_type = #tpu.core_type<tc>, window_params = [{transform_indices = @transform_0, window_bounds = array<i64: 1, 32, 256>}, {pipeline_mode = #tpu.pipeline_mode<synchronous>, transform_indices = @transform_1, window_bounds = array<i64: 128, 32>}, {pipeline_mode = #tpu.pipeline_mode<synchronous>, transform_indices = @transform_2, window_bounds = array<i64: 128, 1>}, {pipeline_mode = #tpu.pipeline_mode<synchronous>, transform_indices = @transform_3, window_bounds = array<i64: 1, 128>}, {pipeline_mode = #tpu.pipeline_mode<synchronous>, transform_indices = @transform_4, window_bounds = array<i64: 1, 1>}, {transform_indices = @transform_5, window_bounds = array<i64: 1, 1, 256>}]} {
    %c0 = arith.constant 0 : index
    %c0_0 = arith.constant 0 : index
    %c0_1 = arith.constant 0 : index
    %0 = vector.load %arg2[%c0, %c0_0, %c0_1] : memref<1x32x256xf32, #tpu.memory_space<vmem>>, vector<1x32x256xf32>
    %1 = vector.shape_cast %0 : vector<1x32x256xf32> to vector<32x256xf32>
    %2 = arith.truncf %1 : vector<32x256xf32> to vector<32x256xbf16>
    %c0_2 = arith.constant 0 : index
    %c0_3 = arith.constant 0 : index
    %3 = vector.load %arg3[%c0_2, %c0_3] : memref<128x32xf32, #tpu.memory_space<vmem>>, vector<128x32xf32>
    %4 = arith.truncf %3 : vector<128x32xf32> to vector<128x32xbf16>
    %cst = arith.constant dense<0.000000e+00> : vector<128x256xf32>
    %5 = tpu.matmul %4, %2, %cst {dimension_numbers = #tpu.dot_dimension_numbers<[1], [0], [0], [1], [0, 0, 1, 1], [], []>} : vector<128x32xbf16>, vector<32x256xbf16>, vector<128x256xf32> -> vector<128x256xf32>
    %c0_4 = arith.constant 0 : index
    %c0_5 = arith.constant 0 : index
    %6 = vector.load %arg4[%c0_4, %c0_5] : memref<128x1xf32, #tpu.memory_space<vmem>>, vector<128x1xf32>
    %7 = vector.broadcast %6 : vector<128x1xf32> to vector<128x256xf32>
    %8 = arith.addf %5, %7 : vector<128x256xf32>
    %cst_6 = arith.constant 5.000000e-01 : f32
    %9 = vector.broadcast %cst_6 : f32 to vector<128x256xf32>
    %10 = arith.mulf %9, %8 : vector<128x256xf32>
    %cst_7 = arith.constant 4.471500e-02 : f32
    %11 = vector.broadcast %cst_7 : f32 to vector<128x256xf32>
    %12 = arith.mulf %11, %8 : vector<128x256xf32>
    %13 = arith.mulf %12, %8 : vector<128x256xf32>
    %14 = arith.mulf %13, %8 : vector<128x256xf32>
    %15 = arith.addf %8, %14 : vector<128x256xf32>
    %cst_8 = arith.constant 0.797884583 : f32
    %16 = vector.broadcast %cst_8 : f32 to vector<128x256xf32>
    %17 = arith.mulf %16, %15 : vector<128x256xf32>
    %18 = math.tanh %17 : vector<128x256xf32>
    %cst_9 = arith.constant 1.000000e+00 : f32
    %19 = vector.broadcast %cst_9 : f32 to vector<128x256xf32>
    %20 = arith.addf %19, %18 : vector<128x256xf32>
    %21 = arith.mulf %10, %20 : vector<128x256xf32>
    %c0_10 = arith.constant 0 : index
    %c0_11 = arith.constant 0 : index
    %22 = vector.load %arg5[%c0_10, %c0_11] : memref<1x128xf32, #tpu.memory_space<vmem>>, vector<1x128xf32>
    %23 = arith.truncf %22 : vector<1x128xf32> to vector<1x128xbf16>
    %24 = arith.truncf %21 : vector<128x256xf32> to vector<128x256xbf16>
    %cst_12 = arith.constant dense<0.000000e+00> : vector<1x256xf32>
    %25 = tpu.matmul %23, %24, %cst_12 {dimension_numbers = #tpu.dot_dimension_numbers<[1], [0], [0], [1], [0, 0, 1, 1], [], []>} : vector<1x128xbf16>, vector<128x256xbf16>, vector<1x256xf32> -> vector<1x256xf32>
    %c0_13 = arith.constant 0 : index
    %c0_14 = arith.constant 0 : index
    %26 = vector.load %arg6[%c0_13, %c0_14] : memref<1x1xf32, #tpu.memory_space<vmem>>, vector<1x1xf32>
    %27 = vector.broadcast %26 : vector<1x1xf32> to vector<1x256xf32>
    %28 = arith.addf %25, %27 : vector<1x256xf32>
    %c0_15 = arith.constant 0 : index
    %c0_16 = arith.constant 0 : index
    %c0_17 = arith.constant 0 : index
    %29 = vector.load %arg7[%c0_15, %c0_16, %c0_17] : memref<1x1x256xf32, #tpu.memory_space<vmem>>, vector<1x1x256xf32>
    %30 = vector.shape_cast %29 : vector<1x1x256xf32> to vector<1x256xf32>
    %31 = vector.shape_cast %28 : vector<1x256xf32> to vector<1x1x256xf32>
    tpu.vector_store %arg7[%c0_15, %c0_16, %c0_17], %31 {strides = array<i32>} : memref<1x1x256xf32, #tpu.memory_space<vmem>>, vector<1x1x256xf32>,
    return
  }
  func.func @transform_0(%arg0: i32, %arg1: i32) -> (i32, i32, i32) {
    %c0_i32 = arith.constant 0 : i32
    %c0_i32_0 = arith.constant 0 : i32
    return %arg0, %c0_i32, %arg1 : i32, i32, i32
  }
  func.func @transform_1(%arg0: i32, %arg1: i32) -> (i32, i32) {
    %c0_i32 = arith.constant 0 : i32
    %c0_i32_0 = arith.constant 0 : i32
    %c0_i32_1 = arith.constant 0 : i32
    return %c0_i32, %c0_i32_0 : i32, i32
  }
  func.func @transform_2(%arg0: i32, %arg1: i32) -> (i32, i32) {
    %c0_i32 = arith.constant 0 : i32
    %c0_i32_0 = arith.constant 0 : i32
    %c0_i32_1 = arith.constant 0 : i32
    return %c0_i32, %c0_i32_0 : i32, i32
  }
  func.func @transform_3(%arg0: i32, %arg1: i32) -> (i32, i32) {
    %c0_i32 = arith.constant 0 : i32
    %c0_i32_0 = arith.constant 0 : i32
    %c0_i32_1 = arith.constant 0 : i32
    return %c0_i32, %c0_i32_0 : i32, i32
  }
  func.func @transform_4(%arg0: i32, %arg1: i32) -> (i32, i32) {
    %c0_i32 = arith.constant 0 : i32
    %c0_i32_0 = arith.constant 0 : i32
    %c0_i32_1 = arith.constant 0 : i32
    return %c0_i32, %c0_i32_0 : i32, i32
  }
  func.func @transform_5(%arg0: i32, %arg1: i32) -> (i32, i32, i32) {
    %c0_i32 = arith.constant 0 : i32
    %c0_i32_0 = arith.constant 0 : i32
    return %arg0, %c0_i32, %arg1 : i32, i32, i32
  }
}

</mosaic_0001>

<llo_original>
// kernel: _lambda_.10
$region0: #{_lambda_.10}
  #allocation0 [shape = 'u32[]', space=smem, size = 0x4, offset = 0x4, fixed_abs, tag = 'smem constant byte address 0x4 - core index']
  #allocation1 [shape = 'u32[144,128]{1,0:T(1,128)}', space=vmem, size = 0x12000, scoped, tag = 'internal scratch']
  %s0 = inlined_call_operand.vmem [shape: f32[2,1,256], index: 0, kind: input, shape index: {}]
  %s1 = inlined_call_operand.vmem [shape: f32[1,1,256], index: 1, kind: input, shape index: {}]
  %s2 = inlined_call_operand.vmem [shape: f32[1,1,256], index: 2, kind: input, shape index: {}]
  %s3 = inlined_call_operand.vmem [shape: f32[32,3], index: 3, kind: input, shape index: {}]
  %s4 = inlined_call_operand.vmem [shape: f32[32,1], index: 4, kind: input, shape index: {}]
  %s5 = inlined_call_operand.vmem [shape: f32[2,32,256], index: 5, kind: output, shape index: {}]
  %s6 = sld [smem:[#allocation0]]
  $region53: #{_lambda_.10} parent=0
    _
  %s8 = ssub.s32 1, %s6
  %s9 = scalar_select 0, %s8, %s6
  loop: start=0, step=1, limit=4
  $region2: #{_lambda_.10} parent=0 // loop_pre_header
    _
  $region3: #{_lambda_.10} parent=0 // loop_header
    %s11 = sphi 0, %s15
    %p12 = scmp.ge.s32.totalorder %s11, 4
    %s18 = sphi 0, %s30
    %s19 = sphi 0, %s26
    %s20 = sphi 0, %s18
    %s21 = sphi 0, %s19
    %s22 = sphi 0, %s20
    %s23 = sphi 0, %s21
    %s35 = sphi 0, %s37
    %s38 = sphi 0, %s35
    %s39 = sphi 0, %s38
    %s55 = sphi 0, %s39
    %s61 = sphi 0, %s63
    %s64 = sphi 0, %s61
    %s65 = sphi 0, %s64
    %s81 = sphi 0, %s65
    %s87 = sphi 0, %s89
    %s90 = sphi 0, %s87
    %s91 = sphi 0, %s90
    %s107 = sphi 0, %s91
    %s111 = sphi 0, %s111
    %s113 = sphi 0, %s111
    %s114 = sphi 0, %s113
    %s128 = sphi 0, %s114
    %s132 = sphi 0, %s132
    %s134 = sphi 0, %s132
    %s135 = sphi 0, %s134
    %s149 = sphi 0, %s135
    %s157 = sphi 0, %s159
    %s160 = sphi 0, %s157
    %s161 = sphi 0, %s160
    %s177 = sphi 0, %s161
  $region4: #{_lambda_.10} parent=0 // loop_header_branch
    %14 = sbr.rel (%p12) target = $region8
  $region5: #{_lambda_.10} parent=0 // loop_body
    %s16 = ssub.s32 %s11, 1
    %s17 = ssub.s32 %s11, 2
    %s24 = sadd.s32 1, %s19
    %p25 = scmp.ge.s32.totalorder %s24, 1
    %s26 = scalar_select %p25, 0, %s24
    %s27 = sadd.s32 1, %s18
    %s28 = scalar_select %p25, %s27, %s18
    %p29 = scmp.ge.s32.totalorder %s28, 2
    %s30 = scalar_select %p29, 0, %s28
    %s31 = ssub.s32 %s18, %s30
    %s32 = ssub.s32 %s19, %s26
    %s33 = sor.u32 %s31, %s32
    %p34 = scmp.eq.s32.totalorder %s33, 0
    %s36 = sadd.s32 %s35, 1
    %s37 = scalar_select %p34, %s35, %s36
    %p40 = pneg %p34
    %p41 = scmp.eq.s32.totalorder %s11, 1
    %p42 = por %p40, %p41
    %p43 = scmp.ne.s32.totalorder %s35, %s38
    %p44 = scmp.eq.s32.totalorder %s11, 0
    %p45 = por %p43, %p44
    %p46 = scmp.ne.s32.totalorder %s35, %s38
    %p47 = scmp.eq.s32.totalorder %s16, 1
    %p48 = por %p46, %p47
    %p49 = scmp.ne.s32.totalorder %s38, %s39
    %p50 = scmp.eq.s32.totalorder %s16, 0
    %p51 = por %p49, %p50
    %p52 = scmp.ne.s32.totalorder %s38, %s39
    %p53 = scmp.eq.s32.totalorder %s17, 1
    %p54 = por %p52, %p53
    %p56 = scmp.ne.s32.totalorder %s39, %s55
    %p57 = scmp.eq.s32.totalorder %s17, 0
    %p58 = por %p56, %p57
    %s59 = ssub.s32 %s19, %s26
    %p60 = scmp.eq.s32.totalorder %s59, 0
    %s62 = sadd.s32 %s61, 1
    %s63 = scalar_select %p60, %s61, %s62
    %p66 = pneg %p60
    %p67 = scmp.eq.s32.totalorder %s11, 1
    %p68 = por %p66, %p67
    %p69 = scmp.ne.s32.totalorder %s61, %s64
    %p70 = scmp.eq.s32.totalorder %s11, 0
    %p71 = por %p69, %p70
    %p72 = scmp.ne.s32.totalorder %s61, %s64
    %p73 = scmp.eq.s32.totalorder %s16, 1
    %p74 = por %p72, %p73
    %p75 = scmp.ne.s32.totalorder %s64, %s65
    %p76 = scmp.eq.s32.totalorder %s16, 0
    %p77 = por %p75, %p76
    %p78 = scmp.ne.s32.totalorder %s64, %s65
    %p79 = scmp.eq.s32.totalorder %s17, 1
    %p80 = por %p78, %p79
    %p82 = scmp.ne.s32.totalorder %s65, %s81
    %p83 = scmp.eq.s32.totalorder %s17, 0
    %p84 = por %p82, %p83
    %s85 = ssub.s32 %s19, %s26
    %p86 = scmp.eq.s32.totalorder %s85, 0
    %s88 = sadd.s32 %s87, 1
    %s89 = scalar_select %p86, %s87, %s88
    %p92 = pneg %p86
    %p93 = scmp.eq.s32.totalorder %s11, 1
    %p94 = por %p92, %p93
    %p95 = scmp.ne.s32.totalorder %s87, %s90
    %p96 = scmp.eq.s32.totalorder %s11, 0
    %p97 = por %p95, %p96
    %p98 = scmp.ne.s32.totalorder %s87, %s90
    %p99 = scmp.eq.s32.totalorder %s16, 1
    %p100 = por %p98, %p99
    %p101 = scmp.ne.s32.totalorder %s90, %s91
    %p102 = scmp.eq.s32.totalorder %s16, 0
    %p103 = por %p101, %p102
    %p104 = scmp.ne.s32.totalorder %s90, %s91
    %p105 = scmp.eq.s32.totalorder %s17, 1
    %p106 = por %p104, %p105
    %p108 = scmp.ne.s32.totalorder %s91, %s107
    %p109 = scmp.eq.s32.totalorder %s17, 0
    %p110 = por %p108, %p109
    %s112 = sadd.s32 %s111, 1
    %p115 = scmp.eq.s32.totalorder %s11, 1
    %p116 = scmp.ne.s32.totalorder %s111, %s113
    %p117 = scmp.eq.s32.totalorder %s11, 0
    %p118 = por %p116, %p117
    %p119 = scmp.ne.s32.totalorder %s111, %s113
    %p120 = scmp.eq.s32.totalorder %s16, 1
    %p121 = por %p119, %p120
    %p122 = scmp.ne.s32.totalorder %s113, %s114
    %p123 = scmp.eq.s32.totalorder %s16, 0
    %p124 = por %p122, %p123
    %p125 = scmp.ne.s32.totalorder %s113, %s114
    %p126 = scmp.eq.s32.totalorder %s17, 1
    %p127 = por %p125, %p126
    %p129 = scmp.ne.s32.totalorder %s114, %s128
    %p130 = scmp.eq.s32.totalorder %s17, 0
    %p131 = por %p129, %p130
    %s133 = sadd.s32 %s132, 1
    %p136 = scmp.eq.s32.totalorder %s11, 1
    %p137 = scmp.ne.s32.totalorder %s132, %s134
    %p138 = scmp.eq.s32.totalorder %s11, 0
    %p139 = por %p137, %p138
    %p140 = scmp.ne.s32.totalorder %s132, %s134
    %p141 = scmp.eq.s32.totalorder %s16, 1
    %p142 = por %p140, %p141
    %p143 = scmp.ne.s32.totalorder %s134, %s135
    %p144 = scmp.eq.s32.totalorder %s16, 0
    %p145 = por %p143, %p144
    %p146 = scmp.ne.s32.totalorder %s134, %s135
    %p147 = scmp.eq.s32.totalorder %s17, 1
    %p148 = por %p146, %p147
    %p150 = scmp.ne.s32.totalorder %s135, %s149
    %p151 = scmp.eq.s32.totalorder %s17, 0
    %p152 = por %p150, %p151
    %s153 = ssub.s32 %s18, %s30
    %s154 = ssub.s32 %s19, %s26
    %s155 = sor.u32 %s153, %s154
    %p156 = scmp.eq.s32.totalorder %s155, 0
    %s158 = sadd.s32 %s157, 1
    %s159 = scalar_select %p156, %s157, %s158
    %p162 = pneg %p156
    %p163 = scmp.eq.s32.totalorder %s11, 1
    %p164 = por %p162, %p163
    %p165 = scmp.ne.s32.totalorder %s157, %s160
    %p166 = scmp.eq.s32.totalorder %s11, 0
    %p167 = por %p165, %p166
    %p168 = scmp.ne.s32.totalorder %s157, %s160
    %p169 = scmp.eq.s32.totalorder %s16, 1
    %p170 = por %p168, %p169
    %p171 = scmp.ne.s32.totalorder %s160, %s161
    %p172 = scmp.eq.s32.totalorder %s16, 0
    %p173 = por %p171, %p172
    %p174 = scmp.ne.s32.totalorder %s160, %s161
    %p175 = scmp.eq.s32.totalorder %s17, 1
    %p176 = por %p174, %p175
    %p178 = scmp.ne.s32.totalorder %s161, %s177
    %p179 = scmp.eq.s32.totalorder %s17, 0
    %p180 = por %p178, %p179
    %p181 = scmp.le.s32.totalorder 1, %s11
    %p182 = scmp.lt.s32.totalorder %s11, 3
    %p183 = pnand %p181, %p182
    %p184 = pneg %p183
    // Predicated region
    $region9: #{_lambda_.10} parent=5 // pred_check
      _
    $region10: #{_lambda_.10} parent=5 // pred_check_branch
      %186 = sbr.rel (%p183) target = $region12
    $region11: #{_lambda_.10} parent=5 // pred_region
      %s187 = ssub.s32 %s11, 1
      // Predicated region
      $region13: #{_lambda_.10} parent=11 // pred_check
        %p188 = pneg %p77
      $region14: #{_lambda_.10} parent=11 // pred_check_branch
        %190 = sbr.rel (%p188) target = $region16
      $region15: #{_lambda_.10} parent=11 // pred_region
        %s191 = smul.u32 2, %s21
        %p192 = scmp.lt.s32.totalorder %s191, 1
        %s193 = scalar_select %p192, %s191, 1
        %s194 = scalar_lea.vmem %s1, %s193
        %s195 = smul.u32 2, %s21
      $region16: #{_lambda_.10} parent=11 // pred_fallthru
        _
      // Predicated region
      $region17: #{_lambda_.10} parent=11 // pred_check
        %p196 = pneg %p103
      $region18: #{_lambda_.10} parent=11 // pred_check_branch
        %198 = sbr.rel (%p196) target = $region20
      $region19: #{_lambda_.10} parent=11 // pred_region
        %s199 = smul.u32 2, %s21
        %p200 = scmp.lt.s32.totalorder %s199, 1
        %s201 = scalar_select %p200, %s199, 1
        %s202 = scalar_lea.vmem %s2, %s201
        %s203 = smul.u32 2, %s21
      $region20: #{_lambda_.10} parent=11 // pred_fallthru
        _
      // Predicated region
      $region21: #{_lambda_.10} parent=11 // pred_check
        %p204 = pneg %p124
      $region22: #{_lambda_.10} parent=11 // pred_check_branch
        %206 = sbr.rel (%p204) target = $region24
      $region23: #{_lambda_.10} parent=11 // pred_region
        _
      $region24: #{_lambda_.10} parent=11 // pred_fallthru
        _
      // Predicated region
      $region25: #{_lambda_.10} parent=11 // pred_check
        %p207 = pneg %p145
      $region26: #{_lambda_.10} parent=11 // pred_check_branch
        %209 = sbr.rel (%p207) target = $region28
      $region27: #{_lambda_.10} parent=11 // pred_region
        _
      $region28: #{_lambda_.10} parent=11 // pred_fallthru
        _
    $region12: #{_lambda_.10} parent=5 // pred_fallthru
      _
    %p210 = scmp.lt.s32.totalorder %s11, 2
    // Predicated region
    $region29: #{_lambda_.10} parent=5 // pred_check
      %p211 = pneg %p210
    $region30: #{_lambda_.10} parent=5 // pred_check_branch
      %213 = sbr.rel (%p211) target = $region32
    $region31: #{_lambda_.10} parent=5 // pred_region
      // Predicated region
      $region33: #{_lambda_.10} parent=31 // pred_check
        %p214 = pneg %p45
      $region34: #{_lambda_.10} parent=31 // pred_check_branch
        %216 = sbr.rel (%p214) target = $region36
      $region35: #{_lambda_.10} parent=31 // pred_region
        %s217 = smul.u32 2, %s19
        %p218 = scmp.lt.s32.totalorder %s18, 1
        %s219 = scalar_select %p218, %s18, 1
        %p220 = scmp.lt.s32.totalorder %s217, 1
        %s221 = scalar_select %p220, %s217, 1
        %s222 = smul.addr %s219, 2
        %s223 = sadd.s32 %s221, %s222
        %s224 = scalar_lea.vmem %s0, %s223
        %s225 = smul.u32 2, %s19
      $region36: #{_lambda_.10} parent=31 // pred_fallthru
        _
    $region32: #{_lambda_.10} parent=5 // pred_fallthru
      _
    %p226 = scmp.le.s32.totalorder 1, %s11
    %p227 = scmp.lt.s32.totalorder %s11, 3
    %p228 = pnand %p226, %p227
    %p229 = pneg %p228
    // Predicated region
    $region37: #{_lambda_.10} parent=5 // pred_check
      _
    $region38: #{_lambda_.10} parent=5 // pred_check_branch
      %231 = sbr.rel (%p228) target = $region40
    $region39: #{_lambda_.10} parent=5 // pred_region
      %s232 = ssub.s32 %s11, 1
      %s233 = smul.u32 2, %s21
      %p234 = scmp.lt.s32.totalorder %s20, 1
      %s235 = scalar_select %p234, %s20, 1
      %p236 = scmp.lt.s32.totalorder %s233, 1
      %s237 = scalar_select %p236, %s233, 1
      %s238 = smul.addr %s235, 2
      %s239 = sadd.s32 %s237, %s238
      %s240 = scalar_lea.vmem %s0, %s239
      %p241 = pneg %p51
      %p242 = pneg %p48
      %s243 = smul.u32 2, %s21
      %p244 = scmp.lt.s32.totalorder %s243, 1
      %s245 = scalar_select %p244, %s243, 1
      %s246 = scalar_lea.vmem %s1, %s245
      %p247 = pneg %p77
      %p248 = pneg %p74
      %s249 = smul.u32 2, %s21
      %p250 = scmp.lt.s32.totalorder %s249, 1
      %s251 = scalar_select %p250, %s249, 1
      %s252 = scalar_lea.vmem %s2, %s251
      %p253 = pneg %p103
      %p254 = pneg %p100
      %p255 = pneg %p124
      %p256 = pneg %p121
      %p257 = pneg %p145
      %p258 = pneg %p142
      %p259 = pneg %p173
      %p260 = pneg %p170
      %s261 = smul.u32 2, %s21
      %p262 = scmp.lt.s32.totalorder %s20, 1
      %s263 = scalar_select %p262, %s20, 1
      %p264 = scmp.lt.s32.totalorder %s261, 1
      %s265 = scalar_select %p264, %s261, 1
      %s266 = smul.addr %s263, 8
      %s267 = sadd.s32 %s265, %s266
      %s268 = smul.addr %s267, 8
      %s269 = scalar_lea.vmem %s5, %s268
      %s270 = smul.u32 2, %s21
      %p271 = scmp.lt.s32.totalorder %s20, 1
      %s272 = scalar_select %p271, %s20, 1
      %p273 = scmp.lt.s32.totalorder %s270, 1
      %s274 = scalar_select %p273, %s270, 1
      %s275 = smul.addr %s272, 2
      %s276 = sadd.s32 %s274, %s275
      %s277 = scalar_lea.vmem %s0, %s276
      %s278 = smul.u32 2, %s21
      %s279 = smul.u32 2, %s21
      %p280 = scmp.lt.s32.totalorder %s279, 1
      %s281 = scalar_select %p280, %s279, 1
      %s282 = scalar_lea.vmem %s1, %s281
      %s283 = smul.u32 2, %s21
      %s284 = smul.u32 2, %s21
      %p285 = scmp.lt.s32.totalorder %s284, 1
      %s286 = scalar_select %p285, %s284, 1
      %s287 = scalar_lea.vmem %s2, %s286
      %s288 = smul.u32 2, %s21
      %s289 = smul.u32 2, %s21
      %p290 = scmp.lt.s32.totalorder %s20, 1
      %s291 = scalar_select %p290, %s20, 1
      %p292 = scmp.lt.s32.totalorder %s289, 1
      %s293 = scalar_select %p292, %s289, 1
      %s294 = smul.addr %s291, 8
      %s295 = sadd.s32 %s293, %s294
      %s296 = smul.addr %s295, 8
      %s297 = scalar_lea.vmem %s5, %s296
      %s298 = smul.u32 2, %s21
      %v299 = vld [vmem:[%s277] sm:$0x3]
      %v300 = vld [vmem:[%s282] sm:$0x3]
      %v301 = vld [vmem:[%s287] sm:$0x3]
      %v302 = vld [vmem:[%s3] sm:$0xff]
      %v303 = vld [vmem:[%s3 + $0x8] sm:$0xff]
      %v304 = vld [vmem:[%s3 + $0x10] sm:$0xff]
      %v305 = vld [vmem:[%s3 + $0x18] sm:$0xff]
      %307 = vset.pattern.permute.xlu0 0
      %308 = vperm.xlu0 %307, %v302
      %v309 = vpop.permute.xlu0 %308
      %312 = vset.pattern.permute.xlu0 0
      %313 = vperm.xlu0 %312, %v303
      %v314 = vpop.permute.xlu0 %313
      %317 = vset.pattern.permute.xlu0 0
      %318 = vperm.xlu0 %317, %v304
      %v319 = vpop.permute.xlu0 %318
      %322 = vset.pattern.permute.xlu0 0
      %323 = vperm.xlu0 %322, %v305
      %v324 = vpop.permute.xlu0 %323
      %v327 = vlaneseq
      %v328 = vshrl.u32 %v327, 7
      %v329 = vsub.s32 0, %v328
      %v330 = vrot.slane %v299, %v329
      %v331 = vlaneseq
      %v332 = vshrl.u32 %v331, 7
      %v333 = vsub.s32 1, %v332
      %v334 = vrot.slane %v299, %v333
      %v337 = vmul.f32 %v309, %v330
      %v338 = vmul.f32 %v309, %v334
      %v339 = vmul.f32 %v314, %v330
      %v340 = vmul.f32 %v314, %v334
      %v341 = vmul.f32 %v319, %v330
      %v342 = vmul.f32 %v319, %v334
      %v343 = vmul.f32 %v324, %v330
      %v344 = vmul.f32 %v324, %v334
      %345 = vset.pattern.permute.xlu0 1
      %346 = vperm.xlu0 %345, %v302
      %v347 = vpop.permute.xlu0 %346
      %349 = vset.pattern.permute.xlu0 1
      %350 = vperm.xlu0 %349, %v303
      %v351 = vpop.permute.xlu0 %350
      %353 = vset.pattern.permute.xlu0 1
      %354 = vperm.xlu0 %353, %v304
      %v355 = vpop.permute.xlu0 %354
      %357 = vset.pattern.permute.xlu0 1
      %358 = vperm.xlu0 %357, %v305
      %v359 = vpop.permute.xlu0 %358
      %v362 = vlaneseq
      %v363 = vshrl.u32 %v362, 7
      %v364 = vsub.s32 0, %v363
      %v365 = vrot.slane %v300, %v364
      %v366 = vlaneseq
      %v367 = vshrl.u32 %v366, 7
      %v368 = vsub.s32 1, %v367
      %v369 = vrot.slane %v300, %v368
      %v372 = vmul.f32 %v347, %v365
      %v373 = vmul.f32 %v347, %v369
      %v374 = vmul.f32 %v351, %v365
      %v375 = vmul.f32 %v351, %v369
      %v376 = vmul.f32 %v355, %v365
      %v377 = vmul.f32 %v355, %v369
      %v378 = vmul.f32 %v359, %v365
      %v379 = vmul.f32 %v359, %v369
      %v380 = vadd.f32 %v337, %v372
      %v381 = vadd.f32 %v338, %v373
      %v382 = vadd.f32 %v339, %v374
      %v383 = vadd.f32 %v340, %v375
      %v384 = vadd.f32 %v341, %v376
      %v385 = vadd.f32 %v342, %v377
      %v386 = vadd.f32 %v343, %v378
      %v387 = vadd.f32 %v344, %v379
      %388 = vset.pattern.permute.xlu0 2
      %389 = vperm.xlu0 %388, %v302
      %v390 = vpop.permute.xlu0 %389
      %392 = vset.pattern.permute.xlu0 2
      %393 = vperm.xlu0 %392, %v303
      %v394 = vpop.permute.xlu0 %393
      %396 = vset.pattern.permute.xlu0 2
      %397 = vperm.xlu0 %396, %v304
      %v398 = vpop.permute.xlu0 %397
      %400 = vset.pattern.permute.xlu0 2
      %401 = vperm.xlu0 %400, %v305
      %v402 = vpop.permute.xlu0 %401
      %v405 = vlaneseq
      %v406 = vshrl.u32 %v405, 7
      %v407 = vsub.s32 0, %v406
      %v408 = vrot.slane %v301, %v407
      %v409 = vlaneseq
      %v410 = vshrl.u32 %v409, 7
      %v411 = vsub.s32 1, %v410
      %v412 = vrot.slane %v301, %v411
      %v415 = vmul.f32 %v390, %v408
      %v416 = vmul.f32 %v390, %v412
      %v417 = vmul.f32 %v394, %v408
      %v418 = vmul.f32 %v394, %v412
      %v419 = vmul.f32 %v398, %v408
      %v420 = vmul.f32 %v398, %v412
      %v421 = vmul.f32 %v402, %v408
      %v422 = vmul.f32 %v402, %v412
      %v423 = vadd.f32 %v380, %v415
      %v424 = vadd.f32 %v381, %v416
      %v425 = vadd.f32 %v382, %v417
      %v426 = vadd.f32 %v383, %v418
      %v427 = vadd.f32 %v384, %v419
      %v428 = vadd.f32 %v385, %v420
      %v429 = vadd.f32 %v386, %v421
      %v430 = vadd.f32 %v387, %v422
      %v431 = vld [vmem:[%s4] sm:$0xff]
      %v432 = vld [vmem:[%s4 + $0x8] sm:$0xff]
      %v433 = vld [vmem:[%s4 + $0x10] sm:$0xff]
      %v434 = vld [vmem:[%s4 + $0x18] sm:$0xff]
      %436 = vset.pattern.permute.xlu0 0
      %437 = vperm.xlu0 %436, %v431
      %v438 = vpop.permute.xlu0 %437
      %441 = vset.pattern.permute.xlu0 0
      %442 = vperm.xlu0 %441, %v432
      %v443 = vpop.permute.xlu0 %442
      %446 = vset.pattern.permute.xlu0 0
      %447 = vperm.xlu0 %446, %v433
      %v448 = vpop.permute.xlu0 %447
      %451 = vset.pattern.permute.xlu0 0
      %452 = vperm.xlu0 %451, %v434
      %v453 = vpop.permute.xlu0 %452
      %v455 = vadd.f32 %v423, %v438
      %v456 = vadd.f32 %v424, %v438
      %v457 = vadd.f32 %v425, %v443
      %v458 = vadd.f32 %v426, %v443
      %v459 = vadd.f32 %v427, %v448
      %v460 = vadd.f32 %v428, %v448
      %v461 = vadd.f32 %v429, %v453
      %v462 = vadd.f32 %v430, %v453
      %463 = vst [vmem:[%s297] sm:$0xff] %v455
      %464 = vst [vmem:[%s297 + $0x8] sm:$0xff] %v456
      %465 = vst [vmem:[%s297 + $0x10] sm:$0xff] %v457
      %466 = vst [vmem:[%s297 + $0x18] sm:$0xff] %v458
      %467 = vst [vmem:[%s297 + $0x20] sm:$0xff] %v459
      %468 = vst [vmem:[%s297 + $0x28] sm:$0xff] %v460
      %469 = vst [vmem:[%s297 + $0x30] sm:$0xff] %v461
      %470 = vst [vmem:[%s297 + $0x38] sm:$0xff] %v462
      %s471 = smul.u32 2, %s21
      %p472 = scmp.lt.s32.totalorder %s20, 1
      %s473 = scalar_select %p472, %s20, 1
      %p474 = scmp.lt.s32.totalorder %s471, 1
      %s475 = scalar_select %p474, %s471, 1
      %s476 = smul.addr %s473, 8
      %s477 = sadd.s32 %s475, %s476
      %s478 = smul.addr %s477, 8
      %s479 = scalar_lea.vmem %s5, %s478
      // Predicated region
      $region41: #{_lambda_.10} parent=39 // pred_check
        %p480 = pneg %p170
      $region42: #{_lambda_.10} parent=39 // pred_check_branch
        %482 = sbr.rel (%p480) target = $region44
      $region43: #{_lambda_.10} parent=39 // pred_region
        %s483 = smul.u32 2, %s21
      $region44: #{_lambda_.10} parent=39 // pred_fallthru
        _
    $region40: #{_lambda_.10} parent=5 // pred_fallthru
      _
    %p484 = scmp.le.s32.totalorder 2, %s11
    // Predicated region
    $region45: #{_lambda_.10} parent=5 // pred_check
      %p485 = pneg %p484
    $region46: #{_lambda_.10} parent=5 // pred_check_branch
      %487 = sbr.rel (%p485) target = $region48
    $region47: #{_lambda_.10} parent=5 // pred_region
      %s488 = ssub.s32 %s11, 2
      // Predicated region
      $region49: #{_lambda_.10} parent=47 // pred_check
        %p489 = pneg %p176
      $region50: #{_lambda_.10} parent=47 // pred_check_branch
        %491 = sbr.rel (%p489) target = $region52
      $region51: #{_lambda_.10} parent=47 // pred_region
        %s492 = smul.u32 2, %s23
        %p493 = scmp.lt.s32.totalorder %s22, 1
        %s494 = scalar_select %p493, %s22, 1
        %p495 = scmp.lt.s32.totalorder %s492, 1
        %s496 = scalar_select %p495, %s492, 1
        %s497 = smul.addr %s494, 8
        %s498 = sadd.s32 %s496, %s497
        %s499 = smul.addr %s498, 8
        %s500 = scalar_lea.vmem %s5, %s499
      $region52: #{_lambda_.10} parent=47 // pred_fallthru
        _
    $region48: #{_lambda_.10} parent=5 // pred_fallthru
      _
  $region6: #{_lambda_.10} parent=0 // loop_footer
    %s15 = sadd.s32 1, %s11
  $region7: #{_lambda_.10} parent=0 // loop_footer_branch
    %10 = sbr.rel target = $region3
  $region8: #{_lambda_.10} parent=0 // loop_exit
    _

// kernel: custom-call.3
$region0: #{custom-call.3}
  %s0 = inlined_call_operand.hbm [shape: c64[32,32,6,6], index: 0, kind: input, shape index: {}]
  %s1 = inlined_call_operand.vmem [shape: f32[32,32,6,6], index: 1, kind: output, shape index: {}]
  %s2 = scalar_lea.hbm %s0, 18432
  $region1: #{custom-call.3} parent=0
    #allocation0 [shape = 's32[1]{0}', space=sflag, size = 0x4, scoped, tag = 'scoped memory for custom-call.3']
    %3 = vsyncpa [#allocation0], 0
    %s4 = sshll.u32 %s1, 4
    %s5 = int_to_ptr.vmem [resolvable:$true] %s4
    %7 = dma.hbm_to_vmem [thread:$0]  %s2, 18432, %s5, [#allocation0]
    %8 = dma.done [#allocation0], 18432
    %9 = vsyncpa [#allocation0], 1

// kernel: custom-call.2
$region0: #{custom-call.2}
  %s0 = inlined_call_operand.hbm [shape: c64[32,32,6,6], index: 0, kind: input, shape index: {}]
  %s1 = inlined_call_operand.vmem [shape: f32[32,32,6,6], index: 1, kind: output, shape index: {}]
  $region1: #{custom-call.2} parent=0
    #allocation0 [shape = 's32[1]{0}', space=sflag, size = 0x4, scoped, tag = 'scoped memory for custom-call.2']
    %2 = vsyncpa [#allocation0], 0
    %s3 = sshll.u32 %s1, 4
    %s4 = int_to_ptr.vmem [resolvable:$true] %s3
    %6 = dma.hbm_to_vmem [thread:$0]  %s0, 18432, %s4, [#allocation0]
    %7 = dma.done [#allocation0], 18432
    %8 = vsyncpa [#allocation0], 1

// kernel: _lambda_.11
$region0: #{_lambda_.11}
  #allocation0 [shape = 'u32[]', space=smem, size = 0x4, offset = 0x4, fixed_abs, tag = 'smem constant byte address 0x4 - core index']
  #allocation1 [shape = 'u32[144,128]{1,0:T(1,128)}', space=vmem, size = 0x12000, scoped, tag = 'internal scratch']
  %s0 = inlined_call_operand.vmem [shape: f32[2,2,32,128], index: 0, kind: input, shape index: {}]
  %s1 = inlined_call_operand.vmem [shape: f32[2,32,32,128], index: 1, kind: input, shape index: {}]
  %s2 = inlined_call_operand.vmem [shape: f32[2,2,32,128], index: 2, kind: output, shape index: {}]
  %s3 = sld [smem:[#allocation0]]
  $region113: #{_lambda_.11} parent=0
    _
  %s5 = ssub.s32 1, %s3
  %s6 = scalar_select 0, %s5, %s3
  $region1: #{_lambda_.11} parent=0
    #allocation2 [shape = 'u8[1048576]{0}', space=vmem, size = 0x100000, scoped, tag = 'input window, operand 1']
    #allocation3 [shape = 'u8[65536]{0}', space=vmem, size = 0x10000, scoped, tag = 'output window, operand 0']
    loop: start=0, step=1, limit=4
    $region2: #{_lambda_.11} parent=1 // loop_pre_header
      _
    $region3: #{_lambda_.11} parent=1 // loop_header
      %s8 = sphi 0, %s12
      %p9 = scmp.ge.s32.totalorder %s8, 4
      %s15 = sphi 0, %s27
      %s16 = sphi 0, %s23
      %s17 = sphi 0, %s15
      %s18 = sphi 0, %s16
      %s19 = sphi 0, %s17
      %s20 = sphi 0, %s18
      %s30 = sphi 0, %s32
      %s33 = sphi 0, %s30
      %s34 = sphi 0, %s33
      %s50 = sphi 0, %s34
      %s58 = sphi 0, %s60
      %s61 = sphi 0, %s58
      %s62 = sphi 0, %s61
      %s78 = sphi 0, %s62
      %s86 = sphi 0, %s88
      %s89 = sphi 0, %s86
      %s90 = sphi 0, %s89
      %s106 = sphi 0, %s90
    $region4: #{_lambda_.11} parent=1 // loop_header_branch
      %11 = sbr.rel (%p9) target = $region8
    $region5: #{_lambda_.11} parent=1 // loop_body
      %s13 = ssub.s32 %s8, 1
      %s14 = ssub.s32 %s8, 2
      %s21 = sadd.s32 1, %s16
      %p22 = scmp.ge.s32.totalorder %s21, 2
      %s23 = scalar_select %p22, 0, %s21
      %s24 = sadd.s32 1, %s15
      %s25 = scalar_select %p22, %s24, %s15
      %p26 = scmp.ge.s32.totalorder %s25, 1
      %s27 = scalar_select %p26, 0, %s25
      %s28 = ssub.s32 %s15, %s27
      %p29 = scmp.eq.s32.totalorder %s28, 0
      %s31 = sadd.s32 %s30, 1
      %s32 = scalar_select %p29, %s30, %s31
      %p35 = pneg %p29
      %p36 = scmp.eq.s32.totalorder %s8, 1
      %p37 = por %p35, %p36
      %p38 = scmp.ne.s32.totalorder %s30, %s33
      %p39 = scmp.eq.s32.totalorder %s8, 0
      %p40 = por %p38, %p39
      %p41 = scmp.ne.s32.totalorder %s30, %s33
      %p42 = scmp.eq.s32.totalorder %s13, 1
      %p43 = por %p41, %p42
      %p44 = scmp.ne.s32.totalorder %s33, %s34
      %p45 = scmp.eq.s32.totalorder %s13, 0
      %p46 = por %p44, %p45
      %p47 = scmp.ne.s32.totalorder %s33, %s34
      %p48 = scmp.eq.s32.totalorder %s14, 1
      %p49 = por %p47, %p48
      %p51 = scmp.ne.s32.totalorder %s34, %s50
      %p52 = scmp.eq.s32.totalorder %s14, 0
      %p53 = por %p51, %p52
      %s54 = ssub.s32 %s16, %s23
      %s55 = ssub.s32 %s15, %s27
      %s56 = sor.u32 %s54, %s55
      %p57 = scmp.eq.s32.totalorder %s56, 0
      %s59 = sadd.s32 %s58, 1
      %s60 = scalar_select %p57, %s58, %s59
      %p63 = pneg %p57
      %p64 = scmp.eq.s32.totalorder %s8, 1
      %p65 = por %p63, %p64
      %p66 = scmp.ne.s32.totalorder %s58, %s61
      %p67 = scmp.eq.s32.totalorder %s8, 0
      %p68 = por %p66, %p67
      %p69 = scmp.ne.s32.totalorder %s58, %s61
      %p70 = scmp.eq.s32.totalorder %s13, 1
      %p71 = por %p69, %p70
      %p72 = scmp.ne.s32.totalorder %s61, %s62
      %p73 = scmp.eq.s32.totalorder %s13, 0
      %p74 = por %p72, %p73
      %p75 = scmp.ne.s32.totalorder %s61, %s62
      %p76 = scmp.eq.s32.totalorder %s14, 1
      %p77 = por %p75, %p76
      %p79 = scmp.ne.s32.totalorder %s62, %s78
      %p80 = scmp.eq.s32.totalorder %s14, 0
      %p81 = por %p79, %p80
      %s82 = ssub.s32 %s16, %s23
      %s83 = ssub.s32 %s15, %s27
      %s84 = sor.u32 %s82, %s83
      %p85 = scmp.eq.s32.totalorder %s84, 0
      %s87 = sadd.s32 %s86, 1
      %s88 = scalar_select %p85, %s86, %s87
      %p91 = pneg %p85
      %p92 = scmp.eq.s32.totalorder %s8, 1
      %p93 = por %p91, %p92
      %p94 = scmp.ne.s32.totalorder %s86, %s89
      %p95 = scmp.eq.s32.totalorder %s8, 0
      %p96 = por %p94, %p95
      %p97 = scmp.ne.s32.totalorder %s86, %s89
      %p98 = scmp.eq.s32.totalorder %s13, 1
      %p99 = por %p97, %p98
      %p100 = scmp.ne.s32.totalorder %s89, %s90
      %p101 = scmp.eq.s32.totalorder %s13, 0
      %p102 = por %p100, %p101
      %p103 = scmp.ne.s32.totalorder %s89, %s90
      %p104 = scmp.eq.s32.totalorder %s14, 1
      %p105 = por %p103, %p104
      %p107 = scmp.ne.s32.totalorder %s90, %s106
      %p108 = scmp.eq.s32.totalorder %s14, 0
      %p109 = por %p107, %p108
      %p110 = scmp.le.s32.totalorder 1, %s8
      %p111 = scmp.lt.s32.totalorder %s8, 3
      %p112 = pnand %p110, %p111
      %p113 = pneg %p112
      // Predicated region
      $region9: #{_lambda_.11} parent=5 // pred_check
        _
      $region10: #{_lambda_.11} parent=5 // pred_check_branch
        %115 = sbr.rel (%p112) target = $region12
      $region11: #{_lambda_.11} parent=5 // pred_region
        %s116 = ssub.s32 %s8, 1
        // Predicated region
        $region13: #{_lambda_.11} parent=11 // pred_check
          %p117 = pneg %p46
        $region14: #{_lambda_.11} parent=11 // pred_check_branch
          %119 = sbr.rel (%p117) target = $region16
        $region15: #{_lambda_.11} parent=11 // pred_region
          %p120 = scmp.lt.s32.totalorder %s17, 0
          %s121 = scalar_select %p120, %s17, 0
          %s122 = smul.addr %s121, 8
          %s123 = scalar_lea.vmem %s0, %s122
        $region16: #{_lambda_.11} parent=11 // pred_fallthru
          _
      $region12: #{_lambda_.11} parent=5 // pred_fallthru
        _
      %p124 = scmp.lt.s32.totalorder %s8, 2
      // Predicated region
      $region17: #{_lambda_.11} parent=5 // pred_check
        %p125 = pneg %p124
      $region18: #{_lambda_.11} parent=5 // pred_check_branch
        %127 = sbr.rel (%p125) target = $region20
      $region19: #{_lambda_.11} parent=5 // pred_region
        // Predicated region
        $region21: #{_lambda_.11} parent=19 // pred_check
          %p128 = pneg %p68
        $region22: #{_lambda_.11} parent=19 // pred_check_branch
          %130 = sbr.rel (%p128) target = $region24
        $region23: #{_lambda_.11} parent=19 // pred_region
          %s131 = sand.u32 %s58, 1
          %s132 = sand.u32 %s58, 1
          %s133 = smul.addr %s132, 1024
          %s134 = scalar_lea.vmem [#allocation2], %s133
          %s135 = smul.u32 2, %s16
          %s136 = sadd.s32 %s15, %s135
          %s137 = smul.addr %s136, 8
          %s138 = scalar_lea.vmem %s1, %s137
          // Predicated region
          $region25: #{_lambda_.11} parent=23 // pred_check
            _
          $region26: #{_lambda_.11} parent=23 // pred_check_branch
            %140 = sbr.rel (0) target = $region28
          $region27: #{_lambda_.11} parent=23 // pred_region
            // Predicated region
            $region29: #{_lambda_.11} parent=27 // pred_check
              _
            $region30: #{_lambda_.11} parent=27 // pred_check_branch
              %142 = sbr.rel (0) target = $region32
            $region31: #{_lambda_.11} parent=27 // pred_region
              // Predicated region
              $region44: #{_lambda_.11} parent=31 // pred_check
                _
              $region45: #{_lambda_.11} parent=31 // pred_check_branch
                %411 = sbr.rel (0) target = $region47
              $region46: #{_lambda_.11} parent=31 // pred_region
                loop: start=0, step=1, limit=1
                $region48: #{_lambda_.11} parent=46 // loop_pre_header
                  _
                $region49: #{_lambda_.11} parent=46 // loop_header
                  %s413 = sphi 0, %s417
                  %p414 = scmp.ge.s32.totalorder %s413, 1
                  %s418 = sphi %s138, %s138
                  %s419 = sphi %s134, %s134
                $region50: #{_lambda_.11} parent=46 // loop_header_branch
                  %416 = sbr.rel (%p414) target = $region54
                $region51: #{_lambda_.11} parent=46 // loop_body
                  %v420 = vld [vmem:[%s418] sm:$0xff]
                  %421 = vst [vmem:[%s419] sm:$0xff] %v420
                  %v422 = vld [vmem:[%s418 + $0x8] sm:$0xff]
                  %423 = vst [vmem:[%s419 + $0x8] sm:$0xff] %v422
                  %v424 = vld [vmem:[%s418 + $0x20] sm:$0xff]
                  %425 = vst [vmem:[%s419 + $0x10] sm:$0xff] %v424
                  %v426 = vld [vmem:[%s418 + $0x28] sm:$0xff]
                  %427 = vst [vmem:[%s419 + $0x18] sm:$0xff] %v426
                  %v428 = vld [vmem:[%s418 + $0x40] sm:$0xff]
                  %429 = vst [vmem:[%s419 + $0x20] sm:$0xff] %v428
                  %v430 = vld [vmem:[%s418 + $0x48] sm:$0xff]
                  %431 = vst [vmem:[%s419 + $0x28] sm:$0xff] %v430
                  %v432 = vld [vmem:[%s418 + $0x60] sm:$0xff]
                  %433 = vst [vmem:[%s419 + $0x30] sm:$0xff] %v432
                  %v434 = vld [vmem:[%s418 + $0x68] sm:$0xff]
                  %435 = vst [vmem:[%s419 + $0x38] sm:$0xff] %v434
                  %v436 = vld [vmem:[%s418 + $0x80] sm:$0xff]
                  %437 = vst [vmem:[%s419 + $0x40] sm:$0xff] %v436
                  %v438 = vld [vmem:[%s418 + $0x88] sm:$0xff]
                  %439 = vst [vmem:[%s419 + $0x48] sm:$0xff] %v438
                  %v440 = vld [vmem:[%s418 + $0xa0] sm:$0xff]
                  %441 = vst [vmem:[%s419 + $0x50] sm:$0xff] %v440
                  %v442 = vld [vmem:[%s418 + $0xa8] sm:$0xff]
                  %443 = vst [vmem:[%s419 + $0x58] sm:$0xff] %v442
                  %v444 = vld [vmem:[%s418 + $0xc0] sm:$0xff]
                  %445 = vst [vmem:[%s419 + $0x60] sm:$0xff] %v444
                  %v446 = vld [vmem:[%s418 + $0xc8] sm:$0xff]
                  %447 = vst [vmem:[%s419 + $0x68] sm:$0xff] %v446
                  %v448 = vld [vmem:[%s418 + $0xe0] sm:$0xff]
                  %449 = vst [vmem:[%s419 + $0x70] sm:$0xff] %v448
                  %v450 = vld [vmem:[%s418 + $0xe8] sm:$0xff]
                  %451 = vst [vmem:[%s419 + $0x78] sm:$0xff] %v450
                  %v452 = vld [vmem:[%s418 + $0x100] sm:$0xff]
                  %453 = vst [vmem:[%s419 + $0x80] sm:$0xff] %v452
                  %v454 = vld [vmem:[%s418 + $0x108] sm:$0xff]
                  %455 = vst [vmem:[%s419 + $0x88] sm:$0xff] %v454
                  %v456 = vld [vmem:[%s418 + $0x120] sm:$0xff]
                  %457 = vst [vmem:[%s419 + $0x90] sm:$0xff] %v456
                  %v458 = vld [vmem:[%s418 + $0x128] sm:$0xff]
                  %459 = vst [vmem:[%s419 + $0x98] sm:$0xff] %v458
                  %v460 = vld [vmem:[%s418 + $0x140] sm:$0xff]
                  %461 = vst [vmem:[%s419 + $0xa0] sm:$0xff] %v460
                  %v462 = vld [vmem:[%s418 + $0x148] sm:$0xff]
                  %463 = vst [vmem:[%s419 + $0xa8] sm:$0xff] %v462
                  %v464 = vld [vmem:[%s418 + $0x160] sm:$0xff]
                  %465 = vst [vmem:[%s419 + $0xb0] sm:$0xff] %v464
                  %v466 = vld [vmem:[%s418 + $0x168] sm:$0xff]
                  %467 = vst [vmem:[%s419 + $0xb8] sm:$0xff] %v466
                  %v468 = vld [vmem:[%s418 + $0x180] sm:$0xff]
                  %469 = vst [vmem:[%s419 + $0xc0] sm:$0xff] %v468
                  %v470 = vld [vmem:[%s418 + $0x188] sm:$0xff]
                  %471 = vst [vmem:[%s419 + $0xc8] sm:$0xff] %v470
                  %v472 = vld [vmem:[%s418 + $0x1a0] sm:$0xff]
                  %473 = vst [vmem:[%s419 + $0xd0] sm:$0xff] %v472
                  %v474 = vld [vmem:[%s418 + $0x1a8] sm:$0xff]
                  %475 = vst [vmem:[%s419 + $0xd8] sm:$0xff] %v474
                  %v476 = vld [vmem:[%s418 + $0x1c0] sm:$0xff]
                  %477 = vst [vmem:[%s419 + $0xe0] sm:$0xff] %v476
                  %v478 = vld [vmem:[%s418 + $0x1c8] sm:$0xff]
                  %479 = vst [vmem:[%s419 + $0xe8] sm:$0xff] %v478
                  %v480 = vld [vmem:[%s418 + $0x1e0] sm:$0xff]
                  %481 = vst [vmem:[%s419 + $0xf0] sm:$0xff] %v480
                  %v482 = vld [vmem:[%s418 + $0x1e8] sm:$0xff]
                  %483 = vst [vmem:[%s419 + $0xf8] sm:$0xff] %v482
                  %v484 = vld [vmem:[%s418 + $0x200] sm:$0xff]
                  %485 = vst [vmem:[%s419 + $0x100] sm:$0xff] %v484
                  %v486 = vld [vmem:[%s418 + $0x208] sm:$0xff]
                  %487 = vst [vmem:[%s419 + $0x108] sm:$0xff] %v486
                  %v488 = vld [vmem:[%s418 + $0x220] sm:$0xff]
                  %489 = vst [vmem:[%s419 + $0x110] sm:$0xff] %v488
                  %v490 = vld [vmem:[%s418 + $0x228] sm:$0xff]
                  %491 = vst [vmem:[%s419 + $0x118] sm:$0xff] %v490
                  %v492 = vld [vmem:[%s418 + $0x240] sm:$0xff]
                  %493 = vst [vmem:[%s419 + $0x120] sm:$0xff] %v492
                  %v494 = vld [vmem:[%s418 + $0x248] sm:$0xff]
                  %495 = vst [vmem:[%s419 + $0x128] sm:$0xff] %v494
                  %v496 = vld [vmem:[%s418 + $0x260] sm:$0xff]
                  %497 = vst [vmem:[%s419 + $0x130] sm:$0xff] %v496
                  %v498 = vld [vmem:[%s418 + $0x268] sm:$0xff]
                  %499 = vst [vmem:[%s419 + $0x138] sm:$0xff] %v498
                  %v500 = vld [vmem:[%s418 + $0x280] sm:$0xff]
                  %501 = vst [vmem:[%s419 + $0x140] sm:$0xff] %v500
                  %v502 = vld [vmem:[%s418 + $0x288] sm:$0xff]
                  %503 = vst [vmem:[%s419 + $0x148] sm:$0xff] %v502
                  %v504 = vld [vmem:[%s418 + $0x2a0] sm:$0xff]
                  %505 = vst [vmem:[%s419 + $0x150] sm:$0xff] %v504
                  %v506 = vld [vmem:[%s418 + $0x2a8] sm:$0xff]
                  %507 = vst [vmem:[%s419 + $0x158] sm:$0xff] %v506
                  %v508 = vld [vmem:[%s418 + $0x2c0] sm:$0xff]
                  %509 = vst [vmem:[%s419 + $0x160] sm:$0xff] %v508
                  %v510 = vld [vmem:[%s418 + $0x2c8] sm:$0xff]
                  %511 = vst [vmem:[%s419 + $0x168] sm:$0xff] %v510
                  %v512 = vld [vmem:[%s418 + $0x2e0] sm:$0xff]
                  %513 = vst [vmem:[%s419 + $0x170] sm:$0xff] %v512
                  %v514 = vld [vmem:[%s418 + $0x2e8] sm:$0xff]
                  %515 = vst [vmem:[%s419 + $0x178] sm:$0xff] %v514
                  %v516 = vld [vmem:[%s418 + $0x300] sm:$0xff]
                  %517 = vst [vmem:[%s419 + $0x180] sm:$0xff] %v516
                  %v518 = vld [vmem:[%s418 + $0x308] sm:$0xff]
                  %519 = vst [vmem:[%s419 + $0x188] sm:$0xff] %v518
                  %v520 = vld [vmem:[%s418 + $0x320] sm:$0xff]
                  %521 = vst [vmem:[%s419 + $0x190] sm:$0xff] %v520
                  %v522 = vld [vmem:[%s418 + $0x328] sm:$0xff]
                  %523 = vst [vmem:[%s419 + $0x198] sm:$0xff] %v522
                  %v524 = vld [vmem:[%s418 + $0x340] sm:$0xff]
                  %525 = vst [vmem:[%s419 + $0x1a0] sm:$0xff] %v524
                  %v526 = vld [vmem:[%s418 + $0x348] sm:$0xff]
                  %527 = vst [vmem:[%s419 + $0x1a8] sm:$0xff] %v526
                  %v528 = vld [vmem:[%s418 + $0x360] sm:$0xff]
                  %529 = vst [vmem:[%s419 + $0x1b0] sm:$0xff] %v528
                  %v530 = vld [vmem:[%s418 + $0x368] sm:$0xff]
                  %531 = vst [vmem:[%s419 + $0x1b8] sm:$0xff] %v530
                  %v532 = vld [vmem:[%s418 + $0x380] sm:$0xff]
                  %533 = vst [vmem:[%s419 + $0x1c0] sm:$0xff] %v532
                  %v534 = vld [vmem:[%s418 + $0x388] sm:$0xff]
                  %535 = vst [vmem:[%s419 + $0x1c8] sm:$0xff] %v534
                  %v536 = vld [vmem:[%s418 + $0x3a0] sm:$0xff]
                  %537 = vst [vmem:[%s419 + $0x1d0] sm:$0xff] %v536
                  %v538 = vld [vmem:[%s418 + $0x3a8] sm:$0xff]
                  %539 = vst [vmem:[%s419 + $0x1d8] sm:$0xff] %v538
                  %v540 = vld [vmem:[%s418 + $0x3c0] sm:$0xff]
                  %541 = vst [vmem:[%s419 + $0x1e0] sm:$0xff] %v540
                  %v542 = vld [vmem:[%s418 + $0x3c8] sm:$0xff]
                  %543 = vst [vmem:[%s419 + $0x1e8] sm:$0xff] %v542
                  %v544 = vld [vmem:[%s418 + $0x3e0] sm:$0xff]
                  %545 = vst [vmem:[%s419 + $0x1f0] sm:$0xff] %v544
                  %v546 = vld [vmem:[%s418 + $0x3e8] sm:$0xff]
                  %547 = vst [vmem:[%s419 + $0x1f8] sm:$0xff] %v546
                  %v548 = vld [vmem:[%s418 + $0x400] sm:$0xff]
                  %549 = vst [vmem:[%s419 + $0x200] sm:$0xff] %v548
                  %v550 = vld [vmem:[%s418 + $0x408] sm:$0xff]
                  %551 = vst [vmem:[%s419 + $0x208] sm:$0xff] %v550
                  %v552 = vld [vmem:[%s418 + $0x420] sm:$0xff]
                  %553 = vst [vmem:[%s419 + $0x210] sm:$0xff] %v552
                  %v554 = vld [vmem:[%s418 + $0x428] sm:$0xff]
                  %555 = vst [vmem:[%s419 + $0x218] sm:$0xff] %v554
                  %v556 = vld [vmem:[%s418 + $0x440] sm:$0xff]
                  %557 = vst [vmem:[%s419 + $0x220] sm:$0xff] %v556
                  %v558 = vld [vmem:[%s418 + $0x448] sm:$0xff]
                  %559 = vst [vmem:[%s419 + $0x228] sm:$0xff] %v558
                  %v560 = vld [vmem:[%s418 + $0x460] sm:$0xff]
                  %561 = vst [vmem:[%s419 + $0x230] sm:$0xff] %v560
                  %v562 = vld [vmem:[%s418 + $0x468] sm:$0xff]
                  %563 = vst [vmem:[%s419 + $0x238] sm:$0xff] %v562
                  %v564 = vld [vmem:[%s418 + $0x480] sm:$0xff]
                  %565 = vst [vmem:[%s419 + $0x240] sm:$0xff] %v564
                  %v566 = vld [vmem:[%s418 + $0x488] sm:$0xff]
                  %567 = vst [vmem:[%s419 + $0x248] sm:$0xff] %v566
                  %v568 = vld [vmem:[%s418 + $0x4a0] sm:$0xff]
                  %569 = vst [vmem:[%s419 + $0x250] sm:$0xff] %v568
                  %v570 = vld [vmem:[%s418 + $0x4a8] sm:$0xff]
                  %571 = vst [vmem:[%s419 + $0x258] sm:$0xff] %v570
                  %v572 = vld [vmem:[%s418 + $0x4c0] sm:$0xff]
                  %573 = vst [vmem:[%s419 + $0x260] sm:$0xff] %v572
                  %v574 = vld [vmem:[%s418 + $0x4c8] sm:$0xff]
                  %575 = vst [vmem:[%s419 + $0x268] sm:$0xff] %v574
                  %v576 = vld [vmem:[%s418 + $0x4e0] sm:$0xff]
                  %577 = vst [vmem:[%s419 + $0x270] sm:$0xff] %v576
                  %v578 = vld [vmem:[%s418 + $0x4e8] sm:$0xff]
                  %579 = vst [vmem:[%s419 + $0x278] sm:$0xff] %v578
                  %v580 = vld [vmem:[%s418 + $0x500] sm:$0xff]
                  %581 = vst [vmem:[%s419 + $0x280] sm:$0xff] %v580
                  %v582 = vld [vmem:[%s418 + $0x508] sm:$0xff]
                  %583 = vst [vmem:[%s419 + $0x288] sm:$0xff] %v582
                  %v584 = vld [vmem:[%s418 + $0x520] sm:$0xff]
                  %585 = vst [vmem:[%s419 + $0x290] sm:$0xff] %v584
                  %v586 = vld [vmem:[%s418 + $0x528] sm:$0xff]
                  %587 = vst [vmem:[%s419 + $0x298] sm:$0xff] %v586
                  %v588 = vld [vmem:[%s418 + $0x540] sm:$0xff]
                  %589 = vst [vmem:[%s419 + $0x2a0] sm:$0xff] %v588
                  %v590 = vld [vmem:[%s418 + $0x548] sm:$0xff]
                  %591 = vst [vmem:[%s419 + $0x2a8] sm:$0xff] %v590
                  %v592 = vld [vmem:[%s418 + $0x560] sm:$0xff]
                  %593 = vst [vmem:[%s419 + $0x2b0] sm:$0xff] %v592
                  %v594 = vld [vmem:[%s418 + $0x568] sm:$0xff]
                  %595 = vst [vmem:[%s419 + $0x2b8] sm:$0xff] %v594
                  %v596 = vld [vmem:[%s418 + $0x580] sm:$0xff]
                  %597 = vst [vmem:[%s419 + $0x2c0] sm:$0xff] %v596
                  %v598 = vld [vmem:[%s418 + $0x588] sm:$0xff]
                  %599 = vst [vmem:[%s419 + $0x2c8] sm:$0xff] %v598
                  %v600 = vld [vmem:[%s418 + $0x5a0] sm:$0xff]
                  %601 = vst [vmem:[%s419 + $0x2d0] sm:$0xff] %v600
                  %v602 = vld [vmem:[%s418 + $0x5a8] sm:$0xff]
                  %603 = vst [vmem:[%s419 + $0x2d8] sm:$0xff] %v602
                  %v604 = vld [vmem:[%s418 + $0x5c0] sm:$0xff]
                  %605 = vst [vmem:[%s419 + $0x2e0] sm:$0xff] %v604
                  %v606 = vld [vmem:[%s418 + $0x5c8] sm:$0xff]
                  %607 = vst [vmem:[%s419 + $0x2e8] sm:$0xff] %v606
                  %v608 = vld [vmem:[%s418 + $0x5e0] sm:$0xff]
                  %609 = vst [vmem:[%s419 + $0x2f0] sm:$0xff] %v608
                  %v610 = vld [vmem:[%s418 + $0x5e8] sm:$0xff]
                  %611 = vst [vmem:[%s419 + $0x2f8] sm:$0xff] %v610
                  %v612 = vld [vmem:[%s418 + $0x600] sm:$0xff]
                  %613 = vst [vmem:[%s419 + $0x300] sm:$0xff] %v612
                  %v614 = vld [vmem:[%s418 + $0x608] sm:$0xff]
                  %615 = vst [vmem:[%s419 + $0x308] sm:$0xff] %v614
                  %v616 = vld [vmem:[%s418 + $0x620] sm:$0xff]
                  %617 = vst [vmem:[%s419 + $0x310] sm:$0xff] %v616
                  %v618 = vld [vmem:[%s418 + $0x628] sm:$0xff]
                  %619 = vst [vmem:[%s419 + $0x318] sm:$0xff] %v618
                  %v620 = vld [vmem:[%s418 + $0x640] sm:$0xff]
                  %621 = vst [vmem:[%s419 + $0x320] sm:$0xff] %v620
                  %v622 = vld [vmem:[%s418 + $0x648] sm:$0xff]
                  %623 = vst [vmem:[%s419 + $0x328] sm:$0xff] %v622
                  %v624 = vld [vmem:[%s418 + $0x660] sm:$0xff]
                  %625 = vst [vmem:[%s419 + $0x330] sm:$0xff] %v624
                  %v626 = vld [vmem:[%s418 + $0x668] sm:$0xff]
                  %627 = vst [vmem:[%s419 + $0x338] sm:$0xff] %v626
                  %v628 = vld [vmem:[%s418 + $0x680] sm:$0xff]
                  %629 = vst [vmem:[%s419 + $0x340] sm:$0xff] %v628
                  %v630 = vld [vmem:[%s418 + $0x688] sm:$0xff]
                  %631 = vst [vmem:[%s419 + $0x348] sm:$0xff] %v630
                  %v632 = vld [vmem:[%s418 + $0x6a0] sm:$0xff]
                  %633 = vst [vmem:[%s419 + $0x350] sm:$0xff] %v632
                  %v634 = vld [vmem:[%s418 + $0x6a8] sm:$0xff]
                  %635 = vst [vmem:[%s419 + $0x358] sm:$0xff] %v634
                  %v636 = vld [vmem:[%s418 + $0x6c0] sm:$0xff]
                  %637 = vst [vmem:[%s419 + $0x360] sm:$0xff] %v636
                  %v638 = vld [vmem:[%s418 + $0x6c8] sm:$0xff]
                  %639 = vst [vmem:[%s419 + $0x368] sm:$0xff] %v638
                  %v640 = vld [vmem:[%s418 + $0x6e0] sm:$0xff]
                  %641 = vst [vmem:[%s419 + $0x370] sm:$0xff] %v640
                  %v642 = vld [vmem:[%s418 + $0x6e8] sm:$0xff]
                  %643 = vst [vmem:[%s419 + $0x378] sm:$0xff] %v642
                  %v644 = vld [vmem:[%s418 + $0x700] sm:$0xff]
                  %645 = vst [vmem:[%s419 + $0x380] sm:$0xff] %v644
                  %v646 = vld [vmem:[%s418 + $0x708] sm:$0xff]
                  %647 = vst [vmem:[%s419 + $0x388] sm:$0xff] %v646
                  %v648 = vld [vmem:[%s418 + $0x720] sm:$0xff]
                  %649 = vst [vmem:[%s419 + $0x390] sm:$0xff] %v648
                  %v650 = vld [vmem:[%s418 + $0x728] sm:$0xff]
                  %651 = vst [vmem:[%s419 + $0x398] sm:$0xff] %v650
                  %v652 = vld [vmem:[%s418 + $0x740] sm:$0xff]
                  %653 = vst [vmem:[%s419 + $0x3a0] sm:$0xff] %v652
                  %v654 = vld [vmem:[%s418 + $0x748] sm:$0xff]
                  %655 = vst [vmem:[%s419 + $0x3a8] sm:$0xff] %v654
                  %v656 = vld [vmem:[%s418 + $0x760] sm:$0xff]
                  %657 = vst [vmem:[%s419 + $0x3b0] sm:$0xff] %v656
                  %v658 = vld [vmem:[%s418 + $0x768] sm:$0xff]
                  %659 = vst [vmem:[%s419 + $0x3b8] sm:$0xff] %v658
                  %v660 = vld [vmem:[%s418 + $0x780] sm:$0xff]
                  %661 = vst [vmem:[%s419 + $0x3c0] sm:$0xff] %v660
                  %v662 = vld [vmem:[%s418 + $0x788] sm:$0xff]
                  %663 = vst [vmem:[%s419 + $0x3c8] sm:$0xff] %v662
                  %v664 = vld [vmem:[%s418 + $0x7a0] sm:$0xff]
                  %665 = vst [vmem:[%s419 + $0x3d0] sm:$0xff] %v664
                  %v666 = vld [vmem:[%s418 + $0x7a8] sm:$0xff]
                  %667 = vst [vmem:[%s419 + $0x3d8] sm:$0xff] %v666
                  %v668 = vld [vmem:[%s418 + $0x7c0] sm:$0xff]
                  %669 = vst [vmem:[%s419 + $0x3e0] sm:$0xff] %v668
                  %v670 = vld [vmem:[%s418 + $0x7c8] sm:$0xff]
                  %671 = vst [vmem:[%s419 + $0x3e8] sm:$0xff] %v670
                  %v672 = vld [vmem:[%s418 + $0x7e0] sm:$0xff]
                  %673 = vst [vmem:[%s419 + $0x3f0] sm:$0xff] %v672
                  %v674 = vld [vmem:[%s418 + $0x7e8] sm:$0xff]
                  %675 = vst [vmem:[%s419 + $0x3f8] sm:$0xff] %v674
                $region52: #{_lambda_.11} parent=46 // loop_footer
                  %s417 = sadd.s32 1, %s413
                $region53: #{_lambda_.11} parent=46 // loop_footer_branch
                  %412 = sbr.rel target = $region49
                $region54: #{_lambda_.11} parent=46 // loop_exit
                  _
              $region47: #{_lambda_.11} parent=31 // pred_fallthru
                _
              // Predicated region
              $region55: #{_lambda_.11} parent=31 // pred_check
                _
              $region56: #{_lambda_.11} parent=31 // pred_check_branch
                %677 = sbr.rel target = $region58
              $region57: #{_lambda_.11} parent=31 // pred_region
                _
              $region58: #{_lambda_.11} parent=31 // pred_fallthru
                _
            $region32: #{_lambda_.11} parent=27 // pred_fallthru
              _
            // Predicated region
            $region33: #{_lambda_.11} parent=27 // pred_check
              _
            $region34: #{_lambda_.11} parent=27 // pred_check_branch
              %144 = sbr.rel target = $region36
            $region35: #{_lambda_.11} parent=27 // pred_region
              loop: start=0, step=1, limit=1
              $region37: #{_lambda_.11} parent=35 // loop_pre_header
                _
              $region38: #{_lambda_.11} parent=35 // loop_header
                %s147 = sphi 0, %s151
                %p148 = scmp.ge.s32.totalorder %s147, 1
                %s152 = sphi %s138, %s138
                %s153 = sphi %s134, %s134
              $region39: #{_lambda_.11} parent=35 // loop_header_branch
                %150 = sbr.rel (%p148) target = $region43
              $region40: #{_lambda_.11} parent=35 // loop_body
                %v154 = vld [vmem:[%s152] sm:$0xff]
                %155 = vst [vmem:[%s153] sm:$0xff] %v154
                %v156 = vld [vmem:[%s152 + $0x8] sm:$0xff]
                %157 = vst [vmem:[%s153 + $0x8] sm:$0xff] %v156
                %v158 = vld [vmem:[%s152 + $0x20] sm:$0xff]
                %159 = vst [vmem:[%s153 + $0x10] sm:$0xff] %v158
                %v160 = vld [vmem:[%s152 + $0x28] sm:$0xff]
                %161 = vst [vmem:[%s153 + $0x18] sm:$0xff] %v160
                %v162 = vld [vmem:[%s152 + $0x40] sm:$0xff]
                %163 = vst [vmem:[%s153 + $0x20] sm:$0xff] %v162
                %v164 = vld [vmem:[%s152 + $0x48] sm:$0xff]
                %165 = vst [vmem:[%s153 + $0x28] sm:$0xff] %v164
                %v166 = vld [vmem:[%s152 + $0x60] sm:$0xff]
                %167 = vst [vmem:[%s153 + $0x30] sm:$0xff] %v166
                %v168 = vld [vmem:[%s152 + $0x68] sm:$0xff]
                %169 = vst [vmem:[%s153 + $0x38] sm:$0xff] %v168
                %v170 = vld [vmem:[%s152 + $0x80] sm:$0xff]
                %171 = vst [vmem:[%s153 + $0x40] sm:$0xff] %v170
                %v172 = vld [vmem:[%s152 + $0x88] sm:$0xff]
                %173 = vst [vmem:[%s153 + $0x48] sm:$0xff] %v172
                %v174 = vld [vmem:[%s152 + $0xa0] sm:$0xff]
                %175 = vst [vmem:[%s153 + $0x50] sm:$0xff] %v174
                %v176 = vld [vmem:[%s152 + $0xa8] sm:$0xff]
                %177 = vst [vmem:[%s153 + $0x58] sm:$0xff] %v176
                %v178 = vld [vmem:[%s152 + $0xc0] sm:$0xff]
                %179 = vst [vmem:[%s153 + $0x60] sm:$0xff] %v178
                %v180 = vld [vmem:[%s152 + $0xc8] sm:$0xff]
                %181 = vst [vmem:[%s153 + $0x68] sm:$0xff] %v180
                %v182 = vld [vmem:[%s152 + $0xe0] sm:$0xff]
                %183 = vst [vmem:[%s153 + $0x70] sm:$0xff] %v182
                %v184 = vld [vmem:[%s152 + $0xe8] sm:$0xff]
                %185 = vst [vmem:[%s153 + $0x78] sm:$0xff] %v184
                %v186 = vld [vmem:[%s152 + $0x100] sm:$0xff]
                %187 = vst [vmem:[%s153 + $0x80] sm:$0xff] %v186
                %v188 = vld [vmem:[%s152 + $0x108] sm:$0xff]
                %189 = vst [vmem:[%s153 + $0x88] sm:$0xff] %v188
                %v190 = vld [vmem:[%s152 + $0x120] sm:$0xff]
                %191 = vst [vmem:[%s153 + $0x90] sm:$0xff] %v190
                %v192 = vld [vmem:[%s152 + $0x128] sm:$0xff]
                %193 = vst [vmem:[%s153 + $0x98] sm:$0xff] %v192
                %v194 = vld [vmem:[%s152 + $0x140] sm:$0xff]
                %195 = vst [vmem:[%s153 + $0xa0] sm:$0xff] %v194
                %v196 = vld [vmem:[%s152 + $0x148] sm:$0xff]
                %197 = vst [vmem:[%s153 + $0xa8] sm:$0xff] %v196
                %v198 = vld [vmem:[%s152 + $0x160] sm:$0xff]
                %199 = vst [vmem:[%s153 + $0xb0] sm:$0xff] %v198
                %v200 = vld [vmem:[%s152 + $0x168] sm:$0xff]
                %201 = vst [vmem:[%s153 + $0xb8] sm:$0xff] %v200
                %v202 = vld [vmem:[%s152 + $0x180] sm:$0xff]
                %203 = vst [vmem:[%s153 + $0xc0] sm:$0xff] %v202
                %v204 = vld [vmem:[%s152 + $0x188] sm:$0xff]
                %205 = vst [vmem:[%s153 + $0xc8] sm:$0xff] %v204
                %v206 = vld [vmem:[%s152 + $0x1a0] sm:$0xff]
                %207 = vst [vmem:[%s153 + $0xd0] sm:$0xff] %v206
                %v208 = vld [vmem:[%s152 + $0x1a8] sm:$0xff]
                %209 = vst [vmem:[%s153 + $0xd8] sm:$0xff] %v208
                %v210 = vld [vmem:[%s152 + $0x1c0] sm:$0xff]
                %211 = vst [vmem:[%s153 + $0xe0] sm:$0xff] %v210
                %v212 = vld [vmem:[%s152 + $0x1c8] sm:$0xff]
                %213 = vst [vmem:[%s153 + $0xe8] sm:$0xff] %v212
                %v214 = vld [vmem:[%s152 + $0x1e0] sm:$0xff]
                %215 = vst [vmem:[%s153 + $0xf0] sm:$0xff] %v214
                %v216 = vld [vmem:[%s152 + $0x1e8] sm:$0xff]
                %217 = vst [vmem:[%s153 + $0xf8] sm:$0xff] %v216
                %v218 = vld [vmem:[%s152 + $0x200] sm:$0xff]
                %219 = vst [vmem:[%s153 + $0x100] sm:$0xff] %v218
                %v220 = vld [vmem:[%s152 + $0x208] sm:$0xff]
                %221 = vst [vmem:[%s153 + $0x108] sm:$0xff] %v220
                %v222 = vld [vmem:[%s152 + $0x220] sm:$0xff]
                %223 = vst [vmem:[%s153 + $0x110] sm:$0xff] %v222
                %v224 = vld [vmem:[%s152 + $0x228] sm:$0xff]
                %225 = vst [vmem:[%s153 + $0x118] sm:$0xff] %v224
                %v226 = vld [vmem:[%s152 + $0x240] sm:$0xff]
                %227 = vst [vmem:[%s153 + $0x120] sm:$0xff] %v226
                %v228 = vld [vmem:[%s152 + $0x248] sm:$0xff]
                %229 = vst [vmem:[%s153 + $0x128] sm:$0xff] %v228
                %v230 = vld [vmem:[%s152 + $0x260] sm:$0xff]
                %231 = vst [vmem:[%s153 + $0x130] sm:$0xff] %v230
                %v232 = vld [vmem:[%s152 + $0x268] sm:$0xff]
                %233 = vst [vmem:[%s153 + $0x138] sm:$0xff] %v232
                %v234 = vld [vmem:[%s152 + $0x280] sm:$0xff]
                %235 = vst [vmem:[%s153 + $0x140] sm:$0xff] %v234
                %v236 = vld [vmem:[%s152 + $0x288] sm:$0xff]
                %237 = vst [vmem:[%s153 + $0x148] sm:$0xff] %v236
                %v238 = vld [vmem:[%s152 + $0x2a0] sm:$0xff]
                %239 = vst [vmem:[%s153 + $0x150] sm:$0xff] %v238
                %v240 = vld [vmem:[%s152 + $0x2a8] sm:$0xff]
                %241 = vst [vmem:[%s153 + $0x158] sm:$0xff] %v240
                %v242 = vld [vmem:[%s152 + $0x2c0] sm:$0xff]
                %243 = vst [vmem:[%s153 + $0x160] sm:$0xff] %v242
                %v244 = vld [vmem:[%s152 + $0x2c8] sm:$0xff]
                %245 = vst [vmem:[%s153 + $0x168] sm:$0xff] %v244
                %v246 = vld [vmem:[%s152 + $0x2e0] sm:$0xff]
                %247 = vst [vmem:[%s153 + $0x170] sm:$0xff] %v246
                %v248 = vld [vmem:[%s152 + $0x2e8] sm:$0xff]
                %249 = vst [vmem:[%s153 + $0x178] sm:$0xff] %v248
                %v250 = vld [vmem:[%s152 + $0x300] sm:$0xff]
                %251 = vst [vmem:[%s153 + $0x180] sm:$0xff] %v250
                %v252 = vld [vmem:[%s152 + $0x308] sm:$0xff]
                %253 = vst [vmem:[%s153 + $0x188] sm:$0xff] %v252
                %v254 = vld [vmem:[%s152 + $0x320] sm:$0xff]
                %255 = vst [vmem:[%s153 + $0x190] sm:$0xff] %v254
                %v256 = vld [vmem:[%s152 + $0x328] sm:$0xff]
                %257 = vst [vmem:[%s153 + $0x198] sm:$0xff] %v256
                %v258 = vld [vmem:[%s152 + $0x340] sm:$0xff]
                %259 = vst [vmem:[%s153 + $0x1a0] sm:$0xff] %v258
                %v260 = vld [vmem:[%s152 + $0x348] sm:$0xff]
                %261 = vst [vmem:[%s153 + $0x1a8] sm:$0xff] %v260
                %v262 = vld [vmem:[%s152 + $0x360] sm:$0xff]
                %263 = vst [vmem:[%s153 + $0x1b0] sm:$0xff] %v262
                %v264 = vld [vmem:[%s152 + $0x368] sm:$0xff]
                %265 = vst [vmem:[%s153 + $0x1b8] sm:$0xff] %v264
                %v266 = vld [vmem:[%s152 + $0x380] sm:$0xff]
                %267 = vst [vmem:[%s153 + $0x1c0] sm:$0xff] %v266
                %v268 = vld [vmem:[%s152 + $0x388] sm:$0xff]
                %269 = vst [vmem:[%s153 + $0x1c8] sm:$0xff] %v268
                %v270 = vld [vmem:[%s152 + $0x3a0] sm:$0xff]
                %271 = vst [vmem:[%s153 + $0x1d0] sm:$0xff] %v270
                %v272 = vld [vmem:[%s152 + $0x3a8] sm:$0xff]
                %273 = vst [vmem:[%s153 + $0x1d8] sm:$0xff] %v272
                %v274 = vld [vmem:[%s152 + $0x3c0] sm:$0xff]
                %275 = vst [vmem:[%s153 + $0x1e0] sm:$0xff] %v274
                %v276 = vld [vmem:[%s152 + $0x3c8] sm:$0xff]
                %277 = vst [vmem:[%s153 + $0x1e8] sm:$0xff] %v276
                %v278 = vld [vmem:[%s152 + $0x3e0] sm:$0xff]
                %279 = vst [vmem:[%s153 + $0x1f0] sm:$0xff] %v278
                %v280 = vld [vmem:[%s152 + $0x3e8] sm:$0xff]
                %281 = vst [vmem:[%s153 + $0x1f8] sm:$0xff] %v280
                %v282 = vld [vmem:[%s152 + $0x400] sm:$0xff]
                %283 = vst [vmem:[%s153 + $0x200] sm:$0xff] %v282
                %v284 = vld [vmem:[%s152 + $0x408] sm:$0xff]
                %285 = vst [vmem:[%s153 + $0x208] sm:$0xff] %v284
                %v286 = vld [vmem:[%s152 + $0x420] sm:$0xff]
                %287 = vst [vmem:[%s153 + $0x210] sm:$0xff] %v286
                %v288 = vld [vmem:[%s152 + $0x428] sm:$0xff]
                %289 = vst [vmem:[%s153 + $0x218] sm:$0xff] %v288
                %v290 = vld [vmem:[%s152 + $0x440] sm:$0xff]
                %291 = vst [vmem:[%s153 + $0x220] sm:$0xff] %v290
                %v292 = vld [vmem:[%s152 + $0x448] sm:$0xff]
                %293 = vst [vmem:[%s153 + $0x228] sm:$0xff] %v292
                %v294 = vld [vmem:[%s152 + $0x460] sm:$0xff]
                %295 = vst [vmem:[%s153 + $0x230] sm:$0xff] %v294
                %v296 = vld [vmem:[%s152 + $0x468] sm:$0xff]
                %297 = vst [vmem:[%s153 + $0x238] sm:$0xff] %v296
                %v298 = vld [vmem:[%s152 + $0x480] sm:$0xff]
                %299 = vst [vmem:[%s153 + $0x240] sm:$0xff] %v298
                %v300 = vld [vmem:[%s152 + $0x488] sm:$0xff]
                %301 = vst [vmem:[%s153 + $0x248] sm:$0xff] %v300
                %v302 = vld [vmem:[%s152 + $0x4a0] sm:$0xff]
                %303 = vst [vmem:[%s153 + $0x250] sm:$0xff] %v302
                %v304 = vld [vmem:[%s152 + $0x4a8] sm:$0xff]
                %305 = vst [vmem:[%s153 + $0x258] sm:$0xff] %v304
                %v306 = vld [vmem:[%s152 + $0x4c0] sm:$0xff]
                %307 = vst [vmem:[%s153 + $0x260] sm:$0xff] %v306
                %v308 = vld [vmem:[%s152 + $0x4c8] sm:$0xff]
                %309 = vst [vmem:[%s153 + $0x268] sm:$0xff] %v308
                %v310 = vld [vmem:[%s152 + $0x4e0] sm:$0xff]
                %311 = vst [vmem:[%s153 + $0x270] sm:$0xff] %v310
                %v312 = vld [vmem:[%s152 + $0x4e8] sm:$0xff]
                %313 = vst [vmem:[%s153 + $0x278] sm:$0xff] %v312
                %v314 = vld [vmem:[%s152 + $0x500] sm:$0xff]
                %315 = vst [vmem:[%s153 + $0x280] sm:$0xff] %v314
                %v316 = vld [vmem:[%s152 + $0x508] sm:$0xff]
                %317 = vst [vmem:[%s153 + $0x288] sm:$0xff] %v316
                %v318 = vld [vmem:[%s152 + $0x520] sm:$0xff]
                %319 = vst [vmem:[%s153 + $0x290] sm:$0xff] %v318
                %v320 = vld [vmem:[%s152 + $0x528] sm:$0xff]
                %321 = vst [vmem:[%s153 + $0x298] sm:$0xff] %v320
                %v322 = vld [vmem:[%s152 + $0x540] sm:$0xff]
                %323 = vst [vmem:[%s153 + $0x2a0] sm:$0xff] %v322
                %v324 = vld [vmem:[%s152 + $0x548] sm:$0xff]
                %325 = vst [vmem:[%s153 + $0x2a8] sm:$0xff] %v324
                %v326 = vld [vmem:[%s152 + $0x560] sm:$0xff]
                %327 = vst [vmem:[%s153 + $0x2b0] sm:$0xff] %v326
                %v328 = vld [vmem:[%s152 + $0x568] sm:$0xff]
                %329 = vst [vmem:[%s153 + $0x2b8] sm:$0xff] %v328
                %v330 = vld [vmem:[%s152 + $0x580] sm:$0xff]
                %331 = vst [vmem:[%s153 + $0x2c0] sm:$0xff] %v330
                %v332 = vld [vmem:[%s152 + $0x588] sm:$0xff]
                %333 = vst [vmem:[%s153 + $0x2c8] sm:$0xff] %v332
                %v334 = vld [vmem:[%s152 + $0x5a0] sm:$0xff]
                %335 = vst [vmem:[%s153 + $0x2d0] sm:$0xff] %v334
                %v336 = vld [vmem:[%s152 + $0x5a8] sm:$0xff]
                %337 = vst [vmem:[%s153 + $0x2d8] sm:$0xff] %v336
                %v338 = vld [vmem:[%s152 + $0x5c0] sm:$0xff]
                %339 = vst [vmem:[%s153 + $0x2e0] sm:$0xff] %v338
                %v340 = vld [vmem:[%s152 + $0x5c8] sm:$0xff]
                %341 = vst [vmem:[%s153 + $0x2e8] sm:$0xff] %v340
                %v342 = vld [vmem:[%s152 + $0x5e0] sm:$0xff]
                %343 = vst [vmem:[%s153 + $0x2f0] sm:$0xff] %v342
                %v344 = vld [vmem:[%s152 + $0x5e8] sm:$0xff]
                %345 = vst [vmem:[%s153 + $0x2f8] sm:$0xff] %v344
                %v346 = vld [vmem:[%s152 + $0x600] sm:$0xff]
                %347 = vst [vmem:[%s153 + $0x300] sm:$0xff] %v346
                %v348 = vld [vmem:[%s152 + $0x608] sm:$0xff]
                %349 = vst [vmem:[%s153 + $0x308] sm:$0xff] %v348
                %v350 = vld [vmem:[%s152 + $0x620] sm:$0xff]
                %351 = vst [vmem:[%s153 + $0x310] sm:$0xff] %v350
                %v352 = vld [vmem:[%s152 + $0x628] sm:$0xff]
                %353 = vst [vmem:[%s153 + $0x318] sm:$0xff] %v352
                %v354 = vld [vmem:[%s152 + $0x640] sm:$0xff]
                %355 = vst [vmem:[%s153 + $0x320] sm:$0xff] %v354
                %v356 = vld [vmem:[%s152 + $0x648] sm:$0xff]
                %357 = vst [vmem:[%s153 + $0x328] sm:$0xff] %v356
                %v358 = vld [vmem:[%s152 + $0x660] sm:$0xff]
                %359 = vst [vmem:[%s153 + $0x330] sm:$0xff] %v358
                %v360 = vld [vmem:[%s152 + $0x668] sm:$0xff]
                %361 = vst [vmem:[%s153 + $0x338] sm:$0xff] %v360
                %v362 = vld [vmem:[%s152 + $0x680] sm:$0xff]
                %363 = vst [vmem:[%s153 + $0x340] sm:$0xff] %v362
                %v364 = vld [vmem:[%s152 + $0x688] sm:$0xff]
                %365 = vst [vmem:[%s153 + $0x348] sm:$0xff] %v364
                %v366 = vld [vmem:[%s152 + $0x6a0] sm:$0xff]
                %367 = vst [vmem:[%s153 + $0x350] sm:$0xff] %v366
                %v368 = vld [vmem:[%s152 + $0x6a8] sm:$0xff]
                %369 = vst [vmem:[%s153 + $0x358] sm:$0xff] %v368
                %v370 = vld [vmem:[%s152 + $0x6c0] sm:$0xff]
                %371 = vst [vmem:[%s153 + $0x360] sm:$0xff] %v370
                %v372 = vld [vmem:[%s152 + $0x6c8] sm:$0xff]
                %373 = vst [vmem:[%s153 + $0x368] sm:$0xff] %v372
                %v374 = vld [vmem:[%s152 + $0x6e0] sm:$0xff]
                %375 = vst [vmem:[%s153 + $0x370] sm:$0xff] %v374
                %v376 = vld [vmem:[%s152 + $0x6e8] sm:$0xff]
                %377 = vst [vmem:[%s153 + $0x378] sm:$0xff] %v376
                %v378 = vld [vmem:[%s152 + $0x700] sm:$0xff]
                %379 = vst [vmem:[%s153 + $0x380] sm:$0xff] %v378
                %v380 = vld [vmem:[%s152 + $0x708] sm:$0xff]
                %381 = vst [vmem:[%s153 + $0x388] sm:$0xff] %v380
                %v382 = vld [vmem:[%s152 + $0x720] sm:$0xff]
                %383 = vst [vmem:[%s153 + $0x390] sm:$0xff] %v382
                %v384 = vld [vmem:[%s152 + $0x728] sm:$0xff]
                %385 = vst [vmem:[%s153 + $0x398] sm:$0xff] %v384
                %v386 = vld [vmem:[%s152 + $0x740] sm:$0xff]
                %387 = vst [vmem:[%s153 + $0x3a0] sm:$0xff] %v386
                %v388 = vld [vmem:[%s152 + $0x748] sm:$0xff]
                %389 = vst [vmem:[%s153 + $0x3a8] sm:$0xff] %v388
                %v390 = vld [vmem:[%s152 + $0x760] sm:$0xff]
                %391 = vst [vmem:[%s153 + $0x3b0] sm:$0xff] %v390
                %v392 = vld [vmem:[%s152 + $0x768] sm:$0xff]
                %393 = vst [vmem:[%s153 + $0x3b8] sm:$0xff] %v392
                %v394 = vld [vmem:[%s152 + $0x780] sm:$0xff]
                %395 = vst [vmem:[%s153 + $0x3c0] sm:$0xff] %v394
                %v396 = vld [vmem:[%s152 + $0x788] sm:$0xff]
                %397 = vst [vmem:[%s153 + $0x3c8] sm:$0xff] %v396
                %v398 = vld [vmem:[%s152 + $0x7a0] sm:$0xff]
                %399 = vst [vmem:[%s153 + $0x3d0] sm:$0xff] %v398
                %v400 = vld [vmem:[%s152 + $0x7a8] sm:$0xff]
                %401 = vst [vmem:[%s153 + $0x3d8] sm:$0xff] %v400
                %v402 = vld [vmem:[%s152 + $0x7c0] sm:$0xff]
                %403 = vst [vmem:[%s153 + $0x3e0] sm:$0xff] %v402
                %v404 = vld [vmem:[%s152 + $0x7c8] sm:$0xff]
                %405 = vst [vmem:[%s153 + $0x3e8] sm:$0xff] %v404
                %v406 = vld [vmem:[%s152 + $0x7e0] sm:$0xff]
                %407 = vst [vmem:[%s153 + $0x3f0] sm:$0xff] %v406
                %v408 = vld [vmem:[%s152 + $0x7e8] sm:$0xff]
                %409 = vst [vmem:[%s153 + $0x3f8] sm:$0xff] %v408
              $region41: #{_lambda_.11} parent=35 // loop_footer
                %s151 = sadd.s32 1, %s147
              $region42: #{_lambda_.11} parent=35 // loop_footer_branch
                %146 = sbr.rel target = $region38
              $region43: #{_lambda_.11} parent=35 // loop_exit
                _
            $region36: #{_lambda_.11} parent=27 // pred_fallthru
              _
          $region28: #{_lambda_.11} parent=23 // pred_fallthru
            _
          %678 = vnop
        $region24: #{_lambda_.11} parent=19 // pred_fallthru
          _
      $region20: #{_lambda_.11} parent=5 // pred_fallthru
        _
      %p679 = scmp.le.s32.totalorder 1, %s8
      %p680 = scmp.lt.s32.totalorder %s8, 3
      %p681 = pnand %p679, %p680
      %p682 = pneg %p681
      // Predicated region
      $region59: #{_lambda_.11} parent=5 // pred_check
        _
      $region60: #{_lambda_.11} parent=5 // pred_check_branch
        %684 = sbr.rel (%p681) target = $region62
      $region61: #{_lambda_.11} parent=5 // pred_region
        %s685 = ssub.s32 %s8, 1
        %s686 = sand.u32 %s61, 1
        %s687 = sand.u32 %s61, 1
        %s688 = smul.addr %s687, 1024
        %s689 = scalar_lea.vmem [#allocation2], %s688
        // Predicated region
        $region63: #{_lambda_.11} parent=61 // pred_check
          %p690 = pneg %p74
        $region64: #{_lambda_.11} parent=61 // pred_check_branch
          %692 = sbr.rel (%p690) target = $region66
        $region65: #{_lambda_.11} parent=61 // pred_region
          _
        $region66: #{_lambda_.11} parent=61 // pred_fallthru
          _
        %p693 = scmp.lt.s32.totalorder %s17, 0
        %s694 = scalar_select %p693, %s17, 0
        %s695 = smul.addr %s694, 8
        %s696 = scalar_lea.vmem %s0, %s695
        %p697 = pneg %p46
        %p698 = pneg %p43
        %s699 = sand.u32 %s61, 1
        %s700 = sand.u32 %s61, 1
        %s701 = smul.addr %s700, 1024
        %s702 = scalar_lea.vmem [#allocation2], %s701
        %p703 = pneg %p74
        %p704 = pneg %p71
        %p705 = pneg %p102
        %p706 = pneg %p99
        %s707 = sand.u32 %s89, 1
        %s708 = sand.u32 %s89, 1
        %s709 = smul.addr %s708, 64
        %s710 = scalar_lea.vmem [#allocation3], %s709
        %p711 = scmp.lt.s32.totalorder %s17, 0
        %s712 = scalar_select %p711, %s17, 0
        %s713 = smul.addr %s712, 8
        %s714 = scalar_lea.vmem %s0, %s713
        %s715 = smul.u32 2, %s18
        %s716 = smul.u32 2, %s18
        %v717 = vld [vmem:[%s714] sm:$0x1]
        %v718 = vld [vmem:[%s714 + $0x20] sm:$0x1]
        %v719 = vlaneseq
        %v720 = vshrl.u32 %v719, 7
        %v721 = vsub.s32 0, %v720
        %v722 = vrot.slane %v717, %v721
        %v723 = vlaneseq
        %v724 = vshrl.u32 %v723, 7
        %v725 = vsub.s32 0, %v724
        %v726 = vrot.slane %v718, %v725
        %s727 = scalar_lea.vmem %s714, 64
        %v728 = vld [vmem:[%s727] sm:$0x1]
        %v729 = vld [vmem:[%s727 + $0x20] sm:$0x1]
        %v730 = vlaneseq
        %v731 = vshrl.u32 %v730, 7
        %v732 = vsub.s32 0, %v731
        %v733 = vrot.slane %v728, %v732
        %v734 = vlaneseq
        %v735 = vshrl.u32 %v734, 7
        %v736 = vsub.s32 0, %v735
        %v737 = vrot.slane %v729, %v736
        %v738 = vld [vmem:[%s689] sm:$0xff]
        %v739 = vld [vmem:[%s689 + $0x8] sm:$0xff]
        %s740 = scalar_lea.vmem %s689, 512 [#allocation2]
        %v741 = vld [vmem:[%s740] sm:$0xff]
        %v742 = vld [vmem:[%s740 + $0x8] sm:$0xff]
        %v743 = vmul.f32 %v722, %v738
        %v744 = vmul.f32 %v722, %v739
        %v745 = vmul.f32 %v726, %v738
        %v746 = vmul.f32 %v726, %v739
        %v747 = vadd.f32 %v743, 0.0
        %v748 = vadd.f32 %v744, 0.0
        %v749 = vadd.f32 %v745, 0.0
        %v750 = vadd.f32 %v746, 0.0
        %v751 = vmul.f32 %v733, %v741
        %v752 = vmul.f32 %v733, %v742
        %v753 = vmul.f32 %v737, %v741
        %v754 = vmul.f32 %v737, %v742
        %v755 = vsub.f32 %v747, %v751
        %v756 = vsub.f32 %v748, %v752
        %v757 = vsub.f32 %v749, %v753
        %v758 = vsub.f32 %v750, %v754
        %v759 = vmul.f32 %v722, %v741
        %v760 = vmul.f32 %v722, %v742
        %v761 = vmul.f32 %v726, %v741
        %v762 = vmul.f32 %v726, %v742
        %v763 = vadd.f32 %v759, 0.0
        %v764 = vadd.f32 %v760, 0.0
        %v765 = vadd.f32 %v761, 0.0
        %v766 = vadd.f32 %v762, 0.0
        %v767 = vmul.f32 %v733, %v738
        %v768 = vmul.f32 %v733, %v739
        %v769 = vmul.f32 %v737, %v738
        %v770 = vmul.f32 %v737, %v739
        %v771 = vadd.f32 %v763, %v767
        %v772 = vadd.f32 %v764, %v768
        %v773 = vadd.f32 %v765, %v769
        %v774 = vadd.f32 %v766, %v770
        %v775 = vld [vmem:[%s714 + $0x1] sm:$0x1]
        %v776 = vld [vmem:[%s714 + $0x21] sm:$0x1]
        %v777 = vlaneseq
        %v778 = vshrl.u32 %v777, 7
        %v779 = vsub.s32 0, %v778
        %v780 = vrot.slane %v775, %v779
        %v781 = vlaneseq
        %v782 = vshrl.u32 %v781, 7
        %v783 = vsub.s32 0, %v782
        %v784 = vrot.slane %v776, %v783
        %v785 = vld [vmem:[%s727 + $0x1] sm:$0x1]
        %v786 = vld [vmem:[%s727 + $0x21] sm:$0x1]
        %v787 = vlaneseq
        %v788 = vshrl.u32 %v787, 7
        %v789 = vsub.s32 0, %v788
        %v790 = vrot.slane %v785, %v789
        %v791 = vlaneseq
        %v792 = vshrl.u32 %v791, 7
        %v793 = vsub.s32 0, %v792
        %v794 = vrot.slane %v786, %v793
        %s795 = scalar_lea.vmem %s689, 16 [#allocation2]
        %v796 = vld [vmem:[%s795] sm:$0xff]
        %v797 = vld [vmem:[%s795 + $0x8] sm:$0xff]
        %s798 = scalar_lea.vmem %s689, 528 [#allocation2]
        %v799 = vld [vmem:[%s798] sm:$0xff]
        %v800 = vld [vmem:[%s798 + $0x8] sm:$0xff]
        %v801 = vmul.f32 %v780, %v796
        %v802 = vmul.f32 %v780, %v797
        %v803 = vmul.f32 %v784, %v796
        %v804 = vmul.f32 %v784, %v797
        %v805 = vadd.f32 %v755, %v801
        %v806 = vadd.f32 %v756, %v802
        %v807 = vadd.f32 %v757, %v803
        %v808 = vadd.f32 %v758, %v804
        %v809 = vmul.f32 %v790, %v799
        %v810 = vmul.f32 %v790, %v800
        %v811 = vmul.f32 %v794, %v799
        %v812 = vmul.f32 %v794, %v800
        %v813 = vsub.f32 %v805, %v809
        %v814 = vsub.f32 %v806, %v810
        %v815 = vsub.f32 %v807, %v811
        %v816 = vsub.f32 %v808, %v812
        %v817 = vmul.f32 %v780, %v799
        %v818 = vmul.f32 %v780, %v800
        %v819 = vmul.f32 %v784, %v799
        %v820 = vmul.f32 %v784, %v800
        %v821 = vadd.f32 %v771, %v817
        %v822 = vadd.f32 %v772, %v818
        %v823 = vadd.f32 %v773, %v819
        %v824 = vadd.f32 %v774, %v820
        %v825 = vmul.f32 %v790, %v796
        %v826 = vmul.f32 %v790, %v797
        %v827 = vmul.f32 %v794, %v796
        %v828 = vmul.f32 %v794, %v797
        %v829 = vadd.f32 %v821, %v825
        %v830 = vadd.f32 %v822, %v826
        %v831 = vadd.f32 %v823, %v827
        %v832 = vadd.f32 %v824, %v828
        %v833 = vld [vmem:[%s714 + $0x2] sm:$0x1]
        %v834 = vld [vmem:[%s714 + $0x22] sm:$0x1]
        %v835 = vlaneseq
        %v836 = vshrl.u32 %v835, 7
        %v837 = vsub.s32 0, %v836
        %v838 = vrot.slane %v833, %v837
        %v839 = vlaneseq
        %v840 = vshrl.u32 %v839, 7
        %v841 = vsub.s32 0, %v840
        %v842 = vrot.slane %v834, %v841
        %v843 = vld [vmem:[%s727 + $0x2] sm:$0x1]
        %v844 = vld [vmem:[%s727 + $0x22] sm:$0x1]
        %v845 = vlaneseq
        %v846 = vshrl.u32 %v845, 7
        %v847 = vsub.s32 0, %v846
        %v848 = vrot.slane %v843, %v847
        %v849 = vlaneseq
        %v850 = vshrl.u32 %v849, 7
        %v851 = vsub.s32 0, %v850
        %v852 = vrot.slane %v844, %v851
        %s853 = scalar_lea.vmem %s689, 32 [#allocation2]
        %v854 = vld [vmem:[%s853] sm:$0xff]
        %v855 = vld [vmem:[%s853 + $0x8] sm:$0xff]
        %s856 = scalar_lea.vmem %s689, 544 [#allocation2]
        %v857 = vld [vmem:[%s856] sm:$0xff]
        %v858 = vld [vmem:[%s856 + $0x8] sm:$0xff]
        %v859 = vmul.f32 %v838, %v854
        %v860 = vmul.f32 %v838, %v855
        %v861 = vmul.f32 %v842, %v854
        %v862 = vmul.f32 %v842, %v855
        %v863 = vadd.f32 %v813, %v859
        %v864 = vadd.f32 %v814, %v860
        %v865 = vadd.f32 %v815, %v861
        %v866 = vadd.f32 %v816, %v862
        %v867 = vmul.f32 %v848, %v857
        %v868 = vmul.f32 %v848, %v858
        %v869 = vmul.f32 %v852, %v857
        %v870 = vmul.f32 %v852, %v858
        %v871 = vsub.f32 %v863, %v867
        %v872 = vsub.f32 %v864, %v868
        %v873 = vsub.f32 %v865, %v869
        %v874 = vsub.f32 %v866, %v870
        %v875 = vmul.f32 %v838, %v857
        %v876 = vmul.f32 %v838, %v858
        %v877 = vmul.f32 %v842, %v857
        %v878 = vmul.f32 %v842, %v858
        %v879 = vadd.f32 %v829, %v875
        %v880 = vadd.f32 %v830, %v876
        %v881 = vadd.f32 %v831, %v877
        %v882 = vadd.f32 %v832, %v878
        %v883 = vmul.f32 %v848, %v854
        %v884 = vmul.f32 %v848, %v855
        %v885 = vmul.f32 %v852, %v854
        %v886 = vmul.f32 %v852, %v855
        %v887 = vadd.f32 %v879, %v883
        %v888 = vadd.f32 %v880, %v884
        %v889 = vadd.f32 %v881, %v885
        %v890 = vadd.f32 %v882, %v886
        %v891 = vld [vmem:[%s714 + $0x3] sm:$0x1]
        %v892 = vld [vmem:[%s714 + $0x23] sm:$0x1]
        %v893 = vlaneseq
        %v894 = vshrl.u32 %v893, 7
        %v895 = vsub.s32 0, %v894
        %v896 = vrot.slane %v891, %v895
        %v897 = vlaneseq
        %v898 = vshrl.u32 %v897, 7
        %v899 = vsub.s32 0, %v898
        %v900 = vrot.slane %v892, %v899
        %v901 = vld [vmem:[%s727 + $0x3] sm:$0x1]
        %v902 = vld [vmem:[%s727 + $0x23] sm:$0x1]
        %v903 = vlaneseq
        %v904 = vshrl.u32 %v903, 7
        %v905 = vsub.s32 0, %v904
        %v906 = vrot.slane %v901, %v905
        %v907 = vlaneseq
        %v908 = vshrl.u32 %v907, 7
        %v909 = vsub.s32 0, %v908
        %v910 = vrot.slane %v902, %v909
        %s911 = scalar_lea.vmem %s689, 48 [#allocation2]
        %v912 = vld [vmem:[%s911] sm:$0xff]
        %v913 = vld [vmem:[%s911 + $0x8] sm:$0xff]
        %s914 = scalar_lea.vmem %s689, 560 [#allocation2]
        %v915 = vld [vmem:[%s914] sm:$0xff]
        %v916 = vld [vmem:[%s914 + $0x8] sm:$0xff]
        %v917 = vmul.f32 %v896, %v912
        %v918 = vmul.f32 %v896, %v913
        %v919 = vmul.f32 %v900, %v912
        %v920 = vmul.f32 %v900, %v913
        %v921 = vadd.f32 %v871, %v917
        %v922 = vadd.f32 %v872, %v918
        %v923 = vadd.f32 %v873, %v919
        %v924 = vadd.f32 %v874, %v920
        %v925 = vmul.f32 %v906, %v915
        %v926 = vmul.f32 %v906, %v916
        %v927 = vmul.f32 %v910, %v915
        %v928 = vmul.f32 %v910, %v916
        %v929 = vsub.f32 %v921, %v925
        %v930 = vsub.f32 %v922, %v926
        %v931 = vsub.f32 %v923, %v927
        %v932 = vsub.f32 %v924, %v928
        %v933 = vmul.f32 %v896, %v915
        %v934 = vmul.f32 %v896, %v916
        %v935 = vmul.f32 %v900, %v915
        %v936 = vmul.f32 %v900, %v916
        %v937 = vadd.f32 %v887, %v933
        %v938 = vadd.f32 %v888, %v934
        %v939 = vadd.f32 %v889, %v935
        %v940 = vadd.f32 %v890, %v936
        %v941 = vmul.f32 %v906, %v912
        %v942 = vmul.f32 %v906, %v913
        %v943 = vmul.f32 %v910, %v912
        %v944 = vmul.f32 %v910, %v913
        %v945 = vadd.f32 %v937, %v941
        %v946 = vadd.f32 %v938, %v942
        %v947 = vadd.f32 %v939, %v943
        %v948 = vadd.f32 %v940, %v944
        %v949 = vld [vmem:[%s714 + $0x4] sm:$0x1]
        %v950 = vld [vmem:[%s714 + $0x24] sm:$0x1]
        %v951 = vlaneseq
        %v952 = vshrl.u32 %v951, 7
        %v953 = vsub.s32 0, %v952
        %v954 = vrot.slane %v949, %v953
        %v955 = vlaneseq
        %v956 = vshrl.u32 %v955, 7
        %v957 = vsub.s32 0, %v956
        %v958 = vrot.slane %v950, %v957
        %v959 = vld [vmem:[%s727 + $0x4] sm:$0x1]
        %v960 = vld [vmem:[%s727 + $0x24] sm:$0x1]
        %v961 = vlaneseq
        %v962 = vshrl.u32 %v961, 7
        %v963 = vsub.s32 0, %v962
        %v964 = vrot.slane %v959, %v963
        %v965 = vlaneseq
        %v966 = vshrl.u32 %v965, 7
        %v967 = vsub.s32 0, %v966
        %v968 = vrot.slane %v960, %v967
        %s969 = scalar_lea.vmem %s689, 64 [#allocation2]
        %v970 = vld [vmem:[%s969] sm:$0xff]
        %v971 = vld [vmem:[%s969 + $0x8] sm:$0xff]
        %s972 = scalar_lea.vmem %s689, 576 [#allocation2]
        %v973 = vld [vmem:[%s972] sm:$0xff]
        %v974 = vld [vmem:[%s972 + $0x8] sm:$0xff]
        %v975 = vmul.f32 %v954, %v970
        %v976 = vmul.f32 %v954, %v971
        %v977 = vmul.f32 %v958, %v970
        %v978 = vmul.f32 %v958, %v971
        %v979 = vadd.f32 %v929, %v975
        %v980 = vadd.f32 %v930, %v976
        %v981 = vadd.f32 %v931, %v977
        %v982 = vadd.f32 %v932, %v978
        %v983 = vmul.f32 %v964, %v973
        %v984 = vmul.f32 %v964, %v974
        %v985 = vmul.f32 %v968, %v973
        %v986 = vmul.f32 %v968, %v974
        %v987 = vsub.f32 %v979, %v983
        %v988 = vsub.f32 %v980, %v984
        %v989 = vsub.f32 %v981, %v985
        %v990 = vsub.f32 %v982, %v986
        %v991 = vmul.f32 %v954, %v973
        %v992 = vmul.f32 %v954, %v974
        %v993 = vmul.f32 %v958, %v973
        %v994 = vmul.f32 %v958, %v974
        %v995 = vadd.f32 %v945, %v991
        %v996 = vadd.f32 %v946, %v992
        %v997 = vadd.f32 %v947, %v993
        %v998 = vadd.f32 %v948, %v994
        %v999 = vmul.f32 %v964, %v970
        %v1000 = vmul.f32 %v964, %v971
        %v1001 = vmul.f32 %v968, %v970
        %v1002 = vmul.f32 %v968, %v971
        %v1003 = vadd.f32 %v995, %v999
        %v1004 = vadd.f32 %v996, %v1000
        %v1005 = vadd.f32 %v997, %v1001
        %v1006 = vadd.f32 %v998, %v1002
        %v1007 = vld [vmem:[%s714 + $0x5] sm:$0x1]
        %v1008 = vld [vmem:[%s714 + $0x25] sm:$0x1]
        %v1009 = vlaneseq
        %v1010 = vshrl.u32 %v1009, 7
        %v1011 = vsub.s32 0, %v1010
        %v1012 = vrot.slane %v1007, %v1011
        %v1013 = vlaneseq
        %v1014 = vshrl.u32 %v1013, 7
        %v1015 = vsub.s32 0, %v1014
        %v1016 = vrot.slane %v1008, %v1015
        %v1017 = vld [vmem:[%s727 + $0x5] sm:$0x1]
        %v1018 = vld [vmem:[%s727 + $0x25] sm:$0x1]
        %v1019 = vlaneseq
        %v1020 = vshrl.u32 %v1019, 7
        %v1021 = vsub.s32 0, %v1020
        %v1022 = vrot.slane %v1017, %v1021
        %v1023 = vlaneseq
        %v1024 = vshrl.u32 %v1023, 7
        %v1025 = vsub.s32 0, %v1024
        %v1026 = vrot.slane %v1018, %v1025
        %s1027 = scalar_lea.vmem %s689, 80 [#allocation2]
        %v1028 = vld [vmem:[%s1027] sm:$0xff]
        %v1029 = vld [vmem:[%s1027 + $0x8] sm:$0xff]
        %s1030 = scalar_lea.vmem %s689, 592 [#allocation2]
        %v1031 = vld [vmem:[%s1030] sm:$0xff]
        %v1032 = vld [vmem:[%s1030 + $0x8] sm:$0xff]
        %v1033 = vmul.f32 %v1012, %v1028
        %v1034 = vmul.f32 %v1012, %v1029
        %v1035 = vmul.f32 %v1016, %v1028
        %v1036 = vmul.f32 %v1016, %v1029
        %v1037 = vadd.f32 %v987, %v1033
        %v1038 = vadd.f32 %v988, %v1034
        %v1039 = vadd.f32 %v989, %v1035
        %v1040 = vadd.f32 %v990, %v1036
        %v1041 = vmul.f32 %v1022, %v1031
        %v1042 = vmul.f32 %v1022, %v1032
        %v1043 = vmul.f32 %v1026, %v1031
        %v1044 = vmul.f32 %v1026, %v1032
        %v1045 = vsub.f32 %v1037, %v1041
        %v1046 = vsub.f32 %v1038, %v1042
        %v1047 = vsub.f32 %v1039, %v1043
        %v1048 = vsub.f32 %v1040, %v1044
        %v1049 = vmul.f32 %v1012, %v1031
        %v1050 = vmul.f32 %v1012, %v1032
        %v1051 = vmul.f32 %v1016, %v1031
        %v1052 = vmul.f32 %v1016, %v1032
        %v1053 = vadd.f32 %v1003, %v1049
        %v1054 = vadd.f32 %v1004, %v1050
        %v1055 = vadd.f32 %v1005, %v1051
        %v1056 = vadd.f32 %v1006, %v1052
        %v1057 = vmul.f32 %v1022, %v1028
        %v1058 = vmul.f32 %v1022, %v1029
        %v1059 = vmul.f32 %v1026, %v1028
        %v1060 = vmul.f32 %v1026, %v1029
        %v1061 = vadd.f32 %v1053, %v1057
        %v1062 = vadd.f32 %v1054, %v1058
        %v1063 = vadd.f32 %v1055, %v1059
        %v1064 = vadd.f32 %v1056, %v1060
        %v1065 = vld [vmem:[%s714 + $0x6] sm:$0x1]
        %v1066 = vld [vmem:[%s714 + $0x26] sm:$0x1]
        %v1067 = vlaneseq
        %v1068 = vshrl.u32 %v1067, 7
        %v1069 = vsub.s32 0, %v1068
        %v1070 = vrot.slane %v1065, %v1069
        %v1071 = vlaneseq
        %v1072 = vshrl.u32 %v1071, 7
        %v1073 = vsub.s32 0, %v1072
        %v1074 = vrot.slane %v1066, %v1073
        %v1075 = vld [vmem:[%s727 + $0x6] sm:$0x1]
        %v1076 = vld [vmem:[%s727 + $0x26] sm:$0x1]
        %v1077 = vlaneseq
        %v1078 = vshrl.u32 %v1077, 7
        %v1079 = vsub.s32 0, %v1078
        %v1080 = vrot.slane %v1075, %v1079
        %v1081 = vlaneseq
        %v1082 = vshrl.u32 %v1081, 7
        %v1083 = vsub.s32 0, %v1082
        %v1084 = vrot.slane %v1076, %v1083
        %s1085 = scalar_lea.vmem %s689, 96 [#allocation2]
        %v1086 = vld [vmem:[%s1085] sm:$0xff]
        %v1087 = vld [vmem:[%s1085 + $0x8] sm:$0xff]
        %s1088 = scalar_lea.vmem %s689, 608 [#allocation2]
        %v1089 = vld [vmem:[%s1088] sm:$0xff]
        %v1090 = vld [vmem:[%s1088 + $0x8] sm:$0xff]
        %v1091 = vmul.f32 %v1070, %v1086
        %v1092 = vmul.f32 %v1070, %v1087
        %v1093 = vmul.f32 %v1074, %v1086
        %v1094 = vmul.f32 %v1074, %v1087
        %v1095 = vadd.f32 %v1045, %v1091
        %v1096 = vadd.f32 %v1046, %v1092
        %v1097 = vadd.f32 %v1047, %v1093
        %v1098 = vadd.f32 %v1048, %v1094
        %v1099 = vmul.f32 %v1080, %v1089
        %v1100 = vmul.f32 %v1080, %v1090
        %v1101 = vmul.f32 %v1084, %v1089
        %v1102 = vmul.f32 %v1084, %v1090
        %v1103 = vsub.f32 %v1095, %v1099
        %v1104 = vsub.f32 %v1096, %v1100
        %v1105 = vsub.f32 %v1097, %v1101
        %v1106 = vsub.f32 %v1098, %v1102
        %v1107 = vmul.f32 %v1070, %v1089
        %v1108 = vmul.f32 %v1070, %v1090
        %v1109 = vmul.f32 %v1074, %v1089
        %v1110 = vmul.f32 %v1074, %v1090
        %v1111 = vadd.f32 %v1061, %v1107
        %v1112 = vadd.f32 %v1062, %v1108
        %v1113 = vadd.f32 %v1063, %v1109
        %v1114 = vadd.f32 %v1064, %v1110
        %v1115 = vmul.f32 %v1080, %v1086
        %v1116 = vmul.f32 %v1080, %v1087
        %v1117 = vmul.f32 %v1084, %v1086
        %v1118 = vmul.f32 %v1084, %v1087
        %v1119 = vadd.f32 %v1111, %v1115
        %v1120 = vadd.f32 %v1112, %v1116
        %v1121 = vadd.f32 %v1113, %v1117
        %v1122 = vadd.f32 %v1114, %v1118
        %v1123 = vld [vmem:[%s714 + $0x7] sm:$0x1]
        %v1124 = vld [vmem:[%s714 + $0x27] sm:$0x1]
        %v1125 = vlaneseq
        %v1126 = vshrl.u32 %v1125, 7
        %v1127 = vsub.s32 0, %v1126
        %v1128 = vrot.slane %v1123, %v1127
        %v1129 = vlaneseq
        %v1130 = vshrl.u32 %v1129, 7
        %v1131 = vsub.s32 0, %v1130
        %v1132 = vrot.slane %v1124, %v1131
        %v1133 = vld [vmem:[%s727 + $0x7] sm:$0x1]
        %v1134 = vld [vmem:[%s727 + $0x27] sm:$0x1]
        %v1135 = vlaneseq
        %v1136 = vshrl.u32 %v1135, 7
        %v1137 = vsub.s32 0, %v1136
        %v1138 = vrot.slane %v1133, %v1137
        %v1139 = vlaneseq
        %v1140 = vshrl.u32 %v1139, 7
        %v1141 = vsub.s32 0, %v1140
        %v1142 = vrot.slane %v1134, %v1141
        %s1143 = scalar_lea.vmem %s689, 112 [#allocation2]
        %v1144 = vld [vmem:[%s1143] sm:$0xff]
        %v1145 = vld [vmem:[%s1143 + $0x8] sm:$0xff]
        %s1146 = scalar_lea.vmem %s689, 624 [#allocation2]
        %v1147 = vld [vmem:[%s1146] sm:$0xff]
        %v1148 = vld [vmem:[%s1146 + $0x8] sm:$0xff]
        %v1149 = vmul.f32 %v1128, %v1144
        %v1150 = vmul.f32 %v1128, %v1145
        %v1151 = vmul.f32 %v1132, %v1144
        %v1152 = vmul.f32 %v1132, %v1145
        %v1153 = vadd.f32 %v1103, %v1149
        %v1154 = vadd.f32 %v1104, %v1150
        %v1155 = vadd.f32 %v1105, %v1151
        %v1156 = vadd.f32 %v1106, %v1152
        %v1157 = vmul.f32 %v1138, %v1147
        %v1158 = vmul.f32 %v1138, %v1148
        %v1159 = vmul.f32 %v1142, %v1147
        %v1160 = vmul.f32 %v1142, %v1148
        %v1161 = vsub.f32 %v1153, %v1157
        %v1162 = vsub.f32 %v1154, %v1158
        %v1163 = vsub.f32 %v1155, %v1159
        %v1164 = vsub.f32 %v1156, %v1160
        %v1165 = vmul.f32 %v1128, %v1147
        %v1166 = vmul.f32 %v1128, %v1148
        %v1167 = vmul.f32 %v1132, %v1147
        %v1168 = vmul.f32 %v1132, %v1148
        %v1169 = vadd.f32 %v1119, %v1165
        %v1170 = vadd.f32 %v1120, %v1166
        %v1171 = vadd.f32 %v1121, %v1167
        %v1172 = vadd.f32 %v1122, %v1168
        %v1173 = vmul.f32 %v1138, %v1144
        %v1174 = vmul.f32 %v1138, %v1145
        %v1175 = vmul.f32 %v1142, %v1144
        %v1176 = vmul.f32 %v1142, %v1145
        %v1177 = vadd.f32 %v1169, %v1173
        %v1178 = vadd.f32 %v1170, %v1174
        %v1179 = vadd.f32 %v1171, %v1175
        %v1180 = vadd.f32 %v1172, %v1176
        %v1181 = vld [vmem:[%s714 + $0x8] sm:$0x1]
        %v1182 = vld [vmem:[%s714 + $0x28] sm:$0x1]
        %v1183 = vlaneseq
        %v1184 = vshrl.u32 %v1183, 7
        %v1185 = vsub.s32 0, %v1184
        %v1186 = vrot.slane %v1181, %v1185
        %v1187 = vlaneseq
        %v1188 = vshrl.u32 %v1187, 7
        %v1189 = vsub.s32 0, %v1188
        %v1190 = vrot.slane %v1182, %v1189
        %v1191 = vld [vmem:[%s727 + $0x8] sm:$0x1]
        %v1192 = vld [vmem:[%s727 + $0x28] sm:$0x1]
        %v1193 = vlaneseq
        %v1194 = vshrl.u32 %v1193, 7
        %v1195 = vsub.s32 0, %v1194
        %v1196 = vrot.slane %v1191, %v1195
        %v1197 = vlaneseq
        %v1198 = vshrl.u32 %v1197, 7
        %v1199 = vsub.s32 0, %v1198
        %v1200 = vrot.slane %v1192, %v1199
        %s1201 = scalar_lea.vmem %s689, 128 [#allocation2]
        %v1202 = vld [vmem:[%s1201] sm:$0xff]
        %v1203 = vld [vmem:[%s1201 + $0x8] sm:$0xff]
        %s1204 = scalar_lea.vmem %s689, 640 [#allocation2]
        %v1205 = vld [vmem:[%s1204] sm:$0xff]
        %v1206 = vld [vmem:[%s1204 + $0x8] sm:$0xff]
        %v1207 = vmul.f32 %v1186, %v1202
        %v1208 = vmul.f32 %v1186, %v1203
        %v1209 = vmul.f32 %v1190, %v1202
        %v1210 = vmul.f32 %v1190, %v1203
        %v1211 = vadd.f32 %v1161, %v1207
        %v1212 = vadd.f32 %v1162, %v1208
        %v1213 = vadd.f32 %v1163, %v1209
        %v1214 = vadd.f32 %v1164, %v1210
        %v1215 = vmul.f32 %v1196, %v1205
        %v1216 = vmul.f32 %v1196, %v1206
        %v1217 = vmul.f32 %v1200, %v1205
        %v1218 = vmul.f32 %v1200, %v1206
        %v1219 = vsub.f32 %v1211, %v1215
        %v1220 = vsub.f32 %v1212, %v1216
        %v1221 = vsub.f32 %v1213, %v1217
        %v1222 = vsub.f32 %v1214, %v1218
        %v1223 = vmul.f32 %v1186, %v1205
        %v1224 = vmul.f32 %v1186, %v1206
        %v1225 = vmul.f32 %v1190, %v1205
        %v1226 = vmul.f32 %v1190, %v1206
        %v1227 = vadd.f32 %v1177, %v1223
        %v1228 = vadd.f32 %v1178, %v1224
        %v1229 = vadd.f32 %v1179, %v1225
        %v1230 = vadd.f32 %v1180, %v1226
        %v1231 = vmul.f32 %v1196, %v1202
        %v1232 = vmul.f32 %v1196, %v1203
        %v1233 = vmul.f32 %v1200, %v1202
        %v1234 = vmul.f32 %v1200, %v1203
        %v1235 = vadd.f32 %v1227, %v1231
        %v1236 = vadd.f32 %v1228, %v1232
        %v1237 = vadd.f32 %v1229, %v1233
        %v1238 = vadd.f32 %v1230, %v1234
        %v1239 = vld [vmem:[%s714 + $0x9] sm:$0x1]
        %v1240 = vld [vmem:[%s714 + $0x29] sm:$0x1]
        %v1241 = vlaneseq
        %v1242 = vshrl.u32 %v1241, 7
        %v1243 = vsub.s32 0, %v1242
        %v1244 = vrot.slane %v1239, %v1243
        %v1245 = vlaneseq
        %v1246 = vshrl.u32 %v1245, 7
        %v1247 = vsub.s32 0, %v1246
        %v1248 = vrot.slane %v1240, %v1247
        %v1249 = vld [vmem:[%s727 + $0x9] sm:$0x1]
        %v1250 = vld [vmem:[%s727 + $0x29] sm:$0x1]
        %v1251 = vlaneseq
        %v1252 = vshrl.u32 %v1251, 7
        %v1253 = vsub.s32 0, %v1252
        %v1254 = vrot.slane %v1249, %v1253
        %v1255 = vlaneseq
        %v1256 = vshrl.u32 %v1255, 7
        %v1257 = vsub.s32 0, %v1256
        %v1258 = vrot.slane %v1250, %v1257
        %s1259 = scalar_lea.vmem %s689, 144 [#allocation2]
        %v1260 = vld [vmem:[%s1259] sm:$0xff]
        %v1261 = vld [vmem:[%s1259 + $0x8] sm:$0xff]
        %s1262 = scalar_lea.vmem %s689, 656 [#allocation2]
        %v1263 = vld [vmem:[%s1262] sm:$0xff]
        %v1264 = vld [vmem:[%s1262 + $0x8] sm:$0xff]
        %v1265 = vmul.f32 %v1244, %v1260
        %v1266 = vmul.f32 %v1244, %v1261
        %v1267 = vmul.f32 %v1248, %v1260
        %v1268 = vmul.f32 %v1248, %v1261
        %v1269 = vadd.f32 %v1219, %v1265
        %v1270 = vadd.f32 %v1220, %v1266
        %v1271 = vadd.f32 %v1221, %v1267
        %v1272 = vadd.f32 %v1222, %v1268
        %v1273 = vmul.f32 %v1254, %v1263
        %v1274 = vmul.f32 %v1254, %v1264
        %v1275 = vmul.f32 %v1258, %v1263
        %v1276 = vmul.f32 %v1258, %v1264
        %v1277 = vsub.f32 %v1269, %v1273
        %v1278 = vsub.f32 %v1270, %v1274
        %v1279 = vsub.f32 %v1271, %v1275
        %v1280 = vsub.f32 %v1272, %v1276
        %v1281 = vmul.f32 %v1244, %v1263
        %v1282 = vmul.f32 %v1244, %v1264
        %v1283 = vmul.f32 %v1248, %v1263
        %v1284 = vmul.f32 %v1248, %v1264
        %v1285 = vadd.f32 %v1235, %v1281
        %v1286 = vadd.f32 %v1236, %v1282
        %v1287 = vadd.f32 %v1237, %v1283
        %v1288 = vadd.f32 %v1238, %v1284
        %v1289 = vmul.f32 %v1254, %v1260
        %v1290 = vmul.f32 %v1254, %v1261
        %v1291 = vmul.f32 %v1258, %v1260
        %v1292 = vmul.f32 %v1258, %v1261
        %v1293 = vadd.f32 %v1285, %v1289
        %v1294 = vadd.f32 %v1286, %v1290
        %v1295 = vadd.f32 %v1287, %v1291
        %v1296 = vadd.f32 %v1288, %v1292
        %v1297 = vld [vmem:[%s714 + $0xa] sm:$0x1]
        %v1298 = vld [vmem:[%s714 + $0x2a] sm:$0x1]
        %v1299 = vlaneseq
        %v1300 = vshrl.u32 %v1299, 7
        %v1301 = vsub.s32 0, %v1300
        %v1302 = vrot.slane %v1297, %v1301
        %v1303 = vlaneseq
        %v1304 = vshrl.u32 %v1303, 7
        %v1305 = vsub.s32 0, %v1304
        %v1306 = vrot.slane %v1298, %v1305
        %v1307 = vld [vmem:[%s727 + $0xa] sm:$0x1]
        %v1308 = vld [vmem:[%s727 + $0x2a] sm:$0x1]
        %v1309 = vlaneseq
        %v1310 = vshrl.u32 %v1309, 7
        %v1311 = vsub.s32 0, %v1310
        %v1312 = vrot.slane %v1307, %v1311
        %v1313 = vlaneseq
        %v1314 = vshrl.u32 %v1313, 7
        %v1315 = vsub.s32 0, %v1314
        %v1316 = vrot.slane %v1308, %v1315
        %s1317 = scalar_lea.vmem %s689, 160 [#allocation2]
        %v1318 = vld [vmem:[%s1317] sm:$0xff]
        %v1319 = vld [vmem:[%s1317 + $0x8] sm:$0xff]
        %s1320 = scalar_lea.vmem %s689, 672 [#allocation2]
        %v1321 = vld [vmem:[%s1320] sm:$0xff]
        %v1322 = vld [vmem:[%s1320 + $0x8] sm:$0xff]
        %v1323 = vmul.f32 %v1302, %v1318
        %v1324 = vmul.f32 %v1302, %v1319
        %v1325 = vmul.f32 %v1306, %v1318
        %v1326 = vmul.f32 %v1306, %v1319
        %v1327 = vadd.f32 %v1277, %v1323
        %v1328 = vadd.f32 %v1278, %v1324
        %v1329 = vadd.f32 %v1279, %v1325
        %v1330 = vadd.f32 %v1280, %v1326
        %v1331 = vmul.f32 %v1312, %v1321
        %v1332 = vmul.f32 %v1312, %v1322
        %v1333 = vmul.f32 %v1316, %v1321
        %v1334 = vmul.f32 %v1316, %v1322
        %v1335 = vsub.f32 %v1327, %v1331
        %v1336 = vsub.f32 %v1328, %v1332
        %v1337 = vsub.f32 %v1329, %v1333
        %v1338 = vsub.f32 %v1330, %v1334
        %v1339 = vmul.f32 %v1302, %v1321
        %v1340 = vmul.f32 %v1302, %v1322
        %v1341 = vmul.f32 %v1306, %v1321
        %v1342 = vmul.f32 %v1306, %v1322
        %v1343 = vadd.f32 %v1293, %v1339
        %v1344 = vadd.f32 %v1294, %v1340
        %v1345 = vadd.f32 %v1295, %v1341
        %v1346 = vadd.f32 %v1296, %v1342
        %v1347 = vmul.f32 %v1312, %v1318
        %v1348 = vmul.f32 %v1312, %v1319
        %v1349 = vmul.f32 %v1316, %v1318
        %v1350 = vmul.f32 %v1316, %v1319
        %v1351 = vadd.f32 %v1343, %v1347
        %v1352 = vadd.f32 %v1344, %v1348
        %v1353 = vadd.f32 %v1345, %v1349
        %v1354 = vadd.f32 %v1346, %v1350
        %v1355 = vld [vmem:[%s714 + $0xb] sm:$0x1]
        %v1356 = vld [vmem:[%s714 + $0x2b] sm:$0x1]
        %v1357 = vlaneseq
        %v1358 = vshrl.u32 %v1357, 7
        %v1359 = vsub.s32 0, %v1358
        %v1360 = vrot.slane %v1355, %v1359
        %v1361 = vlaneseq
        %v1362 = vshrl.u32 %v1361, 7
        %v1363 = vsub.s32 0, %v1362
        %v1364 = vrot.slane %v1356, %v1363
        %v1365 = vld [vmem:[%s727 + $0xb] sm:$0x1]
        %v1366 = vld [vmem:[%s727 + $0x2b] sm:$0x1]
        %v1367 = vlaneseq
        %v1368 = vshrl.u32 %v1367, 7
        %v1369 = vsub.s32 0, %v1368
        %v1370 = vrot.slane %v1365, %v1369
        %v1371 = vlaneseq
        %v1372 = vshrl.u32 %v1371, 7
        %v1373 = vsub.s32 0, %v1372
        %v1374 = vrot.slane %v1366, %v1373
        %s1375 = scalar_lea.vmem %s689, 176 [#allocation2]
        %v1376 = vld [vmem:[%s1375] sm:$0xff]
        %v1377 = vld [vmem:[%s1375 + $0x8] sm:$0xff]
        %s1378 = scalar_lea.vmem %s689, 688 [#allocation2]
        %v1379 = vld [vmem:[%s1378] sm:$0xff]
        %v1380 = vld [vmem:[%s1378 + $0x8] sm:$0xff]
        %v1381 = vmul.f32 %v1360, %v1376
        %v1382 = vmul.f32 %v1360, %v1377
        %v1383 = vmul.f32 %v1364, %v1376
        %v1384 = vmul.f32 %v1364, %v1377
        %v1385 = vadd.f32 %v1335, %v1381
        %v1386 = vadd.f32 %v1336, %v1382
        %v1387 = vadd.f32 %v1337, %v1383
        %v1388 = vadd.f32 %v1338, %v1384
        %v1389 = vmul.f32 %v1370, %v1379
        %v1390 = vmul.f32 %v1370, %v1380
        %v1391 = vmul.f32 %v1374, %v1379
        %v1392 = vmul.f32 %v1374, %v1380
        %v1393 = vsub.f32 %v1385, %v1389
        %v1394 = vsub.f32 %v1386, %v1390
        %v1395 = vsub.f32 %v1387, %v1391
        %v1396 = vsub.f32 %v1388, %v1392
        %v1397 = vmul.f32 %v1360, %v1379
        %v1398 = vmul.f32 %v1360, %v1380
        %v1399 = vmul.f32 %v1364, %v1379
        %v1400 = vmul.f32 %v1364, %v1380
        %v1401 = vadd.f32 %v1351, %v1397
        %v1402 = vadd.f32 %v1352, %v1398
        %v1403 = vadd.f32 %v1353, %v1399
        %v1404 = vadd.f32 %v1354, %v1400
        %v1405 = vmul.f32 %v1370, %v1376
        %v1406 = vmul.f32 %v1370, %v1377
        %v1407 = vmul.f32 %v1374, %v1376
        %v1408 = vmul.f32 %v1374, %v1377
        %v1409 = vadd.f32 %v1401, %v1405
        %v1410 = vadd.f32 %v1402, %v1406
        %v1411 = vadd.f32 %v1403, %v1407
        %v1412 = vadd.f32 %v1404, %v1408
        %v1413 = vld [vmem:[%s714 + $0xc] sm:$0x1]
        %v1414 = vld [vmem:[%s714 + $0x2c] sm:$0x1]
        %v1415 = vlaneseq
        %v1416 = vshrl.u32 %v1415, 7
        %v1417 = vsub.s32 0, %v1416
        %v1418 = vrot.slane %v1413, %v1417
        %v1419 = vlaneseq
        %v1420 = vshrl.u32 %v1419, 7
        %v1421 = vsub.s32 0, %v1420
        %v1422 = vrot.slane %v1414, %v1421
        %v1423 = vld [vmem:[%s727 + $0xc] sm:$0x1]
        %v1424 = vld [vmem:[%s727 + $0x2c] sm:$0x1]
        %v1425 = vlaneseq
        %v1426 = vshrl.u32 %v1425, 7
        %v1427 = vsub.s32 0, %v1426
        %v1428 = vrot.slane %v1423, %v1427
        %v1429 = vlaneseq
        %v1430 = vshrl.u32 %v1429, 7
        %v1431 = vsub.s32 0, %v1430
        %v1432 = vrot.slane %v1424, %v1431
        %s1433 = scalar_lea.vmem %s689, 192 [#allocation2]
        %v1434 = vld [vmem:[%s1433] sm:$0xff]
        %v1435 = vld [vmem:[%s1433 + $0x8] sm:$0xff]
        %s1436 = scalar_lea.vmem %s689, 704 [#allocation2]
        %v1437 = vld [vmem:[%s1436] sm:$0xff]
        %v1438 = vld [vmem:[%s1436 + $0x8] sm:$0xff]
        %v1439 = vmul.f32 %v1418, %v1434
        %v1440 = vmul.f32 %v1418, %v1435
        %v1441 = vmul.f32 %v1422, %v1434
        %v1442 = vmul.f32 %v1422, %v1435
        %v1443 = vadd.f32 %v1393, %v1439
        %v1444 = vadd.f32 %v1394, %v1440
        %v1445 = vadd.f32 %v1395, %v1441
        %v1446 = vadd.f32 %v1396, %v1442
        %v1447 = vmul.f32 %v1428, %v1437
        %v1448 = vmul.f32 %v1428, %v1438
        %v1449 = vmul.f32 %v1432, %v1437
        %v1450 = vmul.f32 %v1432, %v1438
        %v1451 = vsub.f32 %v1443, %v1447
        %v1452 = vsub.f32 %v1444, %v1448
        %v1453 = vsub.f32 %v1445, %v1449
        %v1454 = vsub.f32 %v1446, %v1450
        %v1455 = vmul.f32 %v1418, %v1437
        %v1456 = vmul.f32 %v1418, %v1438
        %v1457 = vmul.f32 %v1422, %v1437
        %v1458 = vmul.f32 %v1422, %v1438
        %v1459 = vadd.f32 %v1409, %v1455
        %v1460 = vadd.f32 %v1410, %v1456
        %v1461 = vadd.f32 %v1411, %v1457
        %v1462 = vadd.f32 %v1412, %v1458
        %v1463 = vmul.f32 %v1428, %v1434
        %v1464 = vmul.f32 %v1428, %v1435
        %v1465 = vmul.f32 %v1432, %v1434
        %v1466 = vmul.f32 %v1432, %v1435
        %v1467 = vadd.f32 %v1459, %v1463
        %v1468 = vadd.f32 %v1460, %v1464
        %v1469 = vadd.f32 %v1461, %v1465
        %v1470 = vadd.f32 %v1462, %v1466
        %v1471 = vld [vmem:[%s714 + $0xd] sm:$0x1]
        %v1472 = vld [vmem:[%s714 + $0x2d] sm:$0x1]
        %v1473 = vlaneseq
        %v1474 = vshrl.u32 %v1473, 7
        %v1475 = vsub.s32 0, %v1474
        %v1476 = vrot.slane %v1471, %v1475
        %v1477 = vlaneseq
        %v1478 = vshrl.u32 %v1477, 7
        %v1479 = vsub.s32 0, %v1478
        %v1480 = vrot.slane %v1472, %v1479
        %v1481 = vld [vmem:[%s727 + $0xd] sm:$0x1]
        %v1482 = vld [vmem:[%s727 + $0x2d] sm:$0x1]
        %v1483 = vlaneseq
        %v1484 = vshrl.u32 %v1483, 7
        %v1485 = vsub.s32 0, %v1484
        %v1486 = vrot.slane %v1481, %v1485
        %v1487 = vlaneseq
        %v1488 = vshrl.u32 %v1487, 7
        %v1489 = vsub.s32 0, %v1488
        %v1490 = vrot.slane %v1482, %v1489
        %s1491 = scalar_lea.vmem %s689, 208 [#allocation2]
        %v1492 = vld [vmem:[%s1491] sm:$0xff]
        %v1493 = vld [vmem:[%s1491 + $0x8] sm:$0xff]
        %s1494 = scalar_lea.vmem %s689, 720 [#allocation2]
        %v1495 = vld [vmem:[%s1494] sm:$0xff]
        %v1496 = vld [vmem:[%s1494 + $0x8] sm:$0xff]
        %v1497 = vmul.f32 %v1476, %v1492
        %v1498 = vmul.f32 %v1476, %v1493
        %v1499 = vmul.f32 %v1480, %v1492
        %v1500 = vmul.f32 %v1480, %v1493
        %v1501 = vadd.f32 %v1451, %v1497
        %v1502 = vadd.f32 %v1452, %v1498
        %v1503 = vadd.f32 %v1453, %v1499
        %v1504 = vadd.f32 %v1454, %v1500
        %v1505 = vmul.f32 %v1486, %v1495
        %v1506 = vmul.f32 %v1486, %v1496
        %v1507 = vmul.f32 %v1490, %v1495
        %v1508 = vmul.f32 %v1490, %v1496
        %v1509 = vsub.f32 %v1501, %v1505
        %v1510 = vsub.f32 %v1502, %v1506
        %v1511 = vsub.f32 %v1503, %v1507
        %v1512 = vsub.f32 %v1504, %v1508
        %v1513 = vmul.f32 %v1476, %v1495
        %v1514 = vmul.f32 %v1476, %v1496
        %v1515 = vmul.f32 %v1480, %v1495
        %v1516 = vmul.f32 %v1480, %v1496
        %v1517 = vadd.f32 %v1467, %v1513
        %v1518 = vadd.f32 %v1468, %v1514
        %v1519 = vadd.f32 %v1469, %v1515
        %v1520 = vadd.f32 %v1470, %v1516
        %v1521 = vmul.f32 %v1486, %v1492
        %v1522 = vmul.f32 %v1486, %v1493
        %v1523 = vmul.f32 %v1490, %v1492
        %v1524 = vmul.f32 %v1490, %v1493
        %v1525 = vadd.f32 %v1517, %v1521
        %v1526 = vadd.f32 %v1518, %v1522
        %v1527 = vadd.f32 %v1519, %v1523
        %v1528 = vadd.f32 %v1520, %v1524
        %v1529 = vld [vmem:[%s714 + $0xe] sm:$0x1]
        %v1530 = vld [vmem:[%s714 + $0x2e] sm:$0x1]
        %v1531 = vlaneseq
        %v1532 = vshrl.u32 %v1531, 7
        %v1533 = vsub.s32 0, %v1532
        %v1534 = vrot.slane %v1529, %v1533
        %v1535 = vlaneseq
        %v1536 = vshrl.u32 %v1535, 7
        %v1537 = vsub.s32 0, %v1536
        %v1538 = vrot.slane %v1530, %v1537
        %v1539 = vld [vmem:[%s727 + $0xe] sm:$0x1]
        %v1540 = vld [vmem:[%s727 + $0x2e] sm:$0x1]
        %v1541 = vlaneseq
        %v1542 = vshrl.u32 %v1541, 7
        %v1543 = vsub.s32 0, %v1542
        %v1544 = vrot.slane %v1539, %v1543
        %v1545 = vlaneseq
        %v1546 = vshrl.u32 %v1545, 7
        %v1547 = vsub.s32 0, %v1546
        %v1548 = vrot.slane %v1540, %v1547
        %s1549 = scalar_lea.vmem %s689, 224 [#allocation2]
        %v1550 = vld [vmem:[%s1549] sm:$0xff]
        %v1551 = vld [vmem:[%s1549 + $0x8] sm:$0xff]
        %s1552 = scalar_lea.vmem %s689, 736 [#allocation2]
        %v1553 = vld [vmem:[%s1552] sm:$0xff]
        %v1554 = vld [vmem:[%s1552 + $0x8] sm:$0xff]
        %v1555 = vmul.f32 %v1534, %v1550
        %v1556 = vmul.f32 %v1534, %v1551
        %v1557 = vmul.f32 %v1538, %v1550
        %v1558 = vmul.f32 %v1538, %v1551
        %v1559 = vadd.f32 %v1509, %v1555
        %v1560 = vadd.f32 %v1510, %v1556
        %v1561 = vadd.f32 %v1511, %v1557
        %v1562 = vadd.f32 %v1512, %v1558
        %v1563 = vmul.f32 %v1544, %v1553
        %v1564 = vmul.f32 %v1544, %v1554
        %v1565 = vmul.f32 %v1548, %v1553
        %v1566 = vmul.f32 %v1548, %v1554
        %v1567 = vsub.f32 %v1559, %v1563
        %v1568 = vsub.f32 %v1560, %v1564
        %v1569 = vsub.f32 %v1561, %v1565
        %v1570 = vsub.f32 %v1562, %v1566
        %v1571 = vmul.f32 %v1534, %v1553
        %v1572 = vmul.f32 %v1534, %v1554
        %v1573 = vmul.f32 %v1538, %v1553
        %v1574 = vmul.f32 %v1538, %v1554
        %v1575 = vadd.f32 %v1525, %v1571
        %v1576 = vadd.f32 %v1526, %v1572
        %v1577 = vadd.f32 %v1527, %v1573
        %v1578 = vadd.f32 %v1528, %v1574
        %v1579 = vmul.f32 %v1544, %v1550
        %v1580 = vmul.f32 %v1544, %v1551
        %v1581 = vmul.f32 %v1548, %v1550
        %v1582 = vmul.f32 %v1548, %v1551
        %v1583 = vadd.f32 %v1575, %v1579
        %v1584 = vadd.f32 %v1576, %v1580
        %v1585 = vadd.f32 %v1577, %v1581
        %v1586 = vadd.f32 %v1578, %v1582
        %v1587 = vld [vmem:[%s714 + $0xf] sm:$0x1]
        %v1588 = vld [vmem:[%s714 + $0x2f] sm:$0x1]
        %v1589 = vlaneseq
        %v1590 = vshrl.u32 %v1589, 7
        %v1591 = vsub.s32 0, %v1590
        %v1592 = vrot.slane %v1587, %v1591
        %v1593 = vlaneseq
        %v1594 = vshrl.u32 %v1593, 7
        %v1595 = vsub.s32 0, %v1594
        %v1596 = vrot.slane %v1588, %v1595
        %v1597 = vld [vmem:[%s727 + $0xf] sm:$0x1]
        %v1598 = vld [vmem:[%s727 + $0x2f] sm:$0x1]
        %v1599 = vlaneseq
        %v1600 = vshrl.u32 %v1599, 7
        %v1601 = vsub.s32 0, %v1600
        %v1602 = vrot.slane %v1597, %v1601
        %v1603 = vlaneseq
        %v1604 = vshrl.u32 %v1603, 7
        %v1605 = vsub.s32 0, %v1604
        %v1606 = vrot.slane %v1598, %v1605
        %s1607 = scalar_lea.vmem %s689, 240 [#allocation2]
        %v1608 = vld [vmem:[%s1607] sm:$0xff]
        %v1609 = vld [vmem:[%s1607 + $0x8] sm:$0xff]
        %s1610 = scalar_lea.vmem %s689, 752 [#allocation2]
        %v1611 = vld [vmem:[%s1610] sm:$0xff]
        %v1612 = vld [vmem:[%s1610 + $0x8] sm:$0xff]
        %v1613 = vmul.f32 %v1592, %v1608
        %v1614 = vmul.f32 %v1592, %v1609
        %v1615 = vmul.f32 %v1596, %v1608
        %v1616 = vmul.f32 %v1596, %v1609
        %v1617 = vadd.f32 %v1567, %v1613
        %v1618 = vadd.f32 %v1568, %v1614
        %v1619 = vadd.f32 %v1569, %v1615
        %v1620 = vadd.f32 %v1570, %v1616
        %v1621 = vmul.f32 %v1602, %v1611
        %v1622 = vmul.f32 %v1602, %v1612
        %v1623 = vmul.f32 %v1606, %v1611
        %v1624 = vmul.f32 %v1606, %v1612
        %v1625 = vsub.f32 %v1617, %v1621
        %v1626 = vsub.f32 %v1618, %v1622
        %v1627 = vsub.f32 %v1619, %v1623
        %v1628 = vsub.f32 %v1620, %v1624
        %v1629 = vmul.f32 %v1592, %v1611
        %v1630 = vmul.f32 %v1592, %v1612
        %v1631 = vmul.f32 %v1596, %v1611
        %v1632 = vmul.f32 %v1596, %v1612
        %v1633 = vadd.f32 %v1583, %v1629
        %v1634 = vadd.f32 %v1584, %v1630
        %v1635 = vadd.f32 %v1585, %v1631
        %v1636 = vadd.f32 %v1586, %v1632
        %v1637 = vmul.f32 %v1602, %v1608
        %v1638 = vmul.f32 %v1602, %v1609
        %v1639 = vmul.f32 %v1606, %v1608
        %v1640 = vmul.f32 %v1606, %v1609
        %v1641 = vadd.f32 %v1633, %v1637
        %v1642 = vadd.f32 %v1634, %v1638
        %v1643 = vadd.f32 %v1635, %v1639
        %v1644 = vadd.f32 %v1636, %v1640
        %v1645 = vld [vmem:[%s714 + $0x10] sm:$0x1]
        %v1646 = vld [vmem:[%s714 + $0x30] sm:$0x1]
        %v1647 = vlaneseq
        %v1648 = vshrl.u32 %v1647, 7
        %v1649 = vsub.s32 0, %v1648
        %v1650 = vrot.slane %v1645, %v1649
        %v1651 = vlaneseq
        %v1652 = vshrl.u32 %v1651, 7
        %v1653 = vsub.s32 0, %v1652
        %v1654 = vrot.slane %v1646, %v1653
        %v1655 = vld [vmem:[%s727 + $0x10] sm:$0x1]
        %v1656 = vld [vmem:[%s727 + $0x30] sm:$0x1]
        %v1657 = vlaneseq
        %v1658 = vshrl.u32 %v1657, 7
        %v1659 = vsub.s32 0, %v1658
        %v1660 = vrot.slane %v1655, %v1659
        %v1661 = vlaneseq
        %v1662 = vshrl.u32 %v1661, 7
        %v1663 = vsub.s32 0, %v1662
        %v1664 = vrot.slane %v1656, %v1663
        %s1665 = scalar_lea.vmem %s689, 256 [#allocation2]
        %v1666 = vld [vmem:[%s1665] sm:$0xff]
        %v1667 = vld [vmem:[%s1665 + $0x8] sm:$0xff]
        %s1668 = scalar_lea.vmem %s689, 768 [#allocation2]
        %v1669 = vld [vmem:[%s1668] sm:$0xff]
        %v1670 = vld [vmem:[%s1668 + $0x8] sm:$0xff]
        %v1671 = vmul.f32 %v1650, %v1666
        %v1672 = vmul.f32 %v1650, %v1667
        %v1673 = vmul.f32 %v1654, %v1666
        %v1674 = vmul.f32 %v1654, %v1667
        %v1675 = vadd.f32 %v1625, %v1671
        %v1676 = vadd.f32 %v1626, %v1672
        %v1677 = vadd.f32 %v1627, %v1673
        %v1678 = vadd.f32 %v1628, %v1674
        %v1679 = vmul.f32 %v1660, %v1669
        %v1680 = vmul.f32 %v1660, %v1670
        %v1681 = vmul.f32 %v1664, %v1669
        %v1682 = vmul.f32 %v1664, %v1670
        %v1683 = vsub.f32 %v1675, %v1679
        %v1684 = vsub.f32 %v1676, %v1680
        %v1685 = vsub.f32 %v1677, %v1681
        %v1686 = vsub.f32 %v1678, %v1682
        %v1687 = vmul.f32 %v1650, %v1669
        %v1688 = vmul.f32 %v1650, %v1670
        %v1689 = vmul.f32 %v1654, %v1669
        %v1690 = vmul.f32 %v1654, %v1670
        %v1691 = vadd.f32 %v1641, %v1687
        %v1692 = vadd.f32 %v1642, %v1688
        %v1693 = vadd.f32 %v1643, %v1689
        %v1694 = vadd.f32 %v1644, %v1690
        %v1695 = vmul.f32 %v1660, %v1666
        %v1696 = vmul.f32 %v1660, %v1667
        %v1697 = vmul.f32 %v1664, %v1666
        %v1698 = vmul.f32 %v1664, %v1667
        %v1699 = vadd.f32 %v1691, %v1695
        %v1700 = vadd.f32 %v1692, %v1696
        %v1701 = vadd.f32 %v1693, %v1697
        %v1702 = vadd.f32 %v1694, %v1698
        %v1703 = vld [vmem:[%s714 + $0x11] sm:$0x1]
        %v1704 = vld [vmem:[%s714 + $0x31] sm:$0x1]
        %v1705 = vlaneseq
        %v1706 = vshrl.u32 %v1705, 7
        %v1707 = vsub.s32 0, %v1706
        %v1708 = vrot.slane %v1703, %v1707
        %v1709 = vlaneseq
        %v1710 = vshrl.u32 %v1709, 7
        %v1711 = vsub.s32 0, %v1710
        %v1712 = vrot.slane %v1704, %v1711
        %v1713 = vld [vmem:[%s727 + $0x11] sm:$0x1]
        %v1714 = vld [vmem:[%s727 + $0x31] sm:$0x1]
        %v1715 = vlaneseq
        %v1716 = vshrl.u32 %v1715, 7
        %v1717 = vsub.s32 0, %v1716
        %v1718 = vrot.slane %v1713, %v1717
        %v1719 = vlaneseq
        %v1720 = vshrl.u32 %v1719, 7
        %v1721 = vsub.s32 0, %v1720
        %v1722 = vrot.slane %v1714, %v1721
        %s1723 = scalar_lea.vmem %s689, 272 [#allocation2]
        %v1724 = vld [vmem:[%s1723] sm:$0xff]
        %v1725 = vld [vmem:[%s1723 + $0x8] sm:$0xff]
        %s1726 = scalar_lea.vmem %s689, 784 [#allocation2]
        %v1727 = vld [vmem:[%s1726] sm:$0xff]
        %v1728 = vld [vmem:[%s1726 + $0x8] sm:$0xff]
        %v1729 = vmul.f32 %v1708, %v1724
        %v1730 = vmul.f32 %v1708, %v1725
        %v1731 = vmul.f32 %v1712, %v1724
        %v1732 = vmul.f32 %v1712, %v1725
        %v1733 = vadd.f32 %v1683, %v1729
        %v1734 = vadd.f32 %v1684, %v1730
        %v1735 = vadd.f32 %v1685, %v1731
        %v1736 = vadd.f32 %v1686, %v1732
        %v1737 = vmul.f32 %v1718, %v1727
        %v1738 = vmul.f32 %v1718, %v1728
        %v1739 = vmul.f32 %v1722, %v1727
        %v1740 = vmul.f32 %v1722, %v1728
        %v1741 = vsub.f32 %v1733, %v1737
        %v1742 = vsub.f32 %v1734, %v1738
        %v1743 = vsub.f32 %v1735, %v1739
        %v1744 = vsub.f32 %v1736, %v1740
        %v1745 = vmul.f32 %v1708, %v1727
        %v1746 = vmul.f32 %v1708, %v1728
        %v1747 = vmul.f32 %v1712, %v1727
        %v1748 = vmul.f32 %v1712, %v1728
        %v1749 = vadd.f32 %v1699, %v1745
        %v1750 = vadd.f32 %v1700, %v1746
        %v1751 = vadd.f32 %v1701, %v1747
        %v1752 = vadd.f32 %v1702, %v1748
        %v1753 = vmul.f32 %v1718, %v1724
        %v1754 = vmul.f32 %v1718, %v1725
        %v1755 = vmul.f32 %v1722, %v1724
        %v1756 = vmul.f32 %v1722, %v1725
        %v1757 = vadd.f32 %v1749, %v1753
        %v1758 = vadd.f32 %v1750, %v1754
        %v1759 = vadd.f32 %v1751, %v1755
        %v1760 = vadd.f32 %v1752, %v1756
        %v1761 = vld [vmem:[%s714 + $0x12] sm:$0x1]
        %v1762 = vld [vmem:[%s714 + $0x32] sm:$0x1]
        %v1763 = vlaneseq
        %v1764 = vshrl.u32 %v1763, 7
        %v1765 = vsub.s32 0, %v1764
        %v1766 = vrot.slane %v1761, %v1765
        %v1767 = vlaneseq
        %v1768 = vshrl.u32 %v1767, 7
        %v1769 = vsub.s32 0, %v1768
        %v1770 = vrot.slane %v1762, %v1769
        %v1771 = vld [vmem:[%s727 + $0x12] sm:$0x1]
        %v1772 = vld [vmem:[%s727 + $0x32] sm:$0x1]
        %v1773 = vlaneseq
        %v1774 = vshrl.u32 %v1773, 7
        %v1775 = vsub.s32 0, %v1774
        %v1776 = vrot.slane %v1771, %v1775
        %v1777 = vlaneseq
        %v1778 = vshrl.u32 %v1777, 7
        %v1779 = vsub.s32 0, %v1778
        %v1780 = vrot.slane %v1772, %v1779
        %s1781 = scalar_lea.vmem %s689, 288 [#allocation2]
        %v1782 = vld [vmem:[%s1781] sm:$0xff]
        %v1783 = vld [vmem:[%s1781 + $0x8] sm:$0xff]
        %s1784 = scalar_lea.vmem %s689, 800 [#allocation2]
        %v1785 = vld [vmem:[%s1784] sm:$0xff]
        %v1786 = vld [vmem:[%s1784 + $0x8] sm:$0xff]
        %v1787 = vmul.f32 %v1766, %v1782
        %v1788 = vmul.f32 %v1766, %v1783
        %v1789 = vmul.f32 %v1770, %v1782
        %v1790 = vmul.f32 %v1770, %v1783
        %v1791 = vadd.f32 %v1741, %v1787
        %v1792 = vadd.f32 %v1742, %v1788
        %v1793 = vadd.f32 %v1743, %v1789
        %v1794 = vadd.f32 %v1744, %v1790
        %v1795 = vmul.f32 %v1776, %v1785
        %v1796 = vmul.f32 %v1776, %v1786
        %v1797 = vmul.f32 %v1780, %v1785
        %v1798 = vmul.f32 %v1780, %v1786
        %v1799 = vsub.f32 %v1791, %v1795
        %v1800 = vsub.f32 %v1792, %v1796
        %v1801 = vsub.f32 %v1793, %v1797
        %v1802 = vsub.f32 %v1794, %v1798
        %v1803 = vmul.f32 %v1766, %v1785
        %v1804 = vmul.f32 %v1766, %v1786
        %v1805 = vmul.f32 %v1770, %v1785
        %v1806 = vmul.f32 %v1770, %v1786
        %v1807 = vadd.f32 %v1757, %v1803
        %v1808 = vadd.f32 %v1758, %v1804
        %v1809 = vadd.f32 %v1759, %v1805
        %v1810 = vadd.f32 %v1760, %v1806
        %v1811 = vmul.f32 %v1776, %v1782
        %v1812 = vmul.f32 %v1776, %v1783
        %v1813 = vmul.f32 %v1780, %v1782
        %v1814 = vmul.f32 %v1780, %v1783
        %v1815 = vadd.f32 %v1807, %v1811
        %v1816 = vadd.f32 %v1808, %v1812
        %v1817 = vadd.f32 %v1809, %v1813
        %v1818 = vadd.f32 %v1810, %v1814
        %v1819 = vld [vmem:[%s714 + $0x13] sm:$0x1]
        %v1820 = vld [vmem:[%s714 + $0x33] sm:$0x1]
        %v1821 = vlaneseq
        %v1822 = vshrl.u32 %v1821, 7
        %v1823 = vsub.s32 0, %v1822
        %v1824 = vrot.slane %v1819, %v1823
        %v1825 = vlaneseq
        %v1826 = vshrl.u32 %v1825, 7
        %v1827 = vsub.s32 0, %v1826
        %v1828 = vrot.slane %v1820, %v1827
        %v1829 = vld [vmem:[%s727 + $0x13] sm:$0x1]
        %v1830 = vld [vmem:[%s727 + $0x33] sm:$0x1]
        %v1831 = vlaneseq
        %v1832 = vshrl.u32 %v1831, 7
        %v1833 = vsub.s32 0, %v1832
        %v1834 = vrot.slane %v1829, %v1833
        %v1835 = vlaneseq
        %v1836 = vshrl.u32 %v1835, 7
        %v1837 = vsub.s32 0, %v1836
        %v1838 = vrot.slane %v1830, %v1837
        %s1839 = scalar_lea.vmem %s689, 304 [#allocation2]
        %v1840 = vld [vmem:[%s1839] sm:$0xff]
        %v1841 = vld [vmem:[%s1839 + $0x8] sm:$0xff]
        %s1842 = scalar_lea.vmem %s689, 816 [#allocation2]
        %v1843 = vld [vmem:[%s1842] sm:$0xff]
        %v1844 = vld [vmem:[%s1842 + $0x8] sm:$0xff]
        %v1845 = vmul.f32 %v1824, %v1840
        %v1846 = vmul.f32 %v1824, %v1841
        %v1847 = vmul.f32 %v1828, %v1840
        %v1848 = vmul.f32 %v1828, %v1841
        %v1849 = vadd.f32 %v1799, %v1845
        %v1850 = vadd.f32 %v1800, %v1846
        %v1851 = vadd.f32 %v1801, %v1847
        %v1852 = vadd.f32 %v1802, %v1848
        %v1853 = vmul.f32 %v1834, %v1843
        %v1854 = vmul.f32 %v1834, %v1844
        %v1855 = vmul.f32 %v1838, %v1843
        %v1856 = vmul.f32 %v1838, %v1844
        %v1857 = vsub.f32 %v1849, %v1853
        %v1858 = vsub.f32 %v1850, %v1854
        %v1859 = vsub.f32 %v1851, %v1855
        %v1860 = vsub.f32 %v1852, %v1856
        %v1861 = vmul.f32 %v1824, %v1843
        %v1862 = vmul.f32 %v1824, %v1844
        %v1863 = vmul.f32 %v1828, %v1843
        %v1864 = vmul.f32 %v1828, %v1844
        %v1865 = vadd.f32 %v1815, %v1861
        %v1866 = vadd.f32 %v1816, %v1862
        %v1867 = vadd.f32 %v1817, %v1863
        %v1868 = vadd.f32 %v1818, %v1864
        %v1869 = vmul.f32 %v1834, %v1840
        %v1870 = vmul.f32 %v1834, %v1841
        %v1871 = vmul.f32 %v1838, %v1840
        %v1872 = vmul.f32 %v1838, %v1841
        %v1873 = vadd.f32 %v1865, %v1869
        %v1874 = vadd.f32 %v1866, %v1870
        %v1875 = vadd.f32 %v1867, %v1871
        %v1876 = vadd.f32 %v1868, %v1872
        %v1877 = vld [vmem:[%s714 + $0x14] sm:$0x1]
        %v1878 = vld [vmem:[%s714 + $0x34] sm:$0x1]
        %v1879 = vlaneseq
        %v1880 = vshrl.u32 %v1879, 7
        %v1881 = vsub.s32 0, %v1880
        %v1882 = vrot.slane %v1877, %v1881
        %v1883 = vlaneseq
        %v1884 = vshrl.u32 %v1883, 7
        %v1885 = vsub.s32 0, %v1884
        %v1886 = vrot.slane %v1878, %v1885
        %v1887 = vld [vmem:[%s727 + $0x14] sm:$0x1]
        %v1888 = vld [vmem:[%s727 + $0x34] sm:$0x1]
        %v1889 = vlaneseq
        %v1890 = vshrl.u32 %v1889, 7
        %v1891 = vsub.s32 0, %v1890
        %v1892 = vrot.slane %v1887, %v1891
        %v1893 = vlaneseq
        %v1894 = vshrl.u32 %v1893, 7
        %v1895 = vsub.s32 0, %v1894
        %v1896 = vrot.slane %v1888, %v1895
        %s1897 = scalar_lea.vmem %s689, 320 [#allocation2]
        %v1898 = vld [vmem:[%s1897] sm:$0xff]
        %v1899 = vld [vmem:[%s1897 + $0x8] sm:$0xff]
        %s1900 = scalar_lea.vmem %s689, 832 [#allocation2]
        %v1901 = vld [vmem:[%s1900] sm:$0xff]
        %v1902 = vld [vmem:[%s1900 + $0x8] sm:$0xff]
        %v1903 = vmul.f32 %v1882, %v1898
        %v1904 = vmul.f32 %v1882, %v1899
        %v1905 = vmul.f32 %v1886, %v1898
        %v1906 = vmul.f32 %v1886, %v1899
        %v1907 = vadd.f32 %v1857, %v1903
        %v1908 = vadd.f32 %v1858, %v1904
        %v1909 = vadd.f32 %v1859, %v1905
        %v1910 = vadd.f32 %v1860, %v1906
        %v1911 = vmul.f32 %v1892, %v1901
        %v1912 = vmul.f32 %v1892, %v1902
        %v1913 = vmul.f32 %v1896, %v1901
        %v1914 = vmul.f32 %v1896, %v1902
        %v1915 = vsub.f32 %v1907, %v1911
        %v1916 = vsub.f32 %v1908, %v1912
        %v1917 = vsub.f32 %v1909, %v1913
        %v1918 = vsub.f32 %v1910, %v1914
        %v1919 = vmul.f32 %v1882, %v1901
        %v1920 = vmul.f32 %v1882, %v1902
        %v1921 = vmul.f32 %v1886, %v1901
        %v1922 = vmul.f32 %v1886, %v1902
        %v1923 = vadd.f32 %v1873, %v1919
        %v1924 = vadd.f32 %v1874, %v1920
        %v1925 = vadd.f32 %v1875, %v1921
        %v1926 = vadd.f32 %v1876, %v1922
        %v1927 = vmul.f32 %v1892, %v1898
        %v1928 = vmul.f32 %v1892, %v1899
        %v1929 = vmul.f32 %v1896, %v1898
        %v1930 = vmul.f32 %v1896, %v1899
        %v1931 = vadd.f32 %v1923, %v1927
        %v1932 = vadd.f32 %v1924, %v1928
        %v1933 = vadd.f32 %v1925, %v1929
        %v1934 = vadd.f32 %v1926, %v1930
        %v1935 = vld [vmem:[%s714 + $0x15] sm:$0x1]
        %v1936 = vld [vmem:[%s714 + $0x35] sm:$0x1]
        %v1937 = vlaneseq
        %v1938 = vshrl.u32 %v1937, 7
        %v1939 = vsub.s32 0, %v1938
        %v1940 = vrot.slane %v1935, %v1939
        %v1941 = vlaneseq
        %v1942 = vshrl.u32 %v1941, 7
        %v1943 = vsub.s32 0, %v1942
        %v1944 = vrot.slane %v1936, %v1943
        %v1945 = vld [vmem:[%s727 + $0x15] sm:$0x1]
        %v1946 = vld [vmem:[%s727 + $0x35] sm:$0x1]
        %v1947 = vlaneseq
        %v1948 = vshrl.u32 %v1947, 7
        %v1949 = vsub.s32 0, %v1948
        %v1950 = vrot.slane %v1945, %v1949
        %v1951 = vlaneseq
        %v1952 = vshrl.u32 %v1951, 7
        %v1953 = vsub.s32 0, %v1952
        %v1954 = vrot.slane %v1946, %v1953
        %s1955 = scalar_lea.vmem %s689, 336 [#allocation2]
        %v1956 = vld [vmem:[%s1955] sm:$0xff]
        %v1957 = vld [vmem:[%s1955 + $0x8] sm:$0xff]
        %s1958 = scalar_lea.vmem %s689, 848 [#allocation2]
        %v1959 = vld [vmem:[%s1958] sm:$0xff]
        %v1960 = vld [vmem:[%s1958 + $0x8] sm:$0xff]
        %v1961 = vmul.f32 %v1940, %v1956
        %v1962 = vmul.f32 %v1940, %v1957
        %v1963 = vmul.f32 %v1944, %v1956
        %v1964 = vmul.f32 %v1944, %v1957
        %v1965 = vadd.f32 %v1915, %v1961
        %v1966 = vadd.f32 %v1916, %v1962
        %v1967 = vadd.f32 %v1917, %v1963
        %v1968 = vadd.f32 %v1918, %v1964
        %v1969 = vmul.f32 %v1950, %v1959
        %v1970 = vmul.f32 %v1950, %v1960
        %v1971 = vmul.f32 %v1954, %v1959
        %v1972 = vmul.f32 %v1954, %v1960
        %v1973 = vsub.f32 %v1965, %v1969
        %v1974 = vsub.f32 %v1966, %v1970
        %v1975 = vsub.f32 %v1967, %v1971
        %v1976 = vsub.f32 %v1968, %v1972
        %v1977 = vmul.f32 %v1940, %v1959
        %v1978 = vmul.f32 %v1940, %v1960
        %v1979 = vmul.f32 %v1944, %v1959
        %v1980 = vmul.f32 %v1944, %v1960
        %v1981 = vadd.f32 %v1931, %v1977
        %v1982 = vadd.f32 %v1932, %v1978
        %v1983 = vadd.f32 %v1933, %v1979
        %v1984 = vadd.f32 %v1934, %v1980
        %v1985 = vmul.f32 %v1950, %v1956
        %v1986 = vmul.f32 %v1950, %v1957
        %v1987 = vmul.f32 %v1954, %v1956
        %v1988 = vmul.f32 %v1954, %v1957
        %v1989 = vadd.f32 %v1981, %v1985
        %v1990 = vadd.f32 %v1982, %v1986
        %v1991 = vadd.f32 %v1983, %v1987
        %v1992 = vadd.f32 %v1984, %v1988
        %v1993 = vld [vmem:[%s714 + $0x16] sm:$0x1]
        %v1994 = vld [vmem:[%s714 + $0x36] sm:$0x1]
        %v1995 = vlaneseq
        %v1996 = vshrl.u32 %v1995, 7
        %v1997 = vsub.s32 0, %v1996
        %v1998 = vrot.slane %v1993, %v1997
        %v1999 = vlaneseq
        %v2000 = vshrl.u32 %v1999, 7
        %v2001 = vsub.s32 0, %v2000
        %v2002 = vrot.slane %v1994, %v2001
        %v2003 = vld [vmem:[%s727 + $0x16] sm:$0x1]
        %v2004 = vld [vmem:[%s727 + $0x36] sm:$0x1]
        %v2005 = vlaneseq
        %v2006 = vshrl.u32 %v2005, 7
        %v2007 = vsub.s32 0, %v2006
        %v2008 = vrot.slane %v2003, %v2007
        %v2009 = vlaneseq
        %v2010 = vshrl.u32 %v2009, 7
        %v2011 = vsub.s32 0, %v2010
        %v2012 = vrot.slane %v2004, %v2011
        %s2013 = scalar_lea.vmem %s689, 352 [#allocation2]
        %v2014 = vld [vmem:[%s2013] sm:$0xff]
        %v2015 = vld [vmem:[%s2013 + $0x8] sm:$0xff]
        %s2016 = scalar_lea.vmem %s689, 864 [#allocation2]
        %v2017 = vld [vmem:[%s2016] sm:$0xff]
        %v2018 = vld [vmem:[%s2016 + $0x8] sm:$0xff]
        %v2019 = vmul.f32 %v1998, %v2014
        %v2020 = vmul.f32 %v1998, %v2015
        %v2021 = vmul.f32 %v2002, %v2014
        %v2022 = vmul.f32 %v2002, %v2015
        %v2023 = vadd.f32 %v1973, %v2019
        %v2024 = vadd.f32 %v1974, %v2020
        %v2025 = vadd.f32 %v1975, %v2021
        %v2026 = vadd.f32 %v1976, %v2022
        %v2027 = vmul.f32 %v2008, %v2017
        %v2028 = vmul.f32 %v2008, %v2018
        %v2029 = vmul.f32 %v2012, %v2017
        %v2030 = vmul.f32 %v2012, %v2018
        %v2031 = vsub.f32 %v2023, %v2027
        %v2032 = vsub.f32 %v2024, %v2028
        %v2033 = vsub.f32 %v2025, %v2029
        %v2034 = vsub.f32 %v2026, %v2030
        %v2035 = vmul.f32 %v1998, %v2017
        %v2036 = vmul.f32 %v1998, %v2018
        %v2037 = vmul.f32 %v2002, %v2017
        %v2038 = vmul.f32 %v2002, %v2018
        %v2039 = vadd.f32 %v1989, %v2035
        %v2040 = vadd.f32 %v1990, %v2036
        %v2041 = vadd.f32 %v1991, %v2037
        %v2042 = vadd.f32 %v1992, %v2038
        %v2043 = vmul.f32 %v2008, %v2014
        %v2044 = vmul.f32 %v2008, %v2015
        %v2045 = vmul.f32 %v2012, %v2014
        %v2046 = vmul.f32 %v2012, %v2015
        %v2047 = vadd.f32 %v2039, %v2043
        %v2048 = vadd.f32 %v2040, %v2044
        %v2049 = vadd.f32 %v2041, %v2045
        %v2050 = vadd.f32 %v2042, %v2046
        %v2051 = vld [vmem:[%s714 + $0x17] sm:$0x1]
        %v2052 = vld [vmem:[%s714 + $0x37] sm:$0x1]
        %v2053 = vlaneseq
        %v2054 = vshrl.u32 %v2053, 7
        %v2055 = vsub.s32 0, %v2054
        %v2056 = vrot.slane %v2051, %v2055
        %v2057 = vlaneseq
        %v2058 = vshrl.u32 %v2057, 7
        %v2059 = vsub.s32 0, %v2058
        %v2060 = vrot.slane %v2052, %v2059
        %v2061 = vld [vmem:[%s727 + $0x17] sm:$0x1]
        %v2062 = vld [vmem:[%s727 + $0x37] sm:$0x1]
        %v2063 = vlaneseq
        %v2064 = vshrl.u32 %v2063, 7
        %v2065 = vsub.s32 0, %v2064
        %v2066 = vrot.slane %v2061, %v2065
        %v2067 = vlaneseq
        %v2068 = vshrl.u32 %v2067, 7
        %v2069 = vsub.s32 0, %v2068
        %v2070 = vrot.slane %v2062, %v2069
        %s2071 = scalar_lea.vmem %s689, 368 [#allocation2]
        %v2072 = vld [vmem:[%s2071] sm:$0xff]
        %v2073 = vld [vmem:[%s2071 + $0x8] sm:$0xff]
        %s2074 = scalar_lea.vmem %s689, 880 [#allocation2]
        %v2075 = vld [vmem:[%s2074] sm:$0xff]
        %v2076 = vld [vmem:[%s2074 + $0x8] sm:$0xff]
        %v2077 = vmul.f32 %v2056, %v2072
        %v2078 = vmul.f32 %v2056, %v2073
        %v2079 = vmul.f32 %v2060, %v2072
        %v2080 = vmul.f32 %v2060, %v2073
        %v2081 = vadd.f32 %v2031, %v2077
        %v2082 = vadd.f32 %v2032, %v2078
        %v2083 = vadd.f32 %v2033, %v2079
        %v2084 = vadd.f32 %v2034, %v2080
        %v2085 = vmul.f32 %v2066, %v2075
        %v2086 = vmul.f32 %v2066, %v2076
        %v2087 = vmul.f32 %v2070, %v2075
        %v2088 = vmul.f32 %v2070, %v2076
        %v2089 = vsub.f32 %v2081, %v2085
        %v2090 = vsub.f32 %v2082, %v2086
        %v2091 = vsub.f32 %v2083, %v2087
        %v2092 = vsub.f32 %v2084, %v2088
        %v2093 = vmul.f32 %v2056, %v2075
        %v2094 = vmul.f32 %v2056, %v2076
        %v2095 = vmul.f32 %v2060, %v2075
        %v2096 = vmul.f32 %v2060, %v2076
        %v2097 = vadd.f32 %v2047, %v2093
        %v2098 = vadd.f32 %v2048, %v2094
        %v2099 = vadd.f32 %v2049, %v2095
        %v2100 = vadd.f32 %v2050, %v2096
        %v2101 = vmul.f32 %v2066, %v2072
        %v2102 = vmul.f32 %v2066, %v2073
        %v2103 = vmul.f32 %v2070, %v2072
        %v2104 = vmul.f32 %v2070, %v2073
        %v2105 = vadd.f32 %v2097, %v2101
        %v2106 = vadd.f32 %v2098, %v2102
        %v2107 = vadd.f32 %v2099, %v2103
        %v2108 = vadd.f32 %v2100, %v2104
        %v2109 = vld [vmem:[%s714 + $0x18] sm:$0x1]
        %v2110 = vld [vmem:[%s714 + $0x38] sm:$0x1]
        %v2111 = vlaneseq
        %v2112 = vshrl.u32 %v2111, 7
        %v2113 = vsub.s32 0, %v2112
        %v2114 = vrot.slane %v2109, %v2113
        %v2115 = vlaneseq
        %v2116 = vshrl.u32 %v2115, 7
        %v2117 = vsub.s32 0, %v2116
        %v2118 = vrot.slane %v2110, %v2117
        %v2119 = vld [vmem:[%s727 + $0x18] sm:$0x1]
        %v2120 = vld [vmem:[%s727 + $0x38] sm:$0x1]
        %v2121 = vlaneseq
        %v2122 = vshrl.u32 %v2121, 7
        %v2123 = vsub.s32 0, %v2122
        %v2124 = vrot.slane %v2119, %v2123
        %v2125 = vlaneseq
        %v2126 = vshrl.u32 %v2125, 7
        %v2127 = vsub.s32 0, %v2126
        %v2128 = vrot.slane %v2120, %v2127
        %s2129 = scalar_lea.vmem %s689, 384 [#allocation2]
        %v2130 = vld [vmem:[%s2129] sm:$0xff]
        %v2131 = vld [vmem:[%s2129 + $0x8] sm:$0xff]
        %s2132 = scalar_lea.vmem %s689, 896 [#allocation2]
        %v2133 = vld [vmem:[%s2132] sm:$0xff]
        %v2134 = vld [vmem:[%s2132 + $0x8] sm:$0xff]
        %v2135 = vmul.f32 %v2114, %v2130
        %v2136 = vmul.f32 %v2114, %v2131
        %v2137 = vmul.f32 %v2118, %v2130
        %v2138 = vmul.f32 %v2118, %v2131
        %v2139 = vadd.f32 %v2089, %v2135
        %v2140 = vadd.f32 %v2090, %v2136
        %v2141 = vadd.f32 %v2091, %v2137
        %v2142 = vadd.f32 %v2092, %v2138
        %v2143 = vmul.f32 %v2124, %v2133
        %v2144 = vmul.f32 %v2124, %v2134
        %v2145 = vmul.f32 %v2128, %v2133
        %v2146 = vmul.f32 %v2128, %v2134
        %v2147 = vsub.f32 %v2139, %v2143
        %v2148 = vsub.f32 %v2140, %v2144
        %v2149 = vsub.f32 %v2141, %v2145
        %v2150 = vsub.f32 %v2142, %v2146
        %v2151 = vmul.f32 %v2114, %v2133
        %v2152 = vmul.f32 %v2114, %v2134
        %v2153 = vmul.f32 %v2118, %v2133
        %v2154 = vmul.f32 %v2118, %v2134
        %v2155 = vadd.f32 %v2105, %v2151
        %v2156 = vadd.f32 %v2106, %v2152
        %v2157 = vadd.f32 %v2107, %v2153
        %v2158 = vadd.f32 %v2108, %v2154
        %v2159 = vmul.f32 %v2124, %v2130
        %v2160 = vmul.f32 %v2124, %v2131
        %v2161 = vmul.f32 %v2128, %v2130
        %v2162 = vmul.f32 %v2128, %v2131
        %v2163 = vadd.f32 %v2155, %v2159
        %v2164 = vadd.f32 %v2156, %v2160
        %v2165 = vadd.f32 %v2157, %v2161
        %v2166 = vadd.f32 %v2158, %v2162
        %v2167 = vld [vmem:[%s714 + $0x19] sm:$0x1]
        %v2168 = vld [vmem:[%s714 + $0x39] sm:$0x1]
        %v2169 = vlaneseq
        %v2170 = vshrl.u32 %v2169, 7
        %v2171 = vsub.s32 0, %v2170
        %v2172 = vrot.slane %v2167, %v2171
        %v2173 = vlaneseq
        %v2174 = vshrl.u32 %v2173, 7
        %v2175 = vsub.s32 0, %v2174
        %v2176 = vrot.slane %v2168, %v2175
        %v2177 = vld [vmem:[%s727 + $0x19] sm:$0x1]
        %v2178 = vld [vmem:[%s727 + $0x39] sm:$0x1]
        %v2179 = vlaneseq
        %v2180 = vshrl.u32 %v2179, 7
        %v2181 = vsub.s32 0, %v2180
        %v2182 = vrot.slane %v2177, %v2181
        %v2183 = vlaneseq
        %v2184 = vshrl.u32 %v2183, 7
        %v2185 = vsub.s32 0, %v2184
        %v2186 = vrot.slane %v2178, %v2185
        %s2187 = scalar_lea.vmem %s689, 400 [#allocation2]
        %v2188 = vld [vmem:[%s2187] sm:$0xff]
        %v2189 = vld [vmem:[%s2187 + $0x8] sm:$0xff]
        %s2190 = scalar_lea.vmem %s689, 912 [#allocation2]
        %v2191 = vld [vmem:[%s2190] sm:$0xff]
        %v2192 = vld [vmem:[%s2190 + $0x8] sm:$0xff]
        %v2193 = vmul.f32 %v2172, %v2188
        %v2194 = vmul.f32 %v2172, %v2189
        %v2195 = vmul.f32 %v2176, %v2188
        %v2196 = vmul.f32 %v2176, %v2189
        %v2197 = vadd.f32 %v2147, %v2193
        %v2198 = vadd.f32 %v2148, %v2194
        %v2199 = vadd.f32 %v2149, %v2195
        %v2200 = vadd.f32 %v2150, %v2196
        %v2201 = vmul.f32 %v2182, %v2191
        %v2202 = vmul.f32 %v2182, %v2192
        %v2203 = vmul.f32 %v2186, %v2191
        %v2204 = vmul.f32 %v2186, %v2192
        %v2205 = vsub.f32 %v2197, %v2201
        %v2206 = vsub.f32 %v2198, %v2202
        %v2207 = vsub.f32 %v2199, %v2203
        %v2208 = vsub.f32 %v2200, %v2204
        %v2209 = vmul.f32 %v2172, %v2191
        %v2210 = vmul.f32 %v2172, %v2192
        %v2211 = vmul.f32 %v2176, %v2191
        %v2212 = vmul.f32 %v2176, %v2192
        %v2213 = vadd.f32 %v2163, %v2209
        %v2214 = vadd.f32 %v2164, %v2210
        %v2215 = vadd.f32 %v2165, %v2211
        %v2216 = vadd.f32 %v2166, %v2212
        %v2217 = vmul.f32 %v2182, %v2188
        %v2218 = vmul.f32 %v2182, %v2189
        %v2219 = vmul.f32 %v2186, %v2188
        %v2220 = vmul.f32 %v2186, %v2189
        %v2221 = vadd.f32 %v2213, %v2217
        %v2222 = vadd.f32 %v2214, %v2218
        %v2223 = vadd.f32 %v2215, %v2219
        %v2224 = vadd.f32 %v2216, %v2220
        %v2225 = vld [vmem:[%s714 + $0x1a] sm:$0x1]
        %v2226 = vld [vmem:[%s714 + $0x3a] sm:$0x1]
        %v2227 = vlaneseq
        %v2228 = vshrl.u32 %v2227, 7
        %v2229 = vsub.s32 0, %v2228
        %v2230 = vrot.slane %v2225, %v2229
        %v2231 = vlaneseq
        %v2232 = vshrl.u32 %v2231, 7
        %v2233 = vsub.s32 0, %v2232
        %v2234 = vrot.slane %v2226, %v2233
        %v2235 = vld [vmem:[%s727 + $0x1a] sm:$0x1]
        %v2236 = vld [vmem:[%s727 + $0x3a] sm:$0x1]
        %v2237 = vlaneseq
        %v2238 = vshrl.u32 %v2237, 7
        %v2239 = vsub.s32 0, %v2238
        %v2240 = vrot.slane %v2235, %v2239
        %v2241 = vlaneseq
        %v2242 = vshrl.u32 %v2241, 7
        %v2243 = vsub.s32 0, %v2242
        %v2244 = vrot.slane %v2236, %v2243
        %s2245 = scalar_lea.vmem %s689, 416 [#allocation2]
        %v2246 = vld [vmem:[%s2245] sm:$0xff]
        %v2247 = vld [vmem:[%s2245 + $0x8] sm:$0xff]
        %s2248 = scalar_lea.vmem %s689, 928 [#allocation2]
        %v2249 = vld [vmem:[%s2248] sm:$0xff]
        %v2250 = vld [vmem:[%s2248 + $0x8] sm:$0xff]
        %v2251 = vmul.f32 %v2230, %v2246
        %v2252 = vmul.f32 %v2230, %v2247
        %v2253 = vmul.f32 %v2234, %v2246
        %v2254 = vmul.f32 %v2234, %v2247
        %v2255 = vadd.f32 %v2205, %v2251
        %v2256 = vadd.f32 %v2206, %v2252
        %v2257 = vadd.f32 %v2207, %v2253
        %v2258 = vadd.f32 %v2208, %v2254
        %v2259 = vmul.f32 %v2240, %v2249
        %v2260 = vmul.f32 %v2240, %v2250
        %v2261 = vmul.f32 %v2244, %v2249
        %v2262 = vmul.f32 %v2244, %v2250
        %v2263 = vsub.f32 %v2255, %v2259
        %v2264 = vsub.f32 %v2256, %v2260
        %v2265 = vsub.f32 %v2257, %v2261
        %v2266 = vsub.f32 %v2258, %v2262
        %v2267 = vmul.f32 %v2230, %v2249
        %v2268 = vmul.f32 %v2230, %v2250
        %v2269 = vmul.f32 %v2234, %v2249
        %v2270 = vmul.f32 %v2234, %v2250
        %v2271 = vadd.f32 %v2221, %v2267
        %v2272 = vadd.f32 %v2222, %v2268
        %v2273 = vadd.f32 %v2223, %v2269
        %v2274 = vadd.f32 %v2224, %v2270
        %v2275 = vmul.f32 %v2240, %v2246
        %v2276 = vmul.f32 %v2240, %v2247
        %v2277 = vmul.f32 %v2244, %v2246
        %v2278 = vmul.f32 %v2244, %v2247
        %v2279 = vadd.f32 %v2271, %v2275
        %v2280 = vadd.f32 %v2272, %v2276
        %v2281 = vadd.f32 %v2273, %v2277
        %v2282 = vadd.f32 %v2274, %v2278
        %v2283 = vld [vmem:[%s714 + $0x1b] sm:$0x1]
        %v2284 = vld [vmem:[%s714 + $0x3b] sm:$0x1]
        %v2285 = vlaneseq
        %v2286 = vshrl.u32 %v2285, 7
        %v2287 = vsub.s32 0, %v2286
        %v2288 = vrot.slane %v2283, %v2287
        %v2289 = vlaneseq
        %v2290 = vshrl.u32 %v2289, 7
        %v2291 = vsub.s32 0, %v2290
        %v2292 = vrot.slane %v2284, %v2291
        %v2293 = vld [vmem:[%s727 + $0x1b] sm:$0x1]
        %v2294 = vld [vmem:[%s727 + $0x3b] sm:$0x1]
        %v2295 = vlaneseq
        %v2296 = vshrl.u32 %v2295, 7
        %v2297 = vsub.s32 0, %v2296
        %v2298 = vrot.slane %v2293, %v2297
        %v2299 = vlaneseq
        %v2300 = vshrl.u32 %v2299, 7
        %v2301 = vsub.s32 0, %v2300
        %v2302 = vrot.slane %v2294, %v2301
        %s2303 = scalar_lea.vmem %s689, 432 [#allocation2]
        %v2304 = vld [vmem:[%s2303] sm:$0xff]
        %v2305 = vld [vmem:[%s2303 + $0x8] sm:$0xff]
        %s2306 = scalar_lea.vmem %s689, 944 [#allocation2]
        %v2307 = vld [vmem:[%s2306] sm:$0xff]
        %v2308 = vld [vmem:[%s2306 + $0x8] sm:$0xff]
        %v2309 = vmul.f32 %v2288, %v2304
        %v2310 = vmul.f32 %v2288, %v2305
        %v2311 = vmul.f32 %v2292, %v2304
        %v2312 = vmul.f32 %v2292, %v2305
        %v2313 = vadd.f32 %v2263, %v2309
        %v2314 = vadd.f32 %v2264, %v2310
        %v2315 = vadd.f32 %v2265, %v2311
        %v2316 = vadd.f32 %v2266, %v2312
        %v2317 = vmul.f32 %v2298, %v2307
        %v2318 = vmul.f32 %v2298, %v2308
        %v2319 = vmul.f32 %v2302, %v2307
        %v2320 = vmul.f32 %v2302, %v2308
        %v2321 = vsub.f32 %v2313, %v2317
        %v2322 = vsub.f32 %v2314, %v2318
        %v2323 = vsub.f32 %v2315, %v2319
        %v2324 = vsub.f32 %v2316, %v2320
        %v2325 = vmul.f32 %v2288, %v2307
        %v2326 = vmul.f32 %v2288, %v2308
        %v2327 = vmul.f32 %v2292, %v2307
        %v2328 = vmul.f32 %v2292, %v2308
        %v2329 = vadd.f32 %v2279, %v2325
        %v2330 = vadd.f32 %v2280, %v2326
        %v2331 = vadd.f32 %v2281, %v2327
        %v2332 = vadd.f32 %v2282, %v2328
        %v2333 = vmul.f32 %v2298, %v2304
        %v2334 = vmul.f32 %v2298, %v2305
        %v2335 = vmul.f32 %v2302, %v2304
        %v2336 = vmul.f32 %v2302, %v2305
        %v2337 = vadd.f32 %v2329, %v2333
        %v2338 = vadd.f32 %v2330, %v2334
        %v2339 = vadd.f32 %v2331, %v2335
        %v2340 = vadd.f32 %v2332, %v2336
        %v2341 = vld [vmem:[%s714 + $0x1c] sm:$0x1]
        %v2342 = vld [vmem:[%s714 + $0x3c] sm:$0x1]
        %v2343 = vlaneseq
        %v2344 = vshrl.u32 %v2343, 7
        %v2345 = vsub.s32 0, %v2344
        %v2346 = vrot.slane %v2341, %v2345
        %v2347 = vlaneseq
        %v2348 = vshrl.u32 %v2347, 7
        %v2349 = vsub.s32 0, %v2348
        %v2350 = vrot.slane %v2342, %v2349
        %v2351 = vld [vmem:[%s727 + $0x1c] sm:$0x1]
        %v2352 = vld [vmem:[%s727 + $0x3c] sm:$0x1]
        %v2353 = vlaneseq
        %v2354 = vshrl.u32 %v2353, 7
        %v2355 = vsub.s32 0, %v2354
        %v2356 = vrot.slane %v2351, %v2355
        %v2357 = vlaneseq
        %v2358 = vshrl.u32 %v2357, 7
        %v2359 = vsub.s32 0, %v2358
        %v2360 = vrot.slane %v2352, %v2359
        %s2361 = scalar_lea.vmem %s689, 448 [#allocation2]
        %v2362 = vld [vmem:[%s2361] sm:$0xff]
        %v2363 = vld [vmem:[%s2361 + $0x8] sm:$0xff]
        %s2364 = scalar_lea.vmem %s689, 960 [#allocation2]
        %v2365 = vld [vmem:[%s2364] sm:$0xff]
        %v2366 = vld [vmem:[%s2364 + $0x8] sm:$0xff]
        %v2367 = vmul.f32 %v2346, %v2362
        %v2368 = vmul.f32 %v2346, %v2363
        %v2369 = vmul.f32 %v2350, %v2362
        %v2370 = vmul.f32 %v2350, %v2363
        %v2371 = vadd.f32 %v2321, %v2367
        %v2372 = vadd.f32 %v2322, %v2368
        %v2373 = vadd.f32 %v2323, %v2369
        %v2374 = vadd.f32 %v2324, %v2370
        %v2375 = vmul.f32 %v2356, %v2365
        %v2376 = vmul.f32 %v2356, %v2366
        %v2377 = vmul.f32 %v2360, %v2365
        %v2378 = vmul.f32 %v2360, %v2366
        %v2379 = vsub.f32 %v2371, %v2375
        %v2380 = vsub.f32 %v2372, %v2376
        %v2381 = vsub.f32 %v2373, %v2377
        %v2382 = vsub.f32 %v2374, %v2378
        %v2383 = vmul.f32 %v2346, %v2365
        %v2384 = vmul.f32 %v2346, %v2366
        %v2385 = vmul.f32 %v2350, %v2365
        %v2386 = vmul.f32 %v2350, %v2366
        %v2387 = vadd.f32 %v2337, %v2383
        %v2388 = vadd.f32 %v2338, %v2384
        %v2389 = vadd.f32 %v2339, %v2385
        %v2390 = vadd.f32 %v2340, %v2386
        %v2391 = vmul.f32 %v2356, %v2362
        %v2392 = vmul.f32 %v2356, %v2363
        %v2393 = vmul.f32 %v2360, %v2362
        %v2394 = vmul.f32 %v2360, %v2363
        %v2395 = vadd.f32 %v2387, %v2391
        %v2396 = vadd.f32 %v2388, %v2392
        %v2397 = vadd.f32 %v2389, %v2393
        %v2398 = vadd.f32 %v2390, %v2394
        %v2399 = vld [vmem:[%s714 + $0x1d] sm:$0x1]
        %v2400 = vld [vmem:[%s714 + $0x3d] sm:$0x1]
        %v2401 = vlaneseq
        %v2402 = vshrl.u32 %v2401, 7
        %v2403 = vsub.s32 0, %v2402
        %v2404 = vrot.slane %v2399, %v2403
        %v2405 = vlaneseq
        %v2406 = vshrl.u32 %v2405, 7
        %v2407 = vsub.s32 0, %v2406
        %v2408 = vrot.slane %v2400, %v2407
        %v2409 = vld [vmem:[%s727 + $0x1d] sm:$0x1]
        %v2410 = vld [vmem:[%s727 + $0x3d] sm:$0x1]
        %v2411 = vlaneseq
        %v2412 = vshrl.u32 %v2411, 7
        %v2413 = vsub.s32 0, %v2412
        %v2414 = vrot.slane %v2409, %v2413
        %v2415 = vlaneseq
        %v2416 = vshrl.u32 %v2415, 7
        %v2417 = vsub.s32 0, %v2416
        %v2418 = vrot.slane %v2410, %v2417
        %s2419 = scalar_lea.vmem %s689, 464 [#allocation2]
        %v2420 = vld [vmem:[%s2419] sm:$0xff]
        %v2421 = vld [vmem:[%s2419 + $0x8] sm:$0xff]
        %s2422 = scalar_lea.vmem %s689, 976 [#allocation2]
        %v2423 = vld [vmem:[%s2422] sm:$0xff]
        %v2424 = vld [vmem:[%s2422 + $0x8] sm:$0xff]
        %v2425 = vmul.f32 %v2404, %v2420
        %v2426 = vmul.f32 %v2404, %v2421
        %v2427 = vmul.f32 %v2408, %v2420
        %v2428 = vmul.f32 %v2408, %v2421
        %v2429 = vadd.f32 %v2379, %v2425
        %v2430 = vadd.f32 %v2380, %v2426
        %v2431 = vadd.f32 %v2381, %v2427
        %v2432 = vadd.f32 %v2382, %v2428
        %v2433 = vmul.f32 %v2414, %v2423
        %v2434 = vmul.f32 %v2414, %v2424
        %v2435 = vmul.f32 %v2418, %v2423
        %v2436 = vmul.f32 %v2418, %v2424
        %v2437 = vsub.f32 %v2429, %v2433
        %v2438 = vsub.f32 %v2430, %v2434
        %v2439 = vsub.f32 %v2431, %v2435
        %v2440 = vsub.f32 %v2432, %v2436
        %v2441 = vmul.f32 %v2404, %v2423
        %v2442 = vmul.f32 %v2404, %v2424
        %v2443 = vmul.f32 %v2408, %v2423
        %v2444 = vmul.f32 %v2408, %v2424
        %v2445 = vadd.f32 %v2395, %v2441
        %v2446 = vadd.f32 %v2396, %v2442
        %v2447 = vadd.f32 %v2397, %v2443
        %v2448 = vadd.f32 %v2398, %v2444
        %v2449 = vmul.f32 %v2414, %v2420
        %v2450 = vmul.f32 %v2414, %v2421
        %v2451 = vmul.f32 %v2418, %v2420
        %v2452 = vmul.f32 %v2418, %v2421
        %v2453 = vadd.f32 %v2445, %v2449
        %v2454 = vadd.f32 %v2446, %v2450
        %v2455 = vadd.f32 %v2447, %v2451
        %v2456 = vadd.f32 %v2448, %v2452
        %v2457 = vld [vmem:[%s714 + $0x1e] sm:$0x1]
        %v2458 = vld [vmem:[%s714 + $0x3e] sm:$0x1]
        %v2459 = vlaneseq
        %v2460 = vshrl.u32 %v2459, 7
        %v2461 = vsub.s32 0, %v2460
        %v2462 = vrot.slane %v2457, %v2461
        %v2463 = vlaneseq
        %v2464 = vshrl.u32 %v2463, 7
        %v2465 = vsub.s32 0, %v2464
        %v2466 = vrot.slane %v2458, %v2465
        %v2467 = vld [vmem:[%s727 + $0x1e] sm:$0x1]
        %v2468 = vld [vmem:[%s727 + $0x3e] sm:$0x1]
        %v2469 = vlaneseq
        %v2470 = vshrl.u32 %v2469, 7
        %v2471 = vsub.s32 0, %v2470
        %v2472 = vrot.slane %v2467, %v2471
        %v2473 = vlaneseq
        %v2474 = vshrl.u32 %v2473, 7
        %v2475 = vsub.s32 0, %v2474
        %v2476 = vrot.slane %v2468, %v2475
        %s2477 = scalar_lea.vmem %s689, 480 [#allocation2]
        %v2478 = vld [vmem:[%s2477] sm:$0xff]
        %v2479 = vld [vmem:[%s2477 + $0x8] sm:$0xff]
        %s2480 = scalar_lea.vmem %s689, 992 [#allocation2]
        %v2481 = vld [vmem:[%s2480] sm:$0xff]
        %v2482 = vld [vmem:[%s2480 + $0x8] sm:$0xff]
        %v2483 = vmul.f32 %v2462, %v2478
        %v2484 = vmul.f32 %v2462, %v2479
        %v2485 = vmul.f32 %v2466, %v2478
        %v2486 = vmul.f32 %v2466, %v2479
        %v2487 = vadd.f32 %v2437, %v2483
        %v2488 = vadd.f32 %v2438, %v2484
        %v2489 = vadd.f32 %v2439, %v2485
        %v2490 = vadd.f32 %v2440, %v2486
        %v2491 = vmul.f32 %v2472, %v2481
        %v2492 = vmul.f32 %v2472, %v2482
        %v2493 = vmul.f32 %v2476, %v2481
        %v2494 = vmul.f32 %v2476, %v2482
        %v2495 = vsub.f32 %v2487, %v2491
        %v2496 = vsub.f32 %v2488, %v2492
        %v2497 = vsub.f32 %v2489, %v2493
        %v2498 = vsub.f32 %v2490, %v2494
        %v2499 = vmul.f32 %v2462, %v2481
        %v2500 = vmul.f32 %v2462, %v2482
        %v2501 = vmul.f32 %v2466, %v2481
        %v2502 = vmul.f32 %v2466, %v2482
        %v2503 = vadd.f32 %v2453, %v2499
        %v2504 = vadd.f32 %v2454, %v2500
        %v2505 = vadd.f32 %v2455, %v2501
        %v2506 = vadd.f32 %v2456, %v2502
        %v2507 = vmul.f32 %v2472, %v2478
        %v2508 = vmul.f32 %v2472, %v2479
        %v2509 = vmul.f32 %v2476, %v2478
        %v2510 = vmul.f32 %v2476, %v2479
        %v2511 = vadd.f32 %v2503, %v2507
        %v2512 = vadd.f32 %v2504, %v2508
        %v2513 = vadd.f32 %v2505, %v2509
        %v2514 = vadd.f32 %v2506, %v2510
        %v2515 = vld [vmem:[%s714 + $0x1f] sm:$0x1]
        %v2516 = vld [vmem:[%s714 + $0x3f] sm:$0x1]
        %v2517 = vlaneseq
        %v2518 = vshrl.u32 %v2517, 7
        %v2519 = vsub.s32 0, %v2518
        %v2520 = vrot.slane %v2515, %v2519
        %v2521 = vlaneseq
        %v2522 = vshrl.u32 %v2521, 7
        %v2523 = vsub.s32 0, %v2522
        %v2524 = vrot.slane %v2516, %v2523
        %v2525 = vld [vmem:[%s727 + $0x1f] sm:$0x1]
        %v2526 = vld [vmem:[%s727 + $0x3f] sm:$0x1]
        %v2527 = vlaneseq
        %v2528 = vshrl.u32 %v2527, 7
        %v2529 = vsub.s32 0, %v2528
        %v2530 = vrot.slane %v2525, %v2529
        %v2531 = vlaneseq
        %v2532 = vshrl.u32 %v2531, 7
        %v2533 = vsub.s32 0, %v2532
        %v2534 = vrot.slane %v2526, %v2533
        %s2535 = scalar_lea.vmem %s689, 496 [#allocation2]
        %v2536 = vld [vmem:[%s2535] sm:$0xff]
        %v2537 = vld [vmem:[%s2535 + $0x8] sm:$0xff]
        %s2538 = scalar_lea.vmem %s689, 1008 [#allocation2]
        %v2539 = vld [vmem:[%s2538] sm:$0xff]
        %v2540 = vld [vmem:[%s2538 + $0x8] sm:$0xff]
        %v2541 = vmul.f32 %v2520, %v2536
        %v2542 = vmul.f32 %v2520, %v2537
        %v2543 = vmul.f32 %v2524, %v2536
        %v2544 = vmul.f32 %v2524, %v2537
        %v2545 = vadd.f32 %v2495, %v2541
        %v2546 = vadd.f32 %v2496, %v2542
        %v2547 = vadd.f32 %v2497, %v2543
        %v2548 = vadd.f32 %v2498, %v2544
        %v2549 = vmul.f32 %v2530, %v2539
        %v2550 = vmul.f32 %v2530, %v2540
        %v2551 = vmul.f32 %v2534, %v2539
        %v2552 = vmul.f32 %v2534, %v2540
        %v2553 = vsub.f32 %v2545, %v2549
        %v2554 = vsub.f32 %v2546, %v2550
        %v2555 = vsub.f32 %v2547, %v2551
        %v2556 = vsub.f32 %v2548, %v2552
        %v2557 = vmul.f32 %v2520, %v2539
        %v2558 = vmul.f32 %v2520, %v2540
        %v2559 = vmul.f32 %v2524, %v2539
        %v2560 = vmul.f32 %v2524, %v2540
        %v2561 = vadd.f32 %v2511, %v2557
        %v2562 = vadd.f32 %v2512, %v2558
        %v2563 = vadd.f32 %v2513, %v2559
        %v2564 = vadd.f32 %v2514, %v2560
        %v2565 = vmul.f32 %v2530, %v2536
        %v2566 = vmul.f32 %v2530, %v2537
        %v2567 = vmul.f32 %v2534, %v2536
        %v2568 = vmul.f32 %v2534, %v2537
        %v2569 = vadd.f32 %v2561, %v2565
        %v2570 = vadd.f32 %v2562, %v2566
        %v2571 = vadd.f32 %v2563, %v2567
        %v2572 = vadd.f32 %v2564, %v2568
        %2573 = vst [vmem:[%s710] sm:$0xff] %v2553
        %2574 = vst [vmem:[%s710 + $0x8] sm:$0xff] %v2554
        %2575 = vst [vmem:[%s710 + $0x10] sm:$0xff] %v2555
        %2576 = vst [vmem:[%s710 + $0x18] sm:$0xff] %v2556
        %s2577 = scalar_lea.vmem %s710, 32 [#allocation3]
        %2578 = vst [vmem:[%s2577] sm:$0xff] %v2569
        %2579 = vst [vmem:[%s2577 + $0x8] sm:$0xff] %v2570
        %2580 = vst [vmem:[%s2577 + $0x10] sm:$0xff] %v2571
        %2581 = vst [vmem:[%s2577 + $0x18] sm:$0xff] %v2572
        %s2582 = sand.u32 %s89, 1
        %s2583 = sand.u32 %s89, 1
        %s2584 = smul.addr %s2583, 64
        %s2585 = scalar_lea.vmem [#allocation3], %s2584
        // Predicated region
        $region67: #{_lambda_.11} parent=61 // pred_check
          %p2586 = pneg %p99
        $region68: #{_lambda_.11} parent=61 // pred_check_branch
          %2588 = sbr.rel (%p2586) target = $region70
        $region69: #{_lambda_.11} parent=61 // pred_region
          %s2589 = smul.u32 2, %s18
          %s2590 = sadd.s32 %s17, %s2589
          %s2591 = smul.addr %s2590, 8
          %s2592 = scalar_lea.vmem %s2, %s2591
          // Predicated region
          $region71: #{_lambda_.11} parent=69 // pred_check
            _
          $region72: #{_lambda_.11} parent=69 // pred_check_branch
            %2594 = sbr.rel (0) target = $region74
          $region73: #{_lambda_.11} parent=69 // pred_region
            // Predicated region
            $region75: #{_lambda_.11} parent=73 // pred_check
              _
            $region76: #{_lambda_.11} parent=73 // pred_check_branch
              %2596 = sbr.rel (0) target = $region78
            $region77: #{_lambda_.11} parent=73 // pred_region
              // Predicated region
              $region90: #{_lambda_.11} parent=77 // pred_check
                _
              $region91: #{_lambda_.11} parent=77 // pred_check_branch
                %2625 = sbr.rel (0) target = $region93
              $region92: #{_lambda_.11} parent=77 // pred_region
                loop: start=0, step=1, limit=1
                $region94: #{_lambda_.11} parent=92 // loop_pre_header
                  _
                $region95: #{_lambda_.11} parent=92 // loop_header
                  %s2627 = sphi 0, %s2631
                  %p2628 = scmp.ge.s32.totalorder %s2627, 1
                  %s2632 = sphi %s2585, %s2585
                  %s2633 = sphi %s2592, %s2592
                $region96: #{_lambda_.11} parent=92 // loop_header_branch
                  %2630 = sbr.rel (%p2628) target = $region100
                $region97: #{_lambda_.11} parent=92 // loop_body
                  %v2634 = vld [vmem:[%s2632] sm:$0xff]
                  %2635 = vst [vmem:[%s2633] sm:$0xff] %v2634
                  %v2636 = vld [vmem:[%s2632 + $0x8] sm:$0xff]
                  %2637 = vst [vmem:[%s2633 + $0x8] sm:$0xff] %v2636
                  %v2638 = vld [vmem:[%s2632 + $0x10] sm:$0xff]
                  %2639 = vst [vmem:[%s2633 + $0x20] sm:$0xff] %v2638
                  %v2640 = vld [vmem:[%s2632 + $0x18] sm:$0xff]
                  %2641 = vst [vmem:[%s2633 + $0x28] sm:$0xff] %v2640
                  %v2642 = vld [vmem:[%s2632 + $0x20] sm:$0xff]
                  %2643 = vst [vmem:[%s2633 + $0x40] sm:$0xff] %v2642
                  %v2644 = vld [vmem:[%s2632 + $0x28] sm:$0xff]
                  %2645 = vst [vmem:[%s2633 + $0x48] sm:$0xff] %v2644
                  %v2646 = vld [vmem:[%s2632 + $0x30] sm:$0xff]
                  %2647 = vst [vmem:[%s2633 + $0x60] sm:$0xff] %v2646
                  %v2648 = vld [vmem:[%s2632 + $0x38] sm:$0xff]
                  %2649 = vst [vmem:[%s2633 + $0x68] sm:$0xff] %v2648
                $region98: #{_lambda_.11} parent=92 // loop_footer
                  %s2631 = sadd.s32 1, %s2627
                $region99: #{_lambda_.11} parent=92 // loop_footer_branch
                  %2626 = sbr.rel target = $region95
                $region100: #{_lambda_.11} parent=92 // loop_exit
                  _
              $region93: #{_lambda_.11} parent=77 // pred_fallthru
                _
              // Predicated region
              $region101: #{_lambda_.11} parent=77 // pred_check
                _
              $region102: #{_lambda_.11} parent=77 // pred_check_branch
                %2651 = sbr.rel target = $region104
              $region103: #{_lambda_.11} parent=77 // pred_region
                _
              $region104: #{_lambda_.11} parent=77 // pred_fallthru
                _
            $region78: #{_lambda_.11} parent=73 // pred_fallthru
              _
            // Predicated region
            $region79: #{_lambda_.11} parent=73 // pred_check
              _
            $region80: #{_lambda_.11} parent=73 // pred_check_branch
              %2598 = sbr.rel target = $region82
            $region81: #{_lambda_.11} parent=73 // pred_region
              loop: start=0, step=1, limit=1
              $region83: #{_lambda_.11} parent=81 // loop_pre_header
                _
              $region84: #{_lambda_.11} parent=81 // loop_header
                %s2601 = sphi 0, %s2605
                %p2602 = scmp.ge.s32.totalorder %s2601, 1
                %s2606 = sphi %s2585, %s2585
                %s2607 = sphi %s2592, %s2592
              $region85: #{_lambda_.11} parent=81 // loop_header_branch
                %2604 = sbr.rel (%p2602) target = $region89
              $region86: #{_lambda_.11} parent=81 // loop_body
                %v2608 = vld [vmem:[%s2606] sm:$0xff]
                %2609 = vst [vmem:[%s2607] sm:$0xff] %v2608
                %v2610 = vld [vmem:[%s2606 + $0x8] sm:$0xff]
                %2611 = vst [vmem:[%s2607 + $0x8] sm:$0xff] %v2610
                %v2612 = vld [vmem:[%s2606 + $0x10] sm:$0xff]
                %2613 = vst [vmem:[%s2607 + $0x20] sm:$0xff] %v2612
                %v2614 = vld [vmem:[%s2606 + $0x18] sm:$0xff]
                %2615 = vst [vmem:[%s2607 + $0x28] sm:$0xff] %v2614
                %v2616 = vld [vmem:[%s2606 + $0x20] sm:$0xff]
                %2617 = vst [vmem:[%s2607 + $0x40] sm:$0xff] %v2616
                %v2618 = vld [vmem:[%s2606 + $0x28] sm:$0xff]
                %2619 = vst [vmem:[%s2607 + $0x48] sm:$0xff] %v2618
                %v2620 = vld [vmem:[%s2606 + $0x30] sm:$0xff]
                %2621 = vst [vmem:[%s2607 + $0x60] sm:$0xff] %v2620
                %v2622 = vld [vmem:[%s2606 + $0x38] sm:$0xff]
                %2623 = vst [vmem:[%s2607 + $0x68] sm:$0xff] %v2622
              $region87: #{_lambda_.11} parent=81 // loop_footer
                %s2605 = sadd.s32 1, %s2601
              $region88: #{_lambda_.11} parent=81 // loop_footer_branch
                %2600 = sbr.rel target = $region84
              $region89: #{_lambda_.11} parent=81 // loop_exit
                _
            $region82: #{_lambda_.11} parent=73 // pred_fallthru
              _
          $region74: #{_lambda_.11} parent=69 // pred_fallthru
            _
          %2652 = vnop
        $region70: #{_lambda_.11} parent=61 // pred_fallthru
          _
      $region62: #{_lambda_.11} parent=5 // pred_fallthru
        _
      %p2653 = scmp.le.s32.totalorder 2, %s8
      // Predicated region
      $region105: #{_lambda_.11} parent=5 // pred_check
        %p2654 = pneg %p2653
      $region106: #{_lambda_.11} parent=5 // pred_check_branch
        %2656 = sbr.rel (%p2654) target = $region108
      $region107: #{_lambda_.11} parent=5 // pred_region
        %s2657 = ssub.s32 %s8, 2
        // Predicated region
        $region109: #{_lambda_.11} parent=107 // pred_check
          %p2658 = pneg %p105
        $region110: #{_lambda_.11} parent=107 // pred_check_branch
          %2660 = sbr.rel (%p2658) target = $region112
        $region111: #{_lambda_.11} parent=107 // pred_region
          %s2661 = sand.u32 %s90, 1
          %s2662 = sand.u32 %s90, 1
          %s2663 = smul.addr %s2662, 64
          %s2664 = scalar_lea.vmem [#allocation3], %s2663
        $region112: #{_lambda_.11} parent=107 // pred_fallthru
          _
      $region108: #{_lambda_.11} parent=5 // pred_fallthru
        _
    $region6: #{_lambda_.11} parent=1 // loop_footer
      %s12 = sadd.s32 1, %s8
    $region7: #{_lambda_.11} parent=1 // loop_footer_branch
      %7 = sbr.rel target = $region3
    $region8: #{_lambda_.11} parent=1 // loop_exit
      _

// kernel: reverse.8
$region0: #{reverse.8}
  #allocation0 [shape = 's32[1]{0}', space=sflag, size = 0x4, scoped, tag = 'scoped memory for reverse.8']
  %s0 = inlined_call_operand.vmem [shape: f32[2,32,25,12], index: 0, kind: input, shape index: {}]
  %s1 = inlined_call_operand.vmem [shape: f32[2,32,25,12], index: 1, kind: output, shape index: {}]
  %s2 = scalar_lea.vmem %s0, 352
  %v3 = vld [vmem:[%s2] sm:$0xff]
  %4 = vst [vmem:[%s1] sm:$0xff] %v3
  %s5 = scalar_lea.vmem %s0, 736
  %v6 = vld [vmem:[%s5] sm:$0xff]
  %s7 = scalar_lea.vmem %s1, 384
  %8 = vst [vmem:[%s7] sm:$0xff] %v6
  %s9 = scalar_lea.vmem %s0, 320
  %v10 = vld [vmem:[%s9] sm:$0xff]
  %s11 = scalar_lea.vmem %s1, 32
  %12 = vst [vmem:[%s11] sm:$0xff] %v10
  %s13 = scalar_lea.vmem %s0, 704
  %v14 = vld [vmem:[%s13] sm:$0xff]
  %s15 = scalar_lea.vmem %s1, 416
  %16 = vst [vmem:[%s15] sm:$0xff] %v14
  %s17 = scalar_lea.vmem %s0, 288
  %v18 = vld [vmem:[%s17] sm:$0xff]
  %s19 = scalar_lea.vmem %s1, 64
  %20 = vst [vmem:[%s19] sm:$0xff] %v18
  %s21 = scalar_lea.vmem %s0, 672
  %v22 = vld [vmem:[%s21] sm:$0xff]
  %s23 = scalar_lea.vmem %s1, 448
  %24 = vst [vmem:[%s23] sm:$0xff] %v22
  %s25 = scalar_lea.vmem %s0, 256
  %v26 = vld [vmem:[%s25] sm:$0xff]
  %s27 = scalar_lea.vmem %s1, 96
  %28 = vst [vmem:[%s27] sm:$0xff] %v26
  %s29 = scalar_lea.vmem %s0, 640
  %v30 = vld [vmem:[%s29] sm:$0xff]
  %s31 = scalar_lea.vmem %s1, 480
  %32 = vst [vmem:[%s31] sm:$0xff] %v30
  %s33 = scalar_lea.vmem %s0, 224
  %v34 = vld [vmem:[%s33] sm:$0xff]
  %s35 = scalar_lea.vmem %s1, 128
  %36 = vst [vmem:[%s35] sm:$0xff] %v34
  %s37 = scalar_lea.vmem %s0, 608
  %v38 = vld [vmem:[%s37] sm:$0xff]
  %s39 = scalar_lea.vmem %s1, 512
  %40 = vst [vmem:[%s39] sm:$0xff] %v38
  %s41 = scalar_lea.vmem %s0, 192
  %v42 = vld [vmem:[%s41] sm:$0xff]
  %s43 = scalar_lea.vmem %s1, 160
  %44 = vst [vmem:[%s43] sm:$0xff] %v42
  %s45 = scalar_lea.vmem %s0, 576
  %v46 = vld [vmem:[%s45] sm:$0xff]
  %s47 = scalar_lea.vmem %s1, 544
  %48 = vst [vmem:[%s47] sm:$0xff] %v46
  %s49 = scalar_lea.vmem %s0, 160
  %v50 = vld [vmem:[%s49] sm:$0xff]
  %s51 = scalar_lea.vmem %s1, 192
  %52 = vst [vmem:[%s51] sm:$0xff] %v50
  %s53 = scalar_lea.vmem %s0, 544
  %v54 = vld [vmem:[%s53] sm:$0xff]
  %s55 = scalar_lea.vmem %s1, 576
  %56 = vst [vmem:[%s55] sm:$0xff] %v54
  %s57 = scalar_lea.vmem %s0, 128
  %v58 = vld [vmem:[%s57] sm:$0xff]
  %s59 = scalar_lea.vmem %s1, 224
  %60 = vst [vmem:[%s59] sm:$0xff] %v58
  %s61 = scalar_lea.vmem %s0, 512
  %v62 = vld [vmem:[%s61] sm:$0xff]
  %s63 = scalar_lea.vmem %s1, 608
  %64 = vst [vmem:[%s63] sm:$0xff] %v62
  %s65 = scalar_lea.vmem %s0, 96
  %v66 = vld [vmem:[%s65] sm:$0xff]
  %s67 = scalar_lea.vmem %s1, 256
  %68 = vst [vmem:[%s67] sm:$0xff] %v66
  %s69 = scalar_lea.vmem %s0, 480
  %v70 = vld [vmem:[%s69] sm:$0xff]
  %s71 = scalar_lea.vmem %s1, 640
  %72 = vst [vmem:[%s71] sm:$0xff] %v70
  %s73 = scalar_lea.vmem %s0, 64
  %v74 = vld [vmem:[%s73] sm:$0xff]
  %s75 = scalar_lea.vmem %s1, 288
  %76 = vst [vmem:[%s75] sm:$0xff] %v74
  %s77 = scalar_lea.vmem %s0, 448
  %v78 = vld [vmem:[%s77] sm:$0xff]
  %s79 = scalar_lea.vmem %s1, 672
  %80 = vst [vmem:[%s79] sm:$0xff] %v78
  %s81 = scalar_lea.vmem %s0, 32
  %v82 = vld [vmem:[%s81] sm:$0xff]
  %s83 = scalar_lea.vmem %s1, 320
  %84 = vst [vmem:[%s83] sm:$0xff] %v82
  %s85 = scalar_lea.vmem %s0, 416
  %v86 = vld [vmem:[%s85] sm:$0xff]
  %s87 = scalar_lea.vmem %s1, 704
  %88 = vst [vmem:[%s87] sm:$0xff] %v86
  %v89 = vld [vmem:[%s0] sm:$0xff]
  %s90 = scalar_lea.vmem %s1, 352
  %91 = vst [vmem:[%s90] sm:$0xff] %v89
  %s92 = scalar_lea.vmem %s0, 384
  %v93 = vld [vmem:[%s92] sm:$0xff]
  %s94 = scalar_lea.vmem %s1, 736
  %95 = vst [vmem:[%s94] sm:$0xff] %v93
  %s96 = scalar_lea.vmem %s0, 360
  %v97 = vld [vmem:[%s96] sm:$0xff]
  %s98 = scalar_lea.vmem %s1, 8
  %99 = vst [vmem:[%s98] sm:$0xff] %v97
  %s100 = scalar_lea.vmem %s0, 744
  %v101 = vld [vmem:[%s100] sm:$0xff]
  %s102 = scalar_lea.vmem %s1, 392
  %103 = vst [vmem:[%s102] sm:$0xff] %v101
  %s104 = scalar_lea.vmem %s0, 328
  %v105 = vld [vmem:[%s104] sm:$0xff]
  %s106 = scalar_lea.vmem %s1, 40
  %107 = vst [vmem:[%s106] sm:$0xff] %v105
  %s108 = scalar_lea.vmem %s0, 712
  %v109 = vld [vmem:[%s108] sm:$0xff]
  %s110 = scalar_lea.vmem %s1, 424
  %111 = vst [vmem:[%s110] sm:$0xff] %v109
  %s112 = scalar_lea.vmem %s0, 296
  %v113 = vld [vmem:[%s112] sm:$0xff]
  %s114 = scalar_lea.vmem %s1, 72
  %115 = vst [vmem:[%s114] sm:$0xff] %v113
  %s116 = scalar_lea.vmem %s0, 680
  %v117 = vld [vmem:[%s116] sm:$0xff]
  %s118 = scalar_lea.vmem %s1, 456
  %119 = vst [vmem:[%s118] sm:$0xff] %v117
  %s120 = scalar_lea.vmem %s0, 264
  %v121 = vld [vmem:[%s120] sm:$0xff]
  %s122 = scalar_lea.vmem %s1, 104
  %123 = vst [vmem:[%s122] sm:$0xff] %v121
  %s124 = scalar_lea.vmem %s0, 648
  %v125 = vld [vmem:[%s124] sm:$0xff]
  %s126 = scalar_lea.vmem %s1, 488
  %127 = vst [vmem:[%s126] sm:$0xff] %v125
  %s128 = scalar_lea.vmem %s0, 232
  %v129 = vld [vmem:[%s128] sm:$0xff]
  %s130 = scalar_lea.vmem %s1, 136
  %131 = vst [vmem:[%s130] sm:$0xff] %v129
  %s132 = scalar_lea.vmem %s0, 616
  %v133 = vld [vmem:[%s132] sm:$0xff]
  %s134 = scalar_lea.vmem %s1, 520
  %135 = vst [vmem:[%s134] sm:$0xff] %v133
  %s136 = scalar_lea.vmem %s0, 200
  %v137 = vld [vmem:[%s136] sm:$0xff]
  %s138 = scalar_lea.vmem %s1, 168
  %139 = vst [vmem:[%s138] sm:$0xff] %v137
  %s140 = scalar_lea.vmem %s0, 584
  %v141 = vld [vmem:[%s140] sm:$0xff]
  %s142 = scalar_lea.vmem %s1, 552
  %143 = vst [vmem:[%s142] sm:$0xff] %v141
  %s144 = scalar_lea.vmem %s0, 168
  %v145 = vld [vmem:[%s144] sm:$0xff]
  %s146 = scalar_lea.vmem %s1, 200
  %147 = vst [vmem:[%s146] sm:$0xff] %v145
  %s148 = scalar_lea.vmem %s0, 552
  %v149 = vld [vmem:[%s148] sm:$0xff]
  %s150 = scalar_lea.vmem %s1, 584
  %151 = vst [vmem:[%s150] sm:$0xff] %v149
  %s152 = scalar_lea.vmem %s0, 136
  %v153 = vld [vmem:[%s152] sm:$0xff]
  %s154 = scalar_lea.vmem %s1, 232
  %155 = vst [vmem:[%s154] sm:$0xff] %v153
  %s156 = scalar_lea.vmem %s0, 520
  %v157 = vld [vmem:[%s156] sm:$0xff]
  %s158 = scalar_lea.vmem %s1, 616
  %159 = vst [vmem:[%s158] sm:$0xff] %v157
  %s160 = scalar_lea.vmem %s0, 104
  %v161 = vld [vmem:[%s160] sm:$0xff]
  %s162 = scalar_lea.vmem %s1, 264
  %163 = vst [vmem:[%s162] sm:$0xff] %v161
  %s164 = scalar_lea.vmem %s0, 488
  %v165 = vld [vmem:[%s164] sm:$0xff]
  %s166 = scalar_lea.vmem %s1, 648
  %167 = vst [vmem:[%s166] sm:$0xff] %v165
  %s168 = scalar_lea.vmem %s0, 72
  %v169 = vld [vmem:[%s168] sm:$0xff]
  %s170 = scalar_lea.vmem %s1, 296
  %171 = vst [vmem:[%s170] sm:$0xff] %v169
  %s172 = scalar_lea.vmem %s0, 456
  %v173 = vld [vmem:[%s172] sm:$0xff]
  %s174 = scalar_lea.vmem %s1, 680
  %175 = vst [vmem:[%s174] sm:$0xff] %v173
  %s176 = scalar_lea.vmem %s0, 40
  %v177 = vld [vmem:[%s176] sm:$0xff]
  %s178 = scalar_lea.vmem %s1, 328
  %179 = vst [vmem:[%s178] sm:$0xff] %v177
  %s180 = scalar_lea.vmem %s0, 424
  %v181 = vld [vmem:[%s180] sm:$0xff]
  %s182 = scalar_lea.vmem %s1, 712
  %183 = vst [vmem:[%s182] sm:$0xff] %v181
  %s184 = scalar_lea.vmem %s0, 8
  %v185 = vld [vmem:[%s184] sm:$0xff]
  %s186 = scalar_lea.vmem %s1, 360
  %187 = vst [vmem:[%s186] sm:$0xff] %v185
  %s188 = scalar_lea.vmem %s0, 392
  %v189 = vld [vmem:[%s188] sm:$0xff]
  %s190 = scalar_lea.vmem %s1, 744
  %191 = vst [vmem:[%s190] sm:$0xff] %v189
  %s192 = scalar_lea.vmem %s0, 368
  %v193 = vld [vmem:[%s192] sm:$0xff]
  %s194 = scalar_lea.vmem %s1, 16
  %195 = vst [vmem:[%s194] sm:$0xff] %v193
  %s196 = scalar_lea.vmem %s0, 752
  %v197 = vld [vmem:[%s196] sm:$0xff]
  %s198 = scalar_lea.vmem %s1, 400
  %199 = vst [vmem:[%s198] sm:$0xff] %v197
  %s200 = scalar_lea.vmem %s0, 336
  %v201 = vld [vmem:[%s200] sm:$0xff]
  %s202 = scalar_lea.vmem %s1, 48
  %203 = vst [vmem:[%s202] sm:$0xff] %v201
  %s204 = scalar_lea.vmem %s0, 720
  %v205 = vld [vmem:[%s204] sm:$0xff]
  %s206 = scalar_lea.vmem %s1, 432
  %207 = vst [vmem:[%s206] sm:$0xff] %v205
  %s208 = scalar_lea.vmem %s0, 304
  %v209 = vld [vmem:[%s208] sm:$0xff]
  %s210 = scalar_lea.vmem %s1, 80
  %211 = vst [vmem:[%s210] sm:$0xff] %v209
  %s212 = scalar_lea.vmem %s0, 688
  %v213 = vld [vmem:[%s212] sm:$0xff]
  %s214 = scalar_lea.vmem %s1, 464
  %215 = vst [vmem:[%s214] sm:$0xff] %v213
  %s216 = scalar_lea.vmem %s0, 272
  %v217 = vld [vmem:[%s216] sm:$0xff]
  %s218 = scalar_lea.vmem %s1, 112
  %219 = vst [vmem:[%s218] sm:$0xff] %v217
  %s220 = scalar_lea.vmem %s0, 656
  %v221 = vld [vmem:[%s220] sm:$0xff]
  %s222 = scalar_lea.vmem %s1, 496
  %223 = vst [vmem:[%s222] sm:$0xff] %v221
  %s224 = scalar_lea.vmem %s0, 240
  %v225 = vld [vmem:[%s224] sm:$0xff]
  %s226 = scalar_lea.vmem %s1, 144
  %227 = vst [vmem:[%s226] sm:$0xff] %v225
  %s228 = scalar_lea.vmem %s0, 624
  %v229 = vld [vmem:[%s228] sm:$0xff]
  %s230 = scalar_lea.vmem %s1, 528
  %231 = vst [vmem:[%s230] sm:$0xff] %v229
  %s232 = scalar_lea.vmem %s0, 208
  %v233 = vld [vmem:[%s232] sm:$0xff]
  %s234 = scalar_lea.vmem %s1, 176
  %235 = vst [vmem:[%s234] sm:$0xff] %v233
  %s236 = scalar_lea.vmem %s0, 592
  %v237 = vld [vmem:[%s236] sm:$0xff]
  %s238 = scalar_lea.vmem %s1, 560
  %239 = vst [vmem:[%s238] sm:$0xff] %v237
  %s240 = scalar_lea.vmem %s0, 176
  %v241 = vld [vmem:[%s240] sm:$0xff]
  %s242 = scalar_lea.vmem %s1, 208
  %243 = vst [vmem:[%s242] sm:$0xff] %v241
  %s244 = scalar_lea.vmem %s0, 560
  %v245 = vld [vmem:[%s244] sm:$0xff]
  %s246 = scalar_lea.vmem %s1, 592
  %247 = vst [vmem:[%s246] sm:$0xff] %v245
  %s248 = scalar_lea.vmem %s0, 144
  %v249 = vld [vmem:[%s248] sm:$0xff]
  %s250 = scalar_lea.vmem %s1, 240
  %251 = vst [vmem:[%s250] sm:$0xff] %v249
  %s252 = scalar_lea.vmem %s0, 528
  %v253 = vld [vmem:[%s252] sm:$0xff]
  %s254 = scalar_lea.vmem %s1, 624
  %255 = vst [vmem:[%s254] sm:$0xff] %v253
  %s256 = scalar_lea.vmem %s0, 112
  %v257 = vld [vmem:[%s256] sm:$0xff]
  %s258 = scalar_lea.vmem %s1, 272
  %259 = vst [vmem:[%s258] sm:$0xff] %v257
  %s260 = scalar_lea.vmem %s0, 496
  %v261 = vld [vmem:[%s260] sm:$0xff]
  %s262 = scalar_lea.vmem %s1, 656
  %263 = vst [vmem:[%s262] sm:$0xff] %v261
  %s264 = scalar_lea.vmem %s0, 80
  %v265 = vld [vmem:[%s264] sm:$0xff]
  %s266 = scalar_lea.vmem %s1, 304
  %267 = vst [vmem:[%s266] sm:$0xff] %v265
  %s268 = scalar_lea.vmem %s0, 464
  %v269 = vld [vmem:[%s268] sm:$0xff]
  %s270 = scalar_lea.vmem %s1, 688
  %271 = vst [vmem:[%s270] sm:$0xff] %v269
  %s272 = scalar_lea.vmem %s0, 48
  %v273 = vld [vmem:[%s272] sm:$0xff]
  %s274 = scalar_lea.vmem %s1, 336
  %275 = vst [vmem:[%s274] sm:$0xff] %v273
  %s276 = scalar_lea.vmem %s0, 432
  %v277 = vld [vmem:[%s276] sm:$0xff]
  %s278 = scalar_lea.vmem %s1, 720
  %279 = vst [vmem:[%s278] sm:$0xff] %v277
  %s280 = scalar_lea.vmem %s0, 16
  %v281 = vld [vmem:[%s280] sm:$0xff]
  %s282 = scalar_lea.vmem %s1, 368
  %283 = vst [vmem:[%s282] sm:$0xff] %v281
  %s284 = scalar_lea.vmem %s0, 400
  %v285 = vld [vmem:[%s284] sm:$0xff]
  %s286 = scalar_lea.vmem %s1, 752
  %287 = vst [vmem:[%s286] sm:$0xff] %v285
  %s288 = scalar_lea.vmem %s0, 376
  %v289 = vld [vmem:[%s288] sm:$0xff]
  %s290 = scalar_lea.vmem %s1, 24
  %291 = vst [vmem:[%s290] sm:$0xff] %v289
  %s292 = scalar_lea.vmem %s0, 760
  %v293 = vld [vmem:[%s292] sm:$0xff]
  %s294 = scalar_lea.vmem %s1, 408
  %295 = vst [vmem:[%s294] sm:$0xff] %v293
  %s296 = scalar_lea.vmem %s0, 344
  %v297 = vld [vmem:[%s296] sm:$0xff]
  %s298 = scalar_lea.vmem %s1, 56
  %299 = vst [vmem:[%s298] sm:$0xff] %v297
  %s300 = scalar_lea.vmem %s0, 728
  %v301 = vld [vmem:[%s300] sm:$0xff]
  %s302 = scalar_lea.vmem %s1, 440
  %303 = vst [vmem:[%s302] sm:$0xff] %v301
  %s304 = scalar_lea.vmem %s0, 312
  %v305 = vld [vmem:[%s304] sm:$0xff]
  %s306 = scalar_lea.vmem %s1, 88
  %307 = vst [vmem:[%s306] sm:$0xff] %v305
  %s308 = scalar_lea.vmem %s0, 696
  %v309 = vld [vmem:[%s308] sm:$0xff]
  %s310 = scalar_lea.vmem %s1, 472
  %311 = vst [vmem:[%s310] sm:$0xff] %v309
  %s312 = scalar_lea.vmem %s0, 280
  %v313 = vld [vmem:[%s312] sm:$0xff]
  %s314 = scalar_lea.vmem %s1, 120
  %315 = vst [vmem:[%s314] sm:$0xff] %v313
  %s316 = scalar_lea.vmem %s0, 664
  %v317 = vld [vmem:[%s316] sm:$0xff]
  %s318 = scalar_lea.vmem %s1, 504
  %319 = vst [vmem:[%s318] sm:$0xff] %v317
  %s320 = scalar_lea.vmem %s0, 248
  %v321 = vld [vmem:[%s320] sm:$0xff]
  %s322 = scalar_lea.vmem %s1, 152
  %323 = vst [vmem:[%s322] sm:$0xff] %v321
  %s324 = scalar_lea.vmem %s0, 632
  %v325 = vld [vmem:[%s324] sm:$0xff]
  %s326 = scalar_lea.vmem %s1, 536
  %327 = vst [vmem:[%s326] sm:$0xff] %v325
  %s328 = scalar_lea.vmem %s0, 216
  %v329 = vld [vmem:[%s328] sm:$0xff]
  %s330 = scalar_lea.vmem %s1, 184
  %331 = vst [vmem:[%s330] sm:$0xff] %v329
  %s332 = scalar_lea.vmem %s0, 600
  %v333 = vld [vmem:[%s332] sm:$0xff]
  %s334 = scalar_lea.vmem %s1, 568
  %335 = vst [vmem:[%s334] sm:$0xff] %v333
  %s336 = scalar_lea.vmem %s0, 184
  %v337 = vld [vmem:[%s336] sm:$0xff]
  %s338 = scalar_lea.vmem %s1, 216
  %339 = vst [vmem:[%s338] sm:$0xff] %v337
  %s340 = scalar_lea.vmem %s0, 568
  %v341 = vld [vmem:[%s340] sm:$0xff]
  %s342 = scalar_lea.vmem %s1, 600
  %343 = vst [vmem:[%s342] sm:$0xff] %v341
  %s344 = scalar_lea.vmem %s0, 152
  %v345 = vld [vmem:[%s344] sm:$0xff]
  %s346 = scalar_lea.vmem %s1, 248
  %347 = vst [vmem:[%s346] sm:$0xff] %v345
  %s348 = scalar_lea.vmem %s0, 536
  %v349 = vld [vmem:[%s348] sm:$0xff]
  %s350 = scalar_lea.vmem %s1, 632
  %351 = vst [vmem:[%s350] sm:$0xff] %v349
  %s352 = scalar_lea.vmem %s0, 120
  %v353 = vld [vmem:[%s352] sm:$0xff]
  %s354 = scalar_lea.vmem %s1, 280
  %355 = vst [vmem:[%s354] sm:$0xff] %v353
  %s356 = scalar_lea.vmem %s0, 504
  %v357 = vld [vmem:[%s356] sm:$0xff]
  %s358 = scalar_lea.vmem %s1, 664
  %359 = vst [vmem:[%s358] sm:$0xff] %v357
  %s360 = scalar_lea.vmem %s0, 88
  %v361 = vld [vmem:[%s360] sm:$0xff]
  %s362 = scalar_lea.vmem %s1, 312
  %363 = vst [vmem:[%s362] sm:$0xff] %v361
  %s364 = scalar_lea.vmem %s0, 472
  %v365 = vld [vmem:[%s364] sm:$0xff]
  %s366 = scalar_lea.vmem %s1, 696
  %367 = vst [vmem:[%s366] sm:$0xff] %v365
  %s368 = scalar_lea.vmem %s0, 56
  %v369 = vld [vmem:[%s368] sm:$0xff]
  %s370 = scalar_lea.vmem %s1, 344
  %371 = vst [vmem:[%s370] sm:$0xff] %v369
  %s372 = scalar_lea.vmem %s0, 440
  %v373 = vld [vmem:[%s372] sm:$0xff]
  %s374 = scalar_lea.vmem %s1, 728
  %375 = vst [vmem:[%s374] sm:$0xff] %v373
  %s376 = scalar_lea.vmem %s0, 24
  %v377 = vld [vmem:[%s376] sm:$0xff]
  %s378 = scalar_lea.vmem %s1, 376
  %379 = vst [vmem:[%s378] sm:$0xff] %v377
  %s380 = scalar_lea.vmem %s0, 408
  %v381 = vld [vmem:[%s380] sm:$0xff]
  %s382 = scalar_lea.vmem %s1, 760
  %383 = vst [vmem:[%s382] sm:$0xff] %v381

// kernel: _lambda_.12
$region0: #{_lambda_.12}
  #allocation0 [shape = 'u32[]', space=smem, size = 0x4, offset = 0x4, fixed_abs, tag = 'smem constant byte address 0x4 - core index']
  #allocation1 [shape = 'u32[144,128]{1,0:T(1,128)}', space=vmem, size = 0x12000, scoped, tag = 'internal scratch']
  %s0 = inlined_call_operand.vmem [shape: f32[2,32,1024], index: 0, kind: input, shape index: {}]
  %s1 = inlined_call_operand.vmem [shape: f32[32,32], index: 1, kind: input, shape index: {}]
  %s2 = inlined_call_operand.vmem [shape: f32[32,1], index: 2, kind: input, shape index: {}]
  %s3 = inlined_call_operand.vmem [shape: f32[2,32,1024], index: 3, kind: input, shape index: {}]
  %s4 = inlined_call_operand.vmem [shape: f32[2,32,1024], index: 4, kind: output, shape index: {}]
  %s5 = sld [smem:[#allocation0]]
  $region114: #{_lambda_.12} parent=0
    _
  %s7 = ssub.s32 1, %s5
  %s8 = scalar_select 0, %s7, %s5
  $region1: #{_lambda_.12} parent=0
    #allocation2 [shape = 'u8[131072]{0}', space=vmem, size = 0x20000, scoped, tag = 'input window, operand 0']
    #allocation3 [shape = 'u8[131072]{0}', space=vmem, size = 0x20000, scoped, tag = 'input window, operand 3']
    #allocation4 [shape = 'u8[131072]{0}', space=vmem, size = 0x20000, scoped, tag = 'output window, operand 0']
    loop: start=0, step=1, limit=6
    $region2: #{_lambda_.12} parent=1 // loop_pre_header
      _
    $region3: #{_lambda_.12} parent=1 // loop_header
      %s10 = sphi 0, %s14
      %p11 = scmp.ge.s32.totalorder %s10, 6
      %s17 = sphi 0, %s29
      %s18 = sphi 0, %s25
      %s19 = sphi 0, %s17
      %s20 = sphi 0, %s18
      %s21 = sphi 0, %s19
      %s22 = sphi 0, %s20
      %s34 = sphi 0, %s36
      %s37 = sphi 0, %s34
      %s38 = sphi 0, %s37
      %s54 = sphi 0, %s38
      %s58 = sphi 0, %s58
      %s60 = sphi 0, %s58
      %s61 = sphi 0, %s60
      %s75 = sphi 0, %s61
      %s79 = sphi 0, %s79
      %s81 = sphi 0, %s79
      %s82 = sphi 0, %s81
      %s96 = sphi 0, %s82
      %s104 = sphi 0, %s106
      %s107 = sphi 0, %s104
      %s108 = sphi 0, %s107
      %s124 = sphi 0, %s108
      %s132 = sphi 0, %s134
      %s135 = sphi 0, %s132
      %s136 = sphi 0, %s135
      %s152 = sphi 0, %s136
    $region4: #{_lambda_.12} parent=1 // loop_header_branch
      %13 = sbr.rel (%p11) target = $region8
    $region5: #{_lambda_.12} parent=1 // loop_body
      %s15 = ssub.s32 %s10, 1
      %s16 = ssub.s32 %s10, 2
      %s23 = sadd.s32 1, %s18
      %p24 = scmp.ge.s32.totalorder %s23, 2
      %s25 = scalar_select %p24, 0, %s23
      %s26 = sadd.s32 1, %s17
      %s27 = scalar_select %p24, %s26, %s17
      %p28 = scmp.ge.s32.totalorder %s27, 2
      %s29 = scalar_select %p28, 0, %s27
      %s30 = ssub.s32 %s17, %s29
      %s31 = ssub.s32 %s18, %s25
      %s32 = sor.u32 %s30, %s31
      %p33 = scmp.eq.s32.totalorder %s32, 0
      %s35 = sadd.s32 %s34, 1
      %s36 = scalar_select %p33, %s34, %s35
      %p39 = pneg %p33
      %p40 = scmp.eq.s32.totalorder %s10, 3
      %p41 = por %p39, %p40
      %p42 = scmp.ne.s32.totalorder %s34, %s37
      %p43 = scmp.eq.s32.totalorder %s10, 0
      %p44 = por %p42, %p43
      %p45 = scmp.ne.s32.totalorder %s34, %s37
      %p46 = scmp.eq.s32.totalorder %s15, 3
      %p47 = por %p45, %p46
      %p48 = scmp.ne.s32.totalorder %s37, %s38
      %p49 = scmp.eq.s32.totalorder %s15, 0
      %p50 = por %p48, %p49
      %p51 = scmp.ne.s32.totalorder %s37, %s38
      %p52 = scmp.eq.s32.totalorder %s16, 3
      %p53 = por %p51, %p52
      %p55 = scmp.ne.s32.totalorder %s38, %s54
      %p56 = scmp.eq.s32.totalorder %s16, 0
      %p57 = por %p55, %p56
      %s59 = sadd.s32 %s58, 1
      %p62 = scmp.eq.s32.totalorder %s10, 3
      %p63 = scmp.ne.s32.totalorder %s58, %s60
      %p64 = scmp.eq.s32.totalorder %s10, 0
      %p65 = por %p63, %p64
      %p66 = scmp.ne.s32.totalorder %s58, %s60
      %p67 = scmp.eq.s32.totalorder %s15, 3
      %p68 = por %p66, %p67
      %p69 = scmp.ne.s32.totalorder %s60, %s61
      %p70 = scmp.eq.s32.totalorder %s15, 0
      %p71 = por %p69, %p70
      %p72 = scmp.ne.s32.totalorder %s60, %s61
      %p73 = scmp.eq.s32.totalorder %s16, 3
      %p74 = por %p72, %p73
      %p76 = scmp.ne.s32.totalorder %s61, %s75
      %p77 = scmp.eq.s32.totalorder %s16, 0
      %p78 = por %p76, %p77
      %s80 = sadd.s32 %s79, 1
      %p83 = scmp.eq.s32.totalorder %s10, 3
      %p84 = scmp.ne.s32.totalorder %s79, %s81
      %p85 = scmp.eq.s32.totalorder %s10, 0
      %p86 = por %p84, %p85
      %p87 = scmp.ne.s32.totalorder %s79, %s81
      %p88 = scmp.eq.s32.totalorder %s15, 3
      %p89 = por %p87, %p88
      %p90 = scmp.ne.s32.totalorder %s81, %s82
      %p91 = scmp.eq.s32.totalorder %s15, 0
      %p92 = por %p90, %p91
      %p93 = scmp.ne.s32.totalorder %s81, %s82
      %p94 = scmp.eq.s32.totalorder %s16, 3
      %p95 = por %p93, %p94
      %p97 = scmp.ne.s32.totalorder %s82, %s96
      %p98 = scmp.eq.s32.totalorder %s16, 0
      %p99 = por %p97, %p98
      %s100 = ssub.s32 %s17, %s29
      %s101 = ssub.s32 %s18, %s25
      %s102 = sor.u32 %s100, %s101
      %p103 = scmp.eq.s32.totalorder %s102, 0
      %s105 = sadd.s32 %s104, 1
      %s106 = scalar_select %p103, %s104, %s105
      %p109 = pneg %p103
      %p110 = scmp.eq.s32.totalorder %s10, 3
      %p111 = por %p109, %p110
      %p112 = scmp.ne.s32.totalorder %s104, %s107
      %p113 = scmp.eq.s32.totalorder %s10, 0
      %p114 = por %p112, %p113
      %p115 = scmp.ne.s32.totalorder %s104, %s107
      %p116 = scmp.eq.s32.totalorder %s15, 3
      %p117 = por %p115, %p116
      %p118 = scmp.ne.s32.totalorder %s107, %s108
      %p119 = scmp.eq.s32.totalorder %s15, 0
      %p120 = por %p118, %p119
      %p121 = scmp.ne.s32.totalorder %s107, %s108
      %p122 = scmp.eq.s32.totalorder %s16, 3
      %p123 = por %p121, %p122
      %p125 = scmp.ne.s32.totalorder %s108, %s124
      %p126 = scmp.eq.s32.totalorder %s16, 0
      %p127 = por %p125, %p126
      %s128 = ssub.s32 %s17, %s29
      %s129 = ssub.s32 %s18, %s25
      %s130 = sor.u32 %s128, %s129
      %p131 = scmp.eq.s32.totalorder %s130, 0
      %s133 = sadd.s32 %s132, 1
      %s134 = scalar_select %p131, %s132, %s133
      %p137 = pneg %p131
      %p138 = scmp.eq.s32.totalorder %s10, 3
      %p139 = por %p137, %p138
      %p140 = scmp.ne.s32.totalorder %s132, %s135
      %p141 = scmp.eq.s32.totalorder %s10, 0
      %p142 = por %p140, %p141
      %p143 = scmp.ne.s32.totalorder %s132, %s135
      %p144 = scmp.eq.s32.totalorder %s15, 3
      %p145 = por %p143, %p144
      %p146 = scmp.ne.s32.totalorder %s135, %s136
      %p147 = scmp.eq.s32.totalorder %s15, 0
      %p148 = por %p146, %p147
      %p149 = scmp.ne.s32.totalorder %s135, %s136
      %p150 = scmp.eq.s32.totalorder %s16, 3
      %p151 = por %p149, %p150
      %p153 = scmp.ne.s32.totalorder %s136, %s152
      %p154 = scmp.eq.s32.totalorder %s16, 0
      %p155 = por %p153, %p154
      %p156 = scmp.le.s32.totalorder 1, %s10
      %p157 = scmp.lt.s32.totalorder %s10, 5
      %p158 = pnand %p156, %p157
      %p159 = pneg %p158
      // Predicated region
      $region9: #{_lambda_.12} parent=5 // pred_check
        _
      $region10: #{_lambda_.12} parent=5 // pred_check_branch
        %161 = sbr.rel (%p158) target = $region12
      $region11: #{_lambda_.12} parent=5 // pred_region
        %s162 = ssub.s32 %s10, 1
        // Predicated region
        $region13: #{_lambda_.12} parent=11 // pred_check
          %p163 = pneg %p71
        $region14: #{_lambda_.12} parent=11 // pred_check_branch
          %165 = sbr.rel (%p163) target = $region16
        $region15: #{_lambda_.12} parent=11 // pred_region
          _
        $region16: #{_lambda_.12} parent=11 // pred_fallthru
          _
        // Predicated region
        $region17: #{_lambda_.12} parent=11 // pred_check
          %p166 = pneg %p92
        $region18: #{_lambda_.12} parent=11 // pred_check_branch
          %168 = sbr.rel (%p166) target = $region20
        $region19: #{_lambda_.12} parent=11 // pred_region
          _
        $region20: #{_lambda_.12} parent=11 // pred_fallthru
          _
      $region12: #{_lambda_.12} parent=5 // pred_fallthru
        _
      %p169 = scmp.lt.s32.totalorder %s10, 4
      // Predicated region
      $region21: #{_lambda_.12} parent=5 // pred_check
        %p170 = pneg %p169
      $region22: #{_lambda_.12} parent=5 // pred_check_branch
        %172 = sbr.rel (%p170) target = $region24
      $region23: #{_lambda_.12} parent=5 // pred_region
        // Predicated region
        $region25: #{_lambda_.12} parent=23 // pred_check
          %p173 = pneg %p44
        $region26: #{_lambda_.12} parent=23 // pred_check_branch
          %175 = sbr.rel (%p173) target = $region28
        $region27: #{_lambda_.12} parent=23 // pred_region
          %s176 = sand.u32 %s34, 1
          %s177 = sand.u32 %s34, 1
          %s178 = smul.addr %s177, 128
          %s179 = scalar_lea.vmem [#allocation2], %s178
          %s180 = smul.u32 4, %s18
          %s181 = smul.addr %s17, 32
          %s182 = sadd.s32 %s180, %s181
          %s183 = smul.addr %s182, 8
          %s184 = scalar_lea.vmem %s0, %s183
          // Predicated region
          $region29: #{_lambda_.12} parent=27 // pred_check
            _
          $region30: #{_lambda_.12} parent=27 // pred_check_branch
            %186 = sbr.rel (0) target = $region32
          $region31: #{_lambda_.12} parent=27 // pred_region
            // Predicated region
            $region33: #{_lambda_.12} parent=31 // pred_check
              _
            $region34: #{_lambda_.12} parent=31 // pred_check_branch
              %188 = sbr.rel (0) target = $region36
            $region35: #{_lambda_.12} parent=31 // pred_region
              loop: start=0, step=1, limit=1
              $region37: #{_lambda_.12} parent=35 // loop_pre_header
                _
              $region38: #{_lambda_.12} parent=35 // loop_header
                %s190 = sphi 0, %s194
                %p191 = scmp.ge.s32.totalorder %s190, 1
                %s195 = sphi %s184, %s184
                %s196 = sphi %s179, %s179
              $region39: #{_lambda_.12} parent=35 // loop_header_branch
                %193 = sbr.rel (%p191) target = $region43
              $region40: #{_lambda_.12} parent=35 // loop_body
                %v197 = vld [vmem:[%s195] sm:$0xff]
                %198 = vst [vmem:[%s196] sm:$0xff] %v197
                %v199 = vld [vmem:[%s195 + $0x8] sm:$0xff]
                %200 = vst [vmem:[%s196 + $0x8] sm:$0xff] %v199
                %v201 = vld [vmem:[%s195 + $0x10] sm:$0xff]
                %202 = vst [vmem:[%s196 + $0x10] sm:$0xff] %v201
                %v203 = vld [vmem:[%s195 + $0x18] sm:$0xff]
                %204 = vst [vmem:[%s196 + $0x18] sm:$0xff] %v203
                %v205 = vld [vmem:[%s195 + $0x40] sm:$0xff]
                %206 = vst [vmem:[%s196 + $0x20] sm:$0xff] %v205
                %v207 = vld [vmem:[%s195 + $0x48] sm:$0xff]
                %208 = vst [vmem:[%s196 + $0x28] sm:$0xff] %v207
                %v209 = vld [vmem:[%s195 + $0x50] sm:$0xff]
                %210 = vst [vmem:[%s196 + $0x30] sm:$0xff] %v209
                %v211 = vld [vmem:[%s195 + $0x58] sm:$0xff]
                %212 = vst [vmem:[%s196 + $0x38] sm:$0xff] %v211
                %v213 = vld [vmem:[%s195 + $0x80] sm:$0xff]
                %214 = vst [vmem:[%s196 + $0x40] sm:$0xff] %v213
                %v215 = vld [vmem:[%s195 + $0x88] sm:$0xff]
                %216 = vst [vmem:[%s196 + $0x48] sm:$0xff] %v215
                %v217 = vld [vmem:[%s195 + $0x90] sm:$0xff]
                %218 = vst [vmem:[%s196 + $0x50] sm:$0xff] %v217
                %v219 = vld [vmem:[%s195 + $0x98] sm:$0xff]
                %220 = vst [vmem:[%s196 + $0x58] sm:$0xff] %v219
                %v221 = vld [vmem:[%s195 + $0xc0] sm:$0xff]
                %222 = vst [vmem:[%s196 + $0x60] sm:$0xff] %v221
                %v223 = vld [vmem:[%s195 + $0xc8] sm:$0xff]
                %224 = vst [vmem:[%s196 + $0x68] sm:$0xff] %v223
                %v225 = vld [vmem:[%s195 + $0xd0] sm:$0xff]
                %226 = vst [vmem:[%s196 + $0x70] sm:$0xff] %v225
                %v227 = vld [vmem:[%s195 + $0xd8] sm:$0xff]
                %228 = vst [vmem:[%s196 + $0x78] sm:$0xff] %v227
              $region41: #{_lambda_.12} parent=35 // loop_footer
                %s194 = sadd.s32 1, %s190
              $region42: #{_lambda_.12} parent=35 // loop_footer_branch
                %189 = sbr.rel target = $region38
              $region43: #{_lambda_.12} parent=35 // loop_exit
                _
            $region36: #{_lambda_.12} parent=31 // pred_fallthru
              _
            // Predicated region
            $region44: #{_lambda_.12} parent=31 // pred_check
              _
            $region45: #{_lambda_.12} parent=31 // pred_check_branch
              %230 = sbr.rel target = $region47
            $region46: #{_lambda_.12} parent=31 // pred_region
              _
            $region47: #{_lambda_.12} parent=31 // pred_fallthru
              _
          $region32: #{_lambda_.12} parent=27 // pred_fallthru
            _
          %231 = vnop
        $region28: #{_lambda_.12} parent=23 // pred_fallthru
          _
        // Predicated region
        $region48: #{_lambda_.12} parent=23 // pred_check
          %p232 = pneg %p114
        $region49: #{_lambda_.12} parent=23 // pred_check_branch
          %234 = sbr.rel (%p232) target = $region51
        $region50: #{_lambda_.12} parent=23 // pred_region
          %s235 = sand.u32 %s104, 1
          %s236 = sand.u32 %s104, 1
          %s237 = smul.addr %s236, 128
          %s238 = scalar_lea.vmem [#allocation3], %s237
          %s239 = smul.u32 4, %s18
          %s240 = smul.addr %s17, 32
          %s241 = sadd.s32 %s239, %s240
          %s242 = smul.addr %s241, 8
          %s243 = scalar_lea.vmem %s3, %s242
          // Predicated region
          $region52: #{_lambda_.12} parent=50 // pred_check
            _
          $region53: #{_lambda_.12} parent=50 // pred_check_branch
            %245 = sbr.rel (0) target = $region55
          $region54: #{_lambda_.12} parent=50 // pred_region
            // Predicated region
            $region56: #{_lambda_.12} parent=54 // pred_check
              _
            $region57: #{_lambda_.12} parent=54 // pred_check_branch
              %247 = sbr.rel (0) target = $region59
            $region58: #{_lambda_.12} parent=54 // pred_region
              loop: start=0, step=1, limit=1
              $region60: #{_lambda_.12} parent=58 // loop_pre_header
                _
              $region61: #{_lambda_.12} parent=58 // loop_header
                %s249 = sphi 0, %s253
                %p250 = scmp.ge.s32.totalorder %s249, 1
                %s254 = sphi %s243, %s243
                %s255 = sphi %s238, %s238
              $region62: #{_lambda_.12} parent=58 // loop_header_branch
                %252 = sbr.rel (%p250) target = $region66
              $region63: #{_lambda_.12} parent=58 // loop_body
                %v256 = vld [vmem:[%s254] sm:$0xff]
                %257 = vst [vmem:[%s255] sm:$0xff] %v256
                %v258 = vld [vmem:[%s254 + $0x8] sm:$0xff]
                %259 = vst [vmem:[%s255 + $0x8] sm:$0xff] %v258
                %v260 = vld [vmem:[%s254 + $0x10] sm:$0xff]
                %261 = vst [vmem:[%s255 + $0x10] sm:$0xff] %v260
                %v262 = vld [vmem:[%s254 + $0x18] sm:$0xff]
                %263 = vst [vmem:[%s255 + $0x18] sm:$0xff] %v262
                %v264 = vld [vmem:[%s254 + $0x40] sm:$0xff]
                %265 = vst [vmem:[%s255 + $0x20] sm:$0xff] %v264
                %v266 = vld [vmem:[%s254 + $0x48] sm:$0xff]
                %267 = vst [vmem:[%s255 + $0x28] sm:$0xff] %v266
                %v268 = vld [vmem:[%s254 + $0x50] sm:$0xff]
                %269 = vst [vmem:[%s255 + $0x30] sm:$0xff] %v268
                %v270 = vld [vmem:[%s254 + $0x58] sm:$0xff]
                %271 = vst [vmem:[%s255 + $0x38] sm:$0xff] %v270
                %v272 = vld [vmem:[%s254 + $0x80] sm:$0xff]
                %273 = vst [vmem:[%s255 + $0x40] sm:$0xff] %v272
                %v274 = vld [vmem:[%s254 + $0x88] sm:$0xff]
                %275 = vst [vmem:[%s255 + $0x48] sm:$0xff] %v274
                %v276 = vld [vmem:[%s254 + $0x90] sm:$0xff]
                %277 = vst [vmem:[%s255 + $0x50] sm:$0xff] %v276
                %v278 = vld [vmem:[%s254 + $0x98] sm:$0xff]
                %279 = vst [vmem:[%s255 + $0x58] sm:$0xff] %v278
                %v280 = vld [vmem:[%s254 + $0xc0] sm:$0xff]
                %281 = vst [vmem:[%s255 + $0x60] sm:$0xff] %v280
                %v282 = vld [vmem:[%s254 + $0xc8] sm:$0xff]
                %283 = vst [vmem:[%s255 + $0x68] sm:$0xff] %v282
                %v284 = vld [vmem:[%s254 + $0xd0] sm:$0xff]
                %285 = vst [vmem:[%s255 + $0x70] sm:$0xff] %v284
                %v286 = vld [vmem:[%s254 + $0xd8] sm:$0xff]
                %287 = vst [vmem:[%s255 + $0x78] sm:$0xff] %v286
              $region64: #{_lambda_.12} parent=58 // loop_footer
                %s253 = sadd.s32 1, %s249
              $region65: #{_lambda_.12} parent=58 // loop_footer_branch
                %248 = sbr.rel target = $region61
              $region66: #{_lambda_.12} parent=58 // loop_exit
                _
            $region59: #{_lambda_.12} parent=54 // pred_fallthru
              _
            // Predicated region
            $region67: #{_lambda_.12} parent=54 // pred_check
              _
            $region68: #{_lambda_.12} parent=54 // pred_check_branch
              %289 = sbr.rel target = $region70
            $region69: #{_lambda_.12} parent=54 // pred_region
              _
            $region70: #{_lambda_.12} parent=54 // pred_fallthru
              _
          $region55: #{_lambda_.12} parent=50 // pred_fallthru
            _
          %290 = vnop
        $region51: #{_lambda_.12} parent=23 // pred_fallthru
          _
      $region24: #{_lambda_.12} parent=5 // pred_fallthru
        _
      %p291 = scmp.le.s32.totalorder 1, %s10
      %p292 = scmp.lt.s32.totalorder %s10, 5
      %p293 = pnand %p291, %p292
      %p294 = pneg %p293
      // Predicated region
      $region71: #{_lambda_.12} parent=5 // pred_check
        _
      $region72: #{_lambda_.12} parent=5 // pred_check_branch
        %296 = sbr.rel (%p293) target = $region74
      $region73: #{_lambda_.12} parent=5 // pred_region
        %s297 = ssub.s32 %s10, 1
        %s298 = sand.u32 %s37, 1
        %s299 = sand.u32 %s37, 1
        %s300 = smul.addr %s299, 128
        %s301 = scalar_lea.vmem [#allocation2], %s300
        // Predicated region
        $region75: #{_lambda_.12} parent=73 // pred_check
          %p302 = pneg %p50
        $region76: #{_lambda_.12} parent=73 // pred_check_branch
          %304 = sbr.rel (%p302) target = $region78
        $region77: #{_lambda_.12} parent=73 // pred_region
          _
        $region78: #{_lambda_.12} parent=73 // pred_fallthru
          _
        %s305 = sand.u32 %s107, 1
        %s306 = sand.u32 %s107, 1
        %s307 = smul.addr %s306, 128
        %s308 = scalar_lea.vmem [#allocation3], %s307
        // Predicated region
        $region79: #{_lambda_.12} parent=73 // pred_check
          %p309 = pneg %p120
        $region80: #{_lambda_.12} parent=73 // pred_check_branch
          %311 = sbr.rel (%p309) target = $region82
        $region81: #{_lambda_.12} parent=73 // pred_region
          _
        $region82: #{_lambda_.12} parent=73 // pred_fallthru
          _
        %s312 = sand.u32 %s37, 1
        %s313 = sand.u32 %s37, 1
        %s314 = smul.addr %s313, 128
        %s315 = scalar_lea.vmem [#allocation2], %s314
        %p316 = pneg %p50
        %p317 = pneg %p47
        %p318 = pneg %p71
        %p319 = pneg %p68
        %p320 = pneg %p92
        %p321 = pneg %p89
        %s322 = sand.u32 %s107, 1
        %s323 = sand.u32 %s107, 1
        %s324 = smul.addr %s323, 128
        %s325 = scalar_lea.vmem [#allocation3], %s324
        %p326 = pneg %p120
        %p327 = pneg %p117
        %p328 = pneg %p148
        %p329 = pneg %p145
        %s330 = sand.u32 %s135, 1
        %s331 = sand.u32 %s135, 1
        %s332 = smul.addr %s331, 128
        %s333 = scalar_lea.vmem [#allocation4], %s332
        %s334 = smul.u32 4, %s20
        %s335 = smul.u32 4, %s20
        %s336 = smul.u32 4, %s20
        %v338 = vld [vmem:[%s301] sm:$0xff]
        %v339 = vld [vmem:[%s301 + $0x8] sm:$0xff]
        %v340 = vld [vmem:[%s301 + $0x10] sm:$0xff]
        %v341 = vld [vmem:[%s301 + $0x18] sm:$0xff]
        %v342 = vld [vmem:[%s301 + $0x20] sm:$0xff]
        %v343 = vld [vmem:[%s301 + $0x28] sm:$0xff]
        %v344 = vld [vmem:[%s301 + $0x30] sm:$0xff]
        %v345 = vld [vmem:[%s301 + $0x38] sm:$0xff]
        %v346 = vld [vmem:[%s301 + $0x40] sm:$0xff]
        %v347 = vld [vmem:[%s301 + $0x48] sm:$0xff]
        %v348 = vld [vmem:[%s301 + $0x50] sm:$0xff]
        %v349 = vld [vmem:[%s301 + $0x58] sm:$0xff]
        %v350 = vld [vmem:[%s301 + $0x60] sm:$0xff]
        %v351 = vld [vmem:[%s301 + $0x68] sm:$0xff]
        %v352 = vld [vmem:[%s301 + $0x70] sm:$0xff]
        %v353 = vld [vmem:[%s301 + $0x78] sm:$0xff]
        %v354 = vpack.c.bf16 %v342, %v338
        %v355 = vpack.c.bf16 %v343, %v339
        %v356 = vpack.c.bf16 %v344, %v340
        %v357 = vpack.c.bf16 %v345, %v341
        %v358 = vpack.c.bf16 %v350, %v346
        %v359 = vpack.c.bf16 %v351, %v347
        %v360 = vpack.c.bf16 %v352, %v348
        %v361 = vpack.c.bf16 %v353, %v349
        %v362 = vld [vmem:[%s1] sm:$0xff]
        %v363 = vld [vmem:[%s1 + $0x8] sm:$0xff]
        %v364 = vld [vmem:[%s1 + $0x10] sm:$0xff]
        %v365 = vld [vmem:[%s1 + $0x18] sm:$0xff]
        %v366 = vpack.c.bf16 %v363, %v362
        %v367 = vpack.c.bf16 %v365, %v364
        %v368 = vld [vmem:[%s2] sm:$0xff]
        %v369 = vld [vmem:[%s2 + $0x8] sm:$0xff]
        %v370 = vld [vmem:[%s2 + $0x10] sm:$0xff]
        %v371 = vld [vmem:[%s2 + $0x18] sm:$0xff]
        %373 = vset.pattern.permute.xlu0 0
        %374 = vperm.xlu0 %373, %v368
        %v375 = vpop.permute.xlu0 %374
        %378 = vset.pattern.permute.xlu0 0
        %379 = vperm.xlu0 %378, %v369
        %v380 = vpop.permute.xlu0 %379
        %383 = vset.pattern.permute.xlu0 0
        %384 = vperm.xlu0 %383, %v370
        %v385 = vpop.permute.xlu0 %384
        %388 = vset.pattern.permute.xlu0 0
        %389 = vperm.xlu0 %388, %v371
        %v390 = vpop.permute.xlu0 %389
        %vm392 = vcmask 261120
        %v394 = vsel %vm392, %v366, 0
        %v397 = vsel %vm392, %v367, 0
        %399 = vmatprep.subr.bf16.mxu0 %v355
        %400 = vmatpush1.bf16.msra.mxu0 %v354
        %401 = vmatprep.subr.bf16.mxu0 %v359
        %402 = vmatpush1.bf16.msra.mxu0 %v358
        %403 = vmatprep.subr.bf16.mxu0 0
        %404 = vmatpush1.bf16.msra.mxu0 0
        %405 = vmatprep.subr.bf16.mxu0 0
        %406 = vmatpush1.bf16.msra.mxu0 0
        %407 = vmatprep.subr.bf16.mxu0 0
        %408 = vmatpush1.bf16.msra.mxu0 0
        %409 = vmatprep.subr.bf16.mxu0 0
        %410 = vmatpush1.bf16.msra.mxu0 0
        %411 = vmatprep.subr.bf16.mxu0 0
        %412 = vmatpush1.bf16.msra.mxu0 0
        %413 = vmatprep.subr.bf16.mxu0 0
        %414 = vmatpush1.bf16.msra.mxu0 0
        %415 = vmatprep.subr.bf16.mxu0 0
        %416 = vmatpush1.bf16.msra.mxu0 0
        %417 = vmatprep.subr.bf16.mxu0 0
        %418 = vmatpush1.bf16.msra.mxu0 0
        %419 = vmatprep.subr.bf16.mxu0 0
        %420 = vmatpush1.bf16.msra.mxu0 0
        %421 = vmatprep.subr.bf16.mxu0 0
        %422 = vmatpush1.bf16.msra.mxu0 0
        %423 = vmatprep.subr.bf16.mxu0 0
        %424 = vmatpush1.bf16.msra.mxu0 0
        %425 = vmatprep.subr.bf16.mxu0 0
        %426 = vmatpush1.bf16.msra.mxu0 0
        %427 = vmatprep.subr.bf16.mxu0 0
        %428 = vmatpush1.bf16.msra.mxu0 0
        %429 = vmatprep.subr.bf16.mxu0 0
        %430 = vmatpush1.bf16.msra.mxu0 0
        %431 = vmatprep.mubr.bf16.mxu0 0
        %432 = vmatmul.mubr.bf16.gmra.mrb[0].mxu0 %v394
        %v433 = vpop.f32.mrb[0].mxu0
        %v434 = vadd.f32 %v375, %v433
        %v435 = vpop.f32.mrb[0].mxu0
        %v436 = vadd.f32 %v375, %v435
        %v437 = vpop.f32.mrb[0].mxu0
        %v438 = vadd.f32 %v380, %v437
        %v439 = vpop.f32.mrb[0].mxu0
        %v440 = vadd.f32 %v380, %v439
        %441 = vmatprep.mubr.bf16.mxu0 0
        %442 = vmatmul.mubr.bf16.gmra.mrb[0].mxu0 %v397
        %v443 = vpop.f32.mrb[0].mxu0
        %v444 = vadd.f32 %v385, %v443
        %v445 = vpop.f32.mrb[0].mxu0
        %v446 = vadd.f32 %v385, %v445
        %v447 = vpop.f32.mrb[0].mxu0
        %v448 = vadd.f32 %v390, %v447
        %v449 = vpop.f32.mrb[0].mxu0
        %v450 = vadd.f32 %v390, %v449
        %451 = vdwg.mxu0
        %452 = vmatprep.subr.bf16.mxu0 %v357
        %453 = vmatpush1.bf16.msra.mxu0 %v356
        %454 = vmatprep.subr.bf16.mxu0 %v361
        %455 = vmatpush1.bf16.msra.mxu0 %v360
        %456 = vmatprep.subr.bf16.mxu0 0
        %457 = vmatpush1.bf16.msra.mxu0 0
        %458 = vmatprep.subr.bf16.mxu0 0
        %459 = vmatpush1.bf16.msra.mxu0 0
        %460 = vmatprep.subr.bf16.mxu0 0
        %461 = vmatpush1.bf16.msra.mxu0 0
        %462 = vmatprep.subr.bf16.mxu0 0
        %463 = vmatpush1.bf16.msra.mxu0 0
        %464 = vmatprep.subr.bf16.mxu0 0
        %465 = vmatpush1.bf16.msra.mxu0 0
        %466 = vmatprep.subr.bf16.mxu0 0
        %467 = vmatpush1.bf16.msra.mxu0 0
        %468 = vmatprep.subr.bf16.mxu0 0
        %469 = vmatpush1.bf16.msra.mxu0 0
        %470 = vmatprep.subr.bf16.mxu0 0
        %471 = vmatpush1.bf16.msra.mxu0 0
        %472 = vmatprep.subr.bf16.mxu0 0
        %473 = vmatpush1.bf16.msra.mxu0 0
        %474 = vmatprep.subr.bf16.mxu0 0
        %475 = vmatpush1.bf16.msra.mxu0 0
        %476 = vmatprep.subr.bf16.mxu0 0
        %477 = vmatpush1.bf16.msra.mxu0 0
        %478 = vmatprep.subr.bf16.mxu0 0
        %479 = vmatpush1.bf16.msra.mxu0 0
        %480 = vmatprep.subr.bf16.mxu0 0
        %481 = vmatpush1.bf16.msra.mxu0 0
        %482 = vmatprep.subr.bf16.mxu0 0
        %483 = vmatpush1.bf16.msra.mxu0 0
        %484 = vmatprep.mubr.bf16.mxu0 0
        %485 = vmatmul.mubr.bf16.gmra.mrb[0].mxu0 %v394
        %v486 = vpop.f32.mrb[0].mxu0
        %v487 = vadd.f32 %v375, %v486
        %v488 = vpop.f32.mrb[0].mxu0
        %v489 = vadd.f32 %v375, %v488
        %v490 = vpop.f32.mrb[0].mxu0
        %v491 = vadd.f32 %v380, %v490
        %v492 = vpop.f32.mrb[0].mxu0
        %v493 = vadd.f32 %v380, %v492
        %494 = vmatprep.mubr.bf16.mxu0 0
        %495 = vmatmul.mubr.bf16.gmra.mrb[0].mxu0 %v397
        %v496 = vpop.f32.mrb[0].mxu0
        %v497 = vadd.f32 %v385, %v496
        %v498 = vpop.f32.mrb[0].mxu0
        %v499 = vadd.f32 %v385, %v498
        %v500 = vpop.f32.mrb[0].mxu0
        %v501 = vadd.f32 %v390, %v500
        %v502 = vpop.f32.mrb[0].mxu0
        %v503 = vadd.f32 %v390, %v502
        %504 = vdwg.mxu0
        %v505 = vld [vmem:[%s308] sm:$0xff]
        %v506 = vld [vmem:[%s308 + $0x8] sm:$0xff]
        %v507 = vld [vmem:[%s308 + $0x10] sm:$0xff]
        %v508 = vld [vmem:[%s308 + $0x18] sm:$0xff]
        %v509 = vld [vmem:[%s308 + $0x20] sm:$0xff]
        %v510 = vld [vmem:[%s308 + $0x28] sm:$0xff]
        %v511 = vld [vmem:[%s308 + $0x30] sm:$0xff]
        %v512 = vld [vmem:[%s308 + $0x38] sm:$0xff]
        %v513 = vld [vmem:[%s308 + $0x40] sm:$0xff]
        %v514 = vld [vmem:[%s308 + $0x48] sm:$0xff]
        %v515 = vld [vmem:[%s308 + $0x50] sm:$0xff]
        %v516 = vld [vmem:[%s308 + $0x58] sm:$0xff]
        %v517 = vld [vmem:[%s308 + $0x60] sm:$0xff]
        %v518 = vld [vmem:[%s308 + $0x68] sm:$0xff]
        %v519 = vld [vmem:[%s308 + $0x70] sm:$0xff]
        %v520 = vld [vmem:[%s308 + $0x78] sm:$0xff]
        %v521 = vadd.f32 %v434, %v505
        %v522 = vadd.f32 %v436, %v506
        %v523 = vadd.f32 %v487, %v507
        %v524 = vadd.f32 %v489, %v508
        %v525 = vadd.f32 %v438, %v509
        %v526 = vadd.f32 %v440, %v510
        %v527 = vadd.f32 %v491, %v511
        %v528 = vadd.f32 %v493, %v512
        %v529 = vadd.f32 %v444, %v513
        %v530 = vadd.f32 %v446, %v514
        %v531 = vadd.f32 %v497, %v515
        %v532 = vadd.f32 %v499, %v516
        %v533 = vadd.f32 %v448, %v517
        %v534 = vadd.f32 %v450, %v518
        %v535 = vadd.f32 %v501, %v519
        %v536 = vadd.f32 %v503, %v520
        %v537 = vmul.f32 %v521, 0.5
        %v538 = vmul.f32 %v522, 0.5
        %v539 = vmul.f32 %v523, 0.5
        %v540 = vmul.f32 %v524, 0.5
        %v541 = vmul.f32 %v525, 0.5
        %v542 = vmul.f32 %v526, 0.5
        %v543 = vmul.f32 %v527, 0.5
        %v544 = vmul.f32 %v528, 0.5
        %v545 = vmul.f32 %v529, 0.5
        %v546 = vmul.f32 %v530, 0.5
        %v547 = vmul.f32 %v531, 0.5
        %v548 = vmul.f32 %v532, 0.5
        %v549 = vmul.f32 %v533, 0.5
        %v550 = vmul.f32 %v534, 0.5
        %v551 = vmul.f32 %v535, 0.5
        %v552 = vmul.f32 %v536, 0.5
        %v553 = vmul.f32 %v521, 0.044715
        %v554 = vmul.f32 %v522, 0.044715
        %v555 = vmul.f32 %v523, 0.044715
        %v556 = vmul.f32 %v524, 0.044715
        %v557 = vmul.f32 %v525, 0.044715
        %v558 = vmul.f32 %v526, 0.044715
        %v559 = vmul.f32 %v527, 0.044715
        %v560 = vmul.f32 %v528, 0.044715
        %v561 = vmul.f32 %v529, 0.044715
        %v562 = vmul.f32 %v530, 0.044715
        %v563 = vmul.f32 %v531, 0.044715
        %v564 = vmul.f32 %v532, 0.044715
        %v565 = vmul.f32 %v533, 0.044715
        %v566 = vmul.f32 %v534, 0.044715
        %v567 = vmul.f32 %v535, 0.044715
        %v568 = vmul.f32 %v536, 0.044715
        %v569 = vmul.f32 %v553, %v521
        %v570 = vmul.f32 %v554, %v522
        %v571 = vmul.f32 %v555, %v523
        %v572 = vmul.f32 %v556, %v524
        %v573 = vmul.f32 %v557, %v525
        %v574 = vmul.f32 %v558, %v526
        %v575 = vmul.f32 %v559, %v527
        %v576 = vmul.f32 %v560, %v528
        %v577 = vmul.f32 %v561, %v529
        %v578 = vmul.f32 %v562, %v530
        %v579 = vmul.f32 %v563, %v531
        %v580 = vmul.f32 %v564, %v532
        %v581 = vmul.f32 %v565, %v533
        %v582 = vmul.f32 %v566, %v534
        %v583 = vmul.f32 %v567, %v535
        %v584 = vmul.f32 %v568, %v536
        %v585 = vmul.f32 %v569, %v521
        %v586 = vmul.f32 %v570, %v522
        %v587 = vmul.f32 %v571, %v523
        %v588 = vmul.f32 %v572, %v524
        %v589 = vmul.f32 %v573, %v525
        %v590 = vmul.f32 %v574, %v526
        %v591 = vmul.f32 %v575, %v527
        %v592 = vmul.f32 %v576, %v528
        %v593 = vmul.f32 %v577, %v529
        %v594 = vmul.f32 %v578, %v530
        %v595 = vmul.f32 %v579, %v531
        %v596 = vmul.f32 %v580, %v532
        %v597 = vmul.f32 %v581, %v533
        %v598 = vmul.f32 %v582, %v534
        %v599 = vmul.f32 %v583, %v535
        %v600 = vmul.f32 %v584, %v536
        %v601 = vadd.f32 %v521, %v585
        %v602 = vadd.f32 %v522, %v586
        %v603 = vadd.f32 %v523, %v587
        %v604 = vadd.f32 %v524, %v588
        %v605 = vadd.f32 %v525, %v589
        %v606 = vadd.f32 %v526, %v590
        %v607 = vadd.f32 %v527, %v591
        %v608 = vadd.f32 %v528, %v592
        %v609 = vadd.f32 %v529, %v593
        %v610 = vadd.f32 %v530, %v594
        %v611 = vadd.f32 %v531, %v595
        %v612 = vadd.f32 %v532, %v596
        %v613 = vadd.f32 %v533, %v597
        %v614 = vadd.f32 %v534, %v598
        %v615 = vadd.f32 %v535, %v599
        %v616 = vadd.f32 %v536, %v600
        %v617 = vmul.f32 %v601, 0.7978846
        %v618 = vmul.f32 %v602, 0.7978846
        %v619 = vmul.f32 %v603, 0.7978846
        %v620 = vmul.f32 %v604, 0.7978846
        %v621 = vmul.f32 %v605, 0.7978846
        %v622 = vmul.f32 %v606, 0.7978846
        %v623 = vmul.f32 %v607, 0.7978846
        %v624 = vmul.f32 %v608, 0.7978846
        %v625 = vmul.f32 %v609, 0.7978846
        %v626 = vmul.f32 %v610, 0.7978846
        %v627 = vmul.f32 %v611, 0.7978846
        %v628 = vmul.f32 %v612, 0.7978846
        %v629 = vmul.f32 %v613, 0.7978846
        %v630 = vmul.f32 %v614, 0.7978846
        %v631 = vmul.f32 %v615, 0.7978846
        %v632 = vmul.f32 %v616, 0.7978846
        %v633 = vtanh.pop %v617
        %v634 = vtanh.pop %v618
        %v635 = vtanh.pop %v619
        %v636 = vtanh.pop %v620
        %v637 = vtanh.pop %v621
        %v638 = vtanh.pop %v622
        %v639 = vtanh.pop %v623
        %v640 = vtanh.pop %v624
        %v641 = vtanh.pop %v625
        %v642 = vtanh.pop %v626
        %v643 = vtanh.pop %v627
        %v644 = vtanh.pop %v628
        %v645 = vtanh.pop %v629
        %v646 = vtanh.pop %v630
        %v647 = vtanh.pop %v631
        %v648 = vtanh.pop %v632
        %v649 = vadd.f32 %v633, 1.0
        %v650 = vadd.f32 %v634, 1.0
        %v651 = vadd.f32 %v635, 1.0
        %v652 = vadd.f32 %v636, 1.0
        %v653 = vadd.f32 %v637, 1.0
        %v654 = vadd.f32 %v638, 1.0
        %v655 = vadd.f32 %v639, 1.0
        %v656 = vadd.f32 %v640, 1.0
        %v657 = vadd.f32 %v641, 1.0
        %v658 = vadd.f32 %v642, 1.0
        %v659 = vadd.f32 %v643, 1.0
        %v660 = vadd.f32 %v644, 1.0
        %v661 = vadd.f32 %v645, 1.0
        %v662 = vadd.f32 %v646, 1.0
        %v663 = vadd.f32 %v647, 1.0
        %v664 = vadd.f32 %v648, 1.0
        %v665 = vmul.f32 %v537, %v649
        %v666 = vmul.f32 %v538, %v650
        %v667 = vmul.f32 %v539, %v651
        %v668 = vmul.f32 %v540, %v652
        %v669 = vmul.f32 %v541, %v653
        %v670 = vmul.f32 %v542, %v654
        %v671 = vmul.f32 %v543, %v655
        %v672 = vmul.f32 %v544, %v656
        %v673 = vmul.f32 %v545, %v657
        %v674 = vmul.f32 %v546, %v658
        %v675 = vmul.f32 %v547, %v659
        %v676 = vmul.f32 %v548, %v660
        %v677 = vmul.f32 %v549, %v661
        %v678 = vmul.f32 %v550, %v662
        %v679 = vmul.f32 %v551, %v663
        %v680 = vmul.f32 %v552, %v664
        %681 = vst [vmem:[%s333] sm:$0xff] %v665
        %682 = vst [vmem:[%s333 + $0x8] sm:$0xff] %v666
        %683 = vst [vmem:[%s333 + $0x10] sm:$0xff] %v667
        %684 = vst [vmem:[%s333 + $0x18] sm:$0xff] %v668
        %685 = vst [vmem:[%s333 + $0x20] sm:$0xff] %v669
        %686 = vst [vmem:[%s333 + $0x28] sm:$0xff] %v670
        %687 = vst [vmem:[%s333 + $0x30] sm:$0xff] %v671
        %688 = vst [vmem:[%s333 + $0x38] sm:$0xff] %v672
        %689 = vst [vmem:[%s333 + $0x40] sm:$0xff] %v673
        %690 = vst [vmem:[%s333 + $0x48] sm:$0xff] %v674
        %691 = vst [vmem:[%s333 + $0x50] sm:$0xff] %v675
        %692 = vst [vmem:[%s333 + $0x58] sm:$0xff] %v676
        %693 = vst [vmem:[%s333 + $0x60] sm:$0xff] %v677
        %694 = vst [vmem:[%s333 + $0x68] sm:$0xff] %v678
        %695 = vst [vmem:[%s333 + $0x70] sm:$0xff] %v679
        %696 = vst [vmem:[%s333 + $0x78] sm:$0xff] %v680
        %s697 = sand.u32 %s135, 1
        %s698 = sand.u32 %s135, 1
        %s699 = smul.addr %s698, 128
        %s700 = scalar_lea.vmem [#allocation4], %s699
        // Predicated region
        $region83: #{_lambda_.12} parent=73 // pred_check
          %p701 = pneg %p145
        $region84: #{_lambda_.12} parent=73 // pred_check_branch
          %703 = sbr.rel (%p701) target = $region86
        $region85: #{_lambda_.12} parent=73 // pred_region
          %s704 = smul.u32 4, %s20
          %s705 = smul.addr %s19, 32
          %s706 = sadd.s32 %s704, %s705
          %s707 = smul.addr %s706, 8
          %s708 = scalar_lea.vmem %s4, %s707
          // Predicated region
          $region87: #{_lambda_.12} parent=85 // pred_check
            _
          $region88: #{_lambda_.12} parent=85 // pred_check_branch
            %710 = sbr.rel (0) target = $region90
          $region89: #{_lambda_.12} parent=85 // pred_region
            // Predicated region
            $region91: #{_lambda_.12} parent=89 // pred_check
              _
            $region92: #{_lambda_.12} parent=89 // pred_check_branch
              %712 = sbr.rel (0) target = $region94
            $region93: #{_lambda_.12} parent=89 // pred_region
              loop: start=0, step=1, limit=1
              $region95: #{_lambda_.12} parent=93 // loop_pre_header
                _
              $region96: #{_lambda_.12} parent=93 // loop_header
                %s714 = sphi 0, %s718
                %p715 = scmp.ge.s32.totalorder %s714, 1
                %s719 = sphi %s700, %s700
                %s720 = sphi %s708, %s708
              $region97: #{_lambda_.12} parent=93 // loop_header_branch
                %717 = sbr.rel (%p715) target = $region101
              $region98: #{_lambda_.12} parent=93 // loop_body
                %v721 = vld [vmem:[%s719] sm:$0xff]
                %722 = vst [vmem:[%s720] sm:$0xff] %v721
                %v723 = vld [vmem:[%s719 + $0x8] sm:$0xff]
                %724 = vst [vmem:[%s720 + $0x8] sm:$0xff] %v723
                %v725 = vld [vmem:[%s719 + $0x10] sm:$0xff]
                %726 = vst [vmem:[%s720 + $0x10] sm:$0xff] %v725
                %v727 = vld [vmem:[%s719 + $0x18] sm:$0xff]
                %728 = vst [vmem:[%s720 + $0x18] sm:$0xff] %v727
                %v729 = vld [vmem:[%s719 + $0x20] sm:$0xff]
                %730 = vst [vmem:[%s720 + $0x40] sm:$0xff] %v729
                %v731 = vld [vmem:[%s719 + $0x28] sm:$0xff]
                %732 = vst [vmem:[%s720 + $0x48] sm:$0xff] %v731
                %v733 = vld [vmem:[%s719 + $0x30] sm:$0xff]
                %734 = vst [vmem:[%s720 + $0x50] sm:$0xff] %v733
                %v735 = vld [vmem:[%s719 + $0x38] sm:$0xff]
                %736 = vst [vmem:[%s720 + $0x58] sm:$0xff] %v735
                %v737 = vld [vmem:[%s719 + $0x40] sm:$0xff]
                %738 = vst [vmem:[%s720 + $0x80] sm:$0xff] %v737
                %v739 = vld [vmem:[%s719 + $0x48] sm:$0xff]
                %740 = vst [vmem:[%s720 + $0x88] sm:$0xff] %v739
                %v741 = vld [vmem:[%s719 + $0x50] sm:$0xff]
                %742 = vst [vmem:[%s720 + $0x90] sm:$0xff] %v741
                %v743 = vld [vmem:[%s719 + $0x58] sm:$0xff]
                %744 = vst [vmem:[%s720 + $0x98] sm:$0xff] %v743
                %v745 = vld [vmem:[%s719 + $0x60] sm:$0xff]
                %746 = vst [vmem:[%s720 + $0xc0] sm:$0xff] %v745
                %v747 = vld [vmem:[%s719 + $0x68] sm:$0xff]
                %748 = vst [vmem:[%s720 + $0xc8] sm:$0xff] %v747
                %v749 = vld [vmem:[%s719 + $0x70] sm:$0xff]
                %750 = vst [vmem:[%s720 + $0xd0] sm:$0xff] %v749
                %v751 = vld [vmem:[%s719 + $0x78] sm:$0xff]
                %752 = vst [vmem:[%s720 + $0xd8] sm:$0xff] %v751
              $region99: #{_lambda_.12} parent=93 // loop_footer
                %s718 = sadd.s32 1, %s714
              $region100: #{_lambda_.12} parent=93 // loop_footer_branch
                %713 = sbr.rel target = $region96
              $region101: #{_lambda_.12} parent=93 // loop_exit
                _
            $region94: #{_lambda_.12} parent=89 // pred_fallthru
              _
            // Predicated region
            $region102: #{_lambda_.12} parent=89 // pred_check
              _
            $region103: #{_lambda_.12} parent=89 // pred_check_branch
              %754 = sbr.rel target = $region105
            $region104: #{_lambda_.12} parent=89 // pred_region
              _
            $region105: #{_lambda_.12} parent=89 // pred_fallthru
              _
          $region90: #{_lambda_.12} parent=85 // pred_fallthru
            _
          %755 = vnop
        $region86: #{_lambda_.12} parent=73 // pred_fallthru
          _
      $region74: #{_lambda_.12} parent=5 // pred_fallthru
        _
      %p756 = scmp.le.s32.totalorder 2, %s10
      // Predicated region
      $region106: #{_lambda_.12} parent=5 // pred_check
        %p757 = pneg %p756
      $region107: #{_lambda_.12} parent=5 // pred_check_branch
        %759 = sbr.rel (%p757) target = $region109
      $region108: #{_lambda_.12} parent=5 // pred_region
        %s760 = ssub.s32 %s10, 2
        // Predicated region
        $region110: #{_lambda_.12} parent=108 // pred_check
          %p761 = pneg %p151
        $region111: #{_lambda_.12} parent=108 // pred_check_branch
          %763 = sbr.rel (%p761) target = $region113
        $region112: #{_lambda_.12} parent=108 // pred_region
          %s764 = sand.u32 %s136, 1
          %s765 = sand.u32 %s136, 1
          %s766 = smul.addr %s765, 128
          %s767 = scalar_lea.vmem [#allocation4], %s766
        $region113: #{_lambda_.12} parent=108 // pred_fallthru
          _
      $region109: #{_lambda_.12} parent=5 // pred_fallthru
        _
    $region6: #{_lambda_.12} parent=1 // loop_footer
      %s14 = sadd.s32 1, %s10
    $region7: #{_lambda_.12} parent=1 // loop_footer_branch
      %9 = sbr.rel target = $region3
    $region8: #{_lambda_.12} parent=1 // loop_exit
      _

// kernel: _lambda_.18
$region0: #{_lambda_.18}
  #allocation0 [shape = 'u32[]', space=smem, size = 0x4, offset = 0x4, fixed_abs, tag = 'smem constant byte address 0x4 - core index']
  #allocation1 [shape = 'u32[144,128]{1,0:T(1,128)}', space=vmem, size = 0x12000, scoped, tag = 'internal scratch']
  %s0 = inlined_call_operand.vmem [shape: f32[2,32,1024], index: 0, kind: input, shape index: {}]
  %s1 = inlined_call_operand.vmem [shape: f32[32,32], index: 1, kind: input, shape index: {}]
  %s2 = inlined_call_operand.vmem [shape: f32[32,1], index: 2, kind: input, shape index: {}]
  %s3 = inlined_call_operand.vmem [shape: f32[2,32,1024], index: 3, kind: input, shape index: {}]
  %s4 = inlined_call_operand.vmem [shape: f32[2,32,1024], index: 4, kind: output, shape index: {}]
  %s5 = sld [smem:[#allocation0]]
  $region114: #{_lambda_.18} parent=0
    _
  %s7 = ssub.s32 1, %s5
  %s8 = scalar_select 0, %s7, %s5
  $region1: #{_lambda_.18} parent=0
    #allocation2 [shape = 'u8[131072]{0}', space=vmem, size = 0x20000, scoped, tag = 'input window, operand 0']
    #allocation3 [shape = 'u8[131072]{0}', space=vmem, size = 0x20000, scoped, tag = 'input window, operand 3']
    #allocation4 [shape = 'u8[131072]{0}', space=vmem, size = 0x20000, scoped, tag = 'output window, operand 0']
    loop: start=0, step=1, limit=6
    $region2: #{_lambda_.18} parent=1 // loop_pre_header
      _
    $region3: #{_lambda_.18} parent=1 // loop_header
      %s10 = sphi 0, %s14
      %p11 = scmp.ge.s32.totalorder %s10, 6
      %s17 = sphi 0, %s29
      %s18 = sphi 0, %s25
      %s19 = sphi 0, %s17
      %s20 = sphi 0, %s18
      %s21 = sphi 0, %s19
      %s22 = sphi 0, %s20
      %s34 = sphi 0, %s36
      %s37 = sphi 0, %s34
      %s38 = sphi 0, %s37
      %s54 = sphi 0, %s38
      %s58 = sphi 0, %s58
      %s60 = sphi 0, %s58
      %s61 = sphi 0, %s60
      %s75 = sphi 0, %s61
      %s79 = sphi 0, %s79
      %s81 = sphi 0, %s79
      %s82 = sphi 0, %s81
      %s96 = sphi 0, %s82
      %s104 = sphi 0, %s106
      %s107 = sphi 0, %s104
      %s108 = sphi 0, %s107
      %s124 = sphi 0, %s108
      %s132 = sphi 0, %s134
      %s135 = sphi 0, %s132
      %s136 = sphi 0, %s135
      %s152 = sphi 0, %s136
    $region4: #{_lambda_.18} parent=1 // loop_header_branch
      %13 = sbr.rel (%p11) target = $region8
    $region5: #{_lambda_.18} parent=1 // loop_body
      %s15 = ssub.s32 %s10, 1
      %s16 = ssub.s32 %s10, 2
      %s23 = sadd.s32 1, %s18
      %p24 = scmp.ge.s32.totalorder %s23, 2
      %s25 = scalar_select %p24, 0, %s23
      %s26 = sadd.s32 1, %s17
      %s27 = scalar_select %p24, %s26, %s17
      %p28 = scmp.ge.s32.totalorder %s27, 2
      %s29 = scalar_select %p28, 0, %s27
      %s30 = ssub.s32 %s17, %s29
      %s31 = ssub.s32 %s18, %s25
      %s32 = sor.u32 %s30, %s31
      %p33 = scmp.eq.s32.totalorder %s32, 0
      %s35 = sadd.s32 %s34, 1
      %s36 = scalar_select %p33, %s34, %s35
      %p39 = pneg %p33
      %p40 = scmp.eq.s32.totalorder %s10, 3
      %p41 = por %p39, %p40
      %p42 = scmp.ne.s32.totalorder %s34, %s37
      %p43 = scmp.eq.s32.totalorder %s10, 0
      %p44 = por %p42, %p43
      %p45 = scmp.ne.s32.totalorder %s34, %s37
      %p46 = scmp.eq.s32.totalorder %s15, 3
      %p47 = por %p45, %p46
      %p48 = scmp.ne.s32.totalorder %s37, %s38
      %p49 = scmp.eq.s32.totalorder %s15, 0
      %p50 = por %p48, %p49
      %p51 = scmp.ne.s32.totalorder %s37, %s38
      %p52 = scmp.eq.s32.totalorder %s16, 3
      %p53 = por %p51, %p52
      %p55 = scmp.ne.s32.totalorder %s38, %s54
      %p56 = scmp.eq.s32.totalorder %s16, 0
      %p57 = por %p55, %p56
      %s59 = sadd.s32 %s58, 1
      %p62 = scmp.eq.s32.totalorder %s10, 3
      %p63 = scmp.ne.s32.totalorder %s58, %s60
      %p64 = scmp.eq.s32.totalorder %s10, 0
      %p65 = por %p63, %p64
      %p66 = scmp.ne.s32.totalorder %s58, %s60
      %p67 = scmp.eq.s32.totalorder %s15, 3
      %p68 = por %p66, %p67
      %p69 = scmp.ne.s32.totalorder %s60, %s61
      %p70 = scmp.eq.s32.totalorder %s15, 0
      %p71 = por %p69, %p70
      %p72 = scmp.ne.s32.totalorder %s60, %s61
      %p73 = scmp.eq.s32.totalorder %s16, 3
      %p74 = por %p72, %p73
      %p76 = scmp.ne.s32.totalorder %s61, %s75
      %p77 = scmp.eq.s32.totalorder %s16, 0
      %p78 = por %p76, %p77
      %s80 = sadd.s32 %s79, 1
      %p83 = scmp.eq.s32.totalorder %s10, 3
      %p84 = scmp.ne.s32.totalorder %s79, %s81
      %p85 = scmp.eq.s32.totalorder %s10, 0
      %p86 = por %p84, %p85
      %p87 = scmp.ne.s32.totalorder %s79, %s81
      %p88 = scmp.eq.s32.totalorder %s15, 3
      %p89 = por %p87, %p88
      %p90 = scmp.ne.s32.totalorder %s81, %s82
      %p91 = scmp.eq.s32.totalorder %s15, 0
      %p92 = por %p90, %p91
      %p93 = scmp.ne.s32.totalorder %s81, %s82
      %p94 = scmp.eq.s32.totalorder %s16, 3
      %p95 = por %p93, %p94
      %p97 = scmp.ne.s32.totalorder %s82, %s96
      %p98 = scmp.eq.s32.totalorder %s16, 0
      %p99 = por %p97, %p98
      %s100 = ssub.s32 %s17, %s29
      %s101 = ssub.s32 %s18, %s25
      %s102 = sor.u32 %s100, %s101
      %p103 = scmp.eq.s32.totalorder %s102, 0
      %s105 = sadd.s32 %s104, 1
      %s106 = scalar_select %p103, %s104, %s105
      %p109 = pneg %p103
      %p110 = scmp.eq.s32.totalorder %s10, 3
      %p111 = por %p109, %p110
      %p112 = scmp.ne.s32.totalorder %s104, %s107
      %p113 = scmp.eq.s32.totalorder %s10, 0
      %p114 = por %p112, %p113
      %p115 = scmp.ne.s32.totalorder %s104, %s107
      %p116 = scmp.eq.s32.totalorder %s15, 3
      %p117 = por %p115, %p116
      %p118 = scmp.ne.s32.totalorder %s107, %s108
      %p119 = scmp.eq.s32.totalorder %s15, 0
      %p120 = por %p118, %p119
      %p121 = scmp.ne.s32.totalorder %s107, %s108
      %p122 = scmp.eq.s32.totalorder %s16, 3
      %p123 = por %p121, %p122
      %p125 = scmp.ne.s32.totalorder %s108, %s124
      %p126 = scmp.eq.s32.totalorder %s16, 0
      %p127 = por %p125, %p126
      %s128 = ssub.s32 %s17, %s29
      %s129 = ssub.s32 %s18, %s25
      %s130 = sor.u32 %s128, %s129
      %p131 = scmp.eq.s32.totalorder %s130, 0
      %s133 = sadd.s32 %s132, 1
      %s134 = scalar_select %p131, %s132, %s133
      %p137 = pneg %p131
      %p138 = scmp.eq.s32.totalorder %s10, 3
      %p139 = por %p137, %p138
      %p140 = scmp.ne.s32.totalorder %s132, %s135
      %p141 = scmp.eq.s32.totalorder %s10, 0
      %p142 = por %p140, %p141
      %p143 = scmp.ne.s32.totalorder %s132, %s135
      %p144 = scmp.eq.s32.totalorder %s15, 3
      %p145 = por %p143, %p144
      %p146 = scmp.ne.s32.totalorder %s135, %s136
      %p147 = scmp.eq.s32.totalorder %s15, 0
      %p148 = por %p146, %p147
      %p149 = scmp.ne.s32.totalorder %s135, %s136
      %p150 = scmp.eq.s32.totalorder %s16, 3
      %p151 = por %p149, %p150
      %p153 = scmp.ne.s32.totalorder %s136, %s152
      %p154 = scmp.eq.s32.totalorder %s16, 0
      %p155 = por %p153, %p154
      %p156 = scmp.le.s32.totalorder 1, %s10
      %p157 = scmp.lt.s32.totalorder %s10, 5
      %p158 = pnand %p156, %p157
      %p159 = pneg %p158
      // Predicated region
      $region9: #{_lambda_.18} parent=5 // pred_check
        _
      $region10: #{_lambda_.18} parent=5 // pred_check_branch
        %161 = sbr.rel (%p158) target = $region12
      $region11: #{_lambda_.18} parent=5 // pred_region
        %s162 = ssub.s32 %s10, 1
        // Predicated region
        $region13: #{_lambda_.18} parent=11 // pred_check
          %p163 = pneg %p71
        $region14: #{_lambda_.18} parent=11 // pred_check_branch
          %165 = sbr.rel (%p163) target = $region16
        $region15: #{_lambda_.18} parent=11 // pred_region
          _
        $region16: #{_lambda_.18} parent=11 // pred_fallthru
          _
        // Predicated region
        $region17: #{_lambda_.18} parent=11 // pred_check
          %p166 = pneg %p92
        $region18: #{_lambda_.18} parent=11 // pred_check_branch
          %168 = sbr.rel (%p166) target = $region20
        $region19: #{_lambda_.18} parent=11 // pred_region
          _
        $region20: #{_lambda_.18} parent=11 // pred_fallthru
          _
      $region12: #{_lambda_.18} parent=5 // pred_fallthru
        _
      %p169 = scmp.lt.s32.totalorder %s10, 4
      // Predicated region
      $region21: #{_lambda_.18} parent=5 // pred_check
        %p170 = pneg %p169
      $region22: #{_lambda_.18} parent=5 // pred_check_branch
        %172 = sbr.rel (%p170) target = $region24
      $region23: #{_lambda_.18} parent=5 // pred_region
        // Predicated region
        $region25: #{_lambda_.18} parent=23 // pred_check
          %p173 = pneg %p44
        $region26: #{_lambda_.18} parent=23 // pred_check_branch
          %175 = sbr.rel (%p173) target = $region28
        $region27: #{_lambda_.18} parent=23 // pred_region
          %s176 = sand.u32 %s34, 1
          %s177 = sand.u32 %s34, 1
          %s178 = smul.addr %s177, 128
          %s179 = scalar_lea.vmem [#allocation2], %s178
          %s180 = smul.u32 4, %s18
          %s181 = smul.addr %s17, 32
          %s182 = sadd.s32 %s180, %s181
          %s183 = smul.addr %s182, 8
          %s184 = scalar_lea.vmem %s0, %s183
          // Predicated region
          $region29: #{_lambda_.18} parent=27 // pred_check
            _
          $region30: #{_lambda_.18} parent=27 // pred_check_branch
            %186 = sbr.rel (0) target = $region32
          $region31: #{_lambda_.18} parent=27 // pred_region
            // Predicated region
            $region33: #{_lambda_.18} parent=31 // pred_check
              _
            $region34: #{_lambda_.18} parent=31 // pred_check_branch
              %188 = sbr.rel (0) target = $region36
            $region35: #{_lambda_.18} parent=31 // pred_region
              loop: start=0, step=1, limit=1
              $region37: #{_lambda_.18} parent=35 // loop_pre_header
                _
              $region38: #{_lambda_.18} parent=35 // loop_header
                %s190 = sphi 0, %s194
                %p191 = scmp.ge.s32.totalorder %s190, 1
                %s195 = sphi %s184, %s184
                %s196 = sphi %s179, %s179
              $region39: #{_lambda_.18} parent=35 // loop_header_branch
                %193 = sbr.rel (%p191) target = $region43
              $region40: #{_lambda_.18} parent=35 // loop_body
                %v197 = vld [vmem:[%s195] sm:$0xff]
                %198 = vst [vmem:[%s196] sm:$0xff] %v197
                %v199 = vld [vmem:[%s195 + $0x8] sm:$0xff]
                %200 = vst [vmem:[%s196 + $0x8] sm:$0xff] %v199
                %v201 = vld [vmem:[%s195 + $0x10] sm:$0xff]
                %202 = vst [vmem:[%s196 + $0x10] sm:$0xff] %v201
                %v203 = vld [vmem:[%s195 + $0x18] sm:$0xff]
                %204 = vst [vmem:[%s196 + $0x18] sm:$0xff] %v203
                %v205 = vld [vmem:[%s195 + $0x40] sm:$0xff]
                %206 = vst [vmem:[%s196 + $0x20] sm:$0xff] %v205
                %v207 = vld [vmem:[%s195 + $0x48] sm:$0xff]
                %208 = vst [vmem:[%s196 + $0x28] sm:$0xff] %v207
                %v209 = vld [vmem:[%s195 + $0x50] sm:$0xff]
                %210 = vst [vmem:[%s196 + $0x30] sm:$0xff] %v209
                %v211 = vld [vmem:[%s195 + $0x58] sm:$0xff]
                %212 = vst [vmem:[%s196 + $0x38] sm:$0xff] %v211
                %v213 = vld [vmem:[%s195 + $0x80] sm:$0xff]
                %214 = vst [vmem:[%s196 + $0x40] sm:$0xff] %v213
                %v215 = vld [vmem:[%s195 + $0x88] sm:$0xff]
                %216 = vst [vmem:[%s196 + $0x48] sm:$0xff] %v215
                %v217 = vld [vmem:[%s195 + $0x90] sm:$0xff]
                %218 = vst [vmem:[%s196 + $0x50] sm:$0xff] %v217
                %v219 = vld [vmem:[%s195 + $0x98] sm:$0xff]
                %220 = vst [vmem:[%s196 + $0x58] sm:$0xff] %v219
                %v221 = vld [vmem:[%s195 + $0xc0] sm:$0xff]
                %222 = vst [vmem:[%s196 + $0x60] sm:$0xff] %v221
                %v223 = vld [vmem:[%s195 + $0xc8] sm:$0xff]
                %224 = vst [vmem:[%s196 + $0x68] sm:$0xff] %v223
                %v225 = vld [vmem:[%s195 + $0xd0] sm:$0xff]
                %226 = vst [vmem:[%s196 + $0x70] sm:$0xff] %v225
                %v227 = vld [vmem:[%s195 + $0xd8] sm:$0xff]
                %228 = vst [vmem:[%s196 + $0x78] sm:$0xff] %v227
              $region41: #{_lambda_.18} parent=35 // loop_footer
                %s194 = sadd.s32 1, %s190
              $region42: #{_lambda_.18} parent=35 // loop_footer_branch
                %189 = sbr.rel target = $region38
              $region43: #{_lambda_.18} parent=35 // loop_exit
                _
            $region36: #{_lambda_.18} parent=31 // pred_fallthru
              _
            // Predicated region
            $region44: #{_lambda_.18} parent=31 // pred_check
              _
            $region45: #{_lambda_.18} parent=31 // pred_check_branch
              %230 = sbr.rel target = $region47
            $region46: #{_lambda_.18} parent=31 // pred_region
              _
            $region47: #{_lambda_.18} parent=31 // pred_fallthru
              _
          $region32: #{_lambda_.18} parent=27 // pred_fallthru
            _
          %231 = vnop
        $region28: #{_lambda_.18} parent=23 // pred_fallthru
          _
        // Predicated region
        $region48: #{_lambda_.18} parent=23 // pred_check
          %p232 = pneg %p114
        $region49: #{_lambda_.18} parent=23 // pred_check_branch
          %234 = sbr.rel (%p232) target = $region51
        $region50: #{_lambda_.18} parent=23 // pred_region
          %s235 = sand.u32 %s104, 1
          %s236 = sand.u32 %s104, 1
          %s237 = smul.addr %s236, 128
          %s238 = scalar_lea.vmem [#allocation3], %s237
          %s239 = smul.u32 4, %s18
          %s240 = smul.addr %s17, 32
          %s241 = sadd.s32 %s239, %s240
          %s242 = smul.addr %s241, 8
          %s243 = scalar_lea.vmem %s3, %s242
          // Predicated region
          $region52: #{_lambda_.18} parent=50 // pred_check
            _
          $region53: #{_lambda_.18} parent=50 // pred_check_branch
            %245 = sbr.rel (0) target = $region55
          $region54: #{_lambda_.18} parent=50 // pred_region
            // Predicated region
            $region56: #{_lambda_.18} parent=54 // pred_check
              _
            $region57: #{_lambda_.18} parent=54 // pred_check_branch
              %247 = sbr.rel (0) target = $region59
            $region58: #{_lambda_.18} parent=54 // pred_region
              loop: start=0, step=1, limit=1
              $region60: #{_lambda_.18} parent=58 // loop_pre_header
                _
              $region61: #{_lambda_.18} parent=58 // loop_header
                %s249 = sphi 0, %s253
                %p250 = scmp.ge.s32.totalorder %s249, 1
                %s254 = sphi %s243, %s243
                %s255 = sphi %s238, %s238
              $region62: #{_lambda_.18} parent=58 // loop_header_branch
                %252 = sbr.rel (%p250) target = $region66
              $region63: #{_lambda_.18} parent=58 // loop_body
                %v256 = vld [vmem:[%s254] sm:$0xff]
                %257 = vst [vmem:[%s255] sm:$0xff] %v256
                %v258 = vld [vmem:[%s254 + $0x8] sm:$0xff]
                %259 = vst [vmem:[%s255 + $0x8] sm:$0xff] %v258
                %v260 = vld [vmem:[%s254 + $0x10] sm:$0xff]
                %261 = vst [vmem:[%s255 + $0x10] sm:$0xff] %v260
                %v262 = vld [vmem:[%s254 + $0x18] sm:$0xff]
                %263 = vst [vmem:[%s255 + $0x18] sm:$0xff] %v262
                %v264 = vld [vmem:[%s254 + $0x40] sm:$0xff]
                %265 = vst [vmem:[%s255 + $0x20] sm:$0xff] %v264
                %v266 = vld [vmem:[%s254 + $0x48] sm:$0xff]
                %267 = vst [vmem:[%s255 + $0x28] sm:$0xff] %v266
                %v268 = vld [vmem:[%s254 + $0x50] sm:$0xff]
                %269 = vst [vmem:[%s255 + $0x30] sm:$0xff] %v268
                %v270 = vld [vmem:[%s254 + $0x58] sm:$0xff]
                %271 = vst [vmem:[%s255 + $0x38] sm:$0xff] %v270
                %v272 = vld [vmem:[%s254 + $0x80] sm:$0xff]
                %273 = vst [vmem:[%s255 + $0x40] sm:$0xff] %v272
                %v274 = vld [vmem:[%s254 + $0x88] sm:$0xff]
                %275 = vst [vmem:[%s255 + $0x48] sm:$0xff] %v274
                %v276 = vld [vmem:[%s254 + $0x90] sm:$0xff]
                %277 = vst [vmem:[%s255 + $0x50] sm:$0xff] %v276
                %v278 = vld [vmem:[%s254 + $0x98] sm:$0xff]
                %279 = vst [vmem:[%s255 + $0x58] sm:$0xff] %v278
                %v280 = vld [vmem:[%s254 + $0xc0] sm:$0xff]
                %281 = vst [vmem:[%s255 + $0x60] sm:$0xff] %v280
                %v282 = vld [vmem:[%s254 + $0xc8] sm:$0xff]
                %283 = vst [vmem:[%s255 + $0x68] sm:$0xff] %v282
                %v284 = vld [vmem:[%s254 + $0xd0] sm:$0xff]
                %285 = vst [vmem:[%s255 + $0x70] sm:$0xff] %v284
                %v286 = vld [vmem:[%s254 + $0xd8] sm:$0xff]
                %287 = vst [vmem:[%s255 + $0x78] sm:$0xff] %v286
              $region64: #{_lambda_.18} parent=58 // loop_footer
                %s253 = sadd.s32 1, %s249
              $region65: #{_lambda_.18} parent=58 // loop_footer_branch
                %248 = sbr.rel target = $region61
              $region66: #{_lambda_.18} parent=58 // loop_exit
                _
            $region59: #{_lambda_.18} parent=54 // pred_fallthru
              _
            // Predicated region
            $region67: #{_lambda_.18} parent=54 // pred_check
              _
            $region68: #{_lambda_.18} parent=54 // pred_check_branch
              %289 = sbr.rel target = $region70
            $region69: #{_lambda_.18} parent=54 // pred_region
              _
            $region70: #{_lambda_.18} parent=54 // pred_fallthru
              _
          $region55: #{_lambda_.18} parent=50 // pred_fallthru
            _
          %290 = vnop
        $region51: #{_lambda_.18} parent=23 // pred_fallthru
          _
      $region24: #{_lambda_.18} parent=5 // pred_fallthru
        _
      %p291 = scmp.le.s32.totalorder 1, %s10
      %p292 = scmp.lt.s32.totalorder %s10, 5
      %p293 = pnand %p291, %p292
      %p294 = pneg %p293
      // Predicated region
      $region71: #{_lambda_.18} parent=5 // pred_check
        _
      $region72: #{_lambda_.18} parent=5 // pred_check_branch
        %296 = sbr.rel (%p293) target = $region74
      $region73: #{_lambda_.18} parent=5 // pred_region
        %s297 = ssub.s32 %s10, 1
        %s298 = sand.u32 %s37, 1
        %s299 = sand.u32 %s37, 1
        %s300 = smul.addr %s299, 128
        %s301 = scalar_lea.vmem [#allocation2], %s300
        // Predicated region
        $region75: #{_lambda_.18} parent=73 // pred_check
          %p302 = pneg %p50
        $region76: #{_lambda_.18} parent=73 // pred_check_branch
          %304 = sbr.rel (%p302) target = $region78
        $region77: #{_lambda_.18} parent=73 // pred_region
          _
        $region78: #{_lambda_.18} parent=73 // pred_fallthru
          _
        %s305 = sand.u32 %s107, 1
        %s306 = sand.u32 %s107, 1
        %s307 = smul.addr %s306, 128
        %s308 = scalar_lea.vmem [#allocation3], %s307
        // Predicated region
        $region79: #{_lambda_.18} parent=73 // pred_check
          %p309 = pneg %p120
        $region80: #{_lambda_.18} parent=73 // pred_check_branch
          %311 = sbr.rel (%p309) target = $region82
        $region81: #{_lambda_.18} parent=73 // pred_region
          _
        $region82: #{_lambda_.18} parent=73 // pred_fallthru
          _
        %s312 = sand.u32 %s37, 1
        %s313 = sand.u32 %s37, 1
        %s314 = smul.addr %s313, 128
        %s315 = scalar_lea.vmem [#allocation2], %s314
        %p316 = pneg %p50
        %p317 = pneg %p47
        %p318 = pneg %p71
        %p319 = pneg %p68
        %p320 = pneg %p92
        %p321 = pneg %p89
        %s322 = sand.u32 %s107, 1
        %s323 = sand.u32 %s107, 1
        %s324 = smul.addr %s323, 128
        %s325 = scalar_lea.vmem [#allocation3], %s324
        %p326 = pneg %p120
        %p327 = pneg %p117
        %p328 = pneg %p148
        %p329 = pneg %p145
        %s330 = sand.u32 %s135, 1
        %s331 = sand.u32 %s135, 1
        %s332 = smul.addr %s331, 128
        %s333 = scalar_lea.vmem [#allocation4], %s332
        %s334 = smul.u32 4, %s20
        %s335 = smul.u32 4, %s20
        %s336 = smul.u32 4, %s20
        %v338 = vld [vmem:[%s301] sm:$0xff]
        %v339 = vld [vmem:[%s301 + $0x8] sm:$0xff]
        %v340 = vld [vmem:[%s301 + $0x10] sm:$0xff]
        %v341 = vld [vmem:[%s301 + $0x18] sm:$0xff]
        %v342 = vld [vmem:[%s301 + $0x20] sm:$0xff]
        %v343 = vld [vmem:[%s301 + $0x28] sm:$0xff]
        %v344 = vld [vmem:[%s301 + $0x30] sm:$0xff]
        %v345 = vld [vmem:[%s301 + $0x38] sm:$0xff]
        %v346 = vld [vmem:[%s301 + $0x40] sm:$0xff]
        %v347 = vld [vmem:[%s301 + $0x48] sm:$0xff]
        %v348 = vld [vmem:[%s301 + $0x50] sm:$0xff]
        %v349 = vld [vmem:[%s301 + $0x58] sm:$0xff]
        %v350 = vld [vmem:[%s301 + $0x60] sm:$0xff]
        %v351 = vld [vmem:[%s301 + $0x68] sm:$0xff]
        %v352 = vld [vmem:[%s301 + $0x70] sm:$0xff]
        %v353 = vld [vmem:[%s301 + $0x78] sm:$0xff]
        %v354 = vpack.c.bf16 %v342, %v338
        %v355 = vpack.c.bf16 %v343, %v339
        %v356 = vpack.c.bf16 %v344, %v340
        %v357 = vpack.c.bf16 %v345, %v341
        %v358 = vpack.c.bf16 %v350, %v346
        %v359 = vpack.c.bf16 %v351, %v347
        %v360 = vpack.c.bf16 %v352, %v348
        %v361 = vpack.c.bf16 %v353, %v349
        %v362 = vld [vmem:[%s1] sm:$0xff]
        %v363 = vld [vmem:[%s1 + $0x8] sm:$0xff]
        %v364 = vld [vmem:[%s1 + $0x10] sm:$0xff]
        %v365 = vld [vmem:[%s1 + $0x18] sm:$0xff]
        %v366 = vpack.c.bf16 %v363, %v362
        %v367 = vpack.c.bf16 %v365, %v364
        %v368 = vld [vmem:[%s2] sm:$0xff]
        %v369 = vld [vmem:[%s2 + $0x8] sm:$0xff]
        %v370 = vld [vmem:[%s2 + $0x10] sm:$0xff]
        %v371 = vld [vmem:[%s2 + $0x18] sm:$0xff]
        %373 = vset.pattern.permute.xlu0 0
        %374 = vperm.xlu0 %373, %v368
        %v375 = vpop.permute.xlu0 %374
        %378 = vset.pattern.permute.xlu0 0
        %379 = vperm.xlu0 %378, %v369
        %v380 = vpop.permute.xlu0 %379
        %383 = vset.pattern.permute.xlu0 0
        %384 = vperm.xlu0 %383, %v370
        %v385 = vpop.permute.xlu0 %384
        %388 = vset.pattern.permute.xlu0 0
        %389 = vperm.xlu0 %388, %v371
        %v390 = vpop.permute.xlu0 %389
        %vm392 = vcmask 261120
        %v394 = vsel %vm392, %v366, 0
        %v397 = vsel %vm392, %v367, 0
        %399 = vmatprep.subr.bf16.mxu0 %v355
        %400 = vmatpush1.bf16.msra.mxu0 %v354
        %401 = vmatprep.subr.bf16.mxu0 %v359
        %402 = vmatpush1.bf16.msra.mxu0 %v358
        %403 = vmatprep.subr.bf16.mxu0 0
        %404 = vmatpush1.bf16.msra.mxu0 0
        %405 = vmatprep.subr.bf16.mxu0 0
        %406 = vmatpush1.bf16.msra.mxu0 0
        %407 = vmatprep.subr.bf16.mxu0 0
        %408 = vmatpush1.bf16.msra.mxu0 0
        %409 = vmatprep.subr.bf16.mxu0 0
        %410 = vmatpush1.bf16.msra.mxu0 0
        %411 = vmatprep.subr.bf16.mxu0 0
        %412 = vmatpush1.bf16.msra.mxu0 0
        %413 = vmatprep.subr.bf16.mxu0 0
        %414 = vmatpush1.bf16.msra.mxu0 0
        %415 = vmatprep.subr.bf16.mxu0 0
        %416 = vmatpush1.bf16.msra.mxu0 0
        %417 = vmatprep.subr.bf16.mxu0 0
        %418 = vmatpush1.bf16.msra.mxu0 0
        %419 = vmatprep.subr.bf16.mxu0 0
        %420 = vmatpush1.bf16.msra.mxu0 0
        %421 = vmatprep.subr.bf16.mxu0 0
        %422 = vmatpush1.bf16.msra.mxu0 0
        %423 = vmatprep.subr.bf16.mxu0 0
        %424 = vmatpush1.bf16.msra.mxu0 0
        %425 = vmatprep.subr.bf16.mxu0 0
        %426 = vmatpush1.bf16.msra.mxu0 0
        %427 = vmatprep.subr.bf16.mxu0 0
        %428 = vmatpush1.bf16.msra.mxu0 0
        %429 = vmatprep.subr.bf16.mxu0 0
        %430 = vmatpush1.bf16.msra.mxu0 0
        %431 = vmatprep.mubr.bf16.mxu0 0
        %432 = vmatmul.mubr.bf16.gmra.mrb[0].mxu0 %v394
        %v433 = vpop.f32.mrb[0].mxu0
        %v434 = vadd.f32 %v375, %v433
        %v435 = vpop.f32.mrb[0].mxu0
        %v436 = vadd.f32 %v375, %v435
        %v437 = vpop.f32.mrb[0].mxu0
        %v438 = vadd.f32 %v380, %v437
        %v439 = vpop.f32.mrb[0].mxu0
        %v440 = vadd.f32 %v380, %v439
        %441 = vmatprep.mubr.bf16.mxu0 0
        %442 = vmatmul.mubr.bf16.gmra.mrb[0].mxu0 %v397
        %v443 = vpop.f32.mrb[0].mxu0
        %v444 = vadd.f32 %v385, %v443
        %v445 = vpop.f32.mrb[0].mxu0
        %v446 = vadd.f32 %v385, %v445
        %v447 = vpop.f32.mrb[0].mxu0
        %v448 = vadd.f32 %v390, %v447
        %v449 = vpop.f32.mrb[0].mxu0
        %v450 = vadd.f32 %v390, %v449
        %451 = vdwg.mxu0
        %452 = vmatprep.subr.bf16.mxu0 %v357
        %453 = vmatpush1.bf16.msra.mxu0 %v356
        %454 = vmatprep.subr.bf16.mxu0 %v361
        %455 = vmatpush1.bf16.msra.mxu0 %v360
        %456 = vmatprep.subr.bf16.mxu0 0
        %457 = vmatpush1.bf16.msra.mxu0 0
        %458 = vmatprep.subr.bf16.mxu0 0
        %459 = vmatpush1.bf16.msra.mxu0 0
        %460 = vmatprep.subr.bf16.mxu0 0
        %461 = vmatpush1.bf16.msra.mxu0 0
        %462 = vmatprep.subr.bf16.mxu0 0
        %463 = vmatpush1.bf16.msra.mxu0 0
        %464 = vmatprep.subr.bf16.mxu0 0
        %465 = vmatpush1.bf16.msra.mxu0 0
        %466 = vmatprep.subr.bf16.mxu0 0
        %467 = vmatpush1.bf16.msra.mxu0 0
        %468 = vmatprep.subr.bf16.mxu0 0
        %469 = vmatpush1.bf16.msra.mxu0 0
        %470 = vmatprep.subr.bf16.mxu0 0
        %471 = vmatpush1.bf16.msra.mxu0 0
        %472 = vmatprep.subr.bf16.mxu0 0
        %473 = vmatpush1.bf16.msra.mxu0 0
        %474 = vmatprep.subr.bf16.mxu0 0
        %475 = vmatpush1.bf16.msra.mxu0 0
        %476 = vmatprep.subr.bf16.mxu0 0
        %477 = vmatpush1.bf16.msra.mxu0 0
        %478 = vmatprep.subr.bf16.mxu0 0
        %479 = vmatpush1.bf16.msra.mxu0 0
        %480 = vmatprep.subr.bf16.mxu0 0
        %481 = vmatpush1.bf16.msra.mxu0 0
        %482 = vmatprep.subr.bf16.mxu0 0
        %483 = vmatpush1.bf16.msra.mxu0 0
        %484 = vmatprep.mubr.bf16.mxu0 0
        %485 = vmatmul.mubr.bf16.gmra.mrb[0].mxu0 %v394
        %v486 = vpop.f32.mrb[0].mxu0
        %v487 = vadd.f32 %v375, %v486
        %v488 = vpop.f32.mrb[0].mxu0
        %v489 = vadd.f32 %v375, %v488
        %v490 = vpop.f32.mrb[0].mxu0
        %v491 = vadd.f32 %v380, %v490
        %v492 = vpop.f32.mrb[0].mxu0
        %v493 = vadd.f32 %v380, %v492
        %494 = vmatprep.mubr.bf16.mxu0 0
        %495 = vmatmul.mubr.bf16.gmra.mrb[0].mxu0 %v397
        %v496 = vpop.f32.mrb[0].mxu0
        %v497 = vadd.f32 %v385, %v496
        %v498 = vpop.f32.mrb[0].mxu0
        %v499 = vadd.f32 %v385, %v498
        %v500 = vpop.f32.mrb[0].mxu0
        %v501 = vadd.f32 %v390, %v500
        %v502 = vpop.f32.mrb[0].mxu0
        %v503 = vadd.f32 %v390, %v502
        %504 = vdwg.mxu0
        %v505 = vld [vmem:[%s308] sm:$0xff]
        %v506 = vld [vmem:[%s308 + $0x8] sm:$0xff]
        %v507 = vld [vmem:[%s308 + $0x10] sm:$0xff]
        %v508 = vld [vmem:[%s308 + $0x18] sm:$0xff]
        %v509 = vld [vmem:[%s308 + $0x20] sm:$0xff]
        %v510 = vld [vmem:[%s308 + $0x28] sm:$0xff]
        %v511 = vld [vmem:[%s308 + $0x30] sm:$0xff]
        %v512 = vld [vmem:[%s308 + $0x38] sm:$0xff]
        %v513 = vld [vmem:[%s308 + $0x40] sm:$0xff]
        %v514 = vld [vmem:[%s308 + $0x48] sm:$0xff]
        %v515 = vld [vmem:[%s308 + $0x50] sm:$0xff]
        %v516 = vld [vmem:[%s308 + $0x58] sm:$0xff]
        %v517 = vld [vmem:[%s308 + $0x60] sm:$0xff]
        %v518 = vld [vmem:[%s308 + $0x68] sm:$0xff]
        %v519 = vld [vmem:[%s308 + $0x70] sm:$0xff]
        %v520 = vld [vmem:[%s308 + $0x78] sm:$0xff]
        %v521 = vadd.f32 %v434, %v505
        %v522 = vadd.f32 %v436, %v506
        %v523 = vadd.f32 %v487, %v507
        %v524 = vadd.f32 %v489, %v508
        %v525 = vadd.f32 %v438, %v509
        %v526 = vadd.f32 %v440, %v510
        %v527 = vadd.f32 %v491, %v511
        %v528 = vadd.f32 %v493, %v512
        %v529 = vadd.f32 %v444, %v513
        %v530 = vadd.f32 %v446, %v514
        %v531 = vadd.f32 %v497, %v515
        %v532 = vadd.f32 %v499, %v516
        %v533 = vadd.f32 %v448, %v517
        %v534 = vadd.f32 %v450, %v518
        %v535 = vadd.f32 %v501, %v519
        %v536 = vadd.f32 %v503, %v520
        %537 = vst [vmem:[%s333] sm:$0xff] %v521
        %538 = vst [vmem:[%s333 + $0x8] sm:$0xff] %v522
        %539 = vst [vmem:[%s333 + $0x10] sm:$0xff] %v523
        %540 = vst [vmem:[%s333 + $0x18] sm:$0xff] %v524
        %541 = vst [vmem:[%s333 + $0x20] sm:$0xff] %v525
        %542 = vst [vmem:[%s333 + $0x28] sm:$0xff] %v526
        %543 = vst [vmem:[%s333 + $0x30] sm:$0xff] %v527
        %544 = vst [vmem:[%s333 + $0x38] sm:$0xff] %v528
        %545 = vst [vmem:[%s333 + $0x40] sm:$0xff] %v529
        %546 = vst [vmem:[%s333 + $0x48] sm:$0xff] %v530
        %547 = vst [vmem:[%s333 + $0x50] sm:$0xff] %v531
        %548 = vst [vmem:[%s333 + $0x58] sm:$0xff] %v532
        %549 = vst [vmem:[%s333 + $0x60] sm:$0xff] %v533
        %550 = vst [vmem:[%s333 + $0x68] sm:$0xff] %v534
        %551 = vst [vmem:[%s333 + $0x70] sm:$0xff] %v535
        %552 = vst [vmem:[%s333 + $0x78] sm:$0xff] %v536
        %s553 = sand.u32 %s135, 1
        %s554 = sand.u32 %s135, 1
        %s555 = smul.addr %s554, 128
        %s556 = scalar_lea.vmem [#allocation4], %s555
        // Predicated region
        $region83: #{_lambda_.18} parent=73 // pred_check
          %p557 = pneg %p145
        $region84: #{_lambda_.18} parent=73 // pred_check_branch
          %559 = sbr.rel (%p557) target = $region86
        $region85: #{_lambda_.18} parent=73 // pred_region
          %s560 = smul.u32 4, %s20
          %s561 = smul.addr %s19, 32
          %s562 = sadd.s32 %s560, %s561
          %s563 = smul.addr %s562, 8
          %s564 = scalar_lea.vmem %s4, %s563
          // Predicated region
          $region87: #{_lambda_.18} parent=85 // pred_check
            _
          $region88: #{_lambda_.18} parent=85 // pred_check_branch
            %566 = sbr.rel (0) target = $region90
          $region89: #{_lambda_.18} parent=85 // pred_region
            // Predicated region
            $region91: #{_lambda_.18} parent=89 // pred_check
              _
            $region92: #{_lambda_.18} parent=89 // pred_check_branch
              %568 = sbr.rel (0) target = $region94
            $region93: #{_lambda_.18} parent=89 // pred_region
              loop: start=0, step=1, limit=1
              $region95: #{_lambda_.18} parent=93 // loop_pre_header
                _
              $region96: #{_lambda_.18} parent=93 // loop_header
                %s570 = sphi 0, %s574
                %p571 = scmp.ge.s32.totalorder %s570, 1
                %s575 = sphi %s556, %s556
                %s576 = sphi %s564, %s564
              $region97: #{_lambda_.18} parent=93 // loop_header_branch
                %573 = sbr.rel (%p571) target = $region101
              $region98: #{_lambda_.18} parent=93 // loop_body
                %v577 = vld [vmem:[%s575] sm:$0xff]
                %578 = vst [vmem:[%s576] sm:$0xff] %v577
                %v579 = vld [vmem:[%s575 + $0x8] sm:$0xff]
                %580 = vst [vmem:[%s576 + $0x8] sm:$0xff] %v579
                %v581 = vld [vmem:[%s575 + $0x10] sm:$0xff]
                %582 = vst [vmem:[%s576 + $0x10] sm:$0xff] %v581
                %v583 = vld [vmem:[%s575 + $0x18] sm:$0xff]
                %584 = vst [vmem:[%s576 + $0x18] sm:$0xff] %v583
                %v585 = vld [vmem:[%s575 + $0x20] sm:$0xff]
                %586 = vst [vmem:[%s576 + $0x40] sm:$0xff] %v585
                %v587 = vld [vmem:[%s575 + $0x28] sm:$0xff]
                %588 = vst [vmem:[%s576 + $0x48] sm:$0xff] %v587
                %v589 = vld [vmem:[%s575 + $0x30] sm:$0xff]
                %590 = vst [vmem:[%s576 + $0x50] sm:$0xff] %v589
                %v591 = vld [vmem:[%s575 + $0x38] sm:$0xff]
                %592 = vst [vmem:[%s576 + $0x58] sm:$0xff] %v591
                %v593 = vld [vmem:[%s575 + $0x40] sm:$0xff]
                %594 = vst [vmem:[%s576 + $0x80] sm:$0xff] %v593
                %v595 = vld [vmem:[%s575 + $0x48] sm:$0xff]
                %596 = vst [vmem:[%s576 + $0x88] sm:$0xff] %v595
                %v597 = vld [vmem:[%s575 + $0x50] sm:$0xff]
                %598 = vst [vmem:[%s576 + $0x90] sm:$0xff] %v597
                %v599 = vld [vmem:[%s575 + $0x58] sm:$0xff]
                %600 = vst [vmem:[%s576 + $0x98] sm:$0xff] %v599
                %v601 = vld [vmem:[%s575 + $0x60] sm:$0xff]
                %602 = vst [vmem:[%s576 + $0xc0] sm:$0xff] %v601
                %v603 = vld [vmem:[%s575 + $0x68] sm:$0xff]
                %604 = vst [vmem:[%s576 + $0xc8] sm:$0xff] %v603
                %v605 = vld [vmem:[%s575 + $0x70] sm:$0xff]
                %606 = vst [vmem:[%s576 + $0xd0] sm:$0xff] %v605
                %v607 = vld [vmem:[%s575 + $0x78] sm:$0xff]
                %608 = vst [vmem:[%s576 + $0xd8] sm:$0xff] %v607
              $region99: #{_lambda_.18} parent=93 // loop_footer
                %s574 = sadd.s32 1, %s570
              $region100: #{_lambda_.18} parent=93 // loop_footer_branch
                %569 = sbr.rel target = $region96
              $region101: #{_lambda_.18} parent=93 // loop_exit
                _
            $region94: #{_lambda_.18} parent=89 // pred_fallthru
              _
            // Predicated region
            $region102: #{_lambda_.18} parent=89 // pred_check
              _
            $region103: #{_lambda_.18} parent=89 // pred_check_branch
              %610 = sbr.rel target = $region105
            $region104: #{_lambda_.18} parent=89 // pred_region
              _
            $region105: #{_lambda_.18} parent=89 // pred_fallthru
              _
          $region90: #{_lambda_.18} parent=85 // pred_fallthru
            _
          %611 = vnop
        $region86: #{_lambda_.18} parent=73 // pred_fallthru
          _
      $region74: #{_lambda_.18} parent=5 // pred_fallthru
        _
      %p612 = scmp.le.s32.totalorder 2, %s10
      // Predicated region
      $region106: #{_lambda_.18} parent=5 // pred_check
        %p613 = pneg %p612
      $region107: #{_lambda_.18} parent=5 // pred_check_branch
        %615 = sbr.rel (%p613) target = $region109
      $region108: #{_lambda_.18} parent=5 // pred_region
        %s616 = ssub.s32 %s10, 2
        // Predicated region
        $region110: #{_lambda_.18} parent=108 // pred_check
          %p617 = pneg %p151
        $region111: #{_lambda_.18} parent=108 // pred_check_branch
          %619 = sbr.rel (%p617) target = $region113
        $region112: #{_lambda_.18} parent=108 // pred_region
          %s620 = sand.u32 %s136, 1
          %s621 = sand.u32 %s136, 1
          %s622 = smul.addr %s621, 128
          %s623 = scalar_lea.vmem [#allocation4], %s622
        $region113: #{_lambda_.18} parent=108 // pred_fallthru
          _
      $region109: #{_lambda_.18} parent=5 // pred_fallthru
        _
    $region6: #{_lambda_.18} parent=1 // loop_footer
      %s14 = sadd.s32 1, %s10
    $region7: #{_lambda_.18} parent=1 // loop_footer_branch
      %9 = sbr.rel target = $region3
    $region8: #{_lambda_.18} parent=1 // loop_exit
      _

// kernel: squeeze.17
$region0: #{squeeze.17}
  %s0 = inlined_call_operand.vmem [shape: f32[2,256], index: 0, kind: input, shape index: {}]
  %s1 = inlined_call_operand.hbm [shape: f32[2,16,16,1], index: 1, kind: output, shape index: {}]
  $region1: #{squeeze.17} parent=0
    #allocation0 [shape = 'u8[16384]{0}', space=vmem, size = 0x4000, scoped, tag = 'operand span for operand 1']
    #allocation1 [shape = 's32[1]{0}', space=sflag, size = 0x4, scoped, tag = 'scoped memory for squeeze.17']
    #allocation2 [shape = 'u8[8192]{0}', space=vmem, size = 0x2000, scoped, tag = 'scoped mem for input reshape']
    %2 = vsyncpa [#allocation1], 0
    %s4 = sshllo.u32 0, 2
    %s5 = scalar_lea.vmem %s0, 2
    %v6 = vld [vmem:[%s5] sm:%s4]
    %s7 = scalar_lea.vmem [#allocation2], 8
    %8 = vst [vmem:[%s7] sm:%s4] %v6
    %v9 = vld [vmem:[%s0] sm:%s4]
    %10 = vst [vmem:[#allocation2] sm:%s4] %v9
    %v11 = vld [vmem:[#allocation2] sm:$0x3]
    %vm12 = vcmask 130048
    %13 = vst.msk [vmem:[#allocation0] ss:$16 sm:$0x3] %vm12, %v11
    %s14 = scalar_lea.vmem [#allocation2], 8
    %v15 = vld [vmem:[%s14] sm:$0x3]
    %vm16 = vcmask 130048
    %s17 = scalar_lea.vmem [#allocation0], 8
    %18 = vst.msk [vmem:[%s17] ss:$16 sm:$0x3] %vm16, %v15
    %v19 = vld.sshfl [vmem:[#allocation2] sm:$0xff pattern:$0x99999180]
    %20 = vrot.lane.b32.xlu0 %v19, 112
    %v21 = vpop.permute.xlu0 %20
    %vm22 = vcmask 130048
    %s23 = scalar_lea.vmem [#allocation0], 1
    %24 = vst.msk [vmem:[%s23] ss:$8 sm:$0xf] %vm22, %v21
    %v25 = vld.sshfl [vmem:[#allocation2] sm:$0xff pattern:$0x99999180]
    %26 = vrot.lane.b32.xlu0 %v25, 96
    %v27 = vpop.permute.xlu0 %26
    %vm28 = vcmask 130048
    %s29 = scalar_lea.vmem [#allocation0], 2
    %30 = vst.msk [vmem:[%s29] ss:$8 sm:$0xf] %vm28, %v27
    %v31 = vld.sshfl [vmem:[#allocation2] sm:$0xff pattern:$0x99999180]
    %32 = vrot.lane.b32.xlu0 %v31, 80
    %v33 = vpop.permute.xlu0 %32
    %vm34 = vcmask 130048
    %s35 = scalar_lea.vmem [#allocation0], 3
    %36 = vst.msk [vmem:[%s35] ss:$8 sm:$0xf] %vm34, %v33
    %v37 = vld.sshfl [vmem:[#allocation2] sm:$0xff pattern:$0x99999180]
    %38 = vrot.lane.b32.xlu0 %v37, 64
    %v39 = vpop.permute.xlu0 %38
    %vm40 = vcmask 130048
    %s41 = scalar_lea.vmem [#allocation0], 4
    %42 = vst.msk [vmem:[%s41] ss:$8 sm:$0xf] %vm40, %v39
    %v43 = vld.sshfl [vmem:[#allocation2] sm:$0xff pattern:$0x99999180]
    %44 = vrot.lane.b32.xlu0 %v43, 48
    %v45 = vpop.permute.xlu0 %44
    %vm46 = vcmask 130048
    %s47 = scalar_lea.vmem [#allocation0], 5
    %48 = vst.msk [vmem:[%s47] ss:$8 sm:$0xf] %vm46, %v45
    %v49 = vld.sshfl [vmem:[#allocation2] sm:$0xff pattern:$0x99999180]
    %50 = vrot.lane.b32.xlu0 %v49, 32
    %v51 = vpop.permute.xlu0 %50
    %vm52 = vcmask 130048
    %s53 = scalar_lea.vmem [#allocation0], 6
    %54 = vst.msk [vmem:[%s53] ss:$8 sm:$0xf] %vm52, %v51
    %v55 = vld.sshfl [vmem:[#allocation2] sm:$0xff pattern:$0x99999180]
    %56 = vrot.lane.b32.xlu0 %v55, 16
    %v57 = vpop.permute.xlu0 %56
    %vm58 = vcmask 130048
    %s59 = scalar_lea.vmem [#allocation0], 7
    %60 = vst.msk [vmem:[%s59] ss:$8 sm:$0xf] %vm58, %v57
    %s62 = ssub.s32 512, 512
    %63 = vsyncadd [#allocation1], %s62
    %s65 = sshll.u32 [#allocation0], 4
    %s66 = int_to_ptr.vmem [resolvable:$true] %s65
    %68 = dma.vmem_to_hbm [thread:$0]  %s66, 512, %s1, [#allocation1]
    %69 = dma.done [#allocation1], 512
    %70 = vsyncpa [#allocation1], 1

// kernel: _lambda_.19
$region0: #{_lambda_.19}
  #allocation0 [shape = 'u32[]', space=smem, size = 0x4, offset = 0x4, fixed_abs, tag = 'smem constant byte address 0x4 - core index']
  #allocation1 [shape = 'u32[144,128]{1,0:T(1,128)}', space=vmem, size = 0x12000, scoped, tag = 'internal scratch']
  #allocation2 [shape = 'f32[1,1]{1,0:T(1,128)S(1)}', space=vmem, size = 0x200, scoped, tag = 'scoped memory for _lambda_.19']
  %s0 = inlined_call_operand.vmem [shape: f32[2,32,256], index: 0, kind: input, shape index: {}]
  %s1 = inlined_call_operand.vmem [shape: f32[128,32], index: 1, kind: input, shape index: {}]
  %s2 = inlined_call_operand.vmem [shape: f32[128,1], index: 2, kind: input, shape index: {}]
  %s3 = inlined_call_operand.vmem [shape: f32[1,128], index: 3, kind: input, shape index: {}]
  %s4 = inlined_call_operand.<no memory space> [shape: f32[1,1], index: 4, kind: input, shape index: {}]
  %s5 = inlined_call_operand.vmem [shape: f32[2,1,256], index: 5, kind: output, shape index: {}]
  %s6 = sld [smem:[#allocation0]]
  $region53: #{_lambda_.19} parent=0
    _
  %s8 = ssub.s32 1, %s6
  %s9 = scalar_select 0, %s8, %s6
  %v10 = vstv %s4
  %11 = vst [vmem:[#allocation2] sm:$0x1] %v10
  loop: start=0, step=1, limit=4
  $region2: #{_lambda_.19} parent=0 // loop_pre_header
    _
  $region3: #{_lambda_.19} parent=0 // loop_header
    %s13 = sphi 0, %s17
    %p14 = scmp.ge.s32.totalorder %s13, 4
    %s20 = sphi 0, %s32
    %s21 = sphi 0, %s28
    %s22 = sphi 0, %s20
    %s23 = sphi 0, %s21
    %s24 = sphi 0, %s22
    %s25 = sphi 0, %s23
    %s37 = sphi 0, %s39
    %s40 = sphi 0, %s37
    %s41 = sphi 0, %s40
    %s57 = sphi 0, %s41
    %s61 = sphi 0, %s61
    %s63 = sphi 0, %s61
    %s64 = sphi 0, %s63
    %s78 = sphi 0, %s64
    %s82 = sphi 0, %s82
    %s84 = sphi 0, %s82
    %s85 = sphi 0, %s84
    %s99 = sphi 0, %s85
    %s103 = sphi 0, %s103
    %s105 = sphi 0, %s103
    %s106 = sphi 0, %s105
    %s120 = sphi 0, %s106
    %s124 = sphi 0, %s124
    %s126 = sphi 0, %s124
    %s127 = sphi 0, %s126
    %s141 = sphi 0, %s127
    %s149 = sphi 0, %s151
    %s152 = sphi 0, %s149
    %s153 = sphi 0, %s152
    %s169 = sphi 0, %s153
  $region4: #{_lambda_.19} parent=0 // loop_header_branch
    %16 = sbr.rel (%p14) target = $region8
  $region5: #{_lambda_.19} parent=0 // loop_body
    %s18 = ssub.s32 %s13, 1
    %s19 = ssub.s32 %s13, 2
    %s26 = sadd.s32 1, %s21
    %p27 = scmp.ge.s32.totalorder %s26, 1
    %s28 = scalar_select %p27, 0, %s26
    %s29 = sadd.s32 1, %s20
    %s30 = scalar_select %p27, %s29, %s20
    %p31 = scmp.ge.s32.totalorder %s30, 2
    %s32 = scalar_select %p31, 0, %s30
    %s33 = ssub.s32 %s20, %s32
    %s34 = ssub.s32 %s21, %s28
    %s35 = sor.u32 %s33, %s34
    %p36 = scmp.eq.s32.totalorder %s35, 0
    %s38 = sadd.s32 %s37, 1
    %s39 = scalar_select %p36, %s37, %s38
    %p42 = pneg %p36
    %p43 = scmp.eq.s32.totalorder %s13, 1
    %p44 = por %p42, %p43
    %p45 = scmp.ne.s32.totalorder %s37, %s40
    %p46 = scmp.eq.s32.totalorder %s13, 0
    %p47 = por %p45, %p46
    %p48 = scmp.ne.s32.totalorder %s37, %s40
    %p49 = scmp.eq.s32.totalorder %s18, 1
    %p50 = por %p48, %p49
    %p51 = scmp.ne.s32.totalorder %s40, %s41
    %p52 = scmp.eq.s32.totalorder %s18, 0
    %p53 = por %p51, %p52
    %p54 = scmp.ne.s32.totalorder %s40, %s41
    %p55 = scmp.eq.s32.totalorder %s19, 1
    %p56 = por %p54, %p55
    %p58 = scmp.ne.s32.totalorder %s41, %s57
    %p59 = scmp.eq.s32.totalorder %s19, 0
    %p60 = por %p58, %p59
    %s62 = sadd.s32 %s61, 1
    %p65 = scmp.eq.s32.totalorder %s13, 1
    %p66 = scmp.ne.s32.totalorder %s61, %s63
    %p67 = scmp.eq.s32.totalorder %s13, 0
    %p68 = por %p66, %p67
    %p69 = scmp.ne.s32.totalorder %s61, %s63
    %p70 = scmp.eq.s32.totalorder %s18, 1
    %p71 = por %p69, %p70
    %p72 = scmp.ne.s32.totalorder %s63, %s64
    %p73 = scmp.eq.s32.totalorder %s18, 0
    %p74 = por %p72, %p73
    %p75 = scmp.ne.s32.totalorder %s63, %s64
    %p76 = scmp.eq.s32.totalorder %s19, 1
    %p77 = por %p75, %p76
    %p79 = scmp.ne.s32.totalorder %s64, %s78
    %p80 = scmp.eq.s32.totalorder %s19, 0
    %p81 = por %p79, %p80
    %s83 = sadd.s32 %s82, 1
    %p86 = scmp.eq.s32.totalorder %s13, 1
    %p87 = scmp.ne.s32.totalorder %s82, %s84
    %p88 = scmp.eq.s32.totalorder %s13, 0
    %p89 = por %p87, %p88
    %p90 = scmp.ne.s32.totalorder %s82, %s84
    %p91 = scmp.eq.s32.totalorder %s18, 1
    %p92 = por %p90, %p91
    %p93 = scmp.ne.s32.totalorder %s84, %s85
    %p94 = scmp.eq.s32.totalorder %s18, 0
    %p95 = por %p93, %p94
    %p96 = scmp.ne.s32.totalorder %s84, %s85
    %p97 = scmp.eq.s32.totalorder %s19, 1
    %p98 = por %p96, %p97
    %p100 = scmp.ne.s32.totalorder %s85, %s99
    %p101 = scmp.eq.s32.totalorder %s19, 0
    %p102 = por %p100, %p101
    %s104 = sadd.s32 %s103, 1
    %p107 = scmp.eq.s32.totalorder %s13, 1
    %p108 = scmp.ne.s32.totalorder %s103, %s105
    %p109 = scmp.eq.s32.totalorder %s13, 0
    %p110 = por %p108, %p109
    %p111 = scmp.ne.s32.totalorder %s103, %s105
    %p112 = scmp.eq.s32.totalorder %s18, 1
    %p113 = por %p111, %p112
    %p114 = scmp.ne.s32.totalorder %s105, %s106
    %p115 = scmp.eq.s32.totalorder %s18, 0
    %p116 = por %p114, %p115
    %p117 = scmp.ne.s32.totalorder %s105, %s106
    %p118 = scmp.eq.s32.totalorder %s19, 1
    %p119 = por %p117, %p118
    %p121 = scmp.ne.s32.totalorder %s106, %s120
    %p122 = scmp.eq.s32.totalorder %s19, 0
    %p123 = por %p121, %p122
    %s125 = sadd.s32 %s124, 1
    %p128 = scmp.eq.s32.totalorder %s13, 1
    %p129 = scmp.ne.s32.totalorder %s124, %s126
    %p130 = scmp.eq.s32.totalorder %s13, 0
    %p131 = por %p129, %p130
    %p132 = scmp.ne.s32.totalorder %s124, %s126
    %p133 = scmp.eq.s32.totalorder %s18, 1
    %p134 = por %p132, %p133
    %p135 = scmp.ne.s32.totalorder %s126, %s127
    %p136 = scmp.eq.s32.totalorder %s18, 0
    %p137 = por %p135, %p136
    %p138 = scmp.ne.s32.totalorder %s126, %s127
    %p139 = scmp.eq.s32.totalorder %s19, 1
    %p140 = por %p138, %p139
    %p142 = scmp.ne.s32.totalorder %s127, %s141
    %p143 = scmp.eq.s32.totalorder %s19, 0
    %p144 = por %p142, %p143
    %s145 = ssub.s32 %s20, %s32
    %s146 = ssub.s32 %s21, %s28
    %s147 = sor.u32 %s145, %s146
    %p148 = scmp.eq.s32.totalorder %s147, 0
    %s150 = sadd.s32 %s149, 1
    %s151 = scalar_select %p148, %s149, %s150
    %p154 = pneg %p148
    %p155 = scmp.eq.s32.totalorder %s13, 1
    %p156 = por %p154, %p155
    %p157 = scmp.ne.s32.totalorder %s149, %s152
    %p158 = scmp.eq.s32.totalorder %s13, 0
    %p159 = por %p157, %p158
    %p160 = scmp.ne.s32.totalorder %s149, %s152
    %p161 = scmp.eq.s32.totalorder %s18, 1
    %p162 = por %p160, %p161
    %p163 = scmp.ne.s32.totalorder %s152, %s153
    %p164 = scmp.eq.s32.totalorder %s18, 0
    %p165 = por %p163, %p164
    %p166 = scmp.ne.s32.totalorder %s152, %s153
    %p167 = scmp.eq.s32.totalorder %s19, 1
    %p168 = por %p166, %p167
    %p170 = scmp.ne.s32.totalorder %s153, %s169
    %p171 = scmp.eq.s32.totalorder %s19, 0
    %p172 = por %p170, %p171
    %p173 = scmp.le.s32.totalorder 1, %s13
    %p174 = scmp.lt.s32.totalorder %s13, 3
    %p175 = pnand %p173, %p174
    %p176 = pneg %p175
    // Predicated region
    $region9: #{_lambda_.19} parent=5 // pred_check
      _
    $region10: #{_lambda_.19} parent=5 // pred_check_branch
      %178 = sbr.rel (%p175) target = $region12
    $region11: #{_lambda_.19} parent=5 // pred_region
      %s179 = ssub.s32 %s13, 1
      // Predicated region
      $region13: #{_lambda_.19} parent=11 // pred_check
        %p180 = pneg %p74
      $region14: #{_lambda_.19} parent=11 // pred_check_branch
        %182 = sbr.rel (%p180) target = $region16
      $region15: #{_lambda_.19} parent=11 // pred_region
        _
      $region16: #{_lambda_.19} parent=11 // pred_fallthru
        _
      // Predicated region
      $region17: #{_lambda_.19} parent=11 // pred_check
        %p183 = pneg %p95
      $region18: #{_lambda_.19} parent=11 // pred_check_branch
        %185 = sbr.rel (%p183) target = $region20
      $region19: #{_lambda_.19} parent=11 // pred_region
        _
      $region20: #{_lambda_.19} parent=11 // pred_fallthru
        _
      // Predicated region
      $region21: #{_lambda_.19} parent=11 // pred_check
        %p186 = pneg %p116
      $region22: #{_lambda_.19} parent=11 // pred_check_branch
        %188 = sbr.rel (%p186) target = $region24
      $region23: #{_lambda_.19} parent=11 // pred_region
        _
      $region24: #{_lambda_.19} parent=11 // pred_fallthru
        _
      // Predicated region
      $region25: #{_lambda_.19} parent=11 // pred_check
        %p189 = pneg %p137
      $region26: #{_lambda_.19} parent=11 // pred_check_branch
        %191 = sbr.rel (%p189) target = $region28
      $region27: #{_lambda_.19} parent=11 // pred_region
        _
      $region28: #{_lambda_.19} parent=11 // pred_fallthru
        _
    $region12: #{_lambda_.19} parent=5 // pred_fallthru
      _
    %p192 = scmp.lt.s32.totalorder %s13, 2
    // Predicated region
    $region29: #{_lambda_.19} parent=5 // pred_check
      %p193 = pneg %p192
    $region30: #{_lambda_.19} parent=5 // pred_check_branch
      %195 = sbr.rel (%p193) target = $region32
    $region31: #{_lambda_.19} parent=5 // pred_region
      // Predicated region
      $region33: #{_lambda_.19} parent=31 // pred_check
        %p196 = pneg %p47
      $region34: #{_lambda_.19} parent=31 // pred_check_branch
        %198 = sbr.rel (%p196) target = $region36
      $region35: #{_lambda_.19} parent=31 // pred_region
        %s199 = smul.u32 2, %s21
        %p200 = scmp.lt.s32.totalorder %s20, 1
        %s201 = scalar_select %p200, %s20, 1
        %p202 = scmp.lt.s32.totalorder %s199, 1
        %s203 = scalar_select %p202, %s199, 1
        %s204 = smul.addr %s201, 8
        %s205 = sadd.s32 %s203, %s204
        %s206 = smul.addr %s205, 8
        %s207 = scalar_lea.vmem %s0, %s206
        %s208 = smul.u32 2, %s21
      $region36: #{_lambda_.19} parent=31 // pred_fallthru
        _
    $region32: #{_lambda_.19} parent=5 // pred_fallthru
      _
    %p209 = scmp.le.s32.totalorder 1, %s13
    %p210 = scmp.lt.s32.totalorder %s13, 3
    %p211 = pnand %p209, %p210
    %p212 = pneg %p211
    // Predicated region
    $region37: #{_lambda_.19} parent=5 // pred_check
      _
    $region38: #{_lambda_.19} parent=5 // pred_check_branch
      %214 = sbr.rel (%p211) target = $region40
    $region39: #{_lambda_.19} parent=5 // pred_region
      %s215 = ssub.s32 %s13, 1
      %s216 = smul.u32 2, %s23
      %p217 = scmp.lt.s32.totalorder %s22, 1
      %s218 = scalar_select %p217, %s22, 1
      %p219 = scmp.lt.s32.totalorder %s216, 1
      %s220 = scalar_select %p219, %s216, 1
      %s221 = smul.addr %s218, 8
      %s222 = sadd.s32 %s220, %s221
      %s223 = smul.addr %s222, 8
      %s224 = scalar_lea.vmem %s0, %s223
      %p225 = pneg %p53
      %p226 = pneg %p50
      %p227 = pneg %p74
      %p228 = pneg %p71
      %p229 = pneg %p95
      %p230 = pneg %p92
      %p231 = pneg %p116
      %p232 = pneg %p113
      %p233 = pneg %p137
      %p234 = pneg %p134
      %p235 = pneg %p165
      %p236 = pneg %p162
      %s237 = smul.u32 2, %s23
      %p238 = scmp.lt.s32.totalorder %s22, 1
      %s239 = scalar_select %p238, %s22, 1
      %p240 = scmp.lt.s32.totalorder %s237, 1
      %s241 = scalar_select %p240, %s237, 1
      %s242 = smul.addr %s239, 2
      %s243 = sadd.s32 %s241, %s242
      %s244 = scalar_lea.vmem %s5, %s243
      %s245 = smul.u32 2, %s23
      %p246 = scmp.lt.s32.totalorder %s22, 1
      %s247 = scalar_select %p246, %s22, 1
      %p248 = scmp.lt.s32.totalorder %s245, 1
      %s249 = scalar_select %p248, %s245, 1
      %s250 = smul.addr %s247, 8
      %s251 = sadd.s32 %s249, %s250
      %s252 = smul.addr %s251, 8
      %s253 = scalar_lea.vmem %s0, %s252
      %s254 = smul.u32 2, %s23
      %s255 = smul.u32 2, %s23
      %p256 = scmp.lt.s32.totalorder %s22, 1
      %s257 = scalar_select %p256, %s22, 1
      %p258 = scmp.lt.s32.totalorder %s255, 1
      %s259 = scalar_select %p258, %s255, 1
      %s260 = smul.addr %s257, 2
      %s261 = sadd.s32 %s259, %s260
      %s262 = scalar_lea.vmem %s5, %s261
      %s263 = smul.u32 2, %s23
      %v265 = vld [vmem:[%s253] sm:$0xff]
      %v266 = vld [vmem:[%s253 + $0x8] sm:$0xff]
      %v267 = vld [vmem:[%s253 + $0x10] sm:$0xff]
      %v268 = vld [vmem:[%s253 + $0x18] sm:$0xff]
      %v269 = vld [vmem:[%s253 + $0x20] sm:$0xff]
      %v270 = vld [vmem:[%s253 + $0x28] sm:$0xff]
      %v271 = vld [vmem:[%s253 + $0x30] sm:$0xff]
      %v272 = vld [vmem:[%s253 + $0x38] sm:$0xff]
      %v273 = vpack.c.bf16 %v267, %v265
      %v274 = vpack.c.bf16 %v268, %v266
      %v275 = vpack.c.bf16 %v271, %v269
      %v276 = vpack.c.bf16 %v272, %v270
      %v277 = vld [vmem:[%s1] sm:$0xff]
      %v278 = vld [vmem:[%s1 + $0x8] sm:$0xff]
      %v279 = vld [vmem:[%s1 + $0x10] sm:$0xff]
      %v280 = vld [vmem:[%s1 + $0x18] sm:$0xff]
      %v281 = vld [vmem:[%s1 + $0x20] sm:$0xff]
      %v282 = vld [vmem:[%s1 + $0x28] sm:$0xff]
      %v283 = vld [vmem:[%s1 + $0x30] sm:$0xff]
      %v284 = vld [vmem:[%s1 + $0x38] sm:$0xff]
      %v285 = vld [vmem:[%s1 + $0x40] sm:$0xff]
      %v286 = vld [vmem:[%s1 + $0x48] sm:$0xff]
      %v287 = vld [vmem:[%s1 + $0x50] sm:$0xff]
      %v288 = vld [vmem:[%s1 + $0x58] sm:$0xff]
      %v289 = vld [vmem:[%s1 + $0x60] sm:$0xff]
      %v290 = vld [vmem:[%s1 + $0x68] sm:$0xff]
      %v291 = vld [vmem:[%s1 + $0x70] sm:$0xff]
      %v292 = vld [vmem:[%s1 + $0x78] sm:$0xff]
      %v293 = vpack.c.bf16 %v278, %v277
      %v294 = vpack.c.bf16 %v280, %v279
      %v295 = vpack.c.bf16 %v282, %v281
      %v296 = vpack.c.bf16 %v284, %v283
      %v297 = vpack.c.bf16 %v286, %v285
      %v298 = vpack.c.bf16 %v288, %v287
      %v299 = vpack.c.bf16 %v290, %v289
      %v300 = vpack.c.bf16 %v292, %v291
      %v301 = vld [vmem:[%s2] sm:$0xff]
      %v302 = vld [vmem:[%s2 + $0x8] sm:$0xff]
      %v303 = vld [vmem:[%s2 + $0x10] sm:$0xff]
      %v304 = vld [vmem:[%s2 + $0x18] sm:$0xff]
      %v305 = vld [vmem:[%s2 + $0x20] sm:$0xff]
      %v306 = vld [vmem:[%s2 + $0x28] sm:$0xff]
      %v307 = vld [vmem:[%s2 + $0x30] sm:$0xff]
      %v308 = vld [vmem:[%s2 + $0x38] sm:$0xff]
      %v309 = vld [vmem:[%s2 + $0x40] sm:$0xff]
      %v310 = vld [vmem:[%s2 + $0x48] sm:$0xff]
      %v311 = vld [vmem:[%s2 + $0x50] sm:$0xff]
      %v312 = vld [vmem:[%s2 + $0x58] sm:$0xff]
      %v313 = vld [vmem:[%s2 + $0x60] sm:$0xff]
      %v314 = vld [vmem:[%s2 + $0x68] sm:$0xff]
      %v315 = vld [vmem:[%s2 + $0x70] sm:$0xff]
      %v316 = vld [vmem:[%s2 + $0x78] sm:$0xff]
      %318 = vset.pattern.permute.xlu0 0
      %319 = vperm.xlu0 %318, %v301
      %v320 = vpop.permute.xlu0 %319
      %323 = vset.pattern.permute.xlu0 0
      %324 = vperm.xlu0 %323, %v302
      %v325 = vpop.permute.xlu0 %324
      %328 = vset.pattern.permute.xlu0 0
      %329 = vperm.xlu0 %328, %v303
      %v330 = vpop.permute.xlu0 %329
      %333 = vset.pattern.permute.xlu0 0
      %334 = vperm.xlu0 %333, %v304
      %v335 = vpop.permute.xlu0 %334
      %338 = vset.pattern.permute.xlu0 0
      %339 = vperm.xlu0 %338, %v305
      %v340 = vpop.permute.xlu0 %339
      %343 = vset.pattern.permute.xlu0 0
      %344 = vperm.xlu0 %343, %v306
      %v345 = vpop.permute.xlu0 %344
      %348 = vset.pattern.permute.xlu0 0
      %349 = vperm.xlu0 %348, %v307
      %v350 = vpop.permute.xlu0 %349
      %353 = vset.pattern.permute.xlu0 0
      %354 = vperm.xlu0 %353, %v308
      %v355 = vpop.permute.xlu0 %354
      %358 = vset.pattern.permute.xlu0 0
      %359 = vperm.xlu0 %358, %v309
      %v360 = vpop.permute.xlu0 %359
      %363 = vset.pattern.permute.xlu0 0
      %364 = vperm.xlu0 %363, %v310
      %v365 = vpop.permute.xlu0 %364
      %368 = vset.pattern.permute.xlu0 0
      %369 = vperm.xlu0 %368, %v311
      %v370 = vpop.permute.xlu0 %369
      %373 = vset.pattern.permute.xlu0 0
      %374 = vperm.xlu0 %373, %v312
      %v375 = vpop.permute.xlu0 %374
      %378 = vset.pattern.permute.xlu0 0
      %379 = vperm.xlu0 %378, %v313
      %v380 = vpop.permute.xlu0 %379
      %383 = vset.pattern.permute.xlu0 0
      %384 = vperm.xlu0 %383, %v314
      %v385 = vpop.permute.xlu0 %384
      %388 = vset.pattern.permute.xlu0 0
      %389 = vperm.xlu0 %388, %v315
      %v390 = vpop.permute.xlu0 %389
      %393 = vset.pattern.permute.xlu0 0
      %394 = vperm.xlu0 %393, %v316
      %v395 = vpop.permute.xlu0 %394
      %vm397 = vcmask 261120
      %v399 = vsel %vm397, %v293, 0
      %v402 = vsel %vm397, %v294, 0
      %v405 = vsel %vm397, %v295, 0
      %v408 = vsel %vm397, %v296, 0
      %v411 = vsel %vm397, %v297, 0
      %v414 = vsel %vm397, %v298, 0
      %v417 = vsel %vm397, %v299, 0
      %v420 = vsel %vm397, %v300, 0
      %422 = vmatprep.subr.bf16.mxu0 %v274
      %423 = vmatpush1.bf16.msra.mxu0 %v273
      %424 = vmatprep.subr.bf16.mxu0 %v276
      %425 = vmatpush1.bf16.msra.mxu0 %v275
      %426 = vmatprep.subr.bf16.mxu0 0
      %427 = vmatpush1.bf16.msra.mxu0 0
      %428 = vmatprep.subr.bf16.mxu0 0
      %429 = vmatpush1.bf16.msra.mxu0 0
      %430 = vmatprep.subr.bf16.mxu0 0
      %431 = vmatpush1.bf16.msra.mxu0 0
      %432 = vmatprep.subr.bf16.mxu0 0
      %433 = vmatpush1.bf16.msra.mxu0 0
      %434 = vmatprep.subr.bf16.mxu0 0
      %435 = vmatpush1.bf16.msra.mxu0 0
      %436 = vmatprep.subr.bf16.mxu0 0
      %437 = vmatpush1.bf16.msra.mxu0 0
      %438 = vmatprep.subr.bf16.mxu0 0
      %439 = vmatpush1.bf16.msra.mxu0 0
      %440 = vmatprep.subr.bf16.mxu0 0
      %441 = vmatpush1.bf16.msra.mxu0 0
      %442 = vmatprep.subr.bf16.mxu0 0
      %443 = vmatpush1.bf16.msra.mxu0 0
      %444 = vmatprep.subr.bf16.mxu0 0
      %445 = vmatpush1.bf16.msra.mxu0 0
      %446 = vmatprep.subr.bf16.mxu0 0
      %447 = vmatpush1.bf16.msra.mxu0 0
      %448 = vmatprep.subr.bf16.mxu0 0
      %449 = vmatpush1.bf16.msra.mxu0 0
      %450 = vmatprep.subr.bf16.mxu0 0
      %451 = vmatpush1.bf16.msra.mxu0 0
      %452 = vmatprep.subr.bf16.mxu0 0
      %453 = vmatpush1.bf16.msra.mxu0 0
      %454 = vmatprep.mubr.bf16.mxu0 0
      %455 = vmatmul.mubr.bf16.gmra.mrb[0].mxu0 %v399
      %v456 = vpop.f32.mrb[0].mxu0
      %v457 = vadd.f32 %v320, %v456
      %v458 = vpop.f32.mrb[0].mxu0
      %v459 = vadd.f32 %v320, %v458
      %v460 = vpop.f32.mrb[0].mxu0
      %v461 = vadd.f32 %v325, %v460
      %v462 = vpop.f32.mrb[0].mxu0
      %v463 = vadd.f32 %v325, %v462
      %464 = vmatprep.mubr.bf16.mxu0 0
      %465 = vmatmul.mubr.bf16.gmra.mrb[0].mxu0 %v402
      %v466 = vpop.f32.mrb[0].mxu0
      %v467 = vadd.f32 %v330, %v466
      %v468 = vpop.f32.mrb[0].mxu0
      %v469 = vadd.f32 %v330, %v468
      %v470 = vpop.f32.mrb[0].mxu0
      %v471 = vadd.f32 %v335, %v470
      %v472 = vpop.f32.mrb[0].mxu0
      %v473 = vadd.f32 %v335, %v472
      %474 = vmatprep.mubr.bf16.mxu0 0
      %475 = vmatmul.mubr.bf16.gmra.mrb[0].mxu0 %v405
      %v476 = vpop.f32.mrb[0].mxu0
      %v477 = vadd.f32 %v340, %v476
      %v478 = vpop.f32.mrb[0].mxu0
      %v479 = vadd.f32 %v340, %v478
      %v480 = vpop.f32.mrb[0].mxu0
      %v481 = vadd.f32 %v345, %v480
      %v482 = vpop.f32.mrb[0].mxu0
      %v483 = vadd.f32 %v345, %v482
      %484 = vmatprep.mubr.bf16.mxu0 0
      %485 = vmatmul.mubr.bf16.gmra.mrb[0].mxu0 %v408
      %v486 = vpop.f32.mrb[0].mxu0
      %v487 = vadd.f32 %v350, %v486
      %v488 = vpop.f32.mrb[0].mxu0
      %v489 = vadd.f32 %v350, %v488
      %v490 = vpop.f32.mrb[0].mxu0
      %v491 = vadd.f32 %v355, %v490
      %v492 = vpop.f32.mrb[0].mxu0
      %v493 = vadd.f32 %v355, %v492
      %494 = vmatprep.mubr.bf16.mxu0 0
      %495 = vmatmul.mubr.bf16.gmra.mrb[0].mxu0 %v411
      %v496 = vpop.f32.mrb[0].mxu0
      %v497 = vadd.f32 %v360, %v496
      %v498 = vpop.f32.mrb[0].mxu0
      %v499 = vadd.f32 %v360, %v498
      %v500 = vpop.f32.mrb[0].mxu0
      %v501 = vadd.f32 %v365, %v500
      %v502 = vpop.f32.mrb[0].mxu0
      %v503 = vadd.f32 %v365, %v502
      %504 = vmatprep.mubr.bf16.mxu0 0
      %505 = vmatmul.mubr.bf16.gmra.mrb[0].mxu0 %v414
      %v506 = vpop.f32.mrb[0].mxu0
      %v507 = vadd.f32 %v370, %v506
      %v508 = vpop.f32.mrb[0].mxu0
      %v509 = vadd.f32 %v370, %v508
      %v510 = vpop.f32.mrb[0].mxu0
      %v511 = vadd.f32 %v375, %v510
      %v512 = vpop.f32.mrb[0].mxu0
      %v513 = vadd.f32 %v375, %v512
      %514 = vmatprep.mubr.bf16.mxu0 0
      %515 = vmatmul.mubr.bf16.gmra.mrb[0].mxu0 %v417
      %v516 = vpop.f32.mrb[0].mxu0
      %v517 = vadd.f32 %v380, %v516
      %v518 = vpop.f32.mrb[0].mxu0
      %v519 = vadd.f32 %v380, %v518
      %v520 = vpop.f32.mrb[0].mxu0
      %v521 = vadd.f32 %v385, %v520
      %v522 = vpop.f32.mrb[0].mxu0
      %v523 = vadd.f32 %v385, %v522
      %524 = vmatprep.mubr.bf16.mxu0 0
      %525 = vmatmul.mubr.bf16.gmra.mrb[0].mxu0 %v420
      %v526 = vpop.f32.mrb[0].mxu0
      %v527 = vadd.f32 %v390, %v526
      %v528 = vpop.f32.mrb[0].mxu0
      %v529 = vadd.f32 %v390, %v528
      %v530 = vpop.f32.mrb[0].mxu0
      %v531 = vadd.f32 %v395, %v530
      %v532 = vpop.f32.mrb[0].mxu0
      %v533 = vadd.f32 %v395, %v532
      %534 = vdwg.mxu0
      %v535 = vmul.f32 %v457, 0.5
      %v536 = vmul.f32 %v459, 0.5
      %v537 = vmul.f32 %v461, 0.5
      %v538 = vmul.f32 %v463, 0.5
      %v539 = vmul.f32 %v467, 0.5
      %v540 = vmul.f32 %v469, 0.5
      %v541 = vmul.f32 %v471, 0.5
      %v542 = vmul.f32 %v473, 0.5
      %v543 = vmul.f32 %v477, 0.5
      %v544 = vmul.f32 %v479, 0.5
      %v545 = vmul.f32 %v481, 0.5
      %v546 = vmul.f32 %v483, 0.5
      %v547 = vmul.f32 %v487, 0.5
      %v548 = vmul.f32 %v489, 0.5
      %v549 = vmul.f32 %v491, 0.5
      %v550 = vmul.f32 %v493, 0.5
      %v551 = vmul.f32 %v497, 0.5
      %v552 = vmul.f32 %v499, 0.5
      %v553 = vmul.f32 %v501, 0.5
      %v554 = vmul.f32 %v503, 0.5
      %v555 = vmul.f32 %v507, 0.5
      %v556 = vmul.f32 %v509, 0.5
      %v557 = vmul.f32 %v511, 0.5
      %v558 = vmul.f32 %v513, 0.5
      %v559 = vmul.f32 %v517, 0.5
      %v560 = vmul.f32 %v519, 0.5
      %v561 = vmul.f32 %v521, 0.5
      %v562 = vmul.f32 %v523, 0.5
      %v563 = vmul.f32 %v527, 0.5
      %v564 = vmul.f32 %v529, 0.5
      %v565 = vmul.f32 %v531, 0.5
      %v566 = vmul.f32 %v533, 0.5
      %v567 = vmul.f32 %v457, 0.044715
      %v568 = vmul.f32 %v459, 0.044715
      %v569 = vmul.f32 %v461, 0.044715
      %v570 = vmul.f32 %v463, 0.044715
      %v571 = vmul.f32 %v467, 0.044715
      %v572 = vmul.f32 %v469, 0.044715
      %v573 = vmul.f32 %v471, 0.044715
      %v574 = vmul.f32 %v473, 0.044715
      %v575 = vmul.f32 %v477, 0.044715
      %v576 = vmul.f32 %v479, 0.044715
      %v577 = vmul.f32 %v481, 0.044715
      %v578 = vmul.f32 %v483, 0.044715
      %v579 = vmul.f32 %v487, 0.044715
      %v580 = vmul.f32 %v489, 0.044715
      %v581 = vmul.f32 %v491, 0.044715
      %v582 = vmul.f32 %v493, 0.044715
      %v583 = vmul.f32 %v497, 0.044715
      %v584 = vmul.f32 %v499, 0.044715
      %v585 = vmul.f32 %v501, 0.044715
      %v586 = vmul.f32 %v503, 0.044715
      %v587 = vmul.f32 %v507, 0.044715
      %v588 = vmul.f32 %v509, 0.044715
      %v589 = vmul.f32 %v511, 0.044715
      %v590 = vmul.f32 %v513, 0.044715
      %v591 = vmul.f32 %v517, 0.044715
      %v592 = vmul.f32 %v519, 0.044715
      %v593 = vmul.f32 %v521, 0.044715
      %v594 = vmul.f32 %v523, 0.044715
      %v595 = vmul.f32 %v527, 0.044715
      %v596 = vmul.f32 %v529, 0.044715
      %v597 = vmul.f32 %v531, 0.044715
      %v598 = vmul.f32 %v533, 0.044715
      %v599 = vmul.f32 %v567, %v457
      %v600 = vmul.f32 %v568, %v459
      %v601 = vmul.f32 %v569, %v461
      %v602 = vmul.f32 %v570, %v463
      %v603 = vmul.f32 %v571, %v467
      %v604 = vmul.f32 %v572, %v469
      %v605 = vmul.f32 %v573, %v471
      %v606 = vmul.f32 %v574, %v473
      %v607 = vmul.f32 %v575, %v477
      %v608 = vmul.f32 %v576, %v479
      %v609 = vmul.f32 %v577, %v481
      %v610 = vmul.f32 %v578, %v483
      %v611 = vmul.f32 %v579, %v487
      %v612 = vmul.f32 %v580, %v489
      %v613 = vmul.f32 %v581, %v491
      %v614 = vmul.f32 %v582, %v493
      %v615 = vmul.f32 %v583, %v497
      %v616 = vmul.f32 %v584, %v499
      %v617 = vmul.f32 %v585, %v501
      %v618 = vmul.f32 %v586, %v503
      %v619 = vmul.f32 %v587, %v507
      %v620 = vmul.f32 %v588, %v509
      %v621 = vmul.f32 %v589, %v511
      %v622 = vmul.f32 %v590, %v513
      %v623 = vmul.f32 %v591, %v517
      %v624 = vmul.f32 %v592, %v519
      %v625 = vmul.f32 %v593, %v521
      %v626 = vmul.f32 %v594, %v523
      %v627 = vmul.f32 %v595, %v527
      %v628 = vmul.f32 %v596, %v529
      %v629 = vmul.f32 %v597, %v531
      %v630 = vmul.f32 %v598, %v533
      %v631 = vmul.f32 %v599, %v457
      %v632 = vmul.f32 %v600, %v459
      %v633 = vmul.f32 %v601, %v461
      %v634 = vmul.f32 %v602, %v463
      %v635 = vmul.f32 %v603, %v467
      %v636 = vmul.f32 %v604, %v469
      %v637 = vmul.f32 %v605, %v471
      %v638 = vmul.f32 %v606, %v473
      %v639 = vmul.f32 %v607, %v477
      %v640 = vmul.f32 %v608, %v479
      %v641 = vmul.f32 %v609, %v481
      %v642 = vmul.f32 %v610, %v483
      %v643 = vmul.f32 %v611, %v487
      %v644 = vmul.f32 %v612, %v489
      %v645 = vmul.f32 %v613, %v491
      %v646 = vmul.f32 %v614, %v493
      %v647 = vmul.f32 %v615, %v497
      %v648 = vmul.f32 %v616, %v499
      %v649 = vmul.f32 %v617, %v501
      %v650 = vmul.f32 %v618, %v503
      %v651 = vmul.f32 %v619, %v507
      %v652 = vmul.f32 %v620, %v509
      %v653 = vmul.f32 %v621, %v511
      %v654 = vmul.f32 %v622, %v513
      %v655 = vmul.f32 %v623, %v517
      %v656 = vmul.f32 %v624, %v519
      %v657 = vmul.f32 %v625, %v521
      %v658 = vmul.f32 %v626, %v523
      %v659 = vmul.f32 %v627, %v527
      %v660 = vmul.f32 %v628, %v529
      %v661 = vmul.f32 %v629, %v531
      %v662 = vmul.f32 %v630, %v533
      %v663 = vadd.f32 %v457, %v631
      %v664 = vadd.f32 %v459, %v632
      %v665 = vadd.f32 %v461, %v633
      %v666 = vadd.f32 %v463, %v634
      %v667 = vadd.f32 %v467, %v635
      %v668 = vadd.f32 %v469, %v636
      %v669 = vadd.f32 %v471, %v637
      %v670 = vadd.f32 %v473, %v638
      %v671 = vadd.f32 %v477, %v639
      %v672 = vadd.f32 %v479, %v640
      %v673 = vadd.f32 %v481, %v641
      %v674 = vadd.f32 %v483, %v642
      %v675 = vadd.f32 %v487, %v643
      %v676 = vadd.f32 %v489, %v644
      %v677 = vadd.f32 %v491, %v645
      %v678 = vadd.f32 %v493, %v646
      %v679 = vadd.f32 %v497, %v647
      %v680 = vadd.f32 %v499, %v648
      %v681 = vadd.f32 %v501, %v649
      %v682 = vadd.f32 %v503, %v650
      %v683 = vadd.f32 %v507, %v651
      %v684 = vadd.f32 %v509, %v652
      %v685 = vadd.f32 %v511, %v653
      %v686 = vadd.f32 %v513, %v654
      %v687 = vadd.f32 %v517, %v655
      %v688 = vadd.f32 %v519, %v656
      %v689 = vadd.f32 %v521, %v657
      %v690 = vadd.f32 %v523, %v658
      %v691 = vadd.f32 %v527, %v659
      %v692 = vadd.f32 %v529, %v660
      %v693 = vadd.f32 %v531, %v661
      %v694 = vadd.f32 %v533, %v662
      %v695 = vmul.f32 %v663, 0.7978846
      %v696 = vmul.f32 %v664, 0.7978846
      %v697 = vmul.f32 %v665, 0.7978846
      %v698 = vmul.f32 %v666, 0.7978846
      %v699 = vmul.f32 %v667, 0.7978846
      %v700 = vmul.f32 %v668, 0.7978846
      %v701 = vmul.f32 %v669, 0.7978846
      %v702 = vmul.f32 %v670, 0.7978846
      %v703 = vmul.f32 %v671, 0.7978846
      %v704 = vmul.f32 %v672, 0.7978846
      %v705 = vmul.f32 %v673, 0.7978846
      %v706 = vmul.f32 %v674, 0.7978846
      %v707 = vmul.f32 %v675, 0.7978846
      %v708 = vmul.f32 %v676, 0.7978846
      %v709 = vmul.f32 %v677, 0.7978846
      %v710 = vmul.f32 %v678, 0.7978846
      %v711 = vmul.f32 %v679, 0.7978846
      %v712 = vmul.f32 %v680, 0.7978846
      %v713 = vmul.f32 %v681, 0.7978846
      %v714 = vmul.f32 %v682, 0.7978846
      %v715 = vmul.f32 %v683, 0.7978846
      %v716 = vmul.f32 %v684, 0.7978846
      %v717 = vmul.f32 %v685, 0.7978846
      %v718 = vmul.f32 %v686, 0.7978846
      %v719 = vmul.f32 %v687, 0.7978846
      %v720 = vmul.f32 %v688, 0.7978846
      %v721 = vmul.f32 %v689, 0.7978846
      %v722 = vmul.f32 %v690, 0.7978846
      %v723 = vmul.f32 %v691, 0.7978846
      %v724 = vmul.f32 %v692, 0.7978846
      %v725 = vmul.f32 %v693, 0.7978846
      %v726 = vmul.f32 %v694, 0.7978846
      %v727 = vtanh.pop %v695
      %v728 = vtanh.pop %v696
      %v729 = vtanh.pop %v697
      %v730 = vtanh.pop %v698
      %v731 = vtanh.pop %v699
      %v732 = vtanh.pop %v700
      %v733 = vtanh.pop %v701
      %v734 = vtanh.pop %v702
      %v735 = vtanh.pop %v703
      %v736 = vtanh.pop %v704
      %v737 = vtanh.pop %v705
      %v738 = vtanh.pop %v706
      %v739 = vtanh.pop %v707
      %v740 = vtanh.pop %v708
      %v741 = vtanh.pop %v709
      %v742 = vtanh.pop %v710
      %v743 = vtanh.pop %v711
      %v744 = vtanh.pop %v712
      %v745 = vtanh.pop %v713
      %v746 = vtanh.pop %v714
      %v747 = vtanh.pop %v715
      %v748 = vtanh.pop %v716
      %v749 = vtanh.pop %v717
      %v750 = vtanh.pop %v718
      %v751 = vtanh.pop %v719
      %v752 = vtanh.pop %v720
      %v753 = vtanh.pop %v721
      %v754 = vtanh.pop %v722
      %v755 = vtanh.pop %v723
      %v756 = vtanh.pop %v724
      %v757 = vtanh.pop %v725
      %v758 = vtanh.pop %v726
      %v759 = vadd.f32 %v727, 1.0
      %v760 = vadd.f32 %v728, 1.0
      %v761 = vadd.f32 %v729, 1.0
      %v762 = vadd.f32 %v730, 1.0
      %v763 = vadd.f32 %v731, 1.0
      %v764 = vadd.f32 %v732, 1.0
      %v765 = vadd.f32 %v733, 1.0
      %v766 = vadd.f32 %v734, 1.0
      %v767 = vadd.f32 %v735, 1.0
      %v768 = vadd.f32 %v736, 1.0
      %v769 = vadd.f32 %v737, 1.0
      %v770 = vadd.f32 %v738, 1.0
      %v771 = vadd.f32 %v739, 1.0
      %v772 = vadd.f32 %v740, 1.0
      %v773 = vadd.f32 %v741, 1.0
      %v774 = vadd.f32 %v742, 1.0
      %v775 = vadd.f32 %v743, 1.0
      %v776 = vadd.f32 %v744, 1.0
      %v777 = vadd.f32 %v745, 1.0
      %v778 = vadd.f32 %v746, 1.0
      %v779 = vadd.f32 %v747, 1.0
      %v780 = vadd.f32 %v748, 1.0
      %v781 = vadd.f32 %v749, 1.0
      %v782 = vadd.f32 %v750, 1.0
      %v783 = vadd.f32 %v751, 1.0
      %v784 = vadd.f32 %v752, 1.0
      %v785 = vadd.f32 %v753, 1.0
      %v786 = vadd.f32 %v754, 1.0
      %v787 = vadd.f32 %v755, 1.0
      %v788 = vadd.f32 %v756, 1.0
      %v789 = vadd.f32 %v757, 1.0
      %v790 = vadd.f32 %v758, 1.0
      %v791 = vmul.f32 %v535, %v759
      %v792 = vmul.f32 %v536, %v760
      %v793 = vmul.f32 %v537, %v761
      %v794 = vmul.f32 %v538, %v762
      %v795 = vmul.f32 %v539, %v763
      %v796 = vmul.f32 %v540, %v764
      %v797 = vmul.f32 %v541, %v765
      %v798 = vmul.f32 %v542, %v766
      %v799 = vmul.f32 %v543, %v767
      %v800 = vmul.f32 %v544, %v768
      %v801 = vmul.f32 %v545, %v769
      %v802 = vmul.f32 %v546, %v770
      %v803 = vmul.f32 %v547, %v771
      %v804 = vmul.f32 %v548, %v772
      %v805 = vmul.f32 %v549, %v773
      %v806 = vmul.f32 %v550, %v774
      %v807 = vmul.f32 %v551, %v775
      %v808 = vmul.f32 %v552, %v776
      %v809 = vmul.f32 %v553, %v777
      %v810 = vmul.f32 %v554, %v778
      %v811 = vmul.f32 %v555, %v779
      %v812 = vmul.f32 %v556, %v780
      %v813 = vmul.f32 %v557, %v781
      %v814 = vmul.f32 %v558, %v782
      %v815 = vmul.f32 %v559, %v783
      %v816 = vmul.f32 %v560, %v784
      %v817 = vmul.f32 %v561, %v785
      %v818 = vmul.f32 %v562, %v786
      %v819 = vmul.f32 %v563, %v787
      %v820 = vmul.f32 %v564, %v788
      %v821 = vmul.f32 %v565, %v789
      %v822 = vmul.f32 %v566, %v790
      %v823 = vld [vmem:[%s3] sm:$0x1]
      %v824 = vpack.c.bf16 %v823, %v823
      %v825 = vpack.c.bf16 %v793, %v791
      %v826 = vpack.c.bf16 %v794, %v792
      %v827 = vpack.c.bf16 %v797, %v795
      %v828 = vpack.c.bf16 %v798, %v796
      %v829 = vpack.c.bf16 %v801, %v799
      %v830 = vpack.c.bf16 %v802, %v800
      %v831 = vpack.c.bf16 %v805, %v803
      %v832 = vpack.c.bf16 %v806, %v804
      %v833 = vpack.c.bf16 %v809, %v807
      %v834 = vpack.c.bf16 %v810, %v808
      %v835 = vpack.c.bf16 %v813, %v811
      %v836 = vpack.c.bf16 %v814, %v812
      %v837 = vpack.c.bf16 %v817, %v815
      %v838 = vpack.c.bf16 %v818, %v816
      %v839 = vpack.c.bf16 %v821, %v819
      %v840 = vpack.c.bf16 %v822, %v820
      %v841 = vld [vmem:[#allocation2] sm:$0x1]
      %843 = vset.pattern.permute.xlu0 0
      %844 = vperm.xlu0 %843, %v841
      %v845 = vpop.permute.xlu0 %844
      %v847 = vlaneseq
      %v848 = vshrl.u32 %v847, 7
      %v849 = vsub.s32 0, %v848
      %v850 = vrot.slane %v845, %v849
      %851 = vmatprep.subr.bf16.mxu0 %v826
      %852 = vmatpush1.bf16.msra.mxu0 %v825
      %853 = vmatprep.subr.bf16.mxu0 %v828
      %854 = vmatpush1.bf16.msra.mxu0 %v827
      %855 = vmatprep.subr.bf16.mxu0 %v830
      %856 = vmatpush1.bf16.msra.mxu0 %v829
      %857 = vmatprep.subr.bf16.mxu0 %v832
      %858 = vmatpush1.bf16.msra.mxu0 %v831
      %859 = vmatprep.subr.bf16.mxu0 %v834
      %860 = vmatpush1.bf16.msra.mxu0 %v833
      %861 = vmatprep.subr.bf16.mxu0 %v836
      %862 = vmatpush1.bf16.msra.mxu0 %v835
      %863 = vmatprep.subr.bf16.mxu0 %v838
      %864 = vmatpush1.bf16.msra.mxu0 %v837
      %865 = vmatprep.subr.bf16.mxu0 %v840
      %866 = vmatpush1.bf16.msra.mxu0 %v839
      %867 = vmatprep.subr.bf16.mxu0 0
      %868 = vmatpush1.bf16.msra.mxu0 0
      %869 = vmatprep.subr.bf16.mxu0 0
      %870 = vmatpush1.bf16.msra.mxu0 0
      %871 = vmatprep.subr.bf16.mxu0 0
      %872 = vmatpush1.bf16.msra.mxu0 0
      %873 = vmatprep.subr.bf16.mxu0 0
      %874 = vmatpush1.bf16.msra.mxu0 0
      %875 = vmatprep.subr.bf16.mxu0 0
      %876 = vmatpush1.bf16.msra.mxu0 0
      %877 = vmatprep.subr.bf16.mxu0 0
      %878 = vmatpush1.bf16.msra.mxu0 0
      %879 = vmatprep.subr.bf16.mxu0 0
      %880 = vmatpush1.bf16.msra.mxu0 0
      %881 = vmatprep.subr.bf16.mxu0 0
      %882 = vmatpush1.bf16.msra.mxu0 0
      %883 = vmatprep.mubr.bf16.mxu0 0
      %884 = vmatmul.mubr.bf16.gmra.mrb[0].mxu0 %v824
      %v885 = vpop.f32.mrb[0].mxu0
      %v886 = vadd.f32 %v850, %v885
      %v887 = vpop.f32.mrb[0].mxu0
      %v888 = vadd.f32 %v850, %v887
      %v889 = vpop.f32.mrb[0].mxu0
      %v890 = vpop.f32.mrb[0].mxu0
      %891 = vdwg.mxu0
      %v894 = vcombine.low %v886, %v888
      %v896 = vunpack.c.l.s4 1966171168
      %v897 = vunpack.c.0.s8 %v896
      %v898 = vlaneseq
      %v899 = vshrl.u32 %v898, 7
      %v900 = vsub.s32 %v897, %v899
      %v901 = vrot.slane %v894, %v900
      %v903 = vunpack.c.l.s4 1966171168
      %v904 = vunpack.c.0.s8 %v903
      %v905 = vlaneseq
      %v906 = vshrl.u32 %v905, 7
      %v907 = vsub.s32 %v904, %v906
      %v908 = vrot.slane %v901, %v907
      %v910 = vlaneseq
      %vm911 = vcmp.ge.s32.totalorder %v910, 0
      %vm912 = vcmp.lt.s32.totalorder %v910, 256
      %vm913 = vmand %vm911, %vm912
      %914 = vst.msk [vmem:[%s262] sm:$0x3] %vm913, %v908
      %s915 = smul.u32 2, %s23
      %p916 = scmp.lt.s32.totalorder %s22, 1
      %s917 = scalar_select %p916, %s22, 1
      %p918 = scmp.lt.s32.totalorder %s915, 1
      %s919 = scalar_select %p918, %s915, 1
      %s920 = smul.addr %s917, 2
      %s921 = sadd.s32 %s919, %s920
      %s922 = scalar_lea.vmem %s5, %s921
      // Predicated region
      $region41: #{_lambda_.19} parent=39 // pred_check
        %p923 = pneg %p162
      $region42: #{_lambda_.19} parent=39 // pred_check_branch
        %925 = sbr.rel (%p923) target = $region44
      $region43: #{_lambda_.19} parent=39 // pred_region
        %s926 = smul.u32 2, %s23
      $region44: #{_lambda_.19} parent=39 // pred_fallthru
        _
    $region40: #{_lambda_.19} parent=5 // pred_fallthru
      _
    %p927 = scmp.le.s32.totalorder 2, %s13
    // Predicated region
    $region45: #{_lambda_.19} parent=5 // pred_check
      %p928 = pneg %p927
    $region46: #{_lambda_.19} parent=5 // pred_check_branch
      %930 = sbr.rel (%p928) target = $region48
    $region47: #{_lambda_.19} parent=5 // pred_region
      %s931 = ssub.s32 %s13, 2
      // Predicated region
      $region49: #{_lambda_.19} parent=47 // pred_check
        %p932 = pneg %p168
      $region50: #{_lambda_.19} parent=47 // pred_check_branch
        %934 = sbr.rel (%p932) target = $region52
      $region51: #{_lambda_.19} parent=47 // pred_region
        %s935 = smul.u32 2, %s25
        %p936 = scmp.lt.s32.totalorder %s24, 1
        %s937 = scalar_select %p936, %s24, 1
        %p938 = scmp.lt.s32.totalorder %s935, 1
        %s939 = scalar_select %p938, %s935, 1
        %s940 = smul.addr %s937, 2
        %s941 = sadd.s32 %s939, %s940
        %s942 = scalar_lea.vmem %s5, %s941
      $region52: #{_lambda_.19} parent=47 // pred_fallthru
        _
    $region48: #{_lambda_.19} parent=5 // pred_fallthru
      _
  $region6: #{_lambda_.19} parent=0 // loop_footer
    %s17 = sadd.s32 1, %s13
  $region7: #{_lambda_.19} parent=0 // loop_footer_branch
    %12 = sbr.rel target = $region3
  $region8: #{_lambda_.19} parent=0 // loop_exit
    _

</llo_original>
